<compile_context>
chip_gen: v6e
topology: v6e:2x2x1
jax: 0.10.0
libtpu: 0.0.40
codegen_flags: <defaults>
</compile_context>

<pallas_src>
import functools

import jax
import jax.numpy as jnp
from jax.experimental import pallas as pl
from jax.experimental.pallas import tpu as pltpu

D_MODEL = 768      # matches qa_outputs = nn.Linear(768, 2) in the reference
D_FF = 512
N_EXPERTS = 4
N_LAYERS = 2
LN_EPS = 1e-5
NPAD = 128         # lane-padded width for router / qa-head output columns


def _round_up(x, m):
    return ((x + m - 1) // m) * m


def _vmem_limit_bytes():
    # Chip-aware scoped-VMEM cap: ~100 MiB on v5e/v6e (128 MiB physical),
    # ~48 MiB on v7x (64 MiB physical).
    try:
        phys = pltpu.get_tpu_info().vmem_capacity_bytes
        return int(min(100 * 1024 * 1024,
                       max(phys - 16 * 1024 * 1024, 32 * 1024 * 1024)))
    except Exception:
        return 48 * 1024 * 1024


_COMPILER_PARAMS = pltpu.CompilerParams(
    dimension_semantics=("parallel",),
    vmem_limit_bytes=_vmem_limit_bytes(),
)


def _layer_norm(x, gamma, beta):
    mu = jnp.mean(x, axis=-1, keepdims=True)
    var = jnp.mean((x - mu) ** 2, axis=-1, keepdims=True)
    return (x - mu) * jax.lax.rsqrt(var + LN_EPS) * gamma + beta


def _valid_mask(nvalid_ref, tile_t):
    base = pl.program_id(0) * tile_t
    rows = jax.lax.broadcasted_iota(jnp.int32, (tile_t, 1), 0) + base
    return (rows < nvalid_ref[0]).astype(jnp.float32)                  # [t, 1]


def _pack_stats(counts_row, psum_row):
    # Lane-dense (8, NPAD) slab per tile: row 0 = expert counts, row 1 = prob sums.
    row_id = jax.lax.broadcasted_iota(jnp.int32, (8, NPAD), 0)
    return (jnp.where(row_id == 0, counts_row, 0.0)
            + jnp.where(row_id == 1, psum_row, 0.0))


# ---------------------------------------------------------------------------
# Kernel 1: pre-norm + router (per layer).
# ---------------------------------------------------------------------------
def router_kernel(nvalid_ref, x_ref, lng_ref, lnb_ref, wr_ref, br_ref,
                  z_ref, route_ref, gate_ref, stats_ref):
    tile_t = x_ref.shape[0]
    valid = _valid_mask(nvalid_ref, tile_t)
    x = x_ref[...].astype(jnp.float32)
    z = _layer_norm(x, lng_ref[...], lnb_ref[...])
    z_bf = z.astype(jnp.bfloat16)

    # bf16 router matmul with f32 accumulation; padded logit columns get a -1e30
    # bias which is kept in f32 so exp() is exactly 0 for them.
    logits = jnp.dot(z_bf, wr_ref[...],
                     preferred_element_type=jnp.float32) + br_ref[...]    # [t, NPAD]
    m = jnp.max(logits, axis=-1, keepdims=True)
    e = jnp.exp(logits - m)
    p = e / jnp.sum(e, axis=-1, keepdims=True)                            # [t, NPAD]

    p_max = jnp.max(p, axis=-1, keepdims=True)                            # [t, 1]
    idx = jax.lax.broadcasted_iota(jnp.int32, (tile_t, NPAD), 1)
    # argmax (first occurrence on ties); padded columns have p == 0 < p_max.
    route = jnp.min(jnp.where(p == p_max, idx, NPAD), axis=-1, keepdims=True)
    onehot = (idx == route).astype(jnp.float32)                           # [t, NPAD]

    z_ref[...] = z_bf
    route_ref[...] = route
    gate_ref[...] = p_max * valid          # route_prob_max folded with padding mask
    stats_ref[0] = _pack_stats(jnp.sum(onehot * valid, axis=0, keepdims=True),
                               jnp.sum(p * valid, axis=0, keepdims=True))


# ---------------------------------------------------------------------------
# Kernel 2: grouped top-1 expert FFN (per layer).  block_expert (scalar prefetch)
# selects the expert weight block per token block via the index_maps.
# ---------------------------------------------------------------------------
def ffn_kernel(block_expert_ref, z_ref, gate_ref,
               w1_ref, b1_ref, w2_ref, b2_ref, y_ref):
    del block_expert_ref  # consumed by the weight index_maps (expert selection)
    z = z_ref[...]                                                    # [blk, D] bf16
    h = jnp.dot(z, w1_ref[0], preferred_element_type=jnp.float32) + b1_ref[0]
    h = jnp.maximum(h, 0.0)
    y = jnp.dot(h.astype(jnp.bfloat16), w2_ref[0],
                preferred_element_type=jnp.float32) + b2_ref[0]       # [blk, D] f32
    # gate is a sublane-shaped [blk, 1] column (no lane extraction needed).
    y_ref[...] = (gate_ref[...] * y).astype(y_ref.dtype)


# ---------------------------------------------------------------------------
# Kernel 3: last-layer residual + final LayerNorm + qa_outputs head (fused).
# ---------------------------------------------------------------------------
def combine_head_kernel(x_ref, y_ref, ng_ref, nb_ref, wq_ref, bq_ref, logits_ref):
    xf = x_ref[...].astype(jnp.float32) + y_ref[...].astype(jnp.float32)
    zf = _layer_norm(xf, ng_ref[...], nb_ref[...])
    logits_ref[...] = jnp.dot(zf.astype(jnp.bfloat16), wq_ref[...],
                              preferred_element_type=jnp.float32) + bq_ref[...]


# ---------------------------------------------------------------------------
# pallas_call wrappers
# ---------------------------------------------------------------------------
def _resident_spec(shape):
    zeros = (0,) * len(shape)
    return pl.BlockSpec(shape, lambda i, _z=zeros: _z)


def router_forward(x, n_valid, params, tile_t):
    T_pad, _ = x.shape
    num_tiles = T_pad // tile_t
    in_specs = [
        pl.BlockSpec(memory_space=pltpu.MemorySpace.SMEM),             # n_valid
        pl.BlockSpec((tile_t, D_MODEL), lambda i: (i, 0)),             # x tile (bf16)
        _resident_spec((1, D_MODEL)),                                  # ln_g
        _resident_spec((1, D_MODEL)),                                  # ln_b
        _resident_spec((D_MODEL, NPAD)),                               # w_r (bf16, padded)
        _resident_spec((1, NPAD)),                                     # b_r (f32, padded)
    ]
    out_shape = (
        jax.ShapeDtypeStruct((T_pad, D_MODEL), jnp.bfloat16),          # z = LN(x)
        jax.ShapeDtypeStruct((T_pad, 1), jnp.int32),                   # top-1 expert
        jax.ShapeDtypeStruct((T_pad, 1), jnp.float32),                 # gate = p_max*valid
        jax.ShapeDtypeStruct((num_tiles, 8, NPAD), jnp.float32),       # per-tile stats
    )
    out_specs = (
        pl.BlockSpec((tile_t, D_MODEL), lambda i: (i, 0)),
        pl.BlockSpec((tile_t, 1), lambda i: (i, 0)),
        pl.BlockSpec((tile_t, 1), lambda i: (i, 0)),
        pl.BlockSpec((1, 8, NPAD), lambda i: (i, 0, 0)),
    )
    return pl.pallas_call(
        router_kernel,
        grid=(num_tiles,),
        in_specs=in_specs,
        out_specs=out_specs,
        out_shape=out_shape,
        compiler_params=_COMPILER_PARAMS,
    )(n_valid, x, params['ln_g'], params['ln_b'], params['w_r'], params['b_r'])


def ffn_forward(block_expert, z_grouped, gate_grouped, params, blk):
    T_ffn = z_grouped.shape[0]
    n_blocks = T_ffn // blk
    grid_spec = pltpu.PrefetchScalarGridSpec(
        num_scalar_prefetch=1,                                          # block_expert
        grid=(n_blocks,),
        in_specs=[
            pl.BlockSpec((blk, D_MODEL), lambda b, be: (b, 0)),             # z block
            pl.BlockSpec((blk, 1), lambda b, be: (b, 0)),                   # gate block
            pl.BlockSpec((1, D_MODEL, D_FF), lambda b, be: (be[b], 0, 0)),  # w1[expert]
            pl.BlockSpec((1, 1, D_FF), lambda b, be: (be[b], 0, 0)),        # b1[expert]
            pl.BlockSpec((1, D_FF, D_MODEL), lambda b, be: (be[b], 0, 0)),  # w2[expert]
            pl.BlockSpec((1, 1, D_MODEL), lambda b, be: (be[b], 0, 0)),     # b2[expert]
        ],
        out_specs=pl.BlockSpec((blk, D_MODEL), lambda b, be: (b, 0)),
    )
    return pl.pallas_call(
        ffn_kernel,
        grid_spec=grid_spec,
        out_shape=jax.ShapeDtypeStruct((T_ffn, D_MODEL), jnp.bfloat16),
        compiler_params=_COMPILER_PARAMS,
    )(block_expert, z_grouped, gate_grouped,
      params['w1'], params['b1'], params['w2'], params['b2'])


def combine_head_forward(x, y, head, tile_t):
    T_pad = x.shape[0]
    num_tiles = T_pad // tile_t
    in_specs = [
        pl.BlockSpec((tile_t, D_MODEL), lambda i: (i, 0)),             # x (bf16)
        pl.BlockSpec((tile_t, D_MODEL), lambda i: (i, 0)),             # gated FFN y (bf16)
        _resident_spec((1, D_MODEL)),                                  # norm_g
        _resident_spec((1, D_MODEL)),                                  # norm_b
        _resident_spec((D_MODEL, NPAD)),                               # wq (bf16, padded)
        _resident_spec((1, NPAD)),                                     # bq (f32, padded)
    ]
    return pl.pallas_call(
        combine_head_kernel,
        grid=(num_tiles,),
        in_specs=in_specs,
        out_specs=pl.BlockSpec((tile_t, NPAD), lambda i: (i, 0)),
        out_shape=jax.ShapeDtypeStruct((T_pad, NPAD), jnp.float32),
        compiler_params=_COMPILER_PARAMS,
    )(x, y, head['norm_g'], head['norm_b'], head['wq'], head['bq'])


# ---------------------------------------------------------------------------
# JAX-side dispatch plan: block-padded, expert-sorted layout for the grouped FFN.
# ---------------------------------------------------------------------------
def _dispatch_plan(route, blk, n_blocks):
    """route: [T_pad] int32 top-1 expert per token.
    Returns dest [T_pad] (grouped-layout row of each token), src [T_ffn]
    (source token of each grouped row; filler rows point at token 0 and are
    never gathered back), block_expert [n_blocks] (expert owning each block)."""
    T_pad = route.shape[0]
    T_ffn = n_blocks * blk
    route = jnp.clip(route, 0, N_EXPERTS - 1)
    eids = jnp.arange(N_EXPERTS, dtype=jnp.int32)
    onehot = (route[:, None] == eids[None, :]).astype(jnp.int32)       # [T_pad, E]
    counts = jnp.sum(onehot, axis=0)                                   # [E]
    rank = jnp.take_along_axis(jnp.cumsum(onehot, axis=0) - 1,
                               route[:, None], axis=1)[:, 0]           # [T_pad]
    padded = ((counts + blk - 1) // blk) * blk                         # per-expert padded
    ends = jnp.cumsum(padded)
    starts = ends - padded
    dest = starts[route] + rank                                        # unique, < T_ffn
    block_starts = jnp.arange(n_blocks, dtype=jnp.int32) * blk
    block_expert = jnp.minimum(
        jnp.sum((block_starts[:, None] >= ends[None, :]).astype(jnp.int32), axis=1),
        N_EXPERTS - 1).astype(jnp.int32)
    src = jnp.zeros((T_ffn,), jnp.int32).at[dest].set(
        jnp.arange(T_pad, dtype=jnp.int32))
    return dest, src, block_expert


# ---------------------------------------------------------------------------
# Plain-JAX glue: parameter init, CE loss with ignore_index, full forward.
# ---------------------------------------------------------------------------
def init_params(key):
    keys = jax.random.split(key, N_LAYERS + 1)
    layers = []
    for l in range(N_LAYERS):
        k = jax.random.split(keys[l], 3)
        w_r = jnp.zeros((D_MODEL, NPAD), jnp.float32)
        w_r = w_r.at[:, :N_EXPERTS].set(
            0.02 * jax.random.normal(k[0], (D_MODEL, N_EXPERTS), jnp.float32))
        b_r = jnp.full((1, NPAD), -1e30, jnp.float32)
        b_r = b_r.at[:, :N_EXPERTS].set(0.0)
        layers.append(dict(
            ln_g=jnp.ones((1, D_MODEL), jnp.float32),
            ln_b=jnp.zeros((1, D_MODEL), jnp.float32),
            w_r=w_r.astype(jnp.bfloat16),
            b_r=b_r,
            w1=(0.02 * jax.random.normal(
                k[1], (N_EXPERTS, D_MODEL, D_FF), jnp.float32)).astype(jnp.bfloat16),
            b1=jnp.zeros((N_EXPERTS, 1, D_FF), jnp.float32),
            w2=(0.02 * jax.random.normal(
                k[2], (N_EXPERTS, D_FF, D_MODEL), jnp.float32)).astype(jnp.bfloat16),
            b2=jnp.zeros((N_EXPERTS, 1, D_MODEL), jnp.float32),
        ))
    wq = jnp.zeros((D_MODEL, NPAD), jnp.float32)
    wq = wq.at[:, :2].set(0.02 * jax.random.normal(keys[-1], (D_MODEL, 2), jnp.float32))
    head = dict(
        norm_g=jnp.ones((1, D_MODEL), jnp.float32),
        norm_b=jnp.zeros((1, D_MODEL), jnp.float32),
        wq=wq.astype(jnp.bfloat16),
        bq=jnp.zeros((1, NPAD), jnp.float32),
    )
    return layers, head


def cross_entropy_ignore(logits, targets, ignore_index):
    # logits [B, C], targets [B]; mimics nn.CrossEntropyLoss(ignore_index=C)
    logp = jax.nn.log_softmax(logits, axis=-1)
    valid = (targets != ignore_index)
    t = jnp.clip(targets, 0, logits.shape[-1] - 1)
    nll = -jnp.take_along_axis(logp, t[:, None], axis=-1)[:, 0]
    nll = jnp.where(valid, nll, 0.0)
    denom = jnp.maximum(jnp.sum(valid.astype(jnp.float32)), 1.0)
    return jnp.sum(nll) / denom


def switch_transformer_forward(hidden_states, attention_mask,
                               start_positions, end_positions,
                               layer_params, head_params,
                               load_balancing_loss_coef=0.01):
    del attention_mask  # only used by the (omitted) attention sub-block
    B, S, D = hidden_states.shape
    T = B * S

    # Token tiling: 512-row tiles for large T (amortize per-grid-step overhead),
    # and >= 2 tiles for small T so the "parallel" grid axis maps onto both
    # TensorCores on v7x.
    if T >= 1024:
        tile_t = 512
    else:
        tile_t = max(8, _round_up(-(-T // 2), 8))
    T_pad = _round_up(T, tile_t)
    blk = tile_t                                       # grouped-FFN block size
    n_blocks = T_pad // blk + N_EXPERTS                # static bound incl. group padding
    T_ffn = n_blocks * blk

    x = hidden_states.reshape(T, D).astype(jnp.bfloat16)   # bf16 activation stream
    if T_pad != T:
        x = jnp.pad(x, ((0, T_pad - T), (0, 0)))
    n_valid = jnp.array([T], jnp.int32)

    counts, route_prob = [], []
    logits_pad = None
    n_layers = len(layer_params)
    for li, lp in enumerate(layer_params):
        z_bf, route, gate, stats = router_forward(x, n_valid, lp, tile_t)
        counts.append(stats[:, 0, :N_EXPERTS].sum(axis=0))      # [E]
        route_prob.append(stats[:, 1, :N_EXPERTS].sum(axis=0))  # [E]
        # n_dropped is identically 0 (no capacity-based token dropping)

        dest, src, block_expert = _dispatch_plan(route[:, 0], blk, n_blocks)
        z_grouped = jnp.take(z_bf, src, axis=0)                 # [T_ffn, D] bf16
        gate_grouped = jnp.take(gate, src, axis=0)              # [T_ffn, 1]
        y_grouped = ffn_forward(block_expert, z_grouped, gate_grouped, lp, blk)
        y = jnp.take(y_grouped, dest, axis=0)                   # [T_pad, D] bf16 (gated)

        if li < n_layers - 1:
            x = (x.astype(jnp.float32) + y.astype(jnp.float32)).astype(jnp.bfloat16)
        else:
            # Last layer: fuse residual + final LayerNorm + qa_outputs head.
            logits_pad = combine_head_forward(x, y, head_params, tile_t)

    logits = logits_pad[:T, :2].reshape(B, S, 2)
    start_logits = logits[..., 0]
    end_logits = logits[..., 1]

    loss = None
    if start_positions is not None and end_positions is not None:
        ignored_index = start_logits.shape[1]
        sp = jnp.clip(start_positions, 0, ignored_index)
        ep = jnp.clip(end_positions, 0, ignored_index)
        start_loss = cross_entropy_ignore(start_logits, sp, ignored_index)
        end_loss = cross_entropy_ignore(end_logits, ep, ignored_index)
        loss = (start_loss + end_loss) / 2.0

    counts = jnp.stack(counts)            # [L, E]
    route_prob = jnp.stack(route_prob)    # [L, E]
    total = jnp.sum(counts, axis=-1, keepdims=True)
    route_frac = counts / total
    route_prob = route_prob / total
    load_balancing_loss = N_EXPERTS * jnp.sum(route_frac * route_prob)
    loss = (load_balancing_loss if loss is None
            else loss + load_balancing_loss_coef * load_balancing_loss)
    return start_logits, end_logits, loss


if __name__ == "__main__":
    key = jax.random.PRNGKey(0)
    k_x, k_p, k_sp, k_ep = jax.random.split(key, 4)

    B, S = 2, 8
    hidden_states = jax.random.normal(k_x, (B, S, D_MODEL), jnp.float32)
    attention_mask = jnp.ones((B, S), jnp.int32)
    start_positions = jax.random.randint(k_sp, (B,), 0, S)
    end_positions = jax.random.randint(k_ep, (B,), 0, S)

    layer_params, head_params = init_params(k_p)

    fwd = jax.jit(functools.partial(switch_transformer_forward,
                                    load_balancing_loss_coef=0.01))
    start_logits, end_logits, loss = fwd(
        hidden_states, attention_mask, start_positions, end_positions,
        layer_params, head_params)

    jax.block_until_ready((start_logits, end_logits, loss))
    assert start_logits.shape == (B, S) and end_logits.shape == (B, S)
    assert loss.shape == ()
    assert bool(jnp.isfinite(loss))
    print("KERNEL_OK")
</pallas_src>

<mosaic_0001>
module attributes {stable_mosaic.version = 11 : i64} {
  func.func @router_kernel(%arg0: i32, %arg1: memref<1xi32, #tpu.memory_space<smem>>, %arg2: memref<8x768xbf16, #tpu.memory_space<vmem>>, %arg3: memref<1x768xf32, #tpu.memory_space<vmem>>, %arg4: memref<1x768xf32, #tpu.memory_space<vmem>>, %arg5: memref<768x128xbf16, #tpu.memory_space<vmem>>, %arg6: memref<1x128xf32, #tpu.memory_space<vmem>>, %arg7: memref<8x768xbf16, #tpu.memory_space<vmem>>, %arg8: memref<8x1xi32, #tpu.memory_space<vmem>>, %arg9: memref<8x1xf32, #tpu.memory_space<vmem>>, %arg10: memref<1x8x128xf32, #tpu.memory_space<vmem>>) attributes {dimension_semantics = [#tpu.dimension_semantics<parallel>], iteration_bounds = array<i64: 2>, scalar_prefetch = 0 : i64, scratch_operands = 0 : i64, tpu.core_type = #tpu.core_type<tc>, window_params = [{transform_indices = @transform_0, window_bounds = array<i64: 1>}, {transform_indices = @transform_1, window_bounds = array<i64: 8, 768>}, {pipeline_mode = #tpu.pipeline_mode<synchronous>, transform_indices = @transform_2, window_bounds = array<i64: 1, 768>}, {pipeline_mode = #tpu.pipeline_mode<synchronous>, transform_indices = @transform_3, window_bounds = array<i64: 1, 768>}, {pipeline_mode = #tpu.pipeline_mode<synchronous>, transform_indices = @transform_4, window_bounds = array<i64: 768, 128>}, {pipeline_mode = #tpu.pipeline_mode<synchronous>, transform_indices = @transform_5, window_bounds = array<i64: 1, 128>}, {transform_indices = @transform_6, window_bounds = array<i64: 8, 768>}, {transform_indices = @transform_7, window_bounds = array<i64: 8, 1>}, {transform_indices = @transform_8, window_bounds = array<i64: 8, 1>}, {transform_indices = @transform_9, window_bounds = array<i64: 1, 8, 128>}]} {
    %c8_i32 = arith.constant 8 : i32
    %0 = arith.muli %arg0, %c8_i32 : i32
    %1 = tpu.iota {dimensions = array<i32: 0>} : vector<8x1xi32>
    %2 = vector.broadcast %0 : i32 to vector<8x1xi32>
    %3 = arith.addi %1, %2 : vector<8x1xi32>
    %c0 = arith.constant 0 : index
    %4 = memref.load %arg1[%c0] : memref<1xi32, #tpu.memory_space<smem>>
    %5 = vector.broadcast %4 : i32 to vector<8x1xi32>
    %6 = arith.cmpi slt, %3, %5 : vector<8x1xi32>
    %7 = arith.extui %6 : vector<8x1xi1> to vector<8x1xi32>
    %8 = arith.sitofp %7 : vector<8x1xi32> to vector<8x1xf32>
    %c0_0 = arith.constant 0 : index
    %c0_1 = arith.constant 0 : index
    %9 = vector.load %arg2[%c0_0, %c0_1] : memref<8x768xbf16, #tpu.memory_space<vmem>>, vector<8x768xbf16>
    %10 = arith.extf %9 : vector<8x768xbf16> to vector<8x768xf32>
    %c0_2 = arith.constant 0 : index
    %c0_3 = arith.constant 0 : index
    %11 = vector.load %arg3[%c0_2, %c0_3] : memref<1x768xf32, #tpu.memory_space<vmem>>, vector<1x768xf32>
    %c0_4 = arith.constant 0 : index
    %c0_5 = arith.constant 0 : index
    %12 = vector.load %arg4[%c0_4, %c0_5] : memref<1x768xf32, #tpu.memory_space<vmem>>, vector<1x768xf32>
    %cst = arith.constant dense<0.000000e+00> : vector<8xf32>
    %13 = vector.multi_reduction <add>, %10, %cst [1] : vector<8x768xf32> to vector<8xf32>
    %14 = vector.shape_cast %13 : vector<8xf32> to vector<8x1xf32>
    %cst_6 = arith.constant 7.680000e+02 : f32
    %15 = vector.broadcast %cst_6 : f32 to vector<8x1xf32>
    %16 = arith.divf %14, %15 : vector<8x1xf32>
    %17 = vector.broadcast %16 : vector<8x1xf32> to vector<8x768xf32>
    %18 = arith.subf %10, %17 : vector<8x768xf32>
    %19 = arith.mulf %18, %18 : vector<8x768xf32>
    %cst_7 = arith.constant dense<0.000000e+00> : vector<8xf32>
    %20 = vector.multi_reduction <add>, %19, %cst_7 [1] : vector<8x768xf32> to vector<8xf32>
    %21 = vector.shape_cast %20 : vector<8xf32> to vector<8x1xf32>
    %cst_8 = arith.constant 7.680000e+02 : f32
    %22 = vector.broadcast %cst_8 : f32 to vector<8x1xf32>
    %23 = arith.divf %21, %22 : vector<8x1xf32>
    %24 = vector.broadcast %16 : vector<8x1xf32> to vector<8x768xf32>
    %25 = arith.subf %10, %24 : vector<8x768xf32>
    %cst_9 = arith.constant 9.99999974E-6 : f32
    %26 = vector.broadcast %cst_9 : f32 to vector<8x1xf32>
    %27 = arith.addf %23, %26 : vector<8x1xf32>
    %28 = math.rsqrt %27 : vector<8x1xf32>
    %29 = vector.broadcast %28 : vector<8x1xf32> to vector<8x768xf32>
    %30 = arith.mulf %25, %29 : vector<8x768xf32>
    %31 = vector.broadcast %11 : vector<1x768xf32> to vector<8x768xf32>
    %32 = arith.mulf %30, %31 : vector<8x768xf32>
    %33 = vector.broadcast %12 : vector<1x768xf32> to vector<8x768xf32>
    %34 = arith.addf %32, %33 : vector<8x768xf32>
    %35 = arith.truncf %34 : vector<8x768xf32> to vector<8x768xbf16>
    %c0_10 = arith.constant 0 : index
    %c0_11 = arith.constant 0 : index
    %36 = vector.load %arg5[%c0_10, %c0_11] : memref<768x128xbf16, #tpu.memory_space<vmem>>, vector<768x128xbf16>
    %cst_12 = arith.constant dense<0.000000e+00> : vector<8x128xf32>
    %37 = tpu.matmul %35, %36, %cst_12 {dimension_numbers = #tpu.dot_dimension_numbers<[1], [0], [0], [1], [0, 0, 1, 1], [], []>} : vector<8x768xbf16>, vector<768x128xbf16>, vector<8x128xf32> -> vector<8x128xf32>
    %c0_13 = arith.constant 0 : index
    %c0_14 = arith.constant 0 : index
    %38 = vector.load %arg6[%c0_13, %c0_14] : memref<1x128xf32, #tpu.memory_space<vmem>>, vector<1x128xf32>
    %39 = vector.broadcast %38 : vector<1x128xf32> to vector<8x128xf32>
    %40 = arith.addf %37, %39 : vector<8x128xf32>
    %cst_15 = arith.constant dense<0xFF800000> : vector<8xf32>
    %41 = vector.multi_reduction <maximumf>, %40, %cst_15 [1] : vector<8x128xf32> to vector<8xf32>
    %42 = vector.shape_cast %41 : vector<8xf32> to vector<8x1xf32>
    %43 = vector.broadcast %42 : vector<8x1xf32> to vector<8x128xf32>
    %44 = arith.subf %40, %43 : vector<8x128xf32>
    %45 = math.exp %44 : vector<8x128xf32>
    %cst_16 = arith.constant dense<0.000000e+00> : vector<8xf32>
    %46 = vector.multi_reduction <add>, %45, %cst_16 [1] : vector<8x128xf32> to vector<8xf32>
    %47 = vector.shape_cast %46 : vector<8xf32> to vector<8x1xf32>
    %48 = vector.broadcast %47 : vector<8x1xf32> to vector<8x128xf32>
    %49 = arith.divf %45, %48 : vector<8x128xf32>
    %cst_17 = arith.constant dense<0xFF800000> : vector<8xf32>
    %50 = vector.multi_reduction <maximumf>, %49, %cst_17 [1] : vector<8x128xf32> to vector<8xf32>
    %51 = vector.shape_cast %50 : vector<8xf32> to vector<8x1xf32>
    %52 = tpu.iota {dimensions = array<i32: 1>} : vector<8x128xi32>
    %53 = vector.broadcast %51 : vector<8x1xf32> to vector<8x128xf32>
    %54 = arith.cmpf oeq, %49, %53 : vector<8x128xf32>
    %c128_i32 = arith.constant 128 : i32
    %55 = vector.broadcast %c128_i32 : i32 to vector<8x128xi32>
    %56 = arith.select %54, %52, %55 : vector<8x128xi1>, vector<8x128xi32>
    %cst_18 = arith.constant dense<2147483647> : vector<8xi32>
    %57 = vector.multi_reduction <minsi>, %56, %cst_18 [1] : vector<8x128xi32> to vector<8xi32>
    %58 = vector.shape_cast %57 : vector<8xi32> to vector<8x1xi32>
    %59 = vector.broadcast %58 : vector<8x1xi32> to vector<8x128xi32>
    %60 = arith.cmpi eq, %52, %59 : vector<8x128xi32>
    %61 = arith.extui %60 : vector<8x128xi1> to vector<8x128xi32>
    %62 = arith.sitofp %61 : vector<8x128xi32> to vector<8x128xf32>
    %c0_19 = arith.constant 0 : index
    %c0_20 = arith.constant 0 : index
    %63 = vector.load %arg7[%c0_19, %c0_20] : memref<8x768xbf16, #tpu.memory_space<vmem>>, vector<8x768xbf16>
    tpu.vector_store %arg7[%c0_19, %c0_20], %35 {strides = array<i32>} : memref<8x768xbf16, #tpu.memory_space<vmem>>, vector<8x768xbf16>,
    %c0_21 = arith.constant 0 : index
    %c0_22 = arith.constant 0 : index
    %64 = vector.load %arg8[%c0_21, %c0_22] : memref<8x1xi32, #tpu.memory_space<vmem>>, vector<8x1xi32>
    tpu.vector_store %arg8[%c0_21, %c0_22], %58 {strides = array<i32>} : memref<8x1xi32, #tpu.memory_space<vmem>>, vector<8x1xi32>,
    %65 = arith.mulf %51, %8 : vector<8x1xf32>
    %c0_23 = arith.constant 0 : index
    %c0_24 = arith.constant 0 : index
    %66 = vector.load %arg9[%c0_23, %c0_24] : memref<8x1xf32, #tpu.memory_space<vmem>>, vector<8x1xf32>
    tpu.vector_store %arg9[%c0_23, %c0_24], %65 {strides = array<i32>} : memref<8x1xf32, #tpu.memory_space<vmem>>, vector<8x1xf32>,
    %67 = vector.broadcast %8 : vector<8x1xf32> to vector<8x128xf32>
    %68 = arith.mulf %62, %67 : vector<8x128xf32>
    %cst_25 = arith.constant dense<0.000000e+00> : vector<128xf32>
    %69 = vector.multi_reduction <add>, %68, %cst_25 [0] : vector<8x128xf32> to vector<128xf32>
    %70 = vector.shape_cast %69 : vector<128xf32> to vector<1x128xf32>
    %71 = vector.broadcast %8 : vector<8x1xf32> to vector<8x128xf32>
    %72 = arith.mulf %49, %71 : vector<8x128xf32>
    %cst_26 = arith.constant dense<0.000000e+00> : vector<128xf32>
    %73 = vector.multi_reduction <add>, %72, %cst_26 [0] : vector<8x128xf32> to vector<128xf32>
    %74 = vector.shape_cast %73 : vector<128xf32> to vector<1x128xf32>
    %75 = tpu.iota {dimensions = array<i32: 0>} : vector<8x128xi32>
    %c0_i32 = arith.constant 0 : i32
    %76 = vector.broadcast %c0_i32 : i32 to vector<8x128xi32>
    %77 = arith.cmpi eq, %75, %76 : vector<8x128xi32>
    %cst_27 = arith.constant 0.000000e+00 : f32
    %78 = vector.shape_cast %70 : vector<1x128xf32> to vector<1x128xf32>
    %79 = vector.broadcast %78 : vector<1x128xf32> to vector<8x128xf32>
    %80 = vector.broadcast %cst_27 : f32 to vector<8x128xf32>
    %81 = arith.select %77, %79, %80 : vector<8x128xi1>, vector<8x128xf32>
    %c1_i32 = arith.constant 1 : i32
    %82 = vector.broadcast %c1_i32 : i32 to vector<8x128xi32>
    %83 = arith.cmpi eq, %75, %82 : vector<8x128xi32>
    %cst_28 = arith.constant 0.000000e+00 : f32
    %84 = vector.shape_cast %74 : vector<1x128xf32> to vector<1x128xf32>
    %85 = vector.broadcast %84 : vector<1x128xf32> to vector<8x128xf32>
    %86 = vector.broadcast %cst_28 : f32 to vector<8x128xf32>
    %87 = arith.select %83, %85, %86 : vector<8x128xi1>, vector<8x128xf32>
    %88 = arith.addf %81, %87 : vector<8x128xf32>
    %c0_29 = arith.constant 0 : index
    %c0_30 = arith.constant 0 : index
    %c0_31 = arith.constant 0 : index
    %89 = vector.load %arg10[%c0_29, %c0_30, %c0_31] : memref<1x8x128xf32, #tpu.memory_space<vmem>>, vector<1x8x128xf32>
    %90 = vector.shape_cast %89 : vector<1x8x128xf32> to vector<8x128xf32>
    %91 = vector.shape_cast %88 : vector<8x128xf32> to vector<1x8x128xf32>
    tpu.vector_store %arg10[%c0_29, %c0_30, %c0_31], %91 {strides = array<i32>} : memref<1x8x128xf32, #tpu.memory_space<vmem>>, vector<1x8x128xf32>,
    return
  }
  func.func @transform_0(%arg0: i32) -> i32 {
    %c0_i32 = arith.constant 0 : i32
    %c0_i32_0 = arith.constant 0 : i32
    return %c0_i32 : i32
  }
  func.func @transform_1(%arg0: i32) -> (i32, i32) {
    %c0_i32 = arith.constant 0 : i32
    %c0_i32_0 = arith.constant 0 : i32
    return %arg0, %c0_i32 : i32, i32
  }
  func.func @transform_2(%arg0: i32) -> (i32, i32) {
    %c0_i32 = arith.constant 0 : i32
    %c0_i32_0 = arith.constant 0 : i32
    %c0_i32_1 = arith.constant 0 : i32
    return %c0_i32, %c0_i32_0 : i32, i32
  }
  func.func @transform_3(%arg0: i32) -> (i32, i32) {
    %c0_i32 = arith.constant 0 : i32
    %c0_i32_0 = arith.constant 0 : i32
    %c0_i32_1 = arith.constant 0 : i32
    return %c0_i32, %c0_i32_0 : i32, i32
  }
  func.func @transform_4(%arg0: i32) -> (i32, i32) {
    %c0_i32 = arith.constant 0 : i32
    %c0_i32_0 = arith.constant 0 : i32
    %c0_i32_1 = arith.constant 0 : i32
    return %c0_i32, %c0_i32_0 : i32, i32
  }
  func.func @transform_5(%arg0: i32) -> (i32, i32) {
    %c0_i32 = arith.constant 0 : i32
    %c0_i32_0 = arith.constant 0 : i32
    %c0_i32_1 = arith.constant 0 : i32
    return %c0_i32, %c0_i32_0 : i32, i32
  }
  func.func @transform_6(%arg0: i32) -> (i32, i32) {
    %c0_i32 = arith.constant 0 : i32
    %c0_i32_0 = arith.constant 0 : i32
    return %arg0, %c0_i32 : i32, i32
  }
  func.func @transform_7(%arg0: i32) -> (i32, i32) {
    %c0_i32 = arith.constant 0 : i32
    %c0_i32_0 = arith.constant 0 : i32
    return %arg0, %c0_i32 : i32, i32
  }
  func.func @transform_8(%arg0: i32) -> (i32, i32) {
    %c0_i32 = arith.constant 0 : i32
    %c0_i32_0 = arith.constant 0 : i32
    return %arg0, %c0_i32 : i32, i32
  }
  func.func @transform_9(%arg0: i32) -> (i32, i32, i32) {
    %c0_i32 = arith.constant 0 : i32
    %c0_i32_0 = arith.constant 0 : i32
    %c0_i32_1 = arith.constant 0 : i32
    return %arg0, %c0_i32, %c0_i32_0 : i32, i32, i32
  }
}

module attributes {stable_mosaic.version = 11 : i64} {
  func.func @ffn_kernel(%arg0: i32, %arg1: memref<6xi32, #tpu.memory_space<smem>>, %arg2: memref<8x768xbf16, #tpu.memory_space<vmem>>, %arg3: memref<8x1xf32, #tpu.memory_space<vmem>>, %arg4: memref<1x768x512xbf16, #tpu.memory_space<vmem>>, %arg5: memref<1x1x512xf32, #tpu.memory_space<vmem>>, %arg6: memref<1x512x768xbf16, #tpu.memory_space<vmem>>, %arg7: memref<1x1x768xf32, #tpu.memory_space<vmem>>, %arg8: memref<8x768xbf16, #tpu.memory_space<vmem>>) attributes {dimension_semantics = [#tpu.dimension_semantics<parallel>], iteration_bounds = array<i64: 6>, scalar_prefetch = 1 : i64, scratch_operands = 0 : i64, tpu.core_type = #tpu.core_type<tc>, window_params = [{transform_indices = @transform_0, window_bounds = array<i64: 8, 768>}, {transform_indices = @transform_1, window_bounds = array<i64: 8, 1>}, {transform_indices = @transform_2, window_bounds = array<i64: 1, 768, 512>}, {transform_indices = @transform_3, window_bounds = array<i64: 1, 1, 512>}, {transform_indices = @transform_4, window_bounds = array<i64: 1, 512, 768>}, {transform_indices = @transform_5, window_bounds = array<i64: 1, 1, 768>}, {transform_indices = @transform_6, window_bounds = array<i64: 8, 768>}]} {
    %c0 = arith.constant 0 : index
    %c0_0 = arith.constant 0 : index
    %0 = vector.load %arg2[%c0, %c0_0] : memref<8x768xbf16, #tpu.memory_space<vmem>>, vector<8x768xbf16>
    %c0_1 = arith.constant 0 : index
    %c0_2 = arith.constant 0 : index
    %c0_3 = arith.constant 0 : index
    %1 = vector.load %arg4[%c0_1, %c0_2, %c0_3] : memref<1x768x512xbf16, #tpu.memory_space<vmem>>, vector<1x768x512xbf16>
    %2 = vector.shape_cast %1 : vector<1x768x512xbf16> to vector<768x512xbf16>
    %cst = arith.constant dense<0.000000e+00> : vector<8x512xf32>
    %3 = tpu.matmul %0, %2, %cst {dimension_numbers = #tpu.dot_dimension_numbers<[1], [0], [0], [1], [0, 0, 1, 1], [], []>} : vector<8x768xbf16>, vector<768x512xbf16>, vector<8x512xf32> -> vector<8x512xf32>
    %c0_4 = arith.constant 0 : index
    %c0_5 = arith.constant 0 : index
    %c0_6 = arith.constant 0 : index
    %4 = vector.load %arg5[%c0_4, %c0_5, %c0_6] : memref<1x1x512xf32, #tpu.memory_space<vmem>>, vector<1x1x512xf32>
    %5 = vector.shape_cast %4 : vector<1x1x512xf32> to vector<1x512xf32>
    %6 = vector.broadcast %5 : vector<1x512xf32> to vector<8x512xf32>
    %7 = arith.addf %3, %6 : vector<8x512xf32>
    %cst_7 = arith.constant 0.000000e+00 : f32
    %8 = vector.broadcast %cst_7 : f32 to vector<8x512xf32>
    %9 = arith.maximumf %7, %8 : vector<8x512xf32>
    %10 = arith.truncf %9 : vector<8x512xf32> to vector<8x512xbf16>
    %c0_8 = arith.constant 0 : index
    %c0_9 = arith.constant 0 : index
    %c0_10 = arith.constant 0 : index
    %11 = vector.load %arg6[%c0_8, %c0_9, %c0_10] : memref<1x512x768xbf16, #tpu.memory_space<vmem>>, vector<1x512x768xbf16>
    %12 = vector.shape_cast %11 : vector<1x512x768xbf16> to vector<512x768xbf16>
    %cst_11 = arith.constant dense<0.000000e+00> : vector<8x768xf32>
    %13 = tpu.matmul %10, %12, %cst_11 {dimension_numbers = #tpu.dot_dimension_numbers<[1], [0], [0], [1], [0, 0, 1, 1], [], []>} : vector<8x512xbf16>, vector<512x768xbf16>, vector<8x768xf32> -> vector<8x768xf32>
    %c0_12 = arith.constant 0 : index
    %c0_13 = arith.constant 0 : index
    %c0_14 = arith.constant 0 : index
    %14 = vector.load %arg7[%c0_12, %c0_13, %c0_14] : memref<1x1x768xf32, #tpu.memory_space<vmem>>, vector<1x1x768xf32>
    %15 = vector.shape_cast %14 : vector<1x1x768xf32> to vector<1x768xf32>
    %16 = vector.broadcast %15 : vector<1x768xf32> to vector<8x768xf32>
    %17 = arith.addf %13, %16 : vector<8x768xf32>
    %c0_15 = arith.constant 0 : index
    %c0_16 = arith.constant 0 : index
    %18 = vector.load %arg3[%c0_15, %c0_16] : memref<8x1xf32, #tpu.memory_space<vmem>>, vector<8x1xf32>
    %19 = vector.broadcast %18 : vector<8x1xf32> to vector<8x768xf32>
    %20 = arith.mulf %19, %17 : vector<8x768xf32>
    %21 = arith.truncf %20 : vector<8x768xf32> to vector<8x768xbf16>
    %c0_17 = arith.constant 0 : index
    %c0_18 = arith.constant 0 : index
    %22 = vector.load %arg8[%c0_17, %c0_18] : memref<8x768xbf16, #tpu.memory_space<vmem>>, vector<8x768xbf16>
    tpu.vector_store %arg8[%c0_17, %c0_18], %21 {strides = array<i32>} : memref<8x768xbf16, #tpu.memory_space<vmem>>, vector<8x768xbf16>,
    return
  }
  func.func @transform_0(%arg0: i32, %arg1: memref<6xi32, #tpu.memory_space<smem>>) -> (i32, i32) {
    %c0_i32 = arith.constant 0 : i32
    %c0_i32_0 = arith.constant 0 : i32
    return %arg0, %c0_i32 : i32, i32
  }
  func.func @transform_1(%arg0: i32, %arg1: memref<6xi32, #tpu.memory_space<smem>>) -> (i32, i32) {
    %c0_i32 = arith.constant 0 : i32
    %c0_i32_0 = arith.constant 0 : i32
    return %arg0, %c0_i32 : i32, i32
  }
  func.func @transform_2(%arg0: i32, %arg1: memref<6xi32, #tpu.memory_space<smem>>) -> (i32, i32, i32) {
    %0 = arith.index_cast %arg0 : i32 to index
    %1 = memref.load %arg1[%0] : memref<6xi32, #tpu.memory_space<smem>>
    %c0_i32 = arith.constant 0 : i32
    %c0_i32_0 = arith.constant 0 : i32
    %c0_i32_1 = arith.constant 0 : i32
    return %1, %c0_i32, %c0_i32_0 : i32, i32, i32
  }
  func.func @transform_3(%arg0: i32, %arg1: memref<6xi32, #tpu.memory_space<smem>>) -> (i32, i32, i32) {
    %0 = arith.index_cast %arg0 : i32 to index
    %1 = memref.load %arg1[%0] : memref<6xi32, #tpu.memory_space<smem>>
    %c0_i32 = arith.constant 0 : i32
    %c0_i32_0 = arith.constant 0 : i32
    %c0_i32_1 = arith.constant 0 : i32
    return %1, %c0_i32, %c0_i32_0 : i32, i32, i32
  }
  func.func @transform_4(%arg0: i32, %arg1: memref<6xi32, #tpu.memory_space<smem>>) -> (i32, i32, i32) {
    %0 = arith.index_cast %arg0 : i32 to index
    %1 = memref.load %arg1[%0] : memref<6xi32, #tpu.memory_space<smem>>
    %c0_i32 = arith.constant 0 : i32
    %c0_i32_0 = arith.constant 0 : i32
    %c0_i32_1 = arith.constant 0 : i32
    return %1, %c0_i32, %c0_i32_0 : i32, i32, i32
  }
  func.func @transform_5(%arg0: i32, %arg1: memref<6xi32, #tpu.memory_space<smem>>) -> (i32, i32, i32) {
    %0 = arith.index_cast %arg0 : i32 to index
    %1 = memref.load %arg1[%0] : memref<6xi32, #tpu.memory_space<smem>>
    %c0_i32 = arith.constant 0 : i32
    %c0_i32_0 = arith.constant 0 : i32
    %c0_i32_1 = arith.constant 0 : i32
    return %1, %c0_i32, %c0_i32_0 : i32, i32, i32
  }
  func.func @transform_6(%arg0: i32, %arg1: memref<6xi32, #tpu.memory_space<smem>>) -> (i32, i32) {
    %c0_i32 = arith.constant 0 : i32
    %c0_i32_0 = arith.constant 0 : i32
    return %arg0, %c0_i32 : i32, i32
  }
}

module attributes {stable_mosaic.version = 11 : i64} {
  func.func @router_kernel(%arg0: i32, %arg1: memref<1xi32, #tpu.memory_space<smem>>, %arg2: memref<8x768xbf16, #tpu.memory_space<vmem>>, %arg3: memref<1x768xf32, #tpu.memory_space<vmem>>, %arg4: memref<1x768xf32, #tpu.memory_space<vmem>>, %arg5: memref<768x128xbf16, #tpu.memory_space<vmem>>, %arg6: memref<1x128xf32, #tpu.memory_space<vmem>>, %arg7: memref<8x768xbf16, #tpu.memory_space<vmem>>, %arg8: memref<8x1xi32, #tpu.memory_space<vmem>>, %arg9: memref<8x1xf32, #tpu.memory_space<vmem>>, %arg10: memref<1x8x128xf32, #tpu.memory_space<vmem>>) attributes {dimension_semantics = [#tpu.dimension_semantics<parallel>], iteration_bounds = array<i64: 2>, scalar_prefetch = 0 : i64, scratch_operands = 0 : i64, tpu.core_type = #tpu.core_type<tc>, window_params = [{transform_indices = @transform_0, window_bounds = array<i64: 1>}, {transform_indices = @transform_1, window_bounds = array<i64: 8, 768>}, {pipeline_mode = #tpu.pipeline_mode<synchronous>, transform_indices = @transform_2, window_bounds = array<i64: 1, 768>}, {pipeline_mode = #tpu.pipeline_mode<synchronous>, transform_indices = @transform_3, window_bounds = array<i64: 1, 768>}, {pipeline_mode = #tpu.pipeline_mode<synchronous>, transform_indices = @transform_4, window_bounds = array<i64: 768, 128>}, {pipeline_mode = #tpu.pipeline_mode<synchronous>, transform_indices = @transform_5, window_bounds = array<i64: 1, 128>}, {transform_indices = @transform_6, window_bounds = array<i64: 8, 768>}, {transform_indices = @transform_7, window_bounds = array<i64: 8, 1>}, {transform_indices = @transform_8, window_bounds = array<i64: 8, 1>}, {transform_indices = @transform_9, window_bounds = array<i64: 1, 8, 128>}]} {
    %c8_i32 = arith.constant 8 : i32
    %0 = arith.muli %arg0, %c8_i32 : i32
    %1 = tpu.iota {dimensions = array<i32: 0>} : vector<8x1xi32>
    %2 = vector.broadcast %0 : i32 to vector<8x1xi32>
    %3 = arith.addi %1, %2 : vector<8x1xi32>
    %c0 = arith.constant 0 : index
    %4 = memref.load %arg1[%c0] : memref<1xi32, #tpu.memory_space<smem>>
    %5 = vector.broadcast %4 : i32 to vector<8x1xi32>
    %6 = arith.cmpi slt, %3, %5 : vector<8x1xi32>
    %7 = arith.extui %6 : vector<8x1xi1> to vector<8x1xi32>
    %8 = arith.sitofp %7 : vector<8x1xi32> to vector<8x1xf32>
    %c0_0 = arith.constant 0 : index
    %c0_1 = arith.constant 0 : index
    %9 = vector.load %arg2[%c0_0, %c0_1] : memref<8x768xbf16, #tpu.memory_space<vmem>>, vector<8x768xbf16>
    %10 = arith.extf %9 : vector<8x768xbf16> to vector<8x768xf32>
    %c0_2 = arith.constant 0 : index
    %c0_3 = arith.constant 0 : index
    %11 = vector.load %arg3[%c0_2, %c0_3] : memref<1x768xf32, #tpu.memory_space<vmem>>, vector<1x768xf32>
    %c0_4 = arith.constant 0 : index
    %c0_5 = arith.constant 0 : index
    %12 = vector.load %arg4[%c0_4, %c0_5] : memref<1x768xf32, #tpu.memory_space<vmem>>, vector<1x768xf32>
    %cst = arith.constant dense<0.000000e+00> : vector<8xf32>
    %13 = vector.multi_reduction <add>, %10, %cst [1] : vector<8x768xf32> to vector<8xf32>
    %14 = vector.shape_cast %13 : vector<8xf32> to vector<8x1xf32>
    %cst_6 = arith.constant 7.680000e+02 : f32
    %15 = vector.broadcast %cst_6 : f32 to vector<8x1xf32>
    %16 = arith.divf %14, %15 : vector<8x1xf32>
    %17 = vector.broadcast %16 : vector<8x1xf32> to vector<8x768xf32>
    %18 = arith.subf %10, %17 : vector<8x768xf32>
    %19 = arith.mulf %18, %18 : vector<8x768xf32>
    %cst_7 = arith.constant dense<0.000000e+00> : vector<8xf32>
    %20 = vector.multi_reduction <add>, %19, %cst_7 [1] : vector<8x768xf32> to vector<8xf32>
    %21 = vector.shape_cast %20 : vector<8xf32> to vector<8x1xf32>
    %cst_8 = arith.constant 7.680000e+02 : f32
    %22 = vector.broadcast %cst_8 : f32 to vector<8x1xf32>
    %23 = arith.divf %21, %22 : vector<8x1xf32>
    %24 = vector.broadcast %16 : vector<8x1xf32> to vector<8x768xf32>
    %25 = arith.subf %10, %24 : vector<8x768xf32>
    %cst_9 = arith.constant 9.99999974E-6 : f32
    %26 = vector.broadcast %cst_9 : f32 to vector<8x1xf32>
    %27 = arith.addf %23, %26 : vector<8x1xf32>
    %28 = math.rsqrt %27 : vector<8x1xf32>
    %29 = vector.broadcast %28 : vector<8x1xf32> to vector<8x768xf32>
    %30 = arith.mulf %25, %29 : vector<8x768xf32>
    %31 = vector.broadcast %11 : vector<1x768xf32> to vector<8x768xf32>
    %32 = arith.mulf %30, %31 : vector<8x768xf32>
    %33 = vector.broadcast %12 : vector<1x768xf32> to vector<8x768xf32>
    %34 = arith.addf %32, %33 : vector<8x768xf32>
    %35 = arith.truncf %34 : vector<8x768xf32> to vector<8x768xbf16>
    %c0_10 = arith.constant 0 : index
    %c0_11 = arith.constant 0 : index
    %36 = vector.load %arg5[%c0_10, %c0_11] : memref<768x128xbf16, #tpu.memory_space<vmem>>, vector<768x128xbf16>
    %cst_12 = arith.constant dense<0.000000e+00> : vector<8x128xf32>
    %37 = tpu.matmul %35, %36, %cst_12 {dimension_numbers = #tpu.dot_dimension_numbers<[1], [0], [0], [1], [0, 0, 1, 1], [], []>} : vector<8x768xbf16>, vector<768x128xbf16>, vector<8x128xf32> -> vector<8x128xf32>
    %c0_13 = arith.constant 0 : index
    %c0_14 = arith.constant 0 : index
    %38 = vector.load %arg6[%c0_13, %c0_14] : memref<1x128xf32, #tpu.memory_space<vmem>>, vector<1x128xf32>
    %39 = vector.broadcast %38 : vector<1x128xf32> to vector<8x128xf32>
    %40 = arith.addf %37, %39 : vector<8x128xf32>
    %cst_15 = arith.constant dense<0xFF800000> : vector<8xf32>
    %41 = vector.multi_reduction <maximumf>, %40, %cst_15 [1] : vector<8x128xf32> to vector<8xf32>
    %42 = vector.shape_cast %41 : vector<8xf32> to vector<8x1xf32>
    %43 = vector.broadcast %42 : vector<8x1xf32> to vector<8x128xf32>
    %44 = arith.subf %40, %43 : vector<8x128xf32>
    %45 = math.exp %44 : vector<8x128xf32>
    %cst_16 = arith.constant dense<0.000000e+00> : vector<8xf32>
    %46 = vector.multi_reduction <add>, %45, %cst_16 [1] : vector<8x128xf32> to vector<8xf32>
    %47 = vector.shape_cast %46 : vector<8xf32> to vector<8x1xf32>
    %48 = vector.broadcast %47 : vector<8x1xf32> to vector<8x128xf32>
    %49 = arith.divf %45, %48 : vector<8x128xf32>
    %cst_17 = arith.constant dense<0xFF800000> : vector<8xf32>
    %50 = vector.multi_reduction <maximumf>, %49, %cst_17 [1] : vector<8x128xf32> to vector<8xf32>
    %51 = vector.shape_cast %50 : vector<8xf32> to vector<8x1xf32>
    %52 = tpu.iota {dimensions = array<i32: 1>} : vector<8x128xi32>
    %53 = vector.broadcast %51 : vector<8x1xf32> to vector<8x128xf32>
    %54 = arith.cmpf oeq, %49, %53 : vector<8x128xf32>
    %c128_i32 = arith.constant 128 : i32
    %55 = vector.broadcast %c128_i32 : i32 to vector<8x128xi32>
    %56 = arith.select %54, %52, %55 : vector<8x128xi1>, vector<8x128xi32>
    %cst_18 = arith.constant dense<2147483647> : vector<8xi32>
    %57 = vector.multi_reduction <minsi>, %56, %cst_18 [1] : vector<8x128xi32> to vector<8xi32>
    %58 = vector.shape_cast %57 : vector<8xi32> to vector<8x1xi32>
    %59 = vector.broadcast %58 : vector<8x1xi32> to vector<8x128xi32>
    %60 = arith.cmpi eq, %52, %59 : vector<8x128xi32>
    %61 = arith.extui %60 : vector<8x128xi1> to vector<8x128xi32>
    %62 = arith.sitofp %61 : vector<8x128xi32> to vector<8x128xf32>
    %c0_19 = arith.constant 0 : index
    %c0_20 = arith.constant 0 : index
    %63 = vector.load %arg7[%c0_19, %c0_20] : memref<8x768xbf16, #tpu.memory_space<vmem>>, vector<8x768xbf16>
    tpu.vector_store %arg7[%c0_19, %c0_20], %35 {strides = array<i32>} : memref<8x768xbf16, #tpu.memory_space<vmem>>, vector<8x768xbf16>,
    %c0_21 = arith.constant 0 : index
    %c0_22 = arith.constant 0 : index
    %64 = vector.load %arg8[%c0_21, %c0_22] : memref<8x1xi32, #tpu.memory_space<vmem>>, vector<8x1xi32>
    tpu.vector_store %arg8[%c0_21, %c0_22], %58 {strides = array<i32>} : memref<8x1xi32, #tpu.memory_space<vmem>>, vector<8x1xi32>,
    %65 = arith.mulf %51, %8 : vector<8x1xf32>
    %c0_23 = arith.constant 0 : index
    %c0_24 = arith.constant 0 : index
    %66 = vector.load %arg9[%c0_23, %c0_24] : memref<8x1xf32, #tpu.memory_space<vmem>>, vector<8x1xf32>
    tpu.vector_store %arg9[%c0_23, %c0_24], %65 {strides = array<i32>} : memref<8x1xf32, #tpu.memory_space<vmem>>, vector<8x1xf32>,
    %67 = vector.broadcast %8 : vector<8x1xf32> to vector<8x128xf32>
    %68 = arith.mulf %62, %67 : vector<8x128xf32>
    %cst_25 = arith.constant dense<0.000000e+00> : vector<128xf32>
    %69 = vector.multi_reduction <add>, %68, %cst_25 [0] : vector<8x128xf32> to vector<128xf32>
    %70 = vector.shape_cast %69 : vector<128xf32> to vector<1x128xf32>
    %71 = vector.broadcast %8 : vector<8x1xf32> to vector<8x128xf32>
    %72 = arith.mulf %49, %71 : vector<8x128xf32>
    %cst_26 = arith.constant dense<0.000000e+00> : vector<128xf32>
    %73 = vector.multi_reduction <add>, %72, %cst_26 [0] : vector<8x128xf32> to vector<128xf32>
    %74 = vector.shape_cast %73 : vector<128xf32> to vector<1x128xf32>
    %75 = tpu.iota {dimensions = array<i32: 0>} : vector<8x128xi32>
    %c0_i32 = arith.constant 0 : i32
    %76 = vector.broadcast %c0_i32 : i32 to vector<8x128xi32>
    %77 = arith.cmpi eq, %75, %76 : vector<8x128xi32>
    %cst_27 = arith.constant 0.000000e+00 : f32
    %78 = vector.shape_cast %70 : vector<1x128xf32> to vector<1x128xf32>
    %79 = vector.broadcast %78 : vector<1x128xf32> to vector<8x128xf32>
    %80 = vector.broadcast %cst_27 : f32 to vector<8x128xf32>
    %81 = arith.select %77, %79, %80 : vector<8x128xi1>, vector<8x128xf32>
    %c1_i32 = arith.constant 1 : i32
    %82 = vector.broadcast %c1_i32 : i32 to vector<8x128xi32>
    %83 = arith.cmpi eq, %75, %82 : vector<8x128xi32>
    %cst_28 = arith.constant 0.000000e+00 : f32
    %84 = vector.shape_cast %74 : vector<1x128xf32> to vector<1x128xf32>
    %85 = vector.broadcast %84 : vector<1x128xf32> to vector<8x128xf32>
    %86 = vector.broadcast %cst_28 : f32 to vector<8x128xf32>
    %87 = arith.select %83, %85, %86 : vector<8x128xi1>, vector<8x128xf32>
    %88 = arith.addf %81, %87 : vector<8x128xf32>
    %c0_29 = arith.constant 0 : index
    %c0_30 = arith.constant 0 : index
    %c0_31 = arith.constant 0 : index
    %89 = vector.load %arg10[%c0_29, %c0_30, %c0_31] : memref<1x8x128xf32, #tpu.memory_space<vmem>>, vector<1x8x128xf32>
    %90 = vector.shape_cast %89 : vector<1x8x128xf32> to vector<8x128xf32>
    %91 = vector.shape_cast %88 : vector<8x128xf32> to vector<1x8x128xf32>
    tpu.vector_store %arg10[%c0_29, %c0_30, %c0_31], %91 {strides = array<i32>} : memref<1x8x128xf32, #tpu.memory_space<vmem>>, vector<1x8x128xf32>,
    return
  }
  func.func @transform_0(%arg0: i32) -> i32 {
    %c0_i32 = arith.constant 0 : i32
    %c0_i32_0 = arith.constant 0 : i32
    return %c0_i32 : i32
  }
  func.func @transform_1(%arg0: i32) -> (i32, i32) {
    %c0_i32 = arith.constant 0 : i32
    %c0_i32_0 = arith.constant 0 : i32
    return %arg0, %c0_i32 : i32, i32
  }
  func.func @transform_2(%arg0: i32) -> (i32, i32) {
    %c0_i32 = arith.constant 0 : i32
    %c0_i32_0 = arith.constant 0 : i32
    %c0_i32_1 = arith.constant 0 : i32
    return %c0_i32, %c0_i32_0 : i32, i32
  }
  func.func @transform_3(%arg0: i32) -> (i32, i32) {
    %c0_i32 = arith.constant 0 : i32
    %c0_i32_0 = arith.constant 0 : i32
    %c0_i32_1 = arith.constant 0 : i32
    return %c0_i32, %c0_i32_0 : i32, i32
  }
  func.func @transform_4(%arg0: i32) -> (i32, i32) {
    %c0_i32 = arith.constant 0 : i32
    %c0_i32_0 = arith.constant 0 : i32
    %c0_i32_1 = arith.constant 0 : i32
    return %c0_i32, %c0_i32_0 : i32, i32
  }
  func.func @transform_5(%arg0: i32) -> (i32, i32) {
    %c0_i32 = arith.constant 0 : i32
    %c0_i32_0 = arith.constant 0 : i32
    %c0_i32_1 = arith.constant 0 : i32
    return %c0_i32, %c0_i32_0 : i32, i32
  }
  func.func @transform_6(%arg0: i32) -> (i32, i32) {
    %c0_i32 = arith.constant 0 : i32
    %c0_i32_0 = arith.constant 0 : i32
    return %arg0, %c0_i32 : i32, i32
  }
  func.func @transform_7(%arg0: i32) -> (i32, i32) {
    %c0_i32 = arith.constant 0 : i32
    %c0_i32_0 = arith.constant 0 : i32
    return %arg0, %c0_i32 : i32, i32
  }
  func.func @transform_8(%arg0: i32) -> (i32, i32) {
    %c0_i32 = arith.constant 0 : i32
    %c0_i32_0 = arith.constant 0 : i32
    return %arg0, %c0_i32 : i32, i32
  }
  func.func @transform_9(%arg0: i32) -> (i32, i32, i32) {
    %c0_i32 = arith.constant 0 : i32
    %c0_i32_0 = arith.constant 0 : i32
    %c0_i32_1 = arith.constant 0 : i32
    return %arg0, %c0_i32, %c0_i32_0 : i32, i32, i32
  }
}

module attributes {stable_mosaic.version = 11 : i64} {
  func.func @ffn_kernel(%arg0: i32, %arg1: memref<6xi32, #tpu.memory_space<smem>>, %arg2: memref<8x768xbf16, #tpu.memory_space<vmem>>, %arg3: memref<8x1xf32, #tpu.memory_space<vmem>>, %arg4: memref<1x768x512xbf16, #tpu.memory_space<vmem>>, %arg5: memref<1x1x512xf32, #tpu.memory_space<vmem>>, %arg6: memref<1x512x768xbf16, #tpu.memory_space<vmem>>, %arg7: memref<1x1x768xf32, #tpu.memory_space<vmem>>, %arg8: memref<8x768xbf16, #tpu.memory_space<vmem>>) attributes {dimension_semantics = [#tpu.dimension_semantics<parallel>], iteration_bounds = array<i64: 6>, scalar_prefetch = 1 : i64, scratch_operands = 0 : i64, tpu.core_type = #tpu.core_type<tc>, window_params = [{transform_indices = @transform_0, window_bounds = array<i64: 8, 768>}, {transform_indices = @transform_1, window_bounds = array<i64: 8, 1>}, {transform_indices = @transform_2, window_bounds = array<i64: 1, 768, 512>}, {transform_indices = @transform_3, window_bounds = array<i64: 1, 1, 512>}, {transform_indices = @transform_4, window_bounds = array<i64: 1, 512, 768>}, {transform_indices = @transform_5, window_bounds = array<i64: 1, 1, 768>}, {transform_indices = @transform_6, window_bounds = array<i64: 8, 768>}]} {
    %c0 = arith.constant 0 : index
    %c0_0 = arith.constant 0 : index
    %0 = vector.load %arg2[%c0, %c0_0] : memref<8x768xbf16, #tpu.memory_space<vmem>>, vector<8x768xbf16>
    %c0_1 = arith.constant 0 : index
    %c0_2 = arith.constant 0 : index
    %c0_3 = arith.constant 0 : index
    %1 = vector.load %arg4[%c0_1, %c0_2, %c0_3] : memref<1x768x512xbf16, #tpu.memory_space<vmem>>, vector<1x768x512xbf16>
    %2 = vector.shape_cast %1 : vector<1x768x512xbf16> to vector<768x512xbf16>
    %cst = arith.constant dense<0.000000e+00> : vector<8x512xf32>
    %3 = tpu.matmul %0, %2, %cst {dimension_numbers = #tpu.dot_dimension_numbers<[1], [0], [0], [1], [0, 0, 1, 1], [], []>} : vector<8x768xbf16>, vector<768x512xbf16>, vector<8x512xf32> -> vector<8x512xf32>
    %c0_4 = arith.constant 0 : index
    %c0_5 = arith.constant 0 : index
    %c0_6 = arith.constant 0 : index
    %4 = vector.load %arg5[%c0_4, %c0_5, %c0_6] : memref<1x1x512xf32, #tpu.memory_space<vmem>>, vector<1x1x512xf32>
    %5 = vector.shape_cast %4 : vector<1x1x512xf32> to vector<1x512xf32>
    %6 = vector.broadcast %5 : vector<1x512xf32> to vector<8x512xf32>
    %7 = arith.addf %3, %6 : vector<8x512xf32>
    %cst_7 = arith.constant 0.000000e+00 : f32
    %8 = vector.broadcast %cst_7 : f32 to vector<8x512xf32>
    %9 = arith.maximumf %7, %8 : vector<8x512xf32>
    %10 = arith.truncf %9 : vector<8x512xf32> to vector<8x512xbf16>
    %c0_8 = arith.constant 0 : index
    %c0_9 = arith.constant 0 : index
    %c0_10 = arith.constant 0 : index
    %11 = vector.load %arg6[%c0_8, %c0_9, %c0_10] : memref<1x512x768xbf16, #tpu.memory_space<vmem>>, vector<1x512x768xbf16>
    %12 = vector.shape_cast %11 : vector<1x512x768xbf16> to vector<512x768xbf16>
    %cst_11 = arith.constant dense<0.000000e+00> : vector<8x768xf32>
    %13 = tpu.matmul %10, %12, %cst_11 {dimension_numbers = #tpu.dot_dimension_numbers<[1], [0], [0], [1], [0, 0, 1, 1], [], []>} : vector<8x512xbf16>, vector<512x768xbf16>, vector<8x768xf32> -> vector<8x768xf32>
    %c0_12 = arith.constant 0 : index
    %c0_13 = arith.constant 0 : index
    %c0_14 = arith.constant 0 : index
    %14 = vector.load %arg7[%c0_12, %c0_13, %c0_14] : memref<1x1x768xf32, #tpu.memory_space<vmem>>, vector<1x1x768xf32>
    %15 = vector.shape_cast %14 : vector<1x1x768xf32> to vector<1x768xf32>
    %16 = vector.broadcast %15 : vector<1x768xf32> to vector<8x768xf32>
    %17 = arith.addf %13, %16 : vector<8x768xf32>
    %c0_15 = arith.constant 0 : index
    %c0_16 = arith.constant 0 : index
    %18 = vector.load %arg3[%c0_15, %c0_16] : memref<8x1xf32, #tpu.memory_space<vmem>>, vector<8x1xf32>
    %19 = vector.broadcast %18 : vector<8x1xf32> to vector<8x768xf32>
    %20 = arith.mulf %19, %17 : vector<8x768xf32>
    %21 = arith.truncf %20 : vector<8x768xf32> to vector<8x768xbf16>
    %c0_17 = arith.constant 0 : index
    %c0_18 = arith.constant 0 : index
    %22 = vector.load %arg8[%c0_17, %c0_18] : memref<8x768xbf16, #tpu.memory_space<vmem>>, vector<8x768xbf16>
    tpu.vector_store %arg8[%c0_17, %c0_18], %21 {strides = array<i32>} : memref<8x768xbf16, #tpu.memory_space<vmem>>, vector<8x768xbf16>,
    return
  }
  func.func @transform_0(%arg0: i32, %arg1: memref<6xi32, #tpu.memory_space<smem>>) -> (i32, i32) {
    %c0_i32 = arith.constant 0 : i32
    %c0_i32_0 = arith.constant 0 : i32
    return %arg0, %c0_i32 : i32, i32
  }
  func.func @transform_1(%arg0: i32, %arg1: memref<6xi32, #tpu.memory_space<smem>>) -> (i32, i32) {
    %c0_i32 = arith.constant 0 : i32
    %c0_i32_0 = arith.constant 0 : i32
    return %arg0, %c0_i32 : i32, i32
  }
  func.func @transform_2(%arg0: i32, %arg1: memref<6xi32, #tpu.memory_space<smem>>) -> (i32, i32, i32) {
    %0 = arith.index_cast %arg0 : i32 to index
    %1 = memref.load %arg1[%0] : memref<6xi32, #tpu.memory_space<smem>>
    %c0_i32 = arith.constant 0 : i32
    %c0_i32_0 = arith.constant 0 : i32
    %c0_i32_1 = arith.constant 0 : i32
    return %1, %c0_i32, %c0_i32_0 : i32, i32, i32
  }
  func.func @transform_3(%arg0: i32, %arg1: memref<6xi32, #tpu.memory_space<smem>>) -> (i32, i32, i32) {
    %0 = arith.index_cast %arg0 : i32 to index
    %1 = memref.load %arg1[%0] : memref<6xi32, #tpu.memory_space<smem>>
    %c0_i32 = arith.constant 0 : i32
    %c0_i32_0 = arith.constant 0 : i32
    %c0_i32_1 = arith.constant 0 : i32
    return %1, %c0_i32, %c0_i32_0 : i32, i32, i32
  }
  func.func @transform_4(%arg0: i32, %arg1: memref<6xi32, #tpu.memory_space<smem>>) -> (i32, i32, i32) {
    %0 = arith.index_cast %arg0 : i32 to index
    %1 = memref.load %arg1[%0] : memref<6xi32, #tpu.memory_space<smem>>
    %c0_i32 = arith.constant 0 : i32
    %c0_i32_0 = arith.constant 0 : i32
    %c0_i32_1 = arith.constant 0 : i32
    return %1, %c0_i32, %c0_i32_0 : i32, i32, i32
  }
  func.func @transform_5(%arg0: i32, %arg1: memref<6xi32, #tpu.memory_space<smem>>) -> (i32, i32, i32) {
    %0 = arith.index_cast %arg0 : i32 to index
    %1 = memref.load %arg1[%0] : memref<6xi32, #tpu.memory_space<smem>>
    %c0_i32 = arith.constant 0 : i32
    %c0_i32_0 = arith.constant 0 : i32
    %c0_i32_1 = arith.constant 0 : i32
    return %1, %c0_i32, %c0_i32_0 : i32, i32, i32
  }
  func.func @transform_6(%arg0: i32, %arg1: memref<6xi32, #tpu.memory_space<smem>>) -> (i32, i32) {
    %c0_i32 = arith.constant 0 : i32
    %c0_i32_0 = arith.constant 0 : i32
    return %arg0, %c0_i32 : i32, i32
  }
}

module attributes {stable_mosaic.version = 11 : i64} {
  func.func @combine_head_kernel(%arg0: i32, %arg1: memref<8x768xbf16, #tpu.memory_space<vmem>>, %arg2: memref<8x768xbf16, #tpu.memory_space<vmem>>, %arg3: memref<1x768xf32, #tpu.memory_space<vmem>>, %arg4: memref<1x768xf32, #tpu.memory_space<vmem>>, %arg5: memref<768x128xbf16, #tpu.memory_space<vmem>>, %arg6: memref<1x128xf32, #tpu.memory_space<vmem>>, %arg7: memref<8x128xf32, #tpu.memory_space<vmem>>) attributes {dimension_semantics = [#tpu.dimension_semantics<parallel>], iteration_bounds = array<i64: 2>, scalar_prefetch = 0 : i64, scratch_operands = 0 : i64, tpu.core_type = #tpu.core_type<tc>, window_params = [{transform_indices = @transform_0, window_bounds = array<i64: 8, 768>}, {transform_indices = @transform_1, window_bounds = array<i64: 8, 768>}, {pipeline_mode = #tpu.pipeline_mode<synchronous>, transform_indices = @transform_2, window_bounds = array<i64: 1, 768>}, {pipeline_mode = #tpu.pipeline_mode<synchronous>, transform_indices = @transform_3, window_bounds = array<i64: 1, 768>}, {pipeline_mode = #tpu.pipeline_mode<synchronous>, transform_indices = @transform_4, window_bounds = array<i64: 768, 128>}, {pipeline_mode = #tpu.pipeline_mode<synchronous>, transform_indices = @transform_5, window_bounds = array<i64: 1, 128>}, {transform_indices = @transform_6, window_bounds = array<i64: 8, 128>}]} {
    %c0 = arith.constant 0 : index
    %c0_0 = arith.constant 0 : index
    %0 = vector.load %arg1[%c0, %c0_0] : memref<8x768xbf16, #tpu.memory_space<vmem>>, vector<8x768xbf16>
    %1 = arith.extf %0 : vector<8x768xbf16> to vector<8x768xf32>
    %c0_1 = arith.constant 0 : index
    %c0_2 = arith.constant 0 : index
    %2 = vector.load %arg2[%c0_1, %c0_2] : memref<8x768xbf16, #tpu.memory_space<vmem>>, vector<8x768xbf16>
    %3 = arith.extf %2 : vector<8x768xbf16> to vector<8x768xf32>
    %4 = arith.addf %1, %3 : vector<8x768xf32>
    %c0_3 = arith.constant 0 : index
    %c0_4 = arith.constant 0 : index
    %5 = vector.load %arg3[%c0_3, %c0_4] : memref<1x768xf32, #tpu.memory_space<vmem>>, vector<1x768xf32>
    %c0_5 = arith.constant 0 : index
    %c0_6 = arith.constant 0 : index
    %6 = vector.load %arg4[%c0_5, %c0_6] : memref<1x768xf32, #tpu.memory_space<vmem>>, vector<1x768xf32>
    %cst = arith.constant dense<0.000000e+00> : vector<8xf32>
    %7 = vector.multi_reduction <add>, %4, %cst [1] : vector<8x768xf32> to vector<8xf32>
    %8 = vector.shape_cast %7 : vector<8xf32> to vector<8x1xf32>
    %cst_7 = arith.constant 7.680000e+02 : f32
    %9 = vector.broadcast %cst_7 : f32 to vector<8x1xf32>
    %10 = arith.divf %8, %9 : vector<8x1xf32>
    %11 = vector.broadcast %10 : vector<8x1xf32> to vector<8x768xf32>
    %12 = arith.subf %4, %11 : vector<8x768xf32>
    %13 = arith.mulf %12, %12 : vector<8x768xf32>
    %cst_8 = arith.constant dense<0.000000e+00> : vector<8xf32>
    %14 = vector.multi_reduction <add>, %13, %cst_8 [1] : vector<8x768xf32> to vector<8xf32>
    %15 = vector.shape_cast %14 : vector<8xf32> to vector<8x1xf32>
    %cst_9 = arith.constant 7.680000e+02 : f32
    %16 = vector.broadcast %cst_9 : f32 to vector<8x1xf32>
    %17 = arith.divf %15, %16 : vector<8x1xf32>
    %18 = vector.broadcast %10 : vector<8x1xf32> to vector<8x768xf32>
    %19 = arith.subf %4, %18 : vector<8x768xf32>
    %cst_10 = arith.constant 9.99999974E-6 : f32
    %20 = vector.broadcast %cst_10 : f32 to vector<8x1xf32>
    %21 = arith.addf %17, %20 : vector<8x1xf32>
    %22 = math.rsqrt %21 : vector<8x1xf32>
    %23 = vector.broadcast %22 : vector<8x1xf32> to vector<8x768xf32>
    %24 = arith.mulf %19, %23 : vector<8x768xf32>
    %25 = vector.broadcast %5 : vector<1x768xf32> to vector<8x768xf32>
    %26 = arith.mulf %24, %25 : vector<8x768xf32>
    %27 = vector.broadcast %6 : vector<1x768xf32> to vector<8x768xf32>
    %28 = arith.addf %26, %27 : vector<8x768xf32>
    %29 = arith.truncf %28 : vector<8x768xf32> to vector<8x768xbf16>
    %c0_11 = arith.constant 0 : index
    %c0_12 = arith.constant 0 : index
    %30 = vector.load %arg5[%c0_11, %c0_12] : memref<768x128xbf16, #tpu.memory_space<vmem>>, vector<768x128xbf16>
    %cst_13 = arith.constant dense<0.000000e+00> : vector<8x128xf32>
    %31 = tpu.matmul %29, %30, %cst_13 {dimension_numbers = #tpu.dot_dimension_numbers<[1], [0], [0], [1], [0, 0, 1, 1], [], []>} : vector<8x768xbf16>, vector<768x128xbf16>, vector<8x128xf32> -> vector<8x128xf32>
    %c0_14 = arith.constant 0 : index
    %c0_15 = arith.constant 0 : index
    %32 = vector.load %arg6[%c0_14, %c0_15] : memref<1x128xf32, #tpu.memory_space<vmem>>, vector<1x128xf32>
    %33 = vector.broadcast %32 : vector<1x128xf32> to vector<8x128xf32>
    %34 = arith.addf %31, %33 : vector<8x128xf32>
    %c0_16 = arith.constant 0 : index
    %c0_17 = arith.constant 0 : index
    %35 = vector.load %arg7[%c0_16, %c0_17] : memref<8x128xf32, #tpu.memory_space<vmem>>, vector<8x128xf32>
    tpu.vector_store %arg7[%c0_16, %c0_17], %34 {strides = array<i32>} : memref<8x128xf32, #tpu.memory_space<vmem>>, vector<8x128xf32>,
    return
  }
  func.func @transform_0(%arg0: i32) -> (i32, i32) {
    %c0_i32 = arith.constant 0 : i32
    %c0_i32_0 = arith.constant 0 : i32
    return %arg0, %c0_i32 : i32, i32
  }
  func.func @transform_1(%arg0: i32) -> (i32, i32) {
    %c0_i32 = arith.constant 0 : i32
    %c0_i32_0 = arith.constant 0 : i32
    return %arg0, %c0_i32 : i32, i32
  }
  func.func @transform_2(%arg0: i32) -> (i32, i32) {
    %c0_i32 = arith.constant 0 : i32
    %c0_i32_0 = arith.constant 0 : i32
    %c0_i32_1 = arith.constant 0 : i32
    return %c0_i32, %c0_i32_0 : i32, i32
  }
  func.func @transform_3(%arg0: i32) -> (i32, i32) {
    %c0_i32 = arith.constant 0 : i32
    %c0_i32_0 = arith.constant 0 : i32
    %c0_i32_1 = arith.constant 0 : i32
    return %c0_i32, %c0_i32_0 : i32, i32
  }
  func.func @transform_4(%arg0: i32) -> (i32, i32) {
    %c0_i32 = arith.constant 0 : i32
    %c0_i32_0 = arith.constant 0 : i32
    %c0_i32_1 = arith.constant 0 : i32
    return %c0_i32, %c0_i32_0 : i32, i32
  }
  func.func @transform_5(%arg0: i32) -> (i32, i32) {
    %c0_i32 = arith.constant 0 : i32
    %c0_i32_0 = arith.constant 0 : i32
    %c0_i32_1 = arith.constant 0 : i32
    return %c0_i32, %c0_i32_0 : i32, i32
  }
  func.func @transform_6(%arg0: i32) -> (i32, i32) {
    %c0_i32 = arith.constant 0 : i32
    %c0_i32_0 = arith.constant 0 : i32
    return %arg0, %c0_i32 : i32, i32
  }
}

</mosaic_0001>

<llo_original>
// kernel: switch_transformer_forward.5
$region0: #{switch_transformer_forward.5}
  #allocation0 [shape = 'u32[]', space=smem, size = 0x4, offset = 0x4, fixed_abs, tag = 'smem constant byte address 0x4 - core index']
  #allocation1 [shape = 'u32[144,128]{1,0:T(1,128)}', space=vmem, size = 0x12000, scoped, tag = 'internal scratch']
  #allocation2 [shape = 's32[1]{0:T(128)S(6)}', space=smem, size = 0x200, scoped, tag = 'scoped memory for switch_transformer_forward.5']
  %s0 = inlined_call_operand.<no memory space> [shape: s32[1], index: 0, kind: input, shape index: {}]
  %s1 = inlined_call_operand.vmem [shape: bf16[16,768], index: 1, kind: input, shape index: {}]
  %s2 = inlined_call_operand.hbm [shape: f32[1,768], index: 2, kind: input, shape index: {}]
  %s3 = inlined_call_operand.hbm [shape: f32[1,768], index: 3, kind: input, shape index: {}]
  %s4 = inlined_call_operand.hbm [shape: bf16[768,128], index: 4, kind: input, shape index: {}]
  %s5 = inlined_call_operand.hbm [shape: f32[1,128], index: 5, kind: input, shape index: {}]
  %s6 = inlined_call_operand.vmem [shape: bf16[16,768], index: 6, kind: output, shape index: {0}]
  %s7 = inlined_call_operand.vmem [shape: s32[16,1], index: 7, kind: output, shape index: {1}]
  %s8 = inlined_call_operand.vmem [shape: f32[16,1], index: 8, kind: output, shape index: {2}]
  %s9 = inlined_call_operand.vmem [shape: f32[2,8,128], index: 9, kind: output, shape index: {3}]
  %10 = xla_tuple %s6, %s7, %s8, %s9
  %s11 = sld [smem:[#allocation0]]
  $region97: #{switch_transformer_forward.5} parent=0
    _
  %s13 = ssub.s32 1, %s11
  %s14 = scalar_select 0, %s13, %s11
  %15 = sst [smem:[#allocation2]] %s0
  $region1: #{switch_transformer_forward.5} parent=0
    #allocation3 [shape = 'u8[3072]{0}', space=vmem, size = 0xc00, scoped, tag = 'input window, operand 2, single buffered']
    #allocation4 [shape = 's32[2]{0}', space=sflag, size = 0x8, scoped, tag = 'scoped memory for switch_transformer_forward.5']
    #allocation5 [shape = 'u8[3072]{0}', space=vmem, size = 0xc00, scoped, tag = 'input window, operand 3, single buffered']
    #allocation6 [shape = 's32[1]{0}', space=sflag, size = 0x4, scoped, tag = 'scoped memory for switch_transformer_forward.5']
    #allocation7 [shape = 'u8[196608]{0}', space=vmem, size = 0x30000, scoped, tag = 'input window, operand 4, single buffered']
    #allocation8 [shape = 'u8[512]{0}', space=vmem, size = 0x400, scoped, tag = 'input window, operand 5, single buffered']
    #allocation9 [shape = 's32[1]{0}', space=sflag, size = 0x4, scoped, tag = 'scoped memory for switch_transformer_forward.5']
    %16 = vsyncpa [#allocation4], 0
    %17 = vsyncpa [#allocation6], 0
    %18 = vsyncpa [#allocation9], 0
    loop: start=0, step=1, limit=4
    $region2: #{switch_transformer_forward.5} parent=1 // loop_pre_header
      _
    $region3: #{switch_transformer_forward.5} parent=1 // loop_header
      %s20 = sphi 0, %s24
      %p21 = scmp.ge.s32.totalorder %s20, 4
      %s28 = sphi 0, %s28
      %s30 = sphi 0, %s28
      %s31 = sphi 0, %s30
      %s45 = sphi 0, %s31
      %s51 = sphi 0, %s53
      %s54 = sphi 0, %s51
      %s55 = sphi 0, %s54
      %s71 = sphi 0, %s55
      %s75 = sphi 0, %s75
      %s77 = sphi 0, %s75
      %s78 = sphi 0, %s77
      %s92 = sphi 0, %s78
      %s96 = sphi 0, %s96
      %s98 = sphi 0, %s96
      %s99 = sphi 0, %s98
      %s113 = sphi 0, %s99
      %s117 = sphi 0, %s117
      %s119 = sphi 0, %s117
      %s120 = sphi 0, %s119
      %s134 = sphi 0, %s120
      %s138 = sphi 0, %s138
      %s140 = sphi 0, %s138
      %s141 = sphi 0, %s140
      %s155 = sphi 0, %s141
      %s161 = sphi 0, %s163
      %s164 = sphi 0, %s161
      %s165 = sphi 0, %s164
      %s181 = sphi 0, %s165
      %s187 = sphi 0, %s189
      %s190 = sphi 0, %s187
      %s191 = sphi 0, %s190
      %s207 = sphi 0, %s191
      %s213 = sphi 0, %s215
      %s216 = sphi 0, %s213
      %s217 = sphi 0, %s216
      %s233 = sphi 0, %s217
      %s239 = sphi 0, %s241
      %s242 = sphi 0, %s239
      %s243 = sphi 0, %s242
      %s259 = sphi 0, %s243
    $region4: #{switch_transformer_forward.5} parent=1 // loop_header_branch
      %23 = sbr.rel (%p21) target = $region8
    $region5: #{switch_transformer_forward.5} parent=1 // loop_body
      %s25 = ssub.s32 %s20, 1
      %s26 = ssub.s32 %s20, 2
      %s27 = sadd.s32 %s20, 1
      %s29 = sadd.s32 %s28, 1
      %p32 = scmp.eq.s32.totalorder %s20, 1
      %p33 = scmp.ne.s32.totalorder %s28, %s30
      %p34 = scmp.eq.s32.totalorder %s20, 0
      %p35 = por %p33, %p34
      %p36 = scmp.ne.s32.totalorder %s28, %s30
      %p37 = scmp.eq.s32.totalorder %s25, 1
      %p38 = por %p36, %p37
      %p39 = scmp.ne.s32.totalorder %s30, %s31
      %p40 = scmp.eq.s32.totalorder %s25, 0
      %p41 = por %p39, %p40
      %p42 = scmp.ne.s32.totalorder %s30, %s31
      %p43 = scmp.eq.s32.totalorder %s26, 1
      %p44 = por %p42, %p43
      %p46 = scmp.ne.s32.totalorder %s31, %s45
      %p47 = scmp.eq.s32.totalorder %s26, 0
      %p48 = por %p46, %p47
      %s49 = ssub.s32 %s20, %s27
      %p50 = scmp.eq.s32.totalorder %s49, 0
      %s52 = sadd.s32 %s51, 1
      %s53 = scalar_select %p50, %s51, %s52
      %p56 = pneg %p50
      %p57 = scmp.eq.s32.totalorder %s20, 1
      %p58 = por %p56, %p57
      %p59 = scmp.ne.s32.totalorder %s51, %s54
      %p60 = scmp.eq.s32.totalorder %s20, 0
      %p61 = por %p59, %p60
      %p62 = scmp.ne.s32.totalorder %s51, %s54
      %p63 = scmp.eq.s32.totalorder %s25, 1
      %p64 = por %p62, %p63
      %p65 = scmp.ne.s32.totalorder %s54, %s55
      %p66 = scmp.eq.s32.totalorder %s25, 0
      %p67 = por %p65, %p66
      %p68 = scmp.ne.s32.totalorder %s54, %s55
      %p69 = scmp.eq.s32.totalorder %s26, 1
      %p70 = por %p68, %p69
      %p72 = scmp.ne.s32.totalorder %s55, %s71
      %p73 = scmp.eq.s32.totalorder %s26, 0
      %p74 = por %p72, %p73
      %s76 = sadd.s32 %s75, 1
      %p79 = scmp.eq.s32.totalorder %s20, 1
      %p80 = scmp.ne.s32.totalorder %s75, %s77
      %p81 = scmp.eq.s32.totalorder %s20, 0
      %p82 = por %p80, %p81
      %p83 = scmp.ne.s32.totalorder %s75, %s77
      %p84 = scmp.eq.s32.totalorder %s25, 1
      %p85 = por %p83, %p84
      %p86 = scmp.ne.s32.totalorder %s77, %s78
      %p87 = scmp.eq.s32.totalorder %s25, 0
      %p88 = por %p86, %p87
      %p89 = scmp.ne.s32.totalorder %s77, %s78
      %p90 = scmp.eq.s32.totalorder %s26, 1
      %p91 = por %p89, %p90
      %p93 = scmp.ne.s32.totalorder %s78, %s92
      %p94 = scmp.eq.s32.totalorder %s26, 0
      %p95 = por %p93, %p94
      %s97 = sadd.s32 %s96, 1
      %p100 = scmp.eq.s32.totalorder %s20, 1
      %p101 = scmp.ne.s32.totalorder %s96, %s98
      %p102 = scmp.eq.s32.totalorder %s20, 0
      %p103 = por %p101, %p102
      %p104 = scmp.ne.s32.totalorder %s96, %s98
      %p105 = scmp.eq.s32.totalorder %s25, 1
      %p106 = por %p104, %p105
      %p107 = scmp.ne.s32.totalorder %s98, %s99
      %p108 = scmp.eq.s32.totalorder %s25, 0
      %p109 = por %p107, %p108
      %p110 = scmp.ne.s32.totalorder %s98, %s99
      %p111 = scmp.eq.s32.totalorder %s26, 1
      %p112 = por %p110, %p111
      %p114 = scmp.ne.s32.totalorder %s99, %s113
      %p115 = scmp.eq.s32.totalorder %s26, 0
      %p116 = por %p114, %p115
      %s118 = sadd.s32 %s117, 1
      %p121 = scmp.eq.s32.totalorder %s20, 1
      %p122 = scmp.ne.s32.totalorder %s117, %s119
      %p123 = scmp.eq.s32.totalorder %s20, 0
      %p124 = por %p122, %p123
      %p125 = scmp.ne.s32.totalorder %s117, %s119
      %p126 = scmp.eq.s32.totalorder %s25, 1
      %p127 = por %p125, %p126
      %p128 = scmp.ne.s32.totalorder %s119, %s120
      %p129 = scmp.eq.s32.totalorder %s25, 0
      %p130 = por %p128, %p129
      %p131 = scmp.ne.s32.totalorder %s119, %s120
      %p132 = scmp.eq.s32.totalorder %s26, 1
      %p133 = por %p131, %p132
      %p135 = scmp.ne.s32.totalorder %s120, %s134
      %p136 = scmp.eq.s32.totalorder %s26, 0
      %p137 = por %p135, %p136
      %s139 = sadd.s32 %s138, 1
      %p142 = scmp.eq.s32.totalorder %s20, 1
      %p143 = scmp.ne.s32.totalorder %s138, %s140
      %p144 = scmp.eq.s32.totalorder %s20, 0
      %p145 = por %p143, %p144
      %p146 = scmp.ne.s32.totalorder %s138, %s140
      %p147 = scmp.eq.s32.totalorder %s25, 1
      %p148 = por %p146, %p147
      %p149 = scmp.ne.s32.totalorder %s140, %s141
      %p150 = scmp.eq.s32.totalorder %s25, 0
      %p151 = por %p149, %p150
      %p152 = scmp.ne.s32.totalorder %s140, %s141
      %p153 = scmp.eq.s32.totalorder %s26, 1
      %p154 = por %p152, %p153
      %p156 = scmp.ne.s32.totalorder %s141, %s155
      %p157 = scmp.eq.s32.totalorder %s26, 0
      %p158 = por %p156, %p157
      %s159 = ssub.s32 %s20, %s27
      %p160 = scmp.eq.s32.totalorder %s159, 0
      %s162 = sadd.s32 %s161, 1
      %s163 = scalar_select %p160, %s161, %s162
      %p166 = pneg %p160
      %p167 = scmp.eq.s32.totalorder %s20, 1
      %p168 = por %p166, %p167
      %p169 = scmp.ne.s32.totalorder %s161, %s164
      %p170 = scmp.eq.s32.totalorder %s20, 0
      %p171 = por %p169, %p170
      %p172 = scmp.ne.s32.totalorder %s161, %s164
      %p173 = scmp.eq.s32.totalorder %s25, 1
      %p174 = por %p172, %p173
      %p175 = scmp.ne.s32.totalorder %s164, %s165
      %p176 = scmp.eq.s32.totalorder %s25, 0
      %p177 = por %p175, %p176
      %p178 = scmp.ne.s32.totalorder %s164, %s165
      %p179 = scmp.eq.s32.totalorder %s26, 1
      %p180 = por %p178, %p179
      %p182 = scmp.ne.s32.totalorder %s165, %s181
      %p183 = scmp.eq.s32.totalorder %s26, 0
      %p184 = por %p182, %p183
      %s185 = ssub.s32 %s20, %s27
      %p186 = scmp.eq.s32.totalorder %s185, 0
      %s188 = sadd.s32 %s187, 1
      %s189 = scalar_select %p186, %s187, %s188
      %p192 = pneg %p186
      %p193 = scmp.eq.s32.totalorder %s20, 1
      %p194 = por %p192, %p193
      %p195 = scmp.ne.s32.totalorder %s187, %s190
      %p196 = scmp.eq.s32.totalorder %s20, 0
      %p197 = por %p195, %p196
      %p198 = scmp.ne.s32.totalorder %s187, %s190
      %p199 = scmp.eq.s32.totalorder %s25, 1
      %p200 = por %p198, %p199
      %p201 = scmp.ne.s32.totalorder %s190, %s191
      %p202 = scmp.eq.s32.totalorder %s25, 0
      %p203 = por %p201, %p202
      %p204 = scmp.ne.s32.totalorder %s190, %s191
      %p205 = scmp.eq.s32.totalorder %s26, 1
      %p206 = por %p204, %p205
      %p208 = scmp.ne.s32.totalorder %s191, %s207
      %p209 = scmp.eq.s32.totalorder %s26, 0
      %p210 = por %p208, %p209
      %s211 = ssub.s32 %s20, %s27
      %p212 = scmp.eq.s32.totalorder %s211, 0
      %s214 = sadd.s32 %s213, 1
      %s215 = scalar_select %p212, %s213, %s214
      %p218 = pneg %p212
      %p219 = scmp.eq.s32.totalorder %s20, 1
      %p220 = por %p218, %p219
      %p221 = scmp.ne.s32.totalorder %s213, %s216
      %p222 = scmp.eq.s32.totalorder %s20, 0
      %p223 = por %p221, %p222
      %p224 = scmp.ne.s32.totalorder %s213, %s216
      %p225 = scmp.eq.s32.totalorder %s25, 1
      %p226 = por %p224, %p225
      %p227 = scmp.ne.s32.totalorder %s216, %s217
      %p228 = scmp.eq.s32.totalorder %s25, 0
      %p229 = por %p227, %p228
      %p230 = scmp.ne.s32.totalorder %s216, %s217
      %p231 = scmp.eq.s32.totalorder %s26, 1
      %p232 = por %p230, %p231
      %p234 = scmp.ne.s32.totalorder %s217, %s233
      %p235 = scmp.eq.s32.totalorder %s26, 0
      %p236 = por %p234, %p235
      %s237 = ssub.s32 %s20, %s27
      %p238 = scmp.eq.s32.totalorder %s237, 0
      %s240 = sadd.s32 %s239, 1
      %s241 = scalar_select %p238, %s239, %s240
      %p244 = pneg %p238
      %p245 = scmp.eq.s32.totalorder %s20, 1
      %p246 = por %p244, %p245
      %p247 = scmp.ne.s32.totalorder %s239, %s242
      %p248 = scmp.eq.s32.totalorder %s20, 0
      %p249 = por %p247, %p248
      %p250 = scmp.ne.s32.totalorder %s239, %s242
      %p251 = scmp.eq.s32.totalorder %s25, 1
      %p252 = por %p250, %p251
      %p253 = scmp.ne.s32.totalorder %s242, %s243
      %p254 = scmp.eq.s32.totalorder %s25, 0
      %p255 = por %p253, %p254
      %p256 = scmp.ne.s32.totalorder %s242, %s243
      %p257 = scmp.eq.s32.totalorder %s26, 1
      %p258 = por %p256, %p257
      %p260 = scmp.ne.s32.totalorder %s243, %s259
      %p261 = scmp.eq.s32.totalorder %s26, 0
      %p262 = por %p260, %p261
      %p263 = scmp.le.s32.totalorder 1, %s20
      %p264 = scmp.lt.s32.totalorder %s20, 3
      %p265 = pnand %p263, %p264
      %p266 = pneg %p265
      // Predicated region
      $region9: #{switch_transformer_forward.5} parent=5 // pred_check
        _
      $region10: #{switch_transformer_forward.5} parent=5 // pred_check_branch
        %268 = sbr.rel (%p265) target = $region12
      $region11: #{switch_transformer_forward.5} parent=5 // pred_region
        %s269 = ssub.s32 %s20, 1
        // Predicated region
        $region13: #{switch_transformer_forward.5} parent=11 // pred_check
          %p270 = pneg %p41
        $region14: #{switch_transformer_forward.5} parent=11 // pred_check_branch
          %272 = sbr.rel (%p270) target = $region16
        $region15: #{switch_transformer_forward.5} parent=11 // pred_region
          _
        $region16: #{switch_transformer_forward.5} parent=11 // pred_fallthru
          _
        // Predicated region
        $region17: #{switch_transformer_forward.5} parent=11 // pred_check
          %p273 = pneg %p88
        $region18: #{switch_transformer_forward.5} parent=11 // pred_check_branch
          %275 = sbr.rel (%p273) target = $region20
        $region19: #{switch_transformer_forward.5} parent=11 // pred_region
          %s277 = ssub.s32 96, 96
          %278 = vsyncadd [#allocation4], %s277
          %s280 = sshll.u32 [#allocation3], 4
          %s281 = int_to_ptr.vmem [resolvable:$true] %s280
          %283 = dma.hbm_to_vmem [thread:$0]  %s2, 96, %s281, [#allocation4]
        $region20: #{switch_transformer_forward.5} parent=11 // pred_fallthru
          _
        // Predicated region
        $region21: #{switch_transformer_forward.5} parent=11 // pred_check
          %p284 = pneg %p109
        $region22: #{switch_transformer_forward.5} parent=11 // pred_check_branch
          %286 = sbr.rel (%p284) target = $region24
        $region23: #{switch_transformer_forward.5} parent=11 // pred_region
          %s288 = ssub.s32 96, 96
          %289 = vsyncadd [#allocation6], %s288
          %s291 = sshll.u32 [#allocation5], 4
          %s292 = int_to_ptr.vmem [resolvable:$true] %s291
          %294 = dma.hbm_to_vmem [thread:$0]  %s3, 96, %s292, [#allocation6]
        $region24: #{switch_transformer_forward.5} parent=11 // pred_fallthru
          _
        // Predicated region
        $region25: #{switch_transformer_forward.5} parent=11 // pred_check
          %p295 = pneg %p130
        $region26: #{switch_transformer_forward.5} parent=11 // pred_check_branch
          %297 = sbr.rel (%p295) target = $region28
        $region27: #{switch_transformer_forward.5} parent=11 // pred_region
          %s299 = ssub.s32 6144, 6144
          %300 = vsyncadd [#allocation6], %s299
          %s301 = sshll.u32 [#allocation7], 4
          %s302 = int_to_ptr.vmem [resolvable:$true] %s301
          %307 = dma.hbm_to_vmem [thread:$0]  %s4, 6144, %s302, [#allocation6], 64, 64, 4
        $region28: #{switch_transformer_forward.5} parent=11 // pred_fallthru
          _
        // Predicated region
        $region29: #{switch_transformer_forward.5} parent=11 // pred_check
          %p308 = pneg %p151
        $region30: #{switch_transformer_forward.5} parent=11 // pred_check_branch
          %310 = sbr.rel (%p308) target = $region32
        $region31: #{switch_transformer_forward.5} parent=11 // pred_region
          %s312 = ssub.s32 16, 16
          %313 = vsyncadd [#allocation9], %s312
          %s315 = sshll.u32 [#allocation8], 4
          %s316 = int_to_ptr.vmem [resolvable:$true] %s315
          %318 = dma.hbm_to_vmem [thread:$0]  %s5, 16, %s316, [#allocation9]
        $region32: #{switch_transformer_forward.5} parent=11 // pred_fallthru
          _
      $region12: #{switch_transformer_forward.5} parent=5 // pred_fallthru
        _
      %p319 = scmp.lt.s32.totalorder %s20, 2
      // Predicated region
      $region33: #{switch_transformer_forward.5} parent=5 // pred_check
        %p320 = pneg %p319
      $region34: #{switch_transformer_forward.5} parent=5 // pred_check_branch
        %322 = sbr.rel (%p320) target = $region36
      $region35: #{switch_transformer_forward.5} parent=5 // pred_region
        // Predicated region
        $region37: #{switch_transformer_forward.5} parent=35 // pred_check
          %p323 = pneg %p61
        $region38: #{switch_transformer_forward.5} parent=35 // pred_check_branch
          %325 = sbr.rel (%p323) target = $region40
        $region39: #{switch_transformer_forward.5} parent=35 // pred_region
          %p326 = scmp.lt.s32.totalorder %s20, 1
          %s327 = scalar_select %p326, %s20, 1
          %s328 = smul.addr %s327, 6
          %s329 = smul.addr %s328, 4
          %s330 = scalar_lea.vmem %s1, %s329
        $region40: #{switch_transformer_forward.5} parent=35 // pred_fallthru
          _
      $region36: #{switch_transformer_forward.5} parent=5 // pred_fallthru
        _
      %p331 = scmp.le.s32.totalorder 1, %s20
      %p332 = scmp.lt.s32.totalorder %s20, 3
      %p333 = pnand %p331, %p332
      %p334 = pneg %p333
      // Predicated region
      $region41: #{switch_transformer_forward.5} parent=5 // pred_check
        _
      $region42: #{switch_transformer_forward.5} parent=5 // pred_check_branch
        %336 = sbr.rel (%p333) target = $region44
      $region43: #{switch_transformer_forward.5} parent=5 // pred_region
        %s337 = ssub.s32 %s20, 1
        // Predicated region
        $region45: #{switch_transformer_forward.5} parent=43 // pred_check
          %p338 = pneg %p88
        $region46: #{switch_transformer_forward.5} parent=43 // pred_check_branch
          %340 = sbr.rel (%p338) target = $region48
        $region47: #{switch_transformer_forward.5} parent=43 // pred_region
          %341 = dma.done [#allocation4], 96
        $region48: #{switch_transformer_forward.5} parent=43 // pred_fallthru
          _
        // Predicated region
        $region49: #{switch_transformer_forward.5} parent=43 // pred_check
          %p342 = pneg %p109
        $region50: #{switch_transformer_forward.5} parent=43 // pred_check_branch
          %344 = sbr.rel (%p342) target = $region52
        $region51: #{switch_transformer_forward.5} parent=43 // pred_region
          %345 = dma.done [#allocation6], 96
        $region52: #{switch_transformer_forward.5} parent=43 // pred_fallthru
          _
        // Predicated region
        $region53: #{switch_transformer_forward.5} parent=43 // pred_check
          %p346 = pneg %p130
        $region54: #{switch_transformer_forward.5} parent=43 // pred_check_branch
          %348 = sbr.rel (%p346) target = $region56
        $region55: #{switch_transformer_forward.5} parent=43 // pred_region
          %349 = dma.done [#allocation6], 6144
        $region56: #{switch_transformer_forward.5} parent=43 // pred_fallthru
          _
        // Predicated region
        $region57: #{switch_transformer_forward.5} parent=43 // pred_check
          %p350 = pneg %p151
        $region58: #{switch_transformer_forward.5} parent=43 // pred_check_branch
          %352 = sbr.rel (%p350) target = $region60
        $region59: #{switch_transformer_forward.5} parent=43 // pred_region
          %353 = dma.done [#allocation9], 16
        $region60: #{switch_transformer_forward.5} parent=43 // pred_fallthru
          _
        %p354 = pneg %p41
        %p355 = pneg %p38
        %p356 = scmp.lt.s32.totalorder %s25, 1
        %s357 = scalar_select %p356, %s25, 1
        %s358 = smul.addr %s357, 6
        %s359 = smul.addr %s358, 4
        %s360 = scalar_lea.vmem %s1, %s359
        %p361 = pneg %p67
        %p362 = pneg %p64
        %p363 = pneg %p88
        %p364 = pneg %p85
        %p365 = pneg %p109
        %p366 = pneg %p106
        %p367 = pneg %p130
        %p368 = pneg %p127
        %p369 = pneg %p151
        %p370 = pneg %p148
        %p371 = pneg %p177
        %p372 = pneg %p174
        %p373 = scmp.lt.s32.totalorder %s25, 1
        %s374 = scalar_select %p373, %s25, 1
        %s375 = smul.addr %s374, 6
        %s376 = smul.addr %s375, 4
        %s377 = scalar_lea.vmem %s6, %s376
        %p378 = pneg %p203
        %p379 = pneg %p200
        %p380 = scmp.lt.s32.totalorder %s25, 1
        %s381 = scalar_select %p380, %s25, 1
        %s382 = smul.addr %s381, 8
        %s383 = scalar_lea.vmem %s7, %s382
        %p384 = pneg %p229
        %p385 = pneg %p226
        %p386 = scmp.lt.s32.totalorder %s25, 1
        %s387 = scalar_select %p386, %s25, 1
        %s388 = smul.addr %s387, 8
        %s389 = scalar_lea.vmem %s8, %s388
        %p390 = pneg %p255
        %p391 = pneg %p252
        %p392 = scmp.lt.s32.totalorder %s25, 1
        %s393 = scalar_select %p392, %s25, 1
        %s394 = smul.addr %s393, 8
        %s395 = scalar_lea.vmem %s9, %s394
        %p396 = scmp.lt.s32.totalorder %s25, 1
        %s397 = scalar_select %p396, %s25, 1
        %s398 = smul.addr %s397, 6
        %s399 = smul.addr %s398, 4
        %s400 = scalar_lea.vmem %s1, %s399
        %p401 = scmp.lt.s32.totalorder %s25, 1
        %s402 = scalar_select %p401, %s25, 1
        %s403 = smul.addr %s402, 6
        %s404 = smul.addr %s403, 4
        %s405 = scalar_lea.vmem %s6, %s404
        %p406 = scmp.lt.s32.totalorder %s25, 1
        %s407 = scalar_select %p406, %s25, 1
        %s408 = smul.addr %s407, 8
        %s409 = scalar_lea.vmem %s7, %s408
        %p410 = scmp.lt.s32.totalorder %s25, 1
        %s411 = scalar_select %p410, %s25, 1
        %s412 = smul.addr %s411, 8
        %s413 = scalar_lea.vmem %s8, %s412
        %p414 = scmp.lt.s32.totalorder %s25, 1
        %s415 = scalar_select %p414, %s25, 1
        %s416 = smul.addr %s415, 8
        %s417 = scalar_lea.vmem %s9, %s416
        %s419 = smul.u32 %s25, 8
        %v420 = vlaneseq
        %v421 = vshrl.u32 %v420, 7
        %v422 = vstv %s419
        %v423 = vadd.s32 %v421, %v422
        %s424 = sld [smem:[#allocation2]]
        %v425 = vstv %s424
        %vm426 = vcmp.lt.s32.totalorder %v423, %v425
        %v427 = vsel %vm426, 1, 0
        %v428 = vcvt.s32.f32 %v427
        %v429 = vld [vmem:[%s400] sm:$0xff]
        %v430 = vld [vmem:[%s400 + $0x8] sm:$0xff]
        %v431 = vld [vmem:[%s400 + $0x10] sm:$0xff]
        %v432 = vunpack.c.l.bf16 %v429
        %v433 = vunpack.c.h.bf16 %v429
        %v434 = vunpack.c.l.bf16 %v430
        %v435 = vunpack.c.h.bf16 %v430
        %v436 = vunpack.c.l.bf16 %v431
        %v437 = vunpack.c.h.bf16 %v431
        %v438 = vld [vmem:[#allocation3] sm:$0x3f]
        %v439 = vld [vmem:[#allocation5] sm:$0x3f]
        %v440 = vadd.f32 %v432, %v433
        %v441 = vadd.f32 %v440, %v434
        %v442 = vadd.f32 %v441, %v435
        %v443 = vadd.f32 %v442, %v436
        %v444 = vadd.f32 %v443, %v437
        %445 = vadd.xlane.f32.xlu0 %v444
        %v446 = vpop.xlane.xlu0 %445
        %v447 = vrcp.pop 768.0
        %v448 = vmul.f32 %v446, %v447
        %v449 = vsub.f32 %v432, %v448
        %v450 = vsub.f32 %v433, %v448
        %v451 = vsub.f32 %v434, %v448
        %v452 = vsub.f32 %v435, %v448
        %v453 = vsub.f32 %v436, %v448
        %v454 = vsub.f32 %v437, %v448
        %v455 = vmul.f32 %v449, %v449
        %v456 = vmul.f32 %v450, %v450
        %v457 = vmul.f32 %v451, %v451
        %v458 = vmul.f32 %v452, %v452
        %v459 = vmul.f32 %v453, %v453
        %v460 = vmul.f32 %v454, %v454
        %v461 = vadd.f32 %v455, %v456
        %v462 = vadd.f32 %v461, %v457
        %v463 = vadd.f32 %v462, %v458
        %v464 = vadd.f32 %v463, %v459
        %v465 = vadd.f32 %v464, %v460
        %466 = vadd.xlane.f32.xlu0 %v465
        %v467 = vpop.xlane.xlu0 %466
        %v468 = vmul.f32 %v467, %v447
        %v469 = vadd.f32 %v468, 1e-05
        %v470 = vrsqrt.pop %v469
        %v471 = vmul.f32 %v449, %v470
        %v472 = vmul.f32 %v450, %v470
        %v473 = vmul.f32 %v451, %v470
        %v474 = vmul.f32 %v452, %v470
        %v475 = vmul.f32 %v453, %v470
        %v476 = vmul.f32 %v454, %v470
        %v478 = vlaneseq
        %v479 = vshrl.u32 %v478, 7
        %v480 = vsub.s32 0, %v479
        %v481 = vrot.slane %v438, %v480
        %v482 = vlaneseq
        %v483 = vshrl.u32 %v482, 7
        %v484 = vsub.s32 1, %v483
        %v485 = vrot.slane %v438, %v484
        %v486 = vlaneseq
        %v487 = vshrl.u32 %v486, 7
        %v488 = vsub.s32 2, %v487
        %v489 = vrot.slane %v438, %v488
        %v490 = vlaneseq
        %v491 = vshrl.u32 %v490, 7
        %v492 = vsub.s32 3, %v491
        %v493 = vrot.slane %v438, %v492
        %v494 = vlaneseq
        %v495 = vshrl.u32 %v494, 7
        %v496 = vsub.s32 4, %v495
        %v497 = vrot.slane %v438, %v496
        %v498 = vlaneseq
        %v499 = vshrl.u32 %v498, 7
        %v500 = vsub.s32 5, %v499
        %v501 = vrot.slane %v438, %v500
        %v508 = vmul.f32 %v471, %v481
        %v509 = vmul.f32 %v472, %v485
        %v510 = vmul.f32 %v473, %v489
        %v511 = vmul.f32 %v474, %v493
        %v512 = vmul.f32 %v475, %v497
        %v513 = vmul.f32 %v476, %v501
        %v515 = vlaneseq
        %v516 = vshrl.u32 %v515, 7
        %v517 = vsub.s32 0, %v516
        %v518 = vrot.slane %v439, %v517
        %v519 = vlaneseq
        %v520 = vshrl.u32 %v519, 7
        %v521 = vsub.s32 1, %v520
        %v522 = vrot.slane %v439, %v521
        %v523 = vlaneseq
        %v524 = vshrl.u32 %v523, 7
        %v525 = vsub.s32 2, %v524
        %v526 = vrot.slane %v439, %v525
        %v527 = vlaneseq
        %v528 = vshrl.u32 %v527, 7
        %v529 = vsub.s32 3, %v528
        %v530 = vrot.slane %v439, %v529
        %v531 = vlaneseq
        %v532 = vshrl.u32 %v531, 7
        %v533 = vsub.s32 4, %v532
        %v534 = vrot.slane %v439, %v533
        %v535 = vlaneseq
        %v536 = vshrl.u32 %v535, 7
        %v537 = vsub.s32 5, %v536
        %v538 = vrot.slane %v439, %v537
        %v545 = vadd.f32 %v508, %v518
        %v546 = vadd.f32 %v509, %v522
        %v547 = vadd.f32 %v510, %v526
        %v548 = vadd.f32 %v511, %v530
        %v549 = vadd.f32 %v512, %v534
        %v550 = vadd.f32 %v513, %v538
        %v551 = vpack.c.bf16 %v545, %v545
        %v552 = vpack.c.bf16 %v546, %v546
        %v553 = vpack.c.bf16 %v547, %v547
        %v554 = vpack.c.bf16 %v548, %v548
        %v555 = vpack.c.bf16 %v549, %v549
        %v556 = vpack.c.bf16 %v550, %v550
        %v557 = vld [vmem:[#allocation7] sm:$0xf]
        %v558 = vld [vmem:[#allocation7 + $0x4] sm:$0xf]
        %v559 = vld [vmem:[#allocation7 + $0x8] sm:$0xf]
        %v560 = vld [vmem:[#allocation7 + $0xc] sm:$0xf]
        %v561 = vld [vmem:[#allocation7 + $0x10] sm:$0xf]
        %v562 = vld [vmem:[#allocation7 + $0x14] sm:$0xf]
        %v563 = vld [vmem:[#allocation7 + $0x18] sm:$0xf]
        %v564 = vld [vmem:[#allocation7 + $0x1c] sm:$0xf]
        %v565 = vld [vmem:[#allocation7 + $0x20] sm:$0xf]
        %v566 = vld [vmem:[#allocation7 + $0x24] sm:$0xf]
        %v567 = vld [vmem:[#allocation7 + $0x28] sm:$0xf]
        %v568 = vld [vmem:[#allocation7 + $0x2c] sm:$0xf]
        %v569 = vld [vmem:[#allocation7 + $0x30] sm:$0xf]
        %v570 = vld [vmem:[#allocation7 + $0x34] sm:$0xf]
        %v571 = vld [vmem:[#allocation7 + $0x38] sm:$0xf]
        %v572 = vld [vmem:[#allocation7 + $0x3c] sm:$0xf]
        %v573 = vld [vmem:[#allocation7 + $0x40] sm:$0xf]
        %v574 = vld [vmem:[#allocation7 + $0x44] sm:$0xf]
        %v575 = vld [vmem:[#allocation7 + $0x48] sm:$0xf]
        %v576 = vld [vmem:[#allocation7 + $0x4c] sm:$0xf]
        %v577 = vld [vmem:[#allocation7 + $0x50] sm:$0xf]
        %v578 = vld [vmem:[#allocation7 + $0x54] sm:$0xf]
        %v579 = vld [vmem:[#allocation7 + $0x58] sm:$0xf]
        %v580 = vld [vmem:[#allocation7 + $0x5c] sm:$0xf]
        %v581 = vld [vmem:[#allocation7 + $0x60] sm:$0xf]
        %v582 = vld [vmem:[#allocation7 + $0x64] sm:$0xf]
        %v583 = vld [vmem:[#allocation7 + $0x68] sm:$0xf]
        %v584 = vld [vmem:[#allocation7 + $0x6c] sm:$0xf]
        %v585 = vld [vmem:[#allocation7 + $0x70] sm:$0xf]
        %v586 = vld [vmem:[#allocation7 + $0x74] sm:$0xf]
        %v587 = vld [vmem:[#allocation7 + $0x78] sm:$0xf]
        %v588 = vld [vmem:[#allocation7 + $0x7c] sm:$0xf]
        %v589 = vld [vmem:[#allocation7 + $0x80] sm:$0xf]
        %v590 = vld [vmem:[#allocation7 + $0x84] sm:$0xf]
        %v591 = vld [vmem:[#allocation7 + $0x88] sm:$0xf]
        %v592 = vld [vmem:[#allocation7 + $0x8c] sm:$0xf]
        %v593 = vld [vmem:[#allocation7 + $0x90] sm:$0xf]
        %v594 = vld [vmem:[#allocation7 + $0x94] sm:$0xf]
        %v595 = vld [vmem:[#allocation7 + $0x98] sm:$0xf]
        %v596 = vld [vmem:[#allocation7 + $0x9c] sm:$0xf]
        %v597 = vld [vmem:[#allocation7 + $0xa0] sm:$0xf]
        %v598 = vld [vmem:[#allocation7 + $0xa4] sm:$0xf]
        %v599 = vld [vmem:[#allocation7 + $0xa8] sm:$0xf]
        %v600 = vld [vmem:[#allocation7 + $0xac] sm:$0xf]
        %v601 = vld [vmem:[#allocation7 + $0xb0] sm:$0xf]
        %v602 = vld [vmem:[#allocation7 + $0xb4] sm:$0xf]
        %v603 = vld [vmem:[#allocation7 + $0xb8] sm:$0xf]
        %v604 = vld [vmem:[#allocation7 + $0xbc] sm:$0xf]
        %v605 = vld [vmem:[#allocation7 + $0xc0] sm:$0xf]
        %v606 = vld [vmem:[#allocation7 + $0xc4] sm:$0xf]
        %v607 = vld [vmem:[#allocation7 + $0xc8] sm:$0xf]
        %v608 = vld [vmem:[#allocation7 + $0xcc] sm:$0xf]
        %v609 = vld [vmem:[#allocation7 + $0xd0] sm:$0xf]
        %v610 = vld [vmem:[#allocation7 + $0xd4] sm:$0xf]
        %v611 = vld [vmem:[#allocation7 + $0xd8] sm:$0xf]
        %v612 = vld [vmem:[#allocation7 + $0xdc] sm:$0xf]
        %v613 = vld [vmem:[#allocation7 + $0xe0] sm:$0xf]
        %v614 = vld [vmem:[#allocation7 + $0xe4] sm:$0xf]
        %v615 = vld [vmem:[#allocation7 + $0xe8] sm:$0xf]
        %v616 = vld [vmem:[#allocation7 + $0xec] sm:$0xf]
        %v617 = vld [vmem:[#allocation7 + $0xf0] sm:$0xf]
        %v618 = vld [vmem:[#allocation7 + $0xf4] sm:$0xf]
        %v619 = vld [vmem:[#allocation7 + $0xf8] sm:$0xf]
        %v620 = vld [vmem:[#allocation7 + $0xfc] sm:$0xf]
        %v621 = vld [vmem:[#allocation7 + $0x100] sm:$0xf]
        %v622 = vld [vmem:[#allocation7 + $0x104] sm:$0xf]
        %v623 = vld [vmem:[#allocation7 + $0x108] sm:$0xf]
        %v624 = vld [vmem:[#allocation7 + $0x10c] sm:$0xf]
        %v625 = vld [vmem:[#allocation7 + $0x110] sm:$0xf]
        %v626 = vld [vmem:[#allocation7 + $0x114] sm:$0xf]
        %v627 = vld [vmem:[#allocation7 + $0x118] sm:$0xf]
        %v628 = vld [vmem:[#allocation7 + $0x11c] sm:$0xf]
        %v629 = vld [vmem:[#allocation7 + $0x120] sm:$0xf]
        %v630 = vld [vmem:[#allocation7 + $0x124] sm:$0xf]
        %v631 = vld [vmem:[#allocation7 + $0x128] sm:$0xf]
        %v632 = vld [vmem:[#allocation7 + $0x12c] sm:$0xf]
        %v633 = vld [vmem:[#allocation7 + $0x130] sm:$0xf]
        %v634 = vld [vmem:[#allocation7 + $0x134] sm:$0xf]
        %v635 = vld [vmem:[#allocation7 + $0x138] sm:$0xf]
        %v636 = vld [vmem:[#allocation7 + $0x13c] sm:$0xf]
        %v637 = vld [vmem:[#allocation7 + $0x140] sm:$0xf]
        %v638 = vld [vmem:[#allocation7 + $0x144] sm:$0xf]
        %v639 = vld [vmem:[#allocation7 + $0x148] sm:$0xf]
        %v640 = vld [vmem:[#allocation7 + $0x14c] sm:$0xf]
        %v641 = vld [vmem:[#allocation7 + $0x150] sm:$0xf]
        %v642 = vld [vmem:[#allocation7 + $0x154] sm:$0xf]
        %v643 = vld [vmem:[#allocation7 + $0x158] sm:$0xf]
        %v644 = vld [vmem:[#allocation7 + $0x15c] sm:$0xf]
        %v645 = vld [vmem:[#allocation7 + $0x160] sm:$0xf]
        %v646 = vld [vmem:[#allocation7 + $0x164] sm:$0xf]
        %v647 = vld [vmem:[#allocation7 + $0x168] sm:$0xf]
        %v648 = vld [vmem:[#allocation7 + $0x16c] sm:$0xf]
        %v649 = vld [vmem:[#allocation7 + $0x170] sm:$0xf]
        %v650 = vld [vmem:[#allocation7 + $0x174] sm:$0xf]
        %v651 = vld [vmem:[#allocation7 + $0x178] sm:$0xf]
        %v652 = vld [vmem:[#allocation7 + $0x17c] sm:$0xf]
        %v653 = vld [vmem:[#allocation8] sm:$0x1]
        %v655 = vlaneseq
        %v656 = vshrl.u32 %v655, 7
        %v657 = vsub.s32 0, %v656
        %v658 = vrot.slane %v653, %v657
        %v756 = vunpack.c.l.b16 %v557
        %v757 = vunpack.c.l.b16 %v558
        %v758 = vunpack.c.l.b16 %v559
        %v759 = vunpack.c.l.b16 %v560
        %v760 = vunpack.c.l.b16 %v561
        %v761 = vunpack.c.l.b16 %v562
        %v762 = vunpack.c.l.b16 %v563
        %v763 = vunpack.c.l.b16 %v564
        %v764 = vunpack.c.l.b16 %v565
        %v765 = vunpack.c.l.b16 %v566
        %v766 = vunpack.c.l.b16 %v567
        %v767 = vunpack.c.l.b16 %v568
        %v768 = vunpack.c.l.b16 %v569
        %v769 = vunpack.c.l.b16 %v570
        %v770 = vunpack.c.l.b16 %v571
        %v771 = vunpack.c.l.b16 %v572
        %v772 = vunpack.c.l.b16 %v573
        %v773 = vunpack.c.l.b16 %v574
        %v774 = vunpack.c.l.b16 %v575
        %v775 = vunpack.c.l.b16 %v576
        %v776 = vunpack.c.l.b16 %v577
        %v777 = vunpack.c.l.b16 %v578
        %v778 = vunpack.c.l.b16 %v579
        %v779 = vunpack.c.l.b16 %v580
        %v780 = vunpack.c.l.b16 %v581
        %v781 = vunpack.c.l.b16 %v582
        %v782 = vunpack.c.l.b16 %v583
        %v783 = vunpack.c.l.b16 %v584
        %v784 = vunpack.c.l.b16 %v585
        %v785 = vunpack.c.l.b16 %v586
        %v786 = vunpack.c.l.b16 %v587
        %v787 = vunpack.c.l.b16 %v588
        %v788 = vunpack.c.l.b16 %v589
        %v789 = vunpack.c.l.b16 %v590
        %v790 = vunpack.c.l.b16 %v591
        %v791 = vunpack.c.l.b16 %v592
        %v792 = vunpack.c.l.b16 %v593
        %v793 = vunpack.c.l.b16 %v594
        %v794 = vunpack.c.l.b16 %v595
        %v795 = vunpack.c.l.b16 %v596
        %v796 = vunpack.c.l.b16 %v597
        %v797 = vunpack.c.l.b16 %v598
        %v798 = vunpack.c.l.b16 %v599
        %v799 = vunpack.c.l.b16 %v600
        %v800 = vunpack.c.l.b16 %v601
        %v801 = vunpack.c.l.b16 %v602
        %v802 = vunpack.c.l.b16 %v603
        %v803 = vunpack.c.l.b16 %v604
        %v804 = vunpack.c.l.b16 %v605
        %v805 = vunpack.c.l.b16 %v606
        %v806 = vunpack.c.l.b16 %v607
        %v807 = vunpack.c.l.b16 %v608
        %v808 = vunpack.c.l.b16 %v609
        %v809 = vunpack.c.l.b16 %v610
        %v810 = vunpack.c.l.b16 %v611
        %v811 = vunpack.c.l.b16 %v612
        %v812 = vunpack.c.l.b16 %v613
        %v813 = vunpack.c.l.b16 %v614
        %v814 = vunpack.c.l.b16 %v615
        %v815 = vunpack.c.l.b16 %v616
        %v816 = vunpack.c.l.b16 %v617
        %v817 = vunpack.c.l.b16 %v618
        %v818 = vunpack.c.l.b16 %v619
        %v819 = vunpack.c.l.b16 %v620
        %v820 = vunpack.c.l.b16 %v621
        %v821 = vunpack.c.l.b16 %v622
        %v822 = vunpack.c.l.b16 %v623
        %v823 = vunpack.c.l.b16 %v624
        %v824 = vunpack.c.l.b16 %v625
        %v825 = vunpack.c.l.b16 %v626
        %v826 = vunpack.c.l.b16 %v627
        %v827 = vunpack.c.l.b16 %v628
        %v828 = vunpack.c.l.b16 %v629
        %v829 = vunpack.c.l.b16 %v630
        %v830 = vunpack.c.l.b16 %v631
        %v831 = vunpack.c.l.b16 %v632
        %v832 = vunpack.c.l.b16 %v633
        %v833 = vunpack.c.l.b16 %v634
        %v834 = vunpack.c.l.b16 %v635
        %v835 = vunpack.c.l.b16 %v636
        %v836 = vunpack.c.l.b16 %v637
        %v837 = vunpack.c.l.b16 %v638
        %v838 = vunpack.c.l.b16 %v639
        %v839 = vunpack.c.l.b16 %v640
        %v840 = vunpack.c.l.b16 %v641
        %v841 = vunpack.c.l.b16 %v642
        %v842 = vunpack.c.l.b16 %v643
        %v843 = vunpack.c.l.b16 %v644
        %v844 = vunpack.c.l.b16 %v645
        %v845 = vunpack.c.l.b16 %v646
        %v846 = vunpack.c.l.b16 %v647
        %v847 = vunpack.c.l.b16 %v648
        %v848 = vunpack.c.l.b16 %v649
        %v849 = vunpack.c.l.b16 %v650
        %v850 = vunpack.c.l.b16 %v651
        %v851 = vunpack.c.l.b16 %v652
        %v852 = vpack.c.b16 %v757, %v756
        %v853 = vpack.c.b16 %v759, %v758
        %v854 = vpack.c.b16 %v761, %v760
        %v855 = vpack.c.b16 %v763, %v762
        %v856 = vpack.c.b16 %v765, %v764
        %v857 = vpack.c.b16 %v767, %v766
        %v858 = vpack.c.b16 %v769, %v768
        %v859 = vpack.c.b16 %v771, %v770
        %v860 = vpack.c.b16 %v773, %v772
        %v861 = vpack.c.b16 %v775, %v774
        %v862 = vpack.c.b16 %v777, %v776
        %v863 = vpack.c.b16 %v779, %v778
        %v864 = vpack.c.b16 %v781, %v780
        %v865 = vpack.c.b16 %v783, %v782
        %v866 = vpack.c.b16 %v785, %v784
        %v867 = vpack.c.b16 %v787, %v786
        %v868 = vpack.c.b16 %v789, %v788
        %v869 = vpack.c.b16 %v791, %v790
        %v870 = vpack.c.b16 %v793, %v792
        %v871 = vpack.c.b16 %v795, %v794
        %v872 = vpack.c.b16 %v797, %v796
        %v873 = vpack.c.b16 %v799, %v798
        %v874 = vpack.c.b16 %v801, %v800
        %v875 = vpack.c.b16 %v803, %v802
        %v876 = vpack.c.b16 %v805, %v804
        %v877 = vpack.c.b16 %v807, %v806
        %v878 = vpack.c.b16 %v809, %v808
        %v879 = vpack.c.b16 %v811, %v810
        %v880 = vpack.c.b16 %v813, %v812
        %v881 = vpack.c.b16 %v815, %v814
        %v882 = vpack.c.b16 %v817, %v816
        %v883 = vpack.c.b16 %v819, %v818
        %v884 = vpack.c.b16 %v821, %v820
        %v885 = vpack.c.b16 %v823, %v822
        %v886 = vpack.c.b16 %v825, %v824
        %v887 = vpack.c.b16 %v827, %v826
        %v888 = vpack.c.b16 %v829, %v828
        %v889 = vpack.c.b16 %v831, %v830
        %v890 = vpack.c.b16 %v833, %v832
        %v891 = vpack.c.b16 %v835, %v834
        %v892 = vpack.c.b16 %v837, %v836
        %v893 = vpack.c.b16 %v839, %v838
        %v894 = vpack.c.b16 %v841, %v840
        %v895 = vpack.c.b16 %v843, %v842
        %v896 = vpack.c.b16 %v845, %v844
        %v897 = vpack.c.b16 %v847, %v846
        %v898 = vpack.c.b16 %v849, %v848
        %v899 = vpack.c.b16 %v851, %v850
        %948 = vmatprep.subr.bf16.mxu0 0
        %949 = vmatpush1.bf16.msra.mxu0 %v859
        %950 = vmatprep.subr.bf16.mxu0 0
        %951 = vmatpush1.bf16.msra.mxu0 %v858
        %952 = vmatprep.subr.bf16.mxu0 0
        %953 = vmatpush1.bf16.msra.mxu0 %v857
        %954 = vmatprep.subr.bf16.mxu0 0
        %955 = vmatpush1.bf16.msra.mxu0 %v856
        %956 = vmatprep.subr.bf16.mxu0 0
        %957 = vmatpush1.bf16.msra.mxu0 %v855
        %958 = vmatprep.subr.bf16.mxu0 0
        %959 = vmatpush1.bf16.msra.mxu0 %v854
        %960 = vmatprep.subr.bf16.mxu0 0
        %961 = vmatpush1.bf16.msra.mxu0 %v853
        %962 = vmatprep.subr.bf16.mxu0 0
        %963 = vmatpush1.bf16.msra.mxu0 %v852
        %964 = vmatprep.subr.bf16.mxu0 0
        %965 = vmatpush2.bf16.msra.mxu0 %v867
        %966 = vmatprep.subr.bf16.mxu0 0
        %967 = vmatpush2.bf16.msra.mxu0 %v866
        %968 = vmatprep.subr.bf16.mxu0 0
        %969 = vmatpush2.bf16.msra.mxu0 %v865
        %970 = vmatprep.subr.bf16.mxu0 0
        %971 = vmatpush2.bf16.msra.mxu0 %v864
        %972 = vmatprep.subr.bf16.mxu0 0
        %973 = vmatpush2.bf16.msra.mxu0 %v863
        %974 = vmatprep.subr.bf16.mxu0 0
        %975 = vmatpush2.bf16.msra.mxu0 %v862
        %976 = vmatprep.subr.bf16.mxu0 0
        %977 = vmatpush2.bf16.msra.mxu0 %v861
        %978 = vmatprep.subr.bf16.mxu0 0
        %979 = vmatpush2.bf16.msra.mxu0 %v860
        %980 = vmatprep.mubr.bf16.mxu0 %v552
        %981 = vmatmul.mubr.bf16.gmra.mxu0 %v551
        %v982 = vpop.f32.mrf.mxu0
        %v983 = vadd.f32 %v658, %v982
        %v984 = vpop.f32.mrf.mxu0
        %v985 = vpop.f32.mrf.mxu0
        %v986 = vpop.f32.mrf.mxu0
        %987 = vdwg.mxu0
        %988 = vmatprep.subr.bf16.mxu0 0
        %989 = vmatpush1.bf16.msra.mxu0 %v875
        %990 = vmatprep.subr.bf16.mxu0 0
        %991 = vmatpush1.bf16.msra.mxu0 %v874
        %992 = vmatprep.subr.bf16.mxu0 0
        %993 = vmatpush1.bf16.msra.mxu0 %v873
        %994 = vmatprep.subr.bf16.mxu0 0
        %995 = vmatpush1.bf16.msra.mxu0 %v872
        %996 = vmatprep.subr.bf16.mxu0 0
        %997 = vmatpush1.bf16.msra.mxu0 %v871
        %998 = vmatprep.subr.bf16.mxu0 0
        %999 = vmatpush1.bf16.msra.mxu0 %v870
        %1000 = vmatprep.subr.bf16.mxu0 0
        %1001 = vmatpush1.bf16.msra.mxu0 %v869
        %1002 = vmatprep.subr.bf16.mxu0 0
        %1003 = vmatpush1.bf16.msra.mxu0 %v868
        %1004 = vmatprep.subr.bf16.mxu0 0
        %1005 = vmatpush2.bf16.msra.mxu0 %v883
        %1006 = vmatprep.subr.bf16.mxu0 0
        %1007 = vmatpush2.bf16.msra.mxu0 %v882
        %1008 = vmatprep.subr.bf16.mxu0 0
        %1009 = vmatpush2.bf16.msra.mxu0 %v881
        %1010 = vmatprep.subr.bf16.mxu0 0
        %1011 = vmatpush2.bf16.msra.mxu0 %v880
        %1012 = vmatprep.subr.bf16.mxu0 0
        %1013 = vmatpush2.bf16.msra.mxu0 %v879
        %1014 = vmatprep.subr.bf16.mxu0 0
        %1015 = vmatpush2.bf16.msra.mxu0 %v878
        %1016 = vmatprep.subr.bf16.mxu0 0
        %1017 = vmatpush2.bf16.msra.mxu0 %v877
        %1018 = vmatprep.subr.bf16.mxu0 0
        %1019 = vmatpush2.bf16.msra.mxu0 %v876
        %1020 = vmatprep.mubr.bf16.mxu0 %v554
        %1021 = vmatmul.mubr.bf16.gmra.mxu0 %v553
        %v1022 = vpop.f32.mrf.mxu0
        %v1023 = vadd.f32 %v983, %v1022
        %v1024 = vpop.f32.mrf.mxu0
        %v1025 = vpop.f32.mrf.mxu0
        %v1026 = vpop.f32.mrf.mxu0
        %1027 = vdwg.mxu0
        %1028 = vmatprep.subr.bf16.mxu0 0
        %1029 = vmatpush1.bf16.msra.mxu0 %v891
        %1030 = vmatprep.subr.bf16.mxu0 0
        %1031 = vmatpush1.bf16.msra.mxu0 %v890
        %1032 = vmatprep.subr.bf16.mxu0 0
        %1033 = vmatpush1.bf16.msra.mxu0 %v889
        %1034 = vmatprep.subr.bf16.mxu0 0
        %1035 = vmatpush1.bf16.msra.mxu0 %v888
        %1036 = vmatprep.subr.bf16.mxu0 0
        %1037 = vmatpush1.bf16.msra.mxu0 %v887
        %1038 = vmatprep.subr.bf16.mxu0 0
        %1039 = vmatpush1.bf16.msra.mxu0 %v886
        %1040 = vmatprep.subr.bf16.mxu0 0
        %1041 = vmatpush1.bf16.msra.mxu0 %v885
        %1042 = vmatprep.subr.bf16.mxu0 0
        %1043 = vmatpush1.bf16.msra.mxu0 %v884
        %1044 = vmatprep.subr.bf16.mxu0 0
        %1045 = vmatpush2.bf16.msra.mxu0 %v899
        %1046 = vmatprep.subr.bf16.mxu0 0
        %1047 = vmatpush2.bf16.msra.mxu0 %v898
        %1048 = vmatprep.subr.bf16.mxu0 0
        %1049 = vmatpush2.bf16.msra.mxu0 %v897
        %1050 = vmatprep.subr.bf16.mxu0 0
        %1051 = vmatpush2.bf16.msra.mxu0 %v896
        %1052 = vmatprep.subr.bf16.mxu0 0
        %1053 = vmatpush2.bf16.msra.mxu0 %v895
        %1054 = vmatprep.subr.bf16.mxu0 0
        %1055 = vmatpush2.bf16.msra.mxu0 %v894
        %1056 = vmatprep.subr.bf16.mxu0 0
        %1057 = vmatpush2.bf16.msra.mxu0 %v893
        %1058 = vmatprep.subr.bf16.mxu0 0
        %1059 = vmatpush2.bf16.msra.mxu0 %v892
        %1060 = vmatprep.mubr.bf16.mxu0 %v556
        %1061 = vmatmul.mubr.bf16.gmra.mxu0 %v555
        %v1062 = vpop.f32.mrf.mxu0
        %v1063 = vadd.f32 %v1023, %v1062
        %v1064 = vpop.f32.mrf.mxu0
        %v1065 = vpop.f32.mrf.mxu0
        %v1066 = vpop.f32.mrf.mxu0
        %1067 = vdwg.mxu0
        %1068 = vmax.xlane.f32.xlu0 %v1063
        %v1069 = vpop.xlane.xlu0 %1068
        %v1070 = vsub.f32 %v1063, %v1069
        %v1071 = vmul.f32 %v1070, 1.442695
        %v1072 = vpow.pop %v1071
        %1073 = vadd.xlane.f32.xlu0 %v1072
        %v1074 = vpop.xlane.xlu0 %1073
        %v1075 = vrcp.pop %v1074
        %v1076 = vmul.f32 %v1072, %v1075
        %1077 = vmax.xlane.f32.xlu0 %v1076
        %v1078 = vpop.xlane.xlu0 %1077
        %v1079 = vlaneseq
        %v1080 = vand.u32 %v1079, 127
        %vm1081 = vcmp.eq.f32.partialorder %v1076, %v1078
        %v1082 = vsel %vm1081, %v1080, 128
        %v1083 = vand.u32 %v1082, 65535
        %v1084 = vshra.s32 %v1082, 16
        %v1085 = vcvt.s32.f32 %v1083
        %v1086 = vcvt.s32.f32 %v1084
        %1087 = vmin.xlane.f32.xlu0 %v1086
        %v1088 = vpop.xlane.xlu0 %1087
        %vm1089 = vcmp.eq.f32.partialorder %v1086, %v1088
        %v1090 = vsel %vm1089, %v1085, inf
        %1091 = vmin.xlane.f32.xlu0 %v1090
        %v1092 = vpop.xlane.xlu0 %1091
        %v1093 = vcvt.f32.s32 %v1092
        %v1094 = vcvt.f32.s32 %v1088
        %v1095 = vshll.u32 %v1094, 16
        %v1096 = vadd.s32 %v1095, %v1093
        %vm1097 = vcmp.eq.s32.totalorder %v1080, %v1096
        %v1098 = vsel %vm1097, 1, 0
        %v1099 = vcvt.s32.f32 %v1098
        %v1106 = vunpack.c.l.b16 %v551
        %v1107 = vunpack.c.l.b16 %v552
        %v1108 = vunpack.c.l.b16 %v553
        %v1109 = vunpack.c.l.b16 %v554
        %v1110 = vunpack.c.l.b16 %v555
        %v1111 = vunpack.c.l.b16 %v556
        %v1112 = vpack.c.b16 %v1107, %v1106
        %v1113 = vpack.c.b16 %v1109, %v1108
        %v1114 = vpack.c.b16 %v1111, %v1110
        %1118 = vst [vmem:[%s405] sm:$0xff] %v1112
        %1119 = vst [vmem:[%s405 + $0x8] sm:$0xff] %v1113
        %1120 = vst [vmem:[%s405 + $0x10] sm:$0xff] %v1114
        %vm1121 = vcmask 7168
        %1122 = vst.msk [vmem:[%s409] sm:$0xff] %vm1121, %v1096
        %v1123 = vmul.f32 %v1078, %v428
        %1124 = vst.msk [vmem:[%s413] sm:$0xff] %vm1121, %v1123
        %v1125 = vmul.f32 %v1099, %v428
        %v1126 = vrot.slane %v1125, 4
        %v1127 = vadd.f32 %v1125, %v1126
        %v1128 = vrot.slane %v1127, 2
        %v1129 = vadd.f32 %v1127, %v1128
        %v1130 = vrot.slane %v1129, 1
        %v1131 = vadd.f32 %v1129, %v1130
        %v1132 = vmul.f32 %v1076, %v428
        %v1133 = vrot.slane %v1132, 4
        %v1134 = vadd.f32 %v1132, %v1133
        %v1135 = vrot.slane %v1134, 2
        %v1136 = vadd.f32 %v1134, %v1135
        %v1137 = vrot.slane %v1136, 1
        %v1138 = vadd.f32 %v1136, %v1137
        %vm1139 = vcmp.eq.s32.totalorder %v421, 0
        %v1140 = vsel %vm1139, %v1131, 0.0
        %vm1141 = vcmp.eq.s32.totalorder %v421, 1
        %v1142 = vsel %vm1141, %v1138, 0.0
        %v1143 = vadd.f32 %v1140, %v1142
        %1144 = vst [vmem:[%s417] sm:$0xff] %v1143
        %p1145 = scmp.lt.s32.totalorder %s25, 1
        %s1146 = scalar_select %p1145, %s25, 1
        %s1147 = smul.addr %s1146, 6
        %s1148 = smul.addr %s1147, 4
        %s1149 = scalar_lea.vmem %s6, %s1148
        %p1150 = scmp.lt.s32.totalorder %s25, 1
        %s1151 = scalar_select %p1150, %s25, 1
        %s1152 = smul.addr %s1151, 8
        %s1153 = scalar_lea.vmem %s7, %s1152
        %p1154 = scmp.lt.s32.totalorder %s25, 1
        %s1155 = scalar_select %p1154, %s25, 1
        %s1156 = smul.addr %s1155, 8
        %s1157 = scalar_lea.vmem %s8, %s1156
        %p1158 = scmp.lt.s32.totalorder %s25, 1
        %s1159 = scalar_select %p1158, %s25, 1
        %s1160 = smul.addr %s1159, 8
        %s1161 = scalar_lea.vmem %s9, %s1160
        // Predicated region
        $region61: #{switch_transformer_forward.5} parent=43 // pred_check
          %p1162 = pneg %p174
        $region62: #{switch_transformer_forward.5} parent=43 // pred_check_branch
          %1164 = sbr.rel (%p1162) target = $region64
        $region63: #{switch_transformer_forward.5} parent=43 // pred_region
          _
        $region64: #{switch_transformer_forward.5} parent=43 // pred_fallthru
          _
        // Predicated region
        $region65: #{switch_transformer_forward.5} parent=43 // pred_check
          %p1165 = pneg %p200
        $region66: #{switch_transformer_forward.5} parent=43 // pred_check_branch
          %1167 = sbr.rel (%p1165) target = $region68
        $region67: #{switch_transformer_forward.5} parent=43 // pred_region
          _
        $region68: #{switch_transformer_forward.5} parent=43 // pred_fallthru
          _
        // Predicated region
        $region69: #{switch_transformer_forward.5} parent=43 // pred_check
          %p1168 = pneg %p226
        $region70: #{switch_transformer_forward.5} parent=43 // pred_check_branch
          %1170 = sbr.rel (%p1168) target = $region72
        $region71: #{switch_transformer_forward.5} parent=43 // pred_region
          _
        $region72: #{switch_transformer_forward.5} parent=43 // pred_fallthru
          _
        // Predicated region
        $region73: #{switch_transformer_forward.5} parent=43 // pred_check
          %p1171 = pneg %p252
        $region74: #{switch_transformer_forward.5} parent=43 // pred_check_branch
          %1173 = sbr.rel (%p1171) target = $region76
        $region75: #{switch_transformer_forward.5} parent=43 // pred_region
          _
        $region76: #{switch_transformer_forward.5} parent=43 // pred_fallthru
          _
      $region44: #{switch_transformer_forward.5} parent=5 // pred_fallthru
        _
      %p1174 = scmp.le.s32.totalorder 2, %s20
      // Predicated region
      $region77: #{switch_transformer_forward.5} parent=5 // pred_check
        %p1175 = pneg %p1174
      $region78: #{switch_transformer_forward.5} parent=5 // pred_check_branch
        %1177 = sbr.rel (%p1175) target = $region80
      $region79: #{switch_transformer_forward.5} parent=5 // pred_region
        %s1178 = ssub.s32 %s20, 2
        // Predicated region
        $region81: #{switch_transformer_forward.5} parent=79 // pred_check
          %p1179 = pneg %p180
        $region82: #{switch_transformer_forward.5} parent=79 // pred_check_branch
          %1181 = sbr.rel (%p1179) target = $region84
        $region83: #{switch_transformer_forward.5} parent=79 // pred_region
          %p1182 = scmp.lt.s32.totalorder %s26, 1
          %s1183 = scalar_select %p1182, %s26, 1
          %s1184 = smul.addr %s1183, 6
          %s1185 = smul.addr %s1184, 4
          %s1186 = scalar_lea.vmem %s6, %s1185
        $region84: #{switch_transformer_forward.5} parent=79 // pred_fallthru
          _
        // Predicated region
        $region85: #{switch_transformer_forward.5} parent=79 // pred_check
          %p1187 = pneg %p206
        $region86: #{switch_transformer_forward.5} parent=79 // pred_check_branch
          %1189 = sbr.rel (%p1187) target = $region88
        $region87: #{switch_transformer_forward.5} parent=79 // pred_region
          %p1190 = scmp.lt.s32.totalorder %s26, 1
          %s1191 = scalar_select %p1190, %s26, 1
          %s1192 = smul.addr %s1191, 8
          %s1193 = scalar_lea.vmem %s7, %s1192
        $region88: #{switch_transformer_forward.5} parent=79 // pred_fallthru
          _
        // Predicated region
        $region89: #{switch_transformer_forward.5} parent=79 // pred_check
          %p1194 = pneg %p232
        $region90: #{switch_transformer_forward.5} parent=79 // pred_check_branch
          %1196 = sbr.rel (%p1194) target = $region92
        $region91: #{switch_transformer_forward.5} parent=79 // pred_region
          %p1197 = scmp.lt.s32.totalorder %s26, 1
          %s1198 = scalar_select %p1197, %s26, 1
          %s1199 = smul.addr %s1198, 8
          %s1200 = scalar_lea.vmem %s8, %s1199
        $region92: #{switch_transformer_forward.5} parent=79 // pred_fallthru
          _
        // Predicated region
        $region93: #{switch_transformer_forward.5} parent=79 // pred_check
          %p1201 = pneg %p258
        $region94: #{switch_transformer_forward.5} parent=79 // pred_check_branch
          %1203 = sbr.rel (%p1201) target = $region96
        $region95: #{switch_transformer_forward.5} parent=79 // pred_region
          %p1204 = scmp.lt.s32.totalorder %s26, 1
          %s1205 = scalar_select %p1204, %s26, 1
          %s1206 = smul.addr %s1205, 8
          %s1207 = scalar_lea.vmem %s9, %s1206
        $region96: #{switch_transformer_forward.5} parent=79 // pred_fallthru
          _
      $region80: #{switch_transformer_forward.5} parent=5 // pred_fallthru
        _
    $region6: #{switch_transformer_forward.5} parent=1 // loop_footer
      %s24 = sadd.s32 1, %s20
    $region7: #{switch_transformer_forward.5} parent=1 // loop_footer_branch
      %19 = sbr.rel target = $region3
    $region8: #{switch_transformer_forward.5} parent=1 // loop_exit
      _
    %1208 = vsyncpa [#allocation4], 1
    %s1209 = scalar_lea.sflag [#allocation4], 1
    %1210 = vsyncpa %s1209, 1
    %1211 = vsyncpa [#allocation6], 1
    %1212 = vsyncpa [#allocation9], 1

// kernel: switch_transformer_forward.9
$region0: #{switch_transformer_forward.9}
  #allocation0 [shape = 'u32[]', space=smem, size = 0x4, offset = 0x4, fixed_abs, tag = 'smem constant byte address 0x4 - core index']
  #allocation1 [shape = 'u32[144,128]{1,0:T(1,128)}', space=vmem, size = 0x12000, scoped, tag = 'internal scratch']
  %s0 = inlined_call_operand.vmem [shape: bf16[16,768], index: 0, kind: input, shape index: {}]
  %s1 = inlined_call_operand.vmem [shape: bf16[16,768], index: 1, kind: input, shape index: {}]
  %s2 = inlined_call_operand.vmem [shape: f32[1,768], index: 2, kind: input, shape index: {}]
  %s3 = inlined_call_operand.vmem [shape: f32[1,768], index: 3, kind: input, shape index: {}]
  %s4 = inlined_call_operand.vmem [shape: bf16[768,128], index: 4, kind: input, shape index: {}]
  %s5 = inlined_call_operand.vmem [shape: f32[1,128], index: 5, kind: input, shape index: {}]
  %s6 = inlined_call_operand.vmem [shape: f32[16,128], index: 6, kind: output, shape index: {}]
  %s7 = sld [smem:[#allocation0]]
  $region57: #{switch_transformer_forward.9} parent=0
    _
  %s9 = ssub.s32 1, %s7
  %s10 = scalar_select 0, %s9, %s7
  loop: start=0, step=1, limit=4
  $region2: #{switch_transformer_forward.9} parent=0 // loop_pre_header
    _
  $region3: #{switch_transformer_forward.9} parent=0 // loop_header
    %s12 = sphi 0, %s16
    %p13 = scmp.ge.s32.totalorder %s12, 4
    %s22 = sphi 0, %s24
    %s25 = sphi 0, %s22
    %s26 = sphi 0, %s25
    %s42 = sphi 0, %s26
    %s48 = sphi 0, %s50
    %s51 = sphi 0, %s48
    %s52 = sphi 0, %s51
    %s68 = sphi 0, %s52
    %s72 = sphi 0, %s72
    %s74 = sphi 0, %s72
    %s75 = sphi 0, %s74
    %s89 = sphi 0, %s75
    %s93 = sphi 0, %s93
    %s95 = sphi 0, %s93
    %s96 = sphi 0, %s95
    %s110 = sphi 0, %s96
    %s114 = sphi 0, %s114
    %s116 = sphi 0, %s114
    %s117 = sphi 0, %s116
    %s131 = sphi 0, %s117
    %s135 = sphi 0, %s135
    %s137 = sphi 0, %s135
    %s138 = sphi 0, %s137
    %s152 = sphi 0, %s138
    %s158 = sphi 0, %s160
    %s161 = sphi 0, %s158
    %s162 = sphi 0, %s161
    %s178 = sphi 0, %s162
  $region4: #{switch_transformer_forward.9} parent=0 // loop_header_branch
    %15 = sbr.rel (%p13) target = $region8
  $region5: #{switch_transformer_forward.9} parent=0 // loop_body
    %s17 = ssub.s32 %s12, 1
    %s18 = ssub.s32 %s12, 2
    %s19 = sadd.s32 %s12, 1
    %s20 = ssub.s32 %s12, %s19
    %p21 = scmp.eq.s32.totalorder %s20, 0
    %s23 = sadd.s32 %s22, 1
    %s24 = scalar_select %p21, %s22, %s23
    %p27 = pneg %p21
    %p28 = scmp.eq.s32.totalorder %s12, 1
    %p29 = por %p27, %p28
    %p30 = scmp.ne.s32.totalorder %s22, %s25
    %p31 = scmp.eq.s32.totalorder %s12, 0
    %p32 = por %p30, %p31
    %p33 = scmp.ne.s32.totalorder %s22, %s25
    %p34 = scmp.eq.s32.totalorder %s17, 1
    %p35 = por %p33, %p34
    %p36 = scmp.ne.s32.totalorder %s25, %s26
    %p37 = scmp.eq.s32.totalorder %s17, 0
    %p38 = por %p36, %p37
    %p39 = scmp.ne.s32.totalorder %s25, %s26
    %p40 = scmp.eq.s32.totalorder %s18, 1
    %p41 = por %p39, %p40
    %p43 = scmp.ne.s32.totalorder %s26, %s42
    %p44 = scmp.eq.s32.totalorder %s18, 0
    %p45 = por %p43, %p44
    %s46 = ssub.s32 %s12, %s19
    %p47 = scmp.eq.s32.totalorder %s46, 0
    %s49 = sadd.s32 %s48, 1
    %s50 = scalar_select %p47, %s48, %s49
    %p53 = pneg %p47
    %p54 = scmp.eq.s32.totalorder %s12, 1
    %p55 = por %p53, %p54
    %p56 = scmp.ne.s32.totalorder %s48, %s51
    %p57 = scmp.eq.s32.totalorder %s12, 0
    %p58 = por %p56, %p57
    %p59 = scmp.ne.s32.totalorder %s48, %s51
    %p60 = scmp.eq.s32.totalorder %s17, 1
    %p61 = por %p59, %p60
    %p62 = scmp.ne.s32.totalorder %s51, %s52
    %p63 = scmp.eq.s32.totalorder %s17, 0
    %p64 = por %p62, %p63
    %p65 = scmp.ne.s32.totalorder %s51, %s52
    %p66 = scmp.eq.s32.totalorder %s18, 1
    %p67 = por %p65, %p66
    %p69 = scmp.ne.s32.totalorder %s52, %s68
    %p70 = scmp.eq.s32.totalorder %s18, 0
    %p71 = por %p69, %p70
    %s73 = sadd.s32 %s72, 1
    %p76 = scmp.eq.s32.totalorder %s12, 1
    %p77 = scmp.ne.s32.totalorder %s72, %s74
    %p78 = scmp.eq.s32.totalorder %s12, 0
    %p79 = por %p77, %p78
    %p80 = scmp.ne.s32.totalorder %s72, %s74
    %p81 = scmp.eq.s32.totalorder %s17, 1
    %p82 = por %p80, %p81
    %p83 = scmp.ne.s32.totalorder %s74, %s75
    %p84 = scmp.eq.s32.totalorder %s17, 0
    %p85 = por %p83, %p84
    %p86 = scmp.ne.s32.totalorder %s74, %s75
    %p87 = scmp.eq.s32.totalorder %s18, 1
    %p88 = por %p86, %p87
    %p90 = scmp.ne.s32.totalorder %s75, %s89
    %p91 = scmp.eq.s32.totalorder %s18, 0
    %p92 = por %p90, %p91
    %s94 = sadd.s32 %s93, 1
    %p97 = scmp.eq.s32.totalorder %s12, 1
    %p98 = scmp.ne.s32.totalorder %s93, %s95
    %p99 = scmp.eq.s32.totalorder %s12, 0
    %p100 = por %p98, %p99
    %p101 = scmp.ne.s32.totalorder %s93, %s95
    %p102 = scmp.eq.s32.totalorder %s17, 1
    %p103 = por %p101, %p102
    %p104 = scmp.ne.s32.totalorder %s95, %s96
    %p105 = scmp.eq.s32.totalorder %s17, 0
    %p106 = por %p104, %p105
    %p107 = scmp.ne.s32.totalorder %s95, %s96
    %p108 = scmp.eq.s32.totalorder %s18, 1
    %p109 = por %p107, %p108
    %p111 = scmp.ne.s32.totalorder %s96, %s110
    %p112 = scmp.eq.s32.totalorder %s18, 0
    %p113 = por %p111, %p112
    %s115 = sadd.s32 %s114, 1
    %p118 = scmp.eq.s32.totalorder %s12, 1
    %p119 = scmp.ne.s32.totalorder %s114, %s116
    %p120 = scmp.eq.s32.totalorder %s12, 0
    %p121 = por %p119, %p120
    %p122 = scmp.ne.s32.totalorder %s114, %s116
    %p123 = scmp.eq.s32.totalorder %s17, 1
    %p124 = por %p122, %p123
    %p125 = scmp.ne.s32.totalorder %s116, %s117
    %p126 = scmp.eq.s32.totalorder %s17, 0
    %p127 = por %p125, %p126
    %p128 = scmp.ne.s32.totalorder %s116, %s117
    %p129 = scmp.eq.s32.totalorder %s18, 1
    %p130 = por %p128, %p129
    %p132 = scmp.ne.s32.totalorder %s117, %s131
    %p133 = scmp.eq.s32.totalorder %s18, 0
    %p134 = por %p132, %p133
    %s136 = sadd.s32 %s135, 1
    %p139 = scmp.eq.s32.totalorder %s12, 1
    %p140 = scmp.ne.s32.totalorder %s135, %s137
    %p141 = scmp.eq.s32.totalorder %s12, 0
    %p142 = por %p140, %p141
    %p143 = scmp.ne.s32.totalorder %s135, %s137
    %p144 = scmp.eq.s32.totalorder %s17, 1
    %p145 = por %p143, %p144
    %p146 = scmp.ne.s32.totalorder %s137, %s138
    %p147 = scmp.eq.s32.totalorder %s17, 0
    %p148 = por %p146, %p147
    %p149 = scmp.ne.s32.totalorder %s137, %s138
    %p150 = scmp.eq.s32.totalorder %s18, 1
    %p151 = por %p149, %p150
    %p153 = scmp.ne.s32.totalorder %s138, %s152
    %p154 = scmp.eq.s32.totalorder %s18, 0
    %p155 = por %p153, %p154
    %s156 = ssub.s32 %s12, %s19
    %p157 = scmp.eq.s32.totalorder %s156, 0
    %s159 = sadd.s32 %s158, 1
    %s160 = scalar_select %p157, %s158, %s159
    %p163 = pneg %p157
    %p164 = scmp.eq.s32.totalorder %s12, 1
    %p165 = por %p163, %p164
    %p166 = scmp.ne.s32.totalorder %s158, %s161
    %p167 = scmp.eq.s32.totalorder %s12, 0
    %p168 = por %p166, %p167
    %p169 = scmp.ne.s32.totalorder %s158, %s161
    %p170 = scmp.eq.s32.totalorder %s17, 1
    %p171 = por %p169, %p170
    %p172 = scmp.ne.s32.totalorder %s161, %s162
    %p173 = scmp.eq.s32.totalorder %s17, 0
    %p174 = por %p172, %p173
    %p175 = scmp.ne.s32.totalorder %s161, %s162
    %p176 = scmp.eq.s32.totalorder %s18, 1
    %p177 = por %p175, %p176
    %p179 = scmp.ne.s32.totalorder %s162, %s178
    %p180 = scmp.eq.s32.totalorder %s18, 0
    %p181 = por %p179, %p180
    %p182 = scmp.le.s32.totalorder 1, %s12
    %p183 = scmp.lt.s32.totalorder %s12, 3
    %p184 = pnand %p182, %p183
    %p185 = pneg %p184
    // Predicated region
    $region9: #{switch_transformer_forward.9} parent=5 // pred_check
      _
    $region10: #{switch_transformer_forward.9} parent=5 // pred_check_branch
      %187 = sbr.rel (%p184) target = $region12
    $region11: #{switch_transformer_forward.9} parent=5 // pred_region
      %s188 = ssub.s32 %s12, 1
      // Predicated region
      $region13: #{switch_transformer_forward.9} parent=11 // pred_check
        %p189 = pneg %p85
      $region14: #{switch_transformer_forward.9} parent=11 // pred_check_branch
        %191 = sbr.rel (%p189) target = $region16
      $region15: #{switch_transformer_forward.9} parent=11 // pred_region
        _
      $region16: #{switch_transformer_forward.9} parent=11 // pred_fallthru
        _
      // Predicated region
      $region17: #{switch_transformer_forward.9} parent=11 // pred_check
        %p192 = pneg %p106
      $region18: #{switch_transformer_forward.9} parent=11 // pred_check_branch
        %194 = sbr.rel (%p192) target = $region20
      $region19: #{switch_transformer_forward.9} parent=11 // pred_region
        _
      $region20: #{switch_transformer_forward.9} parent=11 // pred_fallthru
        _
      // Predicated region
      $region21: #{switch_transformer_forward.9} parent=11 // pred_check
        %p195 = pneg %p127
      $region22: #{switch_transformer_forward.9} parent=11 // pred_check_branch
        %197 = sbr.rel (%p195) target = $region24
      $region23: #{switch_transformer_forward.9} parent=11 // pred_region
        _
      $region24: #{switch_transformer_forward.9} parent=11 // pred_fallthru
        _
      // Predicated region
      $region25: #{switch_transformer_forward.9} parent=11 // pred_check
        %p198 = pneg %p148
      $region26: #{switch_transformer_forward.9} parent=11 // pred_check_branch
        %200 = sbr.rel (%p198) target = $region28
      $region27: #{switch_transformer_forward.9} parent=11 // pred_region
        _
      $region28: #{switch_transformer_forward.9} parent=11 // pred_fallthru
        _
    $region12: #{switch_transformer_forward.9} parent=5 // pred_fallthru
      _
    %p201 = scmp.lt.s32.totalorder %s12, 2
    // Predicated region
    $region29: #{switch_transformer_forward.9} parent=5 // pred_check
      %p202 = pneg %p201
    $region30: #{switch_transformer_forward.9} parent=5 // pred_check_branch
      %204 = sbr.rel (%p202) target = $region32
    $region31: #{switch_transformer_forward.9} parent=5 // pred_region
      // Predicated region
      $region33: #{switch_transformer_forward.9} parent=31 // pred_check
        %p205 = pneg %p32
      $region34: #{switch_transformer_forward.9} parent=31 // pred_check_branch
        %207 = sbr.rel (%p205) target = $region36
      $region35: #{switch_transformer_forward.9} parent=31 // pred_region
        %p208 = scmp.lt.s32.totalorder %s12, 1
        %s209 = scalar_select %p208, %s12, 1
        %s210 = smul.addr %s209, 6
        %s211 = smul.addr %s210, 4
        %s212 = scalar_lea.vmem %s0, %s211
      $region36: #{switch_transformer_forward.9} parent=31 // pred_fallthru
        _
      // Predicated region
      $region37: #{switch_transformer_forward.9} parent=31 // pred_check
        %p213 = pneg %p58
      $region38: #{switch_transformer_forward.9} parent=31 // pred_check_branch
        %215 = sbr.rel (%p213) target = $region40
      $region39: #{switch_transformer_forward.9} parent=31 // pred_region
        %p216 = scmp.lt.s32.totalorder %s12, 1
        %s217 = scalar_select %p216, %s12, 1
        %s218 = smul.addr %s217, 6
        %s219 = smul.addr %s218, 4
        %s220 = scalar_lea.vmem %s1, %s219
      $region40: #{switch_transformer_forward.9} parent=31 // pred_fallthru
        _
    $region32: #{switch_transformer_forward.9} parent=5 // pred_fallthru
      _
    %p221 = scmp.le.s32.totalorder 1, %s12
    %p222 = scmp.lt.s32.totalorder %s12, 3
    %p223 = pnand %p221, %p222
    %p224 = pneg %p223
    // Predicated region
    $region41: #{switch_transformer_forward.9} parent=5 // pred_check
      _
    $region42: #{switch_transformer_forward.9} parent=5 // pred_check_branch
      %226 = sbr.rel (%p223) target = $region44
    $region43: #{switch_transformer_forward.9} parent=5 // pred_region
      %s227 = ssub.s32 %s12, 1
      %p228 = scmp.lt.s32.totalorder %s17, 1
      %s229 = scalar_select %p228, %s17, 1
      %s230 = smul.addr %s229, 6
      %s231 = smul.addr %s230, 4
      %s232 = scalar_lea.vmem %s0, %s231
      %p233 = pneg %p38
      %p234 = pneg %p35
      %p235 = scmp.lt.s32.totalorder %s17, 1
      %s236 = scalar_select %p235, %s17, 1
      %s237 = smul.addr %s236, 6
      %s238 = smul.addr %s237, 4
      %s239 = scalar_lea.vmem %s1, %s238
      %p240 = pneg %p64
      %p241 = pneg %p61
      %p242 = pneg %p85
      %p243 = pneg %p82
      %p244 = pneg %p106
      %p245 = pneg %p103
      %p246 = pneg %p127
      %p247 = pneg %p124
      %p248 = pneg %p148
      %p249 = pneg %p145
      %p250 = pneg %p174
      %p251 = pneg %p171
      %p252 = scmp.lt.s32.totalorder %s17, 1
      %s253 = scalar_select %p252, %s17, 1
      %s254 = smul.addr %s253, 8
      %s255 = scalar_lea.vmem %s6, %s254
      %p256 = scmp.lt.s32.totalorder %s17, 1
      %s257 = scalar_select %p256, %s17, 1
      %s258 = smul.addr %s257, 6
      %s259 = smul.addr %s258, 4
      %s260 = scalar_lea.vmem %s0, %s259
      %p261 = scmp.lt.s32.totalorder %s17, 1
      %s262 = scalar_select %p261, %s17, 1
      %s263 = smul.addr %s262, 6
      %s264 = smul.addr %s263, 4
      %s265 = scalar_lea.vmem %s1, %s264
      %p266 = scmp.lt.s32.totalorder %s17, 1
      %s267 = scalar_select %p266, %s17, 1
      %s268 = smul.addr %s267, 8
      %s269 = scalar_lea.vmem %s6, %s268
      %v271 = vld [vmem:[%s260] sm:$0xff]
      %v272 = vld [vmem:[%s260 + $0x8] sm:$0xff]
      %v273 = vld [vmem:[%s260 + $0x10] sm:$0xff]
      %v274 = vunpack.c.l.bf16 %v271
      %v275 = vunpack.c.h.bf16 %v271
      %v276 = vunpack.c.l.bf16 %v272
      %v277 = vunpack.c.h.bf16 %v272
      %v278 = vunpack.c.l.bf16 %v273
      %v279 = vunpack.c.h.bf16 %v273
      %v280 = vld [vmem:[%s265] sm:$0xff]
      %v281 = vld [vmem:[%s265 + $0x8] sm:$0xff]
      %v282 = vld [vmem:[%s265 + $0x10] sm:$0xff]
      %v283 = vunpack.c.l.bf16 %v280
      %v284 = vunpack.c.h.bf16 %v280
      %v285 = vunpack.c.l.bf16 %v281
      %v286 = vunpack.c.h.bf16 %v281
      %v287 = vunpack.c.l.bf16 %v282
      %v288 = vunpack.c.h.bf16 %v282
      %v289 = vadd.f32 %v274, %v283
      %v290 = vadd.f32 %v275, %v284
      %v291 = vadd.f32 %v276, %v285
      %v292 = vadd.f32 %v277, %v286
      %v293 = vadd.f32 %v278, %v287
      %v294 = vadd.f32 %v279, %v288
      %v295 = vld [vmem:[%s2] sm:$0x3f]
      %v296 = vld [vmem:[%s3] sm:$0x3f]
      %v297 = vadd.f32 %v289, %v290
      %v298 = vadd.f32 %v297, %v291
      %v299 = vadd.f32 %v298, %v292
      %v300 = vadd.f32 %v299, %v293
      %v301 = vadd.f32 %v300, %v294
      %302 = vadd.xlane.f32.xlu0 %v301
      %v303 = vpop.xlane.xlu0 %302
      %v304 = vrcp.pop 768.0
      %v305 = vmul.f32 %v303, %v304
      %v306 = vsub.f32 %v289, %v305
      %v307 = vsub.f32 %v290, %v305
      %v308 = vsub.f32 %v291, %v305
      %v309 = vsub.f32 %v292, %v305
      %v310 = vsub.f32 %v293, %v305
      %v311 = vsub.f32 %v294, %v305
      %v312 = vmul.f32 %v306, %v306
      %v313 = vmul.f32 %v307, %v307
      %v314 = vmul.f32 %v308, %v308
      %v315 = vmul.f32 %v309, %v309
      %v316 = vmul.f32 %v310, %v310
      %v317 = vmul.f32 %v311, %v311
      %v318 = vadd.f32 %v312, %v313
      %v319 = vadd.f32 %v318, %v314
      %v320 = vadd.f32 %v319, %v315
      %v321 = vadd.f32 %v320, %v316
      %v322 = vadd.f32 %v321, %v317
      %323 = vadd.xlane.f32.xlu0 %v322
      %v324 = vpop.xlane.xlu0 %323
      %v325 = vmul.f32 %v324, %v304
      %v326 = vadd.f32 %v325, 1e-05
      %v327 = vrsqrt.pop %v326
      %v328 = vmul.f32 %v306, %v327
      %v329 = vmul.f32 %v307, %v327
      %v330 = vmul.f32 %v308, %v327
      %v331 = vmul.f32 %v309, %v327
      %v332 = vmul.f32 %v310, %v327
      %v333 = vmul.f32 %v311, %v327
      %v335 = vlaneseq
      %v336 = vshrl.u32 %v335, 7
      %v337 = vsub.s32 0, %v336
      %v338 = vrot.slane %v295, %v337
      %v339 = vlaneseq
      %v340 = vshrl.u32 %v339, 7
      %v341 = vsub.s32 1, %v340
      %v342 = vrot.slane %v295, %v341
      %v343 = vlaneseq
      %v344 = vshrl.u32 %v343, 7
      %v345 = vsub.s32 2, %v344
      %v346 = vrot.slane %v295, %v345
      %v347 = vlaneseq
      %v348 = vshrl.u32 %v347, 7
      %v349 = vsub.s32 3, %v348
      %v350 = vrot.slane %v295, %v349
      %v351 = vlaneseq
      %v352 = vshrl.u32 %v351, 7
      %v353 = vsub.s32 4, %v352
      %v354 = vrot.slane %v295, %v353
      %v355 = vlaneseq
      %v356 = vshrl.u32 %v355, 7
      %v357 = vsub.s32 5, %v356
      %v358 = vrot.slane %v295, %v357
      %v365 = vmul.f32 %v328, %v338
      %v366 = vmul.f32 %v329, %v342
      %v367 = vmul.f32 %v330, %v346
      %v368 = vmul.f32 %v331, %v350
      %v369 = vmul.f32 %v332, %v354
      %v370 = vmul.f32 %v333, %v358
      %v372 = vlaneseq
      %v373 = vshrl.u32 %v372, 7
      %v374 = vsub.s32 0, %v373
      %v375 = vrot.slane %v296, %v374
      %v376 = vlaneseq
      %v377 = vshrl.u32 %v376, 7
      %v378 = vsub.s32 1, %v377
      %v379 = vrot.slane %v296, %v378
      %v380 = vlaneseq
      %v381 = vshrl.u32 %v380, 7
      %v382 = vsub.s32 2, %v381
      %v383 = vrot.slane %v296, %v382
      %v384 = vlaneseq
      %v385 = vshrl.u32 %v384, 7
      %v386 = vsub.s32 3, %v385
      %v387 = vrot.slane %v296, %v386
      %v388 = vlaneseq
      %v389 = vshrl.u32 %v388, 7
      %v390 = vsub.s32 4, %v389
      %v391 = vrot.slane %v296, %v390
      %v392 = vlaneseq
      %v393 = vshrl.u32 %v392, 7
      %v394 = vsub.s32 5, %v393
      %v395 = vrot.slane %v296, %v394
      %v402 = vadd.f32 %v365, %v375
      %v403 = vadd.f32 %v366, %v379
      %v404 = vadd.f32 %v367, %v383
      %v405 = vadd.f32 %v368, %v387
      %v406 = vadd.f32 %v369, %v391
      %v407 = vadd.f32 %v370, %v395
      %v408 = vpack.c.bf16 %v402, %v402
      %v409 = vpack.c.bf16 %v403, %v403
      %v410 = vpack.c.bf16 %v404, %v404
      %v411 = vpack.c.bf16 %v405, %v405
      %v412 = vpack.c.bf16 %v406, %v406
      %v413 = vpack.c.bf16 %v407, %v407
      %v414 = vld [vmem:[%s4] sm:$0xf]
      %v415 = vld [vmem:[%s4 + $0x4] sm:$0xf]
      %v416 = vld [vmem:[%s4 + $0x8] sm:$0xf]
      %v417 = vld [vmem:[%s4 + $0xc] sm:$0xf]
      %v418 = vld [vmem:[%s4 + $0x10] sm:$0xf]
      %v419 = vld [vmem:[%s4 + $0x14] sm:$0xf]
      %v420 = vld [vmem:[%s4 + $0x18] sm:$0xf]
      %v421 = vld [vmem:[%s4 + $0x1c] sm:$0xf]
      %v422 = vld [vmem:[%s4 + $0x20] sm:$0xf]
      %v423 = vld [vmem:[%s4 + $0x24] sm:$0xf]
      %v424 = vld [vmem:[%s4 + $0x28] sm:$0xf]
      %v425 = vld [vmem:[%s4 + $0x2c] sm:$0xf]
      %v426 = vld [vmem:[%s4 + $0x30] sm:$0xf]
      %v427 = vld [vmem:[%s4 + $0x34] sm:$0xf]
      %v428 = vld [vmem:[%s4 + $0x38] sm:$0xf]
      %v429 = vld [vmem:[%s4 + $0x3c] sm:$0xf]
      %v430 = vld [vmem:[%s4 + $0x40] sm:$0xf]
      %v431 = vld [vmem:[%s4 + $0x44] sm:$0xf]
      %v432 = vld [vmem:[%s4 + $0x48] sm:$0xf]
      %v433 = vld [vmem:[%s4 + $0x4c] sm:$0xf]
      %v434 = vld [vmem:[%s4 + $0x50] sm:$0xf]
      %v435 = vld [vmem:[%s4 + $0x54] sm:$0xf]
      %v436 = vld [vmem:[%s4 + $0x58] sm:$0xf]
      %v437 = vld [vmem:[%s4 + $0x5c] sm:$0xf]
      %v438 = vld [vmem:[%s4 + $0x60] sm:$0xf]
      %v439 = vld [vmem:[%s4 + $0x64] sm:$0xf]
      %v440 = vld [vmem:[%s4 + $0x68] sm:$0xf]
      %v441 = vld [vmem:[%s4 + $0x6c] sm:$0xf]
      %v442 = vld [vmem:[%s4 + $0x70] sm:$0xf]
      %v443 = vld [vmem:[%s4 + $0x74] sm:$0xf]
      %v444 = vld [vmem:[%s4 + $0x78] sm:$0xf]
      %v445 = vld [vmem:[%s4 + $0x7c] sm:$0xf]
      %v446 = vld [vmem:[%s4 + $0x80] sm:$0xf]
      %v447 = vld [vmem:[%s4 + $0x84] sm:$0xf]
      %v448 = vld [vmem:[%s4 + $0x88] sm:$0xf]
      %v449 = vld [vmem:[%s4 + $0x8c] sm:$0xf]
      %v450 = vld [vmem:[%s4 + $0x90] sm:$0xf]
      %v451 = vld [vmem:[%s4 + $0x94] sm:$0xf]
      %v452 = vld [vmem:[%s4 + $0x98] sm:$0xf]
      %v453 = vld [vmem:[%s4 + $0x9c] sm:$0xf]
      %v454 = vld [vmem:[%s4 + $0xa0] sm:$0xf]
      %v455 = vld [vmem:[%s4 + $0xa4] sm:$0xf]
      %v456 = vld [vmem:[%s4 + $0xa8] sm:$0xf]
      %v457 = vld [vmem:[%s4 + $0xac] sm:$0xf]
      %v458 = vld [vmem:[%s4 + $0xb0] sm:$0xf]
      %v459 = vld [vmem:[%s4 + $0xb4] sm:$0xf]
      %v460 = vld [vmem:[%s4 + $0xb8] sm:$0xf]
      %v461 = vld [vmem:[%s4 + $0xbc] sm:$0xf]
      %v462 = vld [vmem:[%s4 + $0xc0] sm:$0xf]
      %v463 = vld [vmem:[%s4 + $0xc4] sm:$0xf]
      %v464 = vld [vmem:[%s4 + $0xc8] sm:$0xf]
      %v465 = vld [vmem:[%s4 + $0xcc] sm:$0xf]
      %v466 = vld [vmem:[%s4 + $0xd0] sm:$0xf]
      %v467 = vld [vmem:[%s4 + $0xd4] sm:$0xf]
      %v468 = vld [vmem:[%s4 + $0xd8] sm:$0xf]
      %v469 = vld [vmem:[%s4 + $0xdc] sm:$0xf]
      %v470 = vld [vmem:[%s4 + $0xe0] sm:$0xf]
      %v471 = vld [vmem:[%s4 + $0xe4] sm:$0xf]
      %v472 = vld [vmem:[%s4 + $0xe8] sm:$0xf]
      %v473 = vld [vmem:[%s4 + $0xec] sm:$0xf]
      %v474 = vld [vmem:[%s4 + $0xf0] sm:$0xf]
      %v475 = vld [vmem:[%s4 + $0xf4] sm:$0xf]
      %v476 = vld [vmem:[%s4 + $0xf8] sm:$0xf]
      %v477 = vld [vmem:[%s4 + $0xfc] sm:$0xf]
      %v478 = vld [vmem:[%s4 + $0x100] sm:$0xf]
      %v479 = vld [vmem:[%s4 + $0x104] sm:$0xf]
      %v480 = vld [vmem:[%s4 + $0x108] sm:$0xf]
      %v481 = vld [vmem:[%s4 + $0x10c] sm:$0xf]
      %v482 = vld [vmem:[%s4 + $0x110] sm:$0xf]
      %v483 = vld [vmem:[%s4 + $0x114] sm:$0xf]
      %v484 = vld [vmem:[%s4 + $0x118] sm:$0xf]
      %v485 = vld [vmem:[%s4 + $0x11c] sm:$0xf]
      %v486 = vld [vmem:[%s4 + $0x120] sm:$0xf]
      %v487 = vld [vmem:[%s4 + $0x124] sm:$0xf]
      %v488 = vld [vmem:[%s4 + $0x128] sm:$0xf]
      %v489 = vld [vmem:[%s4 + $0x12c] sm:$0xf]
      %v490 = vld [vmem:[%s4 + $0x130] sm:$0xf]
      %v491 = vld [vmem:[%s4 + $0x134] sm:$0xf]
      %v492 = vld [vmem:[%s4 + $0x138] sm:$0xf]
      %v493 = vld [vmem:[%s4 + $0x13c] sm:$0xf]
      %v494 = vld [vmem:[%s4 + $0x140] sm:$0xf]
      %v495 = vld [vmem:[%s4 + $0x144] sm:$0xf]
      %v496 = vld [vmem:[%s4 + $0x148] sm:$0xf]
      %v497 = vld [vmem:[%s4 + $0x14c] sm:$0xf]
      %v498 = vld [vmem:[%s4 + $0x150] sm:$0xf]
      %v499 = vld [vmem:[%s4 + $0x154] sm:$0xf]
      %v500 = vld [vmem:[%s4 + $0x158] sm:$0xf]
      %v501 = vld [vmem:[%s4 + $0x15c] sm:$0xf]
      %v502 = vld [vmem:[%s4 + $0x160] sm:$0xf]
      %v503 = vld [vmem:[%s4 + $0x164] sm:$0xf]
      %v504 = vld [vmem:[%s4 + $0x168] sm:$0xf]
      %v505 = vld [vmem:[%s4 + $0x16c] sm:$0xf]
      %v506 = vld [vmem:[%s4 + $0x170] sm:$0xf]
      %v507 = vld [vmem:[%s4 + $0x174] sm:$0xf]
      %v508 = vld [vmem:[%s4 + $0x178] sm:$0xf]
      %v509 = vld [vmem:[%s4 + $0x17c] sm:$0xf]
      %v510 = vld [vmem:[%s5] sm:$0x1]
      %v512 = vlaneseq
      %v513 = vshrl.u32 %v512, 7
      %v514 = vsub.s32 0, %v513
      %v515 = vrot.slane %v510, %v514
      %v613 = vunpack.c.l.b16 %v414
      %v614 = vunpack.c.l.b16 %v415
      %v615 = vunpack.c.l.b16 %v416
      %v616 = vunpack.c.l.b16 %v417
      %v617 = vunpack.c.l.b16 %v418
      %v618 = vunpack.c.l.b16 %v419
      %v619 = vunpack.c.l.b16 %v420
      %v620 = vunpack.c.l.b16 %v421
      %v621 = vunpack.c.l.b16 %v422
      %v622 = vunpack.c.l.b16 %v423
      %v623 = vunpack.c.l.b16 %v424
      %v624 = vunpack.c.l.b16 %v425
      %v625 = vunpack.c.l.b16 %v426
      %v626 = vunpack.c.l.b16 %v427
      %v627 = vunpack.c.l.b16 %v428
      %v628 = vunpack.c.l.b16 %v429
      %v629 = vunpack.c.l.b16 %v430
      %v630 = vunpack.c.l.b16 %v431
      %v631 = vunpack.c.l.b16 %v432
      %v632 = vunpack.c.l.b16 %v433
      %v633 = vunpack.c.l.b16 %v434
      %v634 = vunpack.c.l.b16 %v435
      %v635 = vunpack.c.l.b16 %v436
      %v636 = vunpack.c.l.b16 %v437
      %v637 = vunpack.c.l.b16 %v438
      %v638 = vunpack.c.l.b16 %v439
      %v639 = vunpack.c.l.b16 %v440
      %v640 = vunpack.c.l.b16 %v441
      %v641 = vunpack.c.l.b16 %v442
      %v642 = vunpack.c.l.b16 %v443
      %v643 = vunpack.c.l.b16 %v444
      %v644 = vunpack.c.l.b16 %v445
      %v645 = vunpack.c.l.b16 %v446
      %v646 = vunpack.c.l.b16 %v447
      %v647 = vunpack.c.l.b16 %v448
      %v648 = vunpack.c.l.b16 %v449
      %v649 = vunpack.c.l.b16 %v450
      %v650 = vunpack.c.l.b16 %v451
      %v651 = vunpack.c.l.b16 %v452
      %v652 = vunpack.c.l.b16 %v453
      %v653 = vunpack.c.l.b16 %v454
      %v654 = vunpack.c.l.b16 %v455
      %v655 = vunpack.c.l.b16 %v456
      %v656 = vunpack.c.l.b16 %v457
      %v657 = vunpack.c.l.b16 %v458
      %v658 = vunpack.c.l.b16 %v459
      %v659 = vunpack.c.l.b16 %v460
      %v660 = vunpack.c.l.b16 %v461
      %v661 = vunpack.c.l.b16 %v462
      %v662 = vunpack.c.l.b16 %v463
      %v663 = vunpack.c.l.b16 %v464
      %v664 = vunpack.c.l.b16 %v465
      %v665 = vunpack.c.l.b16 %v466
      %v666 = vunpack.c.l.b16 %v467
      %v667 = vunpack.c.l.b16 %v468
      %v668 = vunpack.c.l.b16 %v469
      %v669 = vunpack.c.l.b16 %v470
      %v670 = vunpack.c.l.b16 %v471
      %v671 = vunpack.c.l.b16 %v472
      %v672 = vunpack.c.l.b16 %v473
      %v673 = vunpack.c.l.b16 %v474
      %v674 = vunpack.c.l.b16 %v475
      %v675 = vunpack.c.l.b16 %v476
      %v676 = vunpack.c.l.b16 %v477
      %v677 = vunpack.c.l.b16 %v478
      %v678 = vunpack.c.l.b16 %v479
      %v679 = vunpack.c.l.b16 %v480
      %v680 = vunpack.c.l.b16 %v481
      %v681 = vunpack.c.l.b16 %v482
      %v682 = vunpack.c.l.b16 %v483
      %v683 = vunpack.c.l.b16 %v484
      %v684 = vunpack.c.l.b16 %v485
      %v685 = vunpack.c.l.b16 %v486
      %v686 = vunpack.c.l.b16 %v487
      %v687 = vunpack.c.l.b16 %v488
      %v688 = vunpack.c.l.b16 %v489
      %v689 = vunpack.c.l.b16 %v490
      %v690 = vunpack.c.l.b16 %v491
      %v691 = vunpack.c.l.b16 %v492
      %v692 = vunpack.c.l.b16 %v493
      %v693 = vunpack.c.l.b16 %v494
      %v694 = vunpack.c.l.b16 %v495
      %v695 = vunpack.c.l.b16 %v496
      %v696 = vunpack.c.l.b16 %v497
      %v697 = vunpack.c.l.b16 %v498
      %v698 = vunpack.c.l.b16 %v499
      %v699 = vunpack.c.l.b16 %v500
      %v700 = vunpack.c.l.b16 %v501
      %v701 = vunpack.c.l.b16 %v502
      %v702 = vunpack.c.l.b16 %v503
      %v703 = vunpack.c.l.b16 %v504
      %v704 = vunpack.c.l.b16 %v505
      %v705 = vunpack.c.l.b16 %v506
      %v706 = vunpack.c.l.b16 %v507
      %v707 = vunpack.c.l.b16 %v508
      %v708 = vunpack.c.l.b16 %v509
      %v709 = vpack.c.b16 %v614, %v613
      %v710 = vpack.c.b16 %v616, %v615
      %v711 = vpack.c.b16 %v618, %v617
      %v712 = vpack.c.b16 %v620, %v619
      %v713 = vpack.c.b16 %v622, %v621
      %v714 = vpack.c.b16 %v624, %v623
      %v715 = vpack.c.b16 %v626, %v625
      %v716 = vpack.c.b16 %v628, %v627
      %v717 = vpack.c.b16 %v630, %v629
      %v718 = vpack.c.b16 %v632, %v631
      %v719 = vpack.c.b16 %v634, %v633
      %v720 = vpack.c.b16 %v636, %v635
      %v721 = vpack.c.b16 %v638, %v637
      %v722 = vpack.c.b16 %v640, %v639
      %v723 = vpack.c.b16 %v642, %v641
      %v724 = vpack.c.b16 %v644, %v643
      %v725 = vpack.c.b16 %v646, %v645
      %v726 = vpack.c.b16 %v648, %v647
      %v727 = vpack.c.b16 %v650, %v649
      %v728 = vpack.c.b16 %v652, %v651
      %v729 = vpack.c.b16 %v654, %v653
      %v730 = vpack.c.b16 %v656, %v655
      %v731 = vpack.c.b16 %v658, %v657
      %v732 = vpack.c.b16 %v660, %v659
      %v733 = vpack.c.b16 %v662, %v661
      %v734 = vpack.c.b16 %v664, %v663
      %v735 = vpack.c.b16 %v666, %v665
      %v736 = vpack.c.b16 %v668, %v667
      %v737 = vpack.c.b16 %v670, %v669
      %v738 = vpack.c.b16 %v672, %v671
      %v739 = vpack.c.b16 %v674, %v673
      %v740 = vpack.c.b16 %v676, %v675
      %v741 = vpack.c.b16 %v678, %v677
      %v742 = vpack.c.b16 %v680, %v679
      %v743 = vpack.c.b16 %v682, %v681
      %v744 = vpack.c.b16 %v684, %v683
      %v745 = vpack.c.b16 %v686, %v685
      %v746 = vpack.c.b16 %v688, %v687
      %v747 = vpack.c.b16 %v690, %v689
      %v748 = vpack.c.b16 %v692, %v691
      %v749 = vpack.c.b16 %v694, %v693
      %v750 = vpack.c.b16 %v696, %v695
      %v751 = vpack.c.b16 %v698, %v697
      %v752 = vpack.c.b16 %v700, %v699
      %v753 = vpack.c.b16 %v702, %v701
      %v754 = vpack.c.b16 %v704, %v703
      %v755 = vpack.c.b16 %v706, %v705
      %v756 = vpack.c.b16 %v708, %v707
      %805 = vmatprep.subr.bf16.mxu0 0
      %806 = vmatpush1.bf16.msra.mxu0 %v716
      %807 = vmatprep.subr.bf16.mxu0 0
      %808 = vmatpush1.bf16.msra.mxu0 %v715
      %809 = vmatprep.subr.bf16.mxu0 0
      %810 = vmatpush1.bf16.msra.mxu0 %v714
      %811 = vmatprep.subr.bf16.mxu0 0
      %812 = vmatpush1.bf16.msra.mxu0 %v713
      %813 = vmatprep.subr.bf16.mxu0 0
      %814 = vmatpush1.bf16.msra.mxu0 %v712
      %815 = vmatprep.subr.bf16.mxu0 0
      %816 = vmatpush1.bf16.msra.mxu0 %v711
      %817 = vmatprep.subr.bf16.mxu0 0
      %818 = vmatpush1.bf16.msra.mxu0 %v710
      %819 = vmatprep.subr.bf16.mxu0 0
      %820 = vmatpush1.bf16.msra.mxu0 %v709
      %821 = vmatprep.subr.bf16.mxu0 0
      %822 = vmatpush2.bf16.msra.mxu0 %v724
      %823 = vmatprep.subr.bf16.mxu0 0
      %824 = vmatpush2.bf16.msra.mxu0 %v723
      %825 = vmatprep.subr.bf16.mxu0 0
      %826 = vmatpush2.bf16.msra.mxu0 %v722
      %827 = vmatprep.subr.bf16.mxu0 0
      %828 = vmatpush2.bf16.msra.mxu0 %v721
      %829 = vmatprep.subr.bf16.mxu0 0
      %830 = vmatpush2.bf16.msra.mxu0 %v720
      %831 = vmatprep.subr.bf16.mxu0 0
      %832 = vmatpush2.bf16.msra.mxu0 %v719
      %833 = vmatprep.subr.bf16.mxu0 0
      %834 = vmatpush2.bf16.msra.mxu0 %v718
      %835 = vmatprep.subr.bf16.mxu0 0
      %836 = vmatpush2.bf16.msra.mxu0 %v717
      %837 = vmatprep.mubr.bf16.mxu0 %v409
      %838 = vmatmul.mubr.bf16.gmra.mxu0 %v408
      %v839 = vpop.f32.mrf.mxu0
      %v840 = vadd.f32 %v515, %v839
      %v841 = vpop.f32.mrf.mxu0
      %v842 = vpop.f32.mrf.mxu0
      %v843 = vpop.f32.mrf.mxu0
      %844 = vdwg.mxu0
      %845 = vmatprep.subr.bf16.mxu0 0
      %846 = vmatpush1.bf16.msra.mxu0 %v732
      %847 = vmatprep.subr.bf16.mxu0 0
      %848 = vmatpush1.bf16.msra.mxu0 %v731
      %849 = vmatprep.subr.bf16.mxu0 0
      %850 = vmatpush1.bf16.msra.mxu0 %v730
      %851 = vmatprep.subr.bf16.mxu0 0
      %852 = vmatpush1.bf16.msra.mxu0 %v729
      %853 = vmatprep.subr.bf16.mxu0 0
      %854 = vmatpush1.bf16.msra.mxu0 %v728
      %855 = vmatprep.subr.bf16.mxu0 0
      %856 = vmatpush1.bf16.msra.mxu0 %v727
      %857 = vmatprep.subr.bf16.mxu0 0
      %858 = vmatpush1.bf16.msra.mxu0 %v726
      %859 = vmatprep.subr.bf16.mxu0 0
      %860 = vmatpush1.bf16.msra.mxu0 %v725
      %861 = vmatprep.subr.bf16.mxu0 0
      %862 = vmatpush2.bf16.msra.mxu0 %v740
      %863 = vmatprep.subr.bf16.mxu0 0
      %864 = vmatpush2.bf16.msra.mxu0 %v739
      %865 = vmatprep.subr.bf16.mxu0 0
      %866 = vmatpush2.bf16.msra.mxu0 %v738
      %867 = vmatprep.subr.bf16.mxu0 0
      %868 = vmatpush2.bf16.msra.mxu0 %v737
      %869 = vmatprep.subr.bf16.mxu0 0
      %870 = vmatpush2.bf16.msra.mxu0 %v736
      %871 = vmatprep.subr.bf16.mxu0 0
      %872 = vmatpush2.bf16.msra.mxu0 %v735
      %873 = vmatprep.subr.bf16.mxu0 0
      %874 = vmatpush2.bf16.msra.mxu0 %v734
      %875 = vmatprep.subr.bf16.mxu0 0
      %876 = vmatpush2.bf16.msra.mxu0 %v733
      %877 = vmatprep.mubr.bf16.mxu0 %v411
      %878 = vmatmul.mubr.bf16.gmra.mxu0 %v410
      %v879 = vpop.f32.mrf.mxu0
      %v880 = vadd.f32 %v840, %v879
      %v881 = vpop.f32.mrf.mxu0
      %v882 = vpop.f32.mrf.mxu0
      %v883 = vpop.f32.mrf.mxu0
      %884 = vdwg.mxu0
      %885 = vmatprep.subr.bf16.mxu0 0
      %886 = vmatpush1.bf16.msra.mxu0 %v748
      %887 = vmatprep.subr.bf16.mxu0 0
      %888 = vmatpush1.bf16.msra.mxu0 %v747
      %889 = vmatprep.subr.bf16.mxu0 0
      %890 = vmatpush1.bf16.msra.mxu0 %v746
      %891 = vmatprep.subr.bf16.mxu0 0
      %892 = vmatpush1.bf16.msra.mxu0 %v745
      %893 = vmatprep.subr.bf16.mxu0 0
      %894 = vmatpush1.bf16.msra.mxu0 %v744
      %895 = vmatprep.subr.bf16.mxu0 0
      %896 = vmatpush1.bf16.msra.mxu0 %v743
      %897 = vmatprep.subr.bf16.mxu0 0
      %898 = vmatpush1.bf16.msra.mxu0 %v742
      %899 = vmatprep.subr.bf16.mxu0 0
      %900 = vmatpush1.bf16.msra.mxu0 %v741
      %901 = vmatprep.subr.bf16.mxu0 0
      %902 = vmatpush2.bf16.msra.mxu0 %v756
      %903 = vmatprep.subr.bf16.mxu0 0
      %904 = vmatpush2.bf16.msra.mxu0 %v755
      %905 = vmatprep.subr.bf16.mxu0 0
      %906 = vmatpush2.bf16.msra.mxu0 %v754
      %907 = vmatprep.subr.bf16.mxu0 0
      %908 = vmatpush2.bf16.msra.mxu0 %v753
      %909 = vmatprep.subr.bf16.mxu0 0
      %910 = vmatpush2.bf16.msra.mxu0 %v752
      %911 = vmatprep.subr.bf16.mxu0 0
      %912 = vmatpush2.bf16.msra.mxu0 %v751
      %913 = vmatprep.subr.bf16.mxu0 0
      %914 = vmatpush2.bf16.msra.mxu0 %v750
      %915 = vmatprep.subr.bf16.mxu0 0
      %916 = vmatpush2.bf16.msra.mxu0 %v749
      %917 = vmatprep.mubr.bf16.mxu0 %v413
      %918 = vmatmul.mubr.bf16.gmra.mxu0 %v412
      %v919 = vpop.f32.mrf.mxu0
      %v920 = vadd.f32 %v880, %v919
      %v921 = vpop.f32.mrf.mxu0
      %v922 = vpop.f32.mrf.mxu0
      %v923 = vpop.f32.mrf.mxu0
      %924 = vdwg.mxu0
      %925 = vst [vmem:[%s269] sm:$0xff] %v920
      %p926 = scmp.lt.s32.totalorder %s17, 1
      %s927 = scalar_select %p926, %s17, 1
      %s928 = smul.addr %s927, 8
      %s929 = scalar_lea.vmem %s6, %s928
      // Predicated region
      $region45: #{switch_transformer_forward.9} parent=43 // pred_check
        %p930 = pneg %p171
      $region46: #{switch_transformer_forward.9} parent=43 // pred_check_branch
        %932 = sbr.rel (%p930) target = $region48
      $region47: #{switch_transformer_forward.9} parent=43 // pred_region
        _
      $region48: #{switch_transformer_forward.9} parent=43 // pred_fallthru
        _
    $region44: #{switch_transformer_forward.9} parent=5 // pred_fallthru
      _
    %p933 = scmp.le.s32.totalorder 2, %s12
    // Predicated region
    $region49: #{switch_transformer_forward.9} parent=5 // pred_check
      %p934 = pneg %p933
    $region50: #{switch_transformer_forward.9} parent=5 // pred_check_branch
      %936 = sbr.rel (%p934) target = $region52
    $region51: #{switch_transformer_forward.9} parent=5 // pred_region
      %s937 = ssub.s32 %s12, 2
      // Predicated region
      $region53: #{switch_transformer_forward.9} parent=51 // pred_check
        %p938 = pneg %p177
      $region54: #{switch_transformer_forward.9} parent=51 // pred_check_branch
        %940 = sbr.rel (%p938) target = $region56
      $region55: #{switch_transformer_forward.9} parent=51 // pred_region
        %p941 = scmp.lt.s32.totalorder %s18, 1
        %s942 = scalar_select %p941, %s18, 1
        %s943 = smul.addr %s942, 8
        %s944 = scalar_lea.vmem %s6, %s943
      $region56: #{switch_transformer_forward.9} parent=51 // pred_fallthru
        _
    $region52: #{switch_transformer_forward.9} parent=5 // pred_fallthru
      _
  $region6: #{switch_transformer_forward.9} parent=0 // loop_footer
    %s16 = sadd.s32 1, %s12
  $region7: #{switch_transformer_forward.9} parent=0 // loop_footer_branch
    %11 = sbr.rel target = $region3
  $region8: #{switch_transformer_forward.9} parent=0 // loop_exit
    _

// kernel: switch_transformer_forward.7
$region0: #{switch_transformer_forward.7}
  #allocation0 [shape = 'u32[]', space=smem, size = 0x4, offset = 0x4, fixed_abs, tag = 'smem constant byte address 0x4 - core index']
  #allocation1 [shape = 'u32[144,128]{1,0:T(1,128)}', space=vmem, size = 0x12000, scoped, tag = 'internal scratch']
  #allocation2 [shape = 's32[1]{0:T(128)S(6)}', space=smem, size = 0x200, scoped, tag = 'scoped memory for switch_transformer_forward.7']
  %s0 = inlined_call_operand.<no memory space> [shape: s32[1], index: 0, kind: input, shape index: {}]
  %s1 = inlined_call_operand.vmem [shape: bf16[16,768], index: 1, kind: input, shape index: {}]
  %s2 = inlined_call_operand.vmem [shape: f32[1,768], index: 2, kind: input, shape index: {}]
  %s3 = inlined_call_operand.vmem [shape: f32[1,768], index: 3, kind: input, shape index: {}]
  %s4 = inlined_call_operand.vmem [shape: bf16[768,128], index: 4, kind: input, shape index: {}]
  %s5 = inlined_call_operand.vmem [shape: f32[1,128], index: 5, kind: input, shape index: {}]
  %s6 = inlined_call_operand.vmem [shape: bf16[16,768], index: 6, kind: output, shape index: {0}]
  %s7 = inlined_call_operand.vmem [shape: s32[16,1], index: 7, kind: output, shape index: {1}]
  %s8 = inlined_call_operand.vmem [shape: f32[16,1], index: 8, kind: output, shape index: {2}]
  %s9 = inlined_call_operand.vmem [shape: f32[2,8,128], index: 9, kind: output, shape index: {3}]
  %10 = xla_tuple %s6, %s7, %s8, %s9
  %s11 = sld [smem:[#allocation0]]
  $region81: #{switch_transformer_forward.7} parent=0
    _
  %s13 = ssub.s32 1, %s11
  %s14 = scalar_select 0, %s13, %s11
  %15 = sst [smem:[#allocation2]] %s0
  loop: start=0, step=1, limit=4
  $region2: #{switch_transformer_forward.7} parent=0 // loop_pre_header
    _
  $region3: #{switch_transformer_forward.7} parent=0 // loop_header
    %s17 = sphi 0, %s21
    %p18 = scmp.ge.s32.totalorder %s17, 4
    %s25 = sphi 0, %s25
    %s27 = sphi 0, %s25
    %s28 = sphi 0, %s27
    %s42 = sphi 0, %s28
    %s48 = sphi 0, %s50
    %s51 = sphi 0, %s48
    %s52 = sphi 0, %s51
    %s68 = sphi 0, %s52
    %s72 = sphi 0, %s72
    %s74 = sphi 0, %s72
    %s75 = sphi 0, %s74
    %s89 = sphi 0, %s75
    %s93 = sphi 0, %s93
    %s95 = sphi 0, %s93
    %s96 = sphi 0, %s95
    %s110 = sphi 0, %s96
    %s114 = sphi 0, %s114
    %s116 = sphi 0, %s114
    %s117 = sphi 0, %s116
    %s131 = sphi 0, %s117
    %s135 = sphi 0, %s135
    %s137 = sphi 0, %s135
    %s138 = sphi 0, %s137
    %s152 = sphi 0, %s138
    %s158 = sphi 0, %s160
    %s161 = sphi 0, %s158
    %s162 = sphi 0, %s161
    %s178 = sphi 0, %s162
    %s184 = sphi 0, %s186
    %s187 = sphi 0, %s184
    %s188 = sphi 0, %s187
    %s204 = sphi 0, %s188
    %s210 = sphi 0, %s212
    %s213 = sphi 0, %s210
    %s214 = sphi 0, %s213
    %s230 = sphi 0, %s214
    %s236 = sphi 0, %s238
    %s239 = sphi 0, %s236
    %s240 = sphi 0, %s239
    %s256 = sphi 0, %s240
  $region4: #{switch_transformer_forward.7} parent=0 // loop_header_branch
    %20 = sbr.rel (%p18) target = $region8
  $region5: #{switch_transformer_forward.7} parent=0 // loop_body
    %s22 = ssub.s32 %s17, 1
    %s23 = ssub.s32 %s17, 2
    %s24 = sadd.s32 %s17, 1
    %s26 = sadd.s32 %s25, 1
    %p29 = scmp.eq.s32.totalorder %s17, 1
    %p30 = scmp.ne.s32.totalorder %s25, %s27
    %p31 = scmp.eq.s32.totalorder %s17, 0
    %p32 = por %p30, %p31
    %p33 = scmp.ne.s32.totalorder %s25, %s27
    %p34 = scmp.eq.s32.totalorder %s22, 1
    %p35 = por %p33, %p34
    %p36 = scmp.ne.s32.totalorder %s27, %s28
    %p37 = scmp.eq.s32.totalorder %s22, 0
    %p38 = por %p36, %p37
    %p39 = scmp.ne.s32.totalorder %s27, %s28
    %p40 = scmp.eq.s32.totalorder %s23, 1
    %p41 = por %p39, %p40
    %p43 = scmp.ne.s32.totalorder %s28, %s42
    %p44 = scmp.eq.s32.totalorder %s23, 0
    %p45 = por %p43, %p44
    %s46 = ssub.s32 %s17, %s24
    %p47 = scmp.eq.s32.totalorder %s46, 0
    %s49 = sadd.s32 %s48, 1
    %s50 = scalar_select %p47, %s48, %s49
    %p53 = pneg %p47
    %p54 = scmp.eq.s32.totalorder %s17, 1
    %p55 = por %p53, %p54
    %p56 = scmp.ne.s32.totalorder %s48, %s51
    %p57 = scmp.eq.s32.totalorder %s17, 0
    %p58 = por %p56, %p57
    %p59 = scmp.ne.s32.totalorder %s48, %s51
    %p60 = scmp.eq.s32.totalorder %s22, 1
    %p61 = por %p59, %p60
    %p62 = scmp.ne.s32.totalorder %s51, %s52
    %p63 = scmp.eq.s32.totalorder %s22, 0
    %p64 = por %p62, %p63
    %p65 = scmp.ne.s32.totalorder %s51, %s52
    %p66 = scmp.eq.s32.totalorder %s23, 1
    %p67 = por %p65, %p66
    %p69 = scmp.ne.s32.totalorder %s52, %s68
    %p70 = scmp.eq.s32.totalorder %s23, 0
    %p71 = por %p69, %p70
    %s73 = sadd.s32 %s72, 1
    %p76 = scmp.eq.s32.totalorder %s17, 1
    %p77 = scmp.ne.s32.totalorder %s72, %s74
    %p78 = scmp.eq.s32.totalorder %s17, 0
    %p79 = por %p77, %p78
    %p80 = scmp.ne.s32.totalorder %s72, %s74
    %p81 = scmp.eq.s32.totalorder %s22, 1
    %p82 = por %p80, %p81
    %p83 = scmp.ne.s32.totalorder %s74, %s75
    %p84 = scmp.eq.s32.totalorder %s22, 0
    %p85 = por %p83, %p84
    %p86 = scmp.ne.s32.totalorder %s74, %s75
    %p87 = scmp.eq.s32.totalorder %s23, 1
    %p88 = por %p86, %p87
    %p90 = scmp.ne.s32.totalorder %s75, %s89
    %p91 = scmp.eq.s32.totalorder %s23, 0
    %p92 = por %p90, %p91
    %s94 = sadd.s32 %s93, 1
    %p97 = scmp.eq.s32.totalorder %s17, 1
    %p98 = scmp.ne.s32.totalorder %s93, %s95
    %p99 = scmp.eq.s32.totalorder %s17, 0
    %p100 = por %p98, %p99
    %p101 = scmp.ne.s32.totalorder %s93, %s95
    %p102 = scmp.eq.s32.totalorder %s22, 1
    %p103 = por %p101, %p102
    %p104 = scmp.ne.s32.totalorder %s95, %s96
    %p105 = scmp.eq.s32.totalorder %s22, 0
    %p106 = por %p104, %p105
    %p107 = scmp.ne.s32.totalorder %s95, %s96
    %p108 = scmp.eq.s32.totalorder %s23, 1
    %p109 = por %p107, %p108
    %p111 = scmp.ne.s32.totalorder %s96, %s110
    %p112 = scmp.eq.s32.totalorder %s23, 0
    %p113 = por %p111, %p112
    %s115 = sadd.s32 %s114, 1
    %p118 = scmp.eq.s32.totalorder %s17, 1
    %p119 = scmp.ne.s32.totalorder %s114, %s116
    %p120 = scmp.eq.s32.totalorder %s17, 0
    %p121 = por %p119, %p120
    %p122 = scmp.ne.s32.totalorder %s114, %s116
    %p123 = scmp.eq.s32.totalorder %s22, 1
    %p124 = por %p122, %p123
    %p125 = scmp.ne.s32.totalorder %s116, %s117
    %p126 = scmp.eq.s32.totalorder %s22, 0
    %p127 = por %p125, %p126
    %p128 = scmp.ne.s32.totalorder %s116, %s117
    %p129 = scmp.eq.s32.totalorder %s23, 1
    %p130 = por %p128, %p129
    %p132 = scmp.ne.s32.totalorder %s117, %s131
    %p133 = scmp.eq.s32.totalorder %s23, 0
    %p134 = por %p132, %p133
    %s136 = sadd.s32 %s135, 1
    %p139 = scmp.eq.s32.totalorder %s17, 1
    %p140 = scmp.ne.s32.totalorder %s135, %s137
    %p141 = scmp.eq.s32.totalorder %s17, 0
    %p142 = por %p140, %p141
    %p143 = scmp.ne.s32.totalorder %s135, %s137
    %p144 = scmp.eq.s32.totalorder %s22, 1
    %p145 = por %p143, %p144
    %p146 = scmp.ne.s32.totalorder %s137, %s138
    %p147 = scmp.eq.s32.totalorder %s22, 0
    %p148 = por %p146, %p147
    %p149 = scmp.ne.s32.totalorder %s137, %s138
    %p150 = scmp.eq.s32.totalorder %s23, 1
    %p151 = por %p149, %p150
    %p153 = scmp.ne.s32.totalorder %s138, %s152
    %p154 = scmp.eq.s32.totalorder %s23, 0
    %p155 = por %p153, %p154
    %s156 = ssub.s32 %s17, %s24
    %p157 = scmp.eq.s32.totalorder %s156, 0
    %s159 = sadd.s32 %s158, 1
    %s160 = scalar_select %p157, %s158, %s159
    %p163 = pneg %p157
    %p164 = scmp.eq.s32.totalorder %s17, 1
    %p165 = por %p163, %p164
    %p166 = scmp.ne.s32.totalorder %s158, %s161
    %p167 = scmp.eq.s32.totalorder %s17, 0
    %p168 = por %p166, %p167
    %p169 = scmp.ne.s32.totalorder %s158, %s161
    %p170 = scmp.eq.s32.totalorder %s22, 1
    %p171 = por %p169, %p170
    %p172 = scmp.ne.s32.totalorder %s161, %s162
    %p173 = scmp.eq.s32.totalorder %s22, 0
    %p174 = por %p172, %p173
    %p175 = scmp.ne.s32.totalorder %s161, %s162
    %p176 = scmp.eq.s32.totalorder %s23, 1
    %p177 = por %p175, %p176
    %p179 = scmp.ne.s32.totalorder %s162, %s178
    %p180 = scmp.eq.s32.totalorder %s23, 0
    %p181 = por %p179, %p180
    %s182 = ssub.s32 %s17, %s24
    %p183 = scmp.eq.s32.totalorder %s182, 0
    %s185 = sadd.s32 %s184, 1
    %s186 = scalar_select %p183, %s184, %s185
    %p189 = pneg %p183
    %p190 = scmp.eq.s32.totalorder %s17, 1
    %p191 = por %p189, %p190
    %p192 = scmp.ne.s32.totalorder %s184, %s187
    %p193 = scmp.eq.s32.totalorder %s17, 0
    %p194 = por %p192, %p193
    %p195 = scmp.ne.s32.totalorder %s184, %s187
    %p196 = scmp.eq.s32.totalorder %s22, 1
    %p197 = por %p195, %p196
    %p198 = scmp.ne.s32.totalorder %s187, %s188
    %p199 = scmp.eq.s32.totalorder %s22, 0
    %p200 = por %p198, %p199
    %p201 = scmp.ne.s32.totalorder %s187, %s188
    %p202 = scmp.eq.s32.totalorder %s23, 1
    %p203 = por %p201, %p202
    %p205 = scmp.ne.s32.totalorder %s188, %s204
    %p206 = scmp.eq.s32.totalorder %s23, 0
    %p207 = por %p205, %p206
    %s208 = ssub.s32 %s17, %s24
    %p209 = scmp.eq.s32.totalorder %s208, 0
    %s211 = sadd.s32 %s210, 1
    %s212 = scalar_select %p209, %s210, %s211
    %p215 = pneg %p209
    %p216 = scmp.eq.s32.totalorder %s17, 1
    %p217 = por %p215, %p216
    %p218 = scmp.ne.s32.totalorder %s210, %s213
    %p219 = scmp.eq.s32.totalorder %s17, 0
    %p220 = por %p218, %p219
    %p221 = scmp.ne.s32.totalorder %s210, %s213
    %p222 = scmp.eq.s32.totalorder %s22, 1
    %p223 = por %p221, %p222
    %p224 = scmp.ne.s32.totalorder %s213, %s214
    %p225 = scmp.eq.s32.totalorder %s22, 0
    %p226 = por %p224, %p225
    %p227 = scmp.ne.s32.totalorder %s213, %s214
    %p228 = scmp.eq.s32.totalorder %s23, 1
    %p229 = por %p227, %p228
    %p231 = scmp.ne.s32.totalorder %s214, %s230
    %p232 = scmp.eq.s32.totalorder %s23, 0
    %p233 = por %p231, %p232
    %s234 = ssub.s32 %s17, %s24
    %p235 = scmp.eq.s32.totalorder %s234, 0
    %s237 = sadd.s32 %s236, 1
    %s238 = scalar_select %p235, %s236, %s237
    %p241 = pneg %p235
    %p242 = scmp.eq.s32.totalorder %s17, 1
    %p243 = por %p241, %p242
    %p244 = scmp.ne.s32.totalorder %s236, %s239
    %p245 = scmp.eq.s32.totalorder %s17, 0
    %p246 = por %p244, %p245
    %p247 = scmp.ne.s32.totalorder %s236, %s239
    %p248 = scmp.eq.s32.totalorder %s22, 1
    %p249 = por %p247, %p248
    %p250 = scmp.ne.s32.totalorder %s239, %s240
    %p251 = scmp.eq.s32.totalorder %s22, 0
    %p252 = por %p250, %p251
    %p253 = scmp.ne.s32.totalorder %s239, %s240
    %p254 = scmp.eq.s32.totalorder %s23, 1
    %p255 = por %p253, %p254
    %p257 = scmp.ne.s32.totalorder %s240, %s256
    %p258 = scmp.eq.s32.totalorder %s23, 0
    %p259 = por %p257, %p258
    %p260 = scmp.le.s32.totalorder 1, %s17
    %p261 = scmp.lt.s32.totalorder %s17, 3
    %p262 = pnand %p260, %p261
    %p263 = pneg %p262
    // Predicated region
    $region9: #{switch_transformer_forward.7} parent=5 // pred_check
      _
    $region10: #{switch_transformer_forward.7} parent=5 // pred_check_branch
      %265 = sbr.rel (%p262) target = $region12
    $region11: #{switch_transformer_forward.7} parent=5 // pred_region
      %s266 = ssub.s32 %s17, 1
      // Predicated region
      $region13: #{switch_transformer_forward.7} parent=11 // pred_check
        %p267 = pneg %p38
      $region14: #{switch_transformer_forward.7} parent=11 // pred_check_branch
        %269 = sbr.rel (%p267) target = $region16
      $region15: #{switch_transformer_forward.7} parent=11 // pred_region
        _
      $region16: #{switch_transformer_forward.7} parent=11 // pred_fallthru
        _
      // Predicated region
      $region17: #{switch_transformer_forward.7} parent=11 // pred_check
        %p270 = pneg %p85
      $region18: #{switch_transformer_forward.7} parent=11 // pred_check_branch
        %272 = sbr.rel (%p270) target = $region20
      $region19: #{switch_transformer_forward.7} parent=11 // pred_region
        _
      $region20: #{switch_transformer_forward.7} parent=11 // pred_fallthru
        _
      // Predicated region
      $region21: #{switch_transformer_forward.7} parent=11 // pred_check
        %p273 = pneg %p106
      $region22: #{switch_transformer_forward.7} parent=11 // pred_check_branch
        %275 = sbr.rel (%p273) target = $region24
      $region23: #{switch_transformer_forward.7} parent=11 // pred_region
        _
      $region24: #{switch_transformer_forward.7} parent=11 // pred_fallthru
        _
      // Predicated region
      $region25: #{switch_transformer_forward.7} parent=11 // pred_check
        %p276 = pneg %p127
      $region26: #{switch_transformer_forward.7} parent=11 // pred_check_branch
        %278 = sbr.rel (%p276) target = $region28
      $region27: #{switch_transformer_forward.7} parent=11 // pred_region
        _
      $region28: #{switch_transformer_forward.7} parent=11 // pred_fallthru
        _
      // Predicated region
      $region29: #{switch_transformer_forward.7} parent=11 // pred_check
        %p279 = pneg %p148
      $region30: #{switch_transformer_forward.7} parent=11 // pred_check_branch
        %281 = sbr.rel (%p279) target = $region32
      $region31: #{switch_transformer_forward.7} parent=11 // pred_region
        _
      $region32: #{switch_transformer_forward.7} parent=11 // pred_fallthru
        _
    $region12: #{switch_transformer_forward.7} parent=5 // pred_fallthru
      _
    %p282 = scmp.lt.s32.totalorder %s17, 2
    // Predicated region
    $region33: #{switch_transformer_forward.7} parent=5 // pred_check
      %p283 = pneg %p282
    $region34: #{switch_transformer_forward.7} parent=5 // pred_check_branch
      %285 = sbr.rel (%p283) target = $region36
    $region35: #{switch_transformer_forward.7} parent=5 // pred_region
      // Predicated region
      $region37: #{switch_transformer_forward.7} parent=35 // pred_check
        %p286 = pneg %p58
      $region38: #{switch_transformer_forward.7} parent=35 // pred_check_branch
        %288 = sbr.rel (%p286) target = $region40
      $region39: #{switch_transformer_forward.7} parent=35 // pred_region
        %p289 = scmp.lt.s32.totalorder %s17, 1
        %s290 = scalar_select %p289, %s17, 1
        %s291 = smul.addr %s290, 6
        %s292 = smul.addr %s291, 4
        %s293 = scalar_lea.vmem %s1, %s292
      $region40: #{switch_transformer_forward.7} parent=35 // pred_fallthru
        _
    $region36: #{switch_transformer_forward.7} parent=5 // pred_fallthru
      _
    %p294 = scmp.le.s32.totalorder 1, %s17
    %p295 = scmp.lt.s32.totalorder %s17, 3
    %p296 = pnand %p294, %p295
    %p297 = pneg %p296
    // Predicated region
    $region41: #{switch_transformer_forward.7} parent=5 // pred_check
      _
    $region42: #{switch_transformer_forward.7} parent=5 // pred_check_branch
      %299 = sbr.rel (%p296) target = $region44
    $region43: #{switch_transformer_forward.7} parent=5 // pred_region
      %s300 = ssub.s32 %s17, 1
      %p301 = pneg %p38
      %p302 = pneg %p35
      %p303 = scmp.lt.s32.totalorder %s22, 1
      %s304 = scalar_select %p303, %s22, 1
      %s305 = smul.addr %s304, 6
      %s306 = smul.addr %s305, 4
      %s307 = scalar_lea.vmem %s1, %s306
      %p308 = pneg %p64
      %p309 = pneg %p61
      %p310 = pneg %p85
      %p311 = pneg %p82
      %p312 = pneg %p106
      %p313 = pneg %p103
      %p314 = pneg %p127
      %p315 = pneg %p124
      %p316 = pneg %p148
      %p317 = pneg %p145
      %p318 = pneg %p174
      %p319 = pneg %p171
      %p320 = scmp.lt.s32.totalorder %s22, 1
      %s321 = scalar_select %p320, %s22, 1
      %s322 = smul.addr %s321, 6
      %s323 = smul.addr %s322, 4
      %s324 = scalar_lea.vmem %s6, %s323
      %p325 = pneg %p200
      %p326 = pneg %p197
      %p327 = scmp.lt.s32.totalorder %s22, 1
      %s328 = scalar_select %p327, %s22, 1
      %s329 = smul.addr %s328, 8
      %s330 = scalar_lea.vmem %s7, %s329
      %p331 = pneg %p226
      %p332 = pneg %p223
      %p333 = scmp.lt.s32.totalorder %s22, 1
      %s334 = scalar_select %p333, %s22, 1
      %s335 = smul.addr %s334, 8
      %s336 = scalar_lea.vmem %s8, %s335
      %p337 = pneg %p252
      %p338 = pneg %p249
      %p339 = scmp.lt.s32.totalorder %s22, 1
      %s340 = scalar_select %p339, %s22, 1
      %s341 = smul.addr %s340, 8
      %s342 = scalar_lea.vmem %s9, %s341
      %p343 = scmp.lt.s32.totalorder %s22, 1
      %s344 = scalar_select %p343, %s22, 1
      %s345 = smul.addr %s344, 6
      %s346 = smul.addr %s345, 4
      %s347 = scalar_lea.vmem %s1, %s346
      %p348 = scmp.lt.s32.totalorder %s22, 1
      %s349 = scalar_select %p348, %s22, 1
      %s350 = smul.addr %s349, 6
      %s351 = smul.addr %s350, 4
      %s352 = scalar_lea.vmem %s6, %s351
      %p353 = scmp.lt.s32.totalorder %s22, 1
      %s354 = scalar_select %p353, %s22, 1
      %s355 = smul.addr %s354, 8
      %s356 = scalar_lea.vmem %s7, %s355
      %p357 = scmp.lt.s32.totalorder %s22, 1
      %s358 = scalar_select %p357, %s22, 1
      %s359 = smul.addr %s358, 8
      %s360 = scalar_lea.vmem %s8, %s359
      %p361 = scmp.lt.s32.totalorder %s22, 1
      %s362 = scalar_select %p361, %s22, 1
      %s363 = smul.addr %s362, 8
      %s364 = scalar_lea.vmem %s9, %s363
      %s366 = smul.u32 %s22, 8
      %v367 = vlaneseq
      %v368 = vshrl.u32 %v367, 7
      %v369 = vstv %s366
      %v370 = vadd.s32 %v368, %v369
      %s371 = sld [smem:[#allocation2]]
      %v372 = vstv %s371
      %vm373 = vcmp.lt.s32.totalorder %v370, %v372
      %v374 = vsel %vm373, 1, 0
      %v375 = vcvt.s32.f32 %v374
      %v376 = vld [vmem:[%s347] sm:$0xff]
      %v377 = vld [vmem:[%s347 + $0x8] sm:$0xff]
      %v378 = vld [vmem:[%s347 + $0x10] sm:$0xff]
      %v379 = vunpack.c.l.bf16 %v376
      %v380 = vunpack.c.h.bf16 %v376
      %v381 = vunpack.c.l.bf16 %v377
      %v382 = vunpack.c.h.bf16 %v377
      %v383 = vunpack.c.l.bf16 %v378
      %v384 = vunpack.c.h.bf16 %v378
      %v385 = vld [vmem:[%s2] sm:$0x3f]
      %v386 = vld [vmem:[%s3] sm:$0x3f]
      %v387 = vadd.f32 %v379, %v380
      %v388 = vadd.f32 %v387, %v381
      %v389 = vadd.f32 %v388, %v382
      %v390 = vadd.f32 %v389, %v383
      %v391 = vadd.f32 %v390, %v384
      %392 = vadd.xlane.f32.xlu0 %v391
      %v393 = vpop.xlane.xlu0 %392
      %v394 = vrcp.pop 768.0
      %v395 = vmul.f32 %v393, %v394
      %v396 = vsub.f32 %v379, %v395
      %v397 = vsub.f32 %v380, %v395
      %v398 = vsub.f32 %v381, %v395
      %v399 = vsub.f32 %v382, %v395
      %v400 = vsub.f32 %v383, %v395
      %v401 = vsub.f32 %v384, %v395
      %v402 = vmul.f32 %v396, %v396
      %v403 = vmul.f32 %v397, %v397
      %v404 = vmul.f32 %v398, %v398
      %v405 = vmul.f32 %v399, %v399
      %v406 = vmul.f32 %v400, %v400
      %v407 = vmul.f32 %v401, %v401
      %v408 = vadd.f32 %v402, %v403
      %v409 = vadd.f32 %v408, %v404
      %v410 = vadd.f32 %v409, %v405
      %v411 = vadd.f32 %v410, %v406
      %v412 = vadd.f32 %v411, %v407
      %413 = vadd.xlane.f32.xlu0 %v412
      %v414 = vpop.xlane.xlu0 %413
      %v415 = vmul.f32 %v414, %v394
      %v416 = vadd.f32 %v415, 1e-05
      %v417 = vrsqrt.pop %v416
      %v418 = vmul.f32 %v396, %v417
      %v419 = vmul.f32 %v397, %v417
      %v420 = vmul.f32 %v398, %v417
      %v421 = vmul.f32 %v399, %v417
      %v422 = vmul.f32 %v400, %v417
      %v423 = vmul.f32 %v401, %v417
      %v425 = vlaneseq
      %v426 = vshrl.u32 %v425, 7
      %v427 = vsub.s32 0, %v426
      %v428 = vrot.slane %v385, %v427
      %v429 = vlaneseq
      %v430 = vshrl.u32 %v429, 7
      %v431 = vsub.s32 1, %v430
      %v432 = vrot.slane %v385, %v431
      %v433 = vlaneseq
      %v434 = vshrl.u32 %v433, 7
      %v435 = vsub.s32 2, %v434
      %v436 = vrot.slane %v385, %v435
      %v437 = vlaneseq
      %v438 = vshrl.u32 %v437, 7
      %v439 = vsub.s32 3, %v438
      %v440 = vrot.slane %v385, %v439
      %v441 = vlaneseq
      %v442 = vshrl.u32 %v441, 7
      %v443 = vsub.s32 4, %v442
      %v444 = vrot.slane %v385, %v443
      %v445 = vlaneseq
      %v446 = vshrl.u32 %v445, 7
      %v447 = vsub.s32 5, %v446
      %v448 = vrot.slane %v385, %v447
      %v455 = vmul.f32 %v418, %v428
      %v456 = vmul.f32 %v419, %v432
      %v457 = vmul.f32 %v420, %v436
      %v458 = vmul.f32 %v421, %v440
      %v459 = vmul.f32 %v422, %v444
      %v460 = vmul.f32 %v423, %v448
      %v462 = vlaneseq
      %v463 = vshrl.u32 %v462, 7
      %v464 = vsub.s32 0, %v463
      %v465 = vrot.slane %v386, %v464
      %v466 = vlaneseq
      %v467 = vshrl.u32 %v466, 7
      %v468 = vsub.s32 1, %v467
      %v469 = vrot.slane %v386, %v468
      %v470 = vlaneseq
      %v471 = vshrl.u32 %v470, 7
      %v472 = vsub.s32 2, %v471
      %v473 = vrot.slane %v386, %v472
      %v474 = vlaneseq
      %v475 = vshrl.u32 %v474, 7
      %v476 = vsub.s32 3, %v475
      %v477 = vrot.slane %v386, %v476
      %v478 = vlaneseq
      %v479 = vshrl.u32 %v478, 7
      %v480 = vsub.s32 4, %v479
      %v481 = vrot.slane %v386, %v480
      %v482 = vlaneseq
      %v483 = vshrl.u32 %v482, 7
      %v484 = vsub.s32 5, %v483
      %v485 = vrot.slane %v386, %v484
      %v492 = vadd.f32 %v455, %v465
      %v493 = vadd.f32 %v456, %v469
      %v494 = vadd.f32 %v457, %v473
      %v495 = vadd.f32 %v458, %v477
      %v496 = vadd.f32 %v459, %v481
      %v497 = vadd.f32 %v460, %v485
      %v498 = vpack.c.bf16 %v492, %v492
      %v499 = vpack.c.bf16 %v493, %v493
      %v500 = vpack.c.bf16 %v494, %v494
      %v501 = vpack.c.bf16 %v495, %v495
      %v502 = vpack.c.bf16 %v496, %v496
      %v503 = vpack.c.bf16 %v497, %v497
      %v504 = vld [vmem:[%s4] sm:$0xf]
      %v505 = vld [vmem:[%s4 + $0x4] sm:$0xf]
      %v506 = vld [vmem:[%s4 + $0x8] sm:$0xf]
      %v507 = vld [vmem:[%s4 + $0xc] sm:$0xf]
      %v508 = vld [vmem:[%s4 + $0x10] sm:$0xf]
      %v509 = vld [vmem:[%s4 + $0x14] sm:$0xf]
      %v510 = vld [vmem:[%s4 + $0x18] sm:$0xf]
      %v511 = vld [vmem:[%s4 + $0x1c] sm:$0xf]
      %v512 = vld [vmem:[%s4 + $0x20] sm:$0xf]
      %v513 = vld [vmem:[%s4 + $0x24] sm:$0xf]
      %v514 = vld [vmem:[%s4 + $0x28] sm:$0xf]
      %v515 = vld [vmem:[%s4 + $0x2c] sm:$0xf]
      %v516 = vld [vmem:[%s4 + $0x30] sm:$0xf]
      %v517 = vld [vmem:[%s4 + $0x34] sm:$0xf]
      %v518 = vld [vmem:[%s4 + $0x38] sm:$0xf]
      %v519 = vld [vmem:[%s4 + $0x3c] sm:$0xf]
      %v520 = vld [vmem:[%s4 + $0x40] sm:$0xf]
      %v521 = vld [vmem:[%s4 + $0x44] sm:$0xf]
      %v522 = vld [vmem:[%s4 + $0x48] sm:$0xf]
      %v523 = vld [vmem:[%s4 + $0x4c] sm:$0xf]
      %v524 = vld [vmem:[%s4 + $0x50] sm:$0xf]
      %v525 = vld [vmem:[%s4 + $0x54] sm:$0xf]
      %v526 = vld [vmem:[%s4 + $0x58] sm:$0xf]
      %v527 = vld [vmem:[%s4 + $0x5c] sm:$0xf]
      %v528 = vld [vmem:[%s4 + $0x60] sm:$0xf]
      %v529 = vld [vmem:[%s4 + $0x64] sm:$0xf]
      %v530 = vld [vmem:[%s4 + $0x68] sm:$0xf]
      %v531 = vld [vmem:[%s4 + $0x6c] sm:$0xf]
      %v532 = vld [vmem:[%s4 + $0x70] sm:$0xf]
      %v533 = vld [vmem:[%s4 + $0x74] sm:$0xf]
      %v534 = vld [vmem:[%s4 + $0x78] sm:$0xf]
      %v535 = vld [vmem:[%s4 + $0x7c] sm:$0xf]
      %v536 = vld [vmem:[%s4 + $0x80] sm:$0xf]
      %v537 = vld [vmem:[%s4 + $0x84] sm:$0xf]
      %v538 = vld [vmem:[%s4 + $0x88] sm:$0xf]
      %v539 = vld [vmem:[%s4 + $0x8c] sm:$0xf]
      %v540 = vld [vmem:[%s4 + $0x90] sm:$0xf]
      %v541 = vld [vmem:[%s4 + $0x94] sm:$0xf]
      %v542 = vld [vmem:[%s4 + $0x98] sm:$0xf]
      %v543 = vld [vmem:[%s4 + $0x9c] sm:$0xf]
      %v544 = vld [vmem:[%s4 + $0xa0] sm:$0xf]
      %v545 = vld [vmem:[%s4 + $0xa4] sm:$0xf]
      %v546 = vld [vmem:[%s4 + $0xa8] sm:$0xf]
      %v547 = vld [vmem:[%s4 + $0xac] sm:$0xf]
      %v548 = vld [vmem:[%s4 + $0xb0] sm:$0xf]
      %v549 = vld [vmem:[%s4 + $0xb4] sm:$0xf]
      %v550 = vld [vmem:[%s4 + $0xb8] sm:$0xf]
      %v551 = vld [vmem:[%s4 + $0xbc] sm:$0xf]
      %v552 = vld [vmem:[%s4 + $0xc0] sm:$0xf]
      %v553 = vld [vmem:[%s4 + $0xc4] sm:$0xf]
      %v554 = vld [vmem:[%s4 + $0xc8] sm:$0xf]
      %v555 = vld [vmem:[%s4 + $0xcc] sm:$0xf]
      %v556 = vld [vmem:[%s4 + $0xd0] sm:$0xf]
      %v557 = vld [vmem:[%s4 + $0xd4] sm:$0xf]
      %v558 = vld [vmem:[%s4 + $0xd8] sm:$0xf]
      %v559 = vld [vmem:[%s4 + $0xdc] sm:$0xf]
      %v560 = vld [vmem:[%s4 + $0xe0] sm:$0xf]
      %v561 = vld [vmem:[%s4 + $0xe4] sm:$0xf]
      %v562 = vld [vmem:[%s4 + $0xe8] sm:$0xf]
      %v563 = vld [vmem:[%s4 + $0xec] sm:$0xf]
      %v564 = vld [vmem:[%s4 + $0xf0] sm:$0xf]
      %v565 = vld [vmem:[%s4 + $0xf4] sm:$0xf]
      %v566 = vld [vmem:[%s4 + $0xf8] sm:$0xf]
      %v567 = vld [vmem:[%s4 + $0xfc] sm:$0xf]
      %v568 = vld [vmem:[%s4 + $0x100] sm:$0xf]
      %v569 = vld [vmem:[%s4 + $0x104] sm:$0xf]
      %v570 = vld [vmem:[%s4 + $0x108] sm:$0xf]
      %v571 = vld [vmem:[%s4 + $0x10c] sm:$0xf]
      %v572 = vld [vmem:[%s4 + $0x110] sm:$0xf]
      %v573 = vld [vmem:[%s4 + $0x114] sm:$0xf]
      %v574 = vld [vmem:[%s4 + $0x118] sm:$0xf]
      %v575 = vld [vmem:[%s4 + $0x11c] sm:$0xf]
      %v576 = vld [vmem:[%s4 + $0x120] sm:$0xf]
      %v577 = vld [vmem:[%s4 + $0x124] sm:$0xf]
      %v578 = vld [vmem:[%s4 + $0x128] sm:$0xf]
      %v579 = vld [vmem:[%s4 + $0x12c] sm:$0xf]
      %v580 = vld [vmem:[%s4 + $0x130] sm:$0xf]
      %v581 = vld [vmem:[%s4 + $0x134] sm:$0xf]
      %v582 = vld [vmem:[%s4 + $0x138] sm:$0xf]
      %v583 = vld [vmem:[%s4 + $0x13c] sm:$0xf]
      %v584 = vld [vmem:[%s4 + $0x140] sm:$0xf]
      %v585 = vld [vmem:[%s4 + $0x144] sm:$0xf]
      %v586 = vld [vmem:[%s4 + $0x148] sm:$0xf]
      %v587 = vld [vmem:[%s4 + $0x14c] sm:$0xf]
      %v588 = vld [vmem:[%s4 + $0x150] sm:$0xf]
      %v589 = vld [vmem:[%s4 + $0x154] sm:$0xf]
      %v590 = vld [vmem:[%s4 + $0x158] sm:$0xf]
      %v591 = vld [vmem:[%s4 + $0x15c] sm:$0xf]
      %v592 = vld [vmem:[%s4 + $0x160] sm:$0xf]
      %v593 = vld [vmem:[%s4 + $0x164] sm:$0xf]
      %v594 = vld [vmem:[%s4 + $0x168] sm:$0xf]
      %v595 = vld [vmem:[%s4 + $0x16c] sm:$0xf]
      %v596 = vld [vmem:[%s4 + $0x170] sm:$0xf]
      %v597 = vld [vmem:[%s4 + $0x174] sm:$0xf]
      %v598 = vld [vmem:[%s4 + $0x178] sm:$0xf]
      %v599 = vld [vmem:[%s4 + $0x17c] sm:$0xf]
      %v600 = vld [vmem:[%s5] sm:$0x1]
      %v602 = vlaneseq
      %v603 = vshrl.u32 %v602, 7
      %v604 = vsub.s32 0, %v603
      %v605 = vrot.slane %v600, %v604
      %v703 = vunpack.c.l.b16 %v504
      %v704 = vunpack.c.l.b16 %v505
      %v705 = vunpack.c.l.b16 %v506
      %v706 = vunpack.c.l.b16 %v507
      %v707 = vunpack.c.l.b16 %v508
      %v708 = vunpack.c.l.b16 %v509
      %v709 = vunpack.c.l.b16 %v510
      %v710 = vunpack.c.l.b16 %v511
      %v711 = vunpack.c.l.b16 %v512
      %v712 = vunpack.c.l.b16 %v513
      %v713 = vunpack.c.l.b16 %v514
      %v714 = vunpack.c.l.b16 %v515
      %v715 = vunpack.c.l.b16 %v516
      %v716 = vunpack.c.l.b16 %v517
      %v717 = vunpack.c.l.b16 %v518
      %v718 = vunpack.c.l.b16 %v519
      %v719 = vunpack.c.l.b16 %v520
      %v720 = vunpack.c.l.b16 %v521
      %v721 = vunpack.c.l.b16 %v522
      %v722 = vunpack.c.l.b16 %v523
      %v723 = vunpack.c.l.b16 %v524
      %v724 = vunpack.c.l.b16 %v525
      %v725 = vunpack.c.l.b16 %v526
      %v726 = vunpack.c.l.b16 %v527
      %v727 = vunpack.c.l.b16 %v528
      %v728 = vunpack.c.l.b16 %v529
      %v729 = vunpack.c.l.b16 %v530
      %v730 = vunpack.c.l.b16 %v531
      %v731 = vunpack.c.l.b16 %v532
      %v732 = vunpack.c.l.b16 %v533
      %v733 = vunpack.c.l.b16 %v534
      %v734 = vunpack.c.l.b16 %v535
      %v735 = vunpack.c.l.b16 %v536
      %v736 = vunpack.c.l.b16 %v537
      %v737 = vunpack.c.l.b16 %v538
      %v738 = vunpack.c.l.b16 %v539
      %v739 = vunpack.c.l.b16 %v540
      %v740 = vunpack.c.l.b16 %v541
      %v741 = vunpack.c.l.b16 %v542
      %v742 = vunpack.c.l.b16 %v543
      %v743 = vunpack.c.l.b16 %v544
      %v744 = vunpack.c.l.b16 %v545
      %v745 = vunpack.c.l.b16 %v546
      %v746 = vunpack.c.l.b16 %v547
      %v747 = vunpack.c.l.b16 %v548
      %v748 = vunpack.c.l.b16 %v549
      %v749 = vunpack.c.l.b16 %v550
      %v750 = vunpack.c.l.b16 %v551
      %v751 = vunpack.c.l.b16 %v552
      %v752 = vunpack.c.l.b16 %v553
      %v753 = vunpack.c.l.b16 %v554
      %v754 = vunpack.c.l.b16 %v555
      %v755 = vunpack.c.l.b16 %v556
      %v756 = vunpack.c.l.b16 %v557
      %v757 = vunpack.c.l.b16 %v558
      %v758 = vunpack.c.l.b16 %v559
      %v759 = vunpack.c.l.b16 %v560
      %v760 = vunpack.c.l.b16 %v561
      %v761 = vunpack.c.l.b16 %v562
      %v762 = vunpack.c.l.b16 %v563
      %v763 = vunpack.c.l.b16 %v564
      %v764 = vunpack.c.l.b16 %v565
      %v765 = vunpack.c.l.b16 %v566
      %v766 = vunpack.c.l.b16 %v567
      %v767 = vunpack.c.l.b16 %v568
      %v768 = vunpack.c.l.b16 %v569
      %v769 = vunpack.c.l.b16 %v570
      %v770 = vunpack.c.l.b16 %v571
      %v771 = vunpack.c.l.b16 %v572
      %v772 = vunpack.c.l.b16 %v573
      %v773 = vunpack.c.l.b16 %v574
      %v774 = vunpack.c.l.b16 %v575
      %v775 = vunpack.c.l.b16 %v576
      %v776 = vunpack.c.l.b16 %v577
      %v777 = vunpack.c.l.b16 %v578
      %v778 = vunpack.c.l.b16 %v579
      %v779 = vunpack.c.l.b16 %v580
      %v780 = vunpack.c.l.b16 %v581
      %v781 = vunpack.c.l.b16 %v582
      %v782 = vunpack.c.l.b16 %v583
      %v783 = vunpack.c.l.b16 %v584
      %v784 = vunpack.c.l.b16 %v585
      %v785 = vunpack.c.l.b16 %v586
      %v786 = vunpack.c.l.b16 %v587
      %v787 = vunpack.c.l.b16 %v588
      %v788 = vunpack.c.l.b16 %v589
      %v789 = vunpack.c.l.b16 %v590
      %v790 = vunpack.c.l.b16 %v591
      %v791 = vunpack.c.l.b16 %v592
      %v792 = vunpack.c.l.b16 %v593
      %v793 = vunpack.c.l.b16 %v594
      %v794 = vunpack.c.l.b16 %v595
      %v795 = vunpack.c.l.b16 %v596
      %v796 = vunpack.c.l.b16 %v597
      %v797 = vunpack.c.l.b16 %v598
      %v798 = vunpack.c.l.b16 %v599
      %v799 = vpack.c.b16 %v704, %v703
      %v800 = vpack.c.b16 %v706, %v705
      %v801 = vpack.c.b16 %v708, %v707
      %v802 = vpack.c.b16 %v710, %v709
      %v803 = vpack.c.b16 %v712, %v711
      %v804 = vpack.c.b16 %v714, %v713
      %v805 = vpack.c.b16 %v716, %v715
      %v806 = vpack.c.b16 %v718, %v717
      %v807 = vpack.c.b16 %v720, %v719
      %v808 = vpack.c.b16 %v722, %v721
      %v809 = vpack.c.b16 %v724, %v723
      %v810 = vpack.c.b16 %v726, %v725
      %v811 = vpack.c.b16 %v728, %v727
      %v812 = vpack.c.b16 %v730, %v729
      %v813 = vpack.c.b16 %v732, %v731
      %v814 = vpack.c.b16 %v734, %v733
      %v815 = vpack.c.b16 %v736, %v735
      %v816 = vpack.c.b16 %v738, %v737
      %v817 = vpack.c.b16 %v740, %v739
      %v818 = vpack.c.b16 %v742, %v741
      %v819 = vpack.c.b16 %v744, %v743
      %v820 = vpack.c.b16 %v746, %v745
      %v821 = vpack.c.b16 %v748, %v747
      %v822 = vpack.c.b16 %v750, %v749
      %v823 = vpack.c.b16 %v752, %v751
      %v824 = vpack.c.b16 %v754, %v753
      %v825 = vpack.c.b16 %v756, %v755
      %v826 = vpack.c.b16 %v758, %v757
      %v827 = vpack.c.b16 %v760, %v759
      %v828 = vpack.c.b16 %v762, %v761
      %v829 = vpack.c.b16 %v764, %v763
      %v830 = vpack.c.b16 %v766, %v765
      %v831 = vpack.c.b16 %v768, %v767
      %v832 = vpack.c.b16 %v770, %v769
      %v833 = vpack.c.b16 %v772, %v771
      %v834 = vpack.c.b16 %v774, %v773
      %v835 = vpack.c.b16 %v776, %v775
      %v836 = vpack.c.b16 %v778, %v777
      %v837 = vpack.c.b16 %v780, %v779
      %v838 = vpack.c.b16 %v782, %v781
      %v839 = vpack.c.b16 %v784, %v783
      %v840 = vpack.c.b16 %v786, %v785
      %v841 = vpack.c.b16 %v788, %v787
      %v842 = vpack.c.b16 %v790, %v789
      %v843 = vpack.c.b16 %v792, %v791
      %v844 = vpack.c.b16 %v794, %v793
      %v845 = vpack.c.b16 %v796, %v795
      %v846 = vpack.c.b16 %v798, %v797
      %895 = vmatprep.subr.bf16.mxu0 0
      %896 = vmatpush1.bf16.msra.mxu0 %v806
      %897 = vmatprep.subr.bf16.mxu0 0
      %898 = vmatpush1.bf16.msra.mxu0 %v805
      %899 = vmatprep.subr.bf16.mxu0 0
      %900 = vmatpush1.bf16.msra.mxu0 %v804
      %901 = vmatprep.subr.bf16.mxu0 0
      %902 = vmatpush1.bf16.msra.mxu0 %v803
      %903 = vmatprep.subr.bf16.mxu0 0
      %904 = vmatpush1.bf16.msra.mxu0 %v802
      %905 = vmatprep.subr.bf16.mxu0 0
      %906 = vmatpush1.bf16.msra.mxu0 %v801
      %907 = vmatprep.subr.bf16.mxu0 0
      %908 = vmatpush1.bf16.msra.mxu0 %v800
      %909 = vmatprep.subr.bf16.mxu0 0
      %910 = vmatpush1.bf16.msra.mxu0 %v799
      %911 = vmatprep.subr.bf16.mxu0 0
      %912 = vmatpush2.bf16.msra.mxu0 %v814
      %913 = vmatprep.subr.bf16.mxu0 0
      %914 = vmatpush2.bf16.msra.mxu0 %v813
      %915 = vmatprep.subr.bf16.mxu0 0
      %916 = vmatpush2.bf16.msra.mxu0 %v812
      %917 = vmatprep.subr.bf16.mxu0 0
      %918 = vmatpush2.bf16.msra.mxu0 %v811
      %919 = vmatprep.subr.bf16.mxu0 0
      %920 = vmatpush2.bf16.msra.mxu0 %v810
      %921 = vmatprep.subr.bf16.mxu0 0
      %922 = vmatpush2.bf16.msra.mxu0 %v809
      %923 = vmatprep.subr.bf16.mxu0 0
      %924 = vmatpush2.bf16.msra.mxu0 %v808
      %925 = vmatprep.subr.bf16.mxu0 0
      %926 = vmatpush2.bf16.msra.mxu0 %v807
      %927 = vmatprep.mubr.bf16.mxu0 %v499
      %928 = vmatmul.mubr.bf16.gmra.mxu0 %v498
      %v929 = vpop.f32.mrf.mxu0
      %v930 = vadd.f32 %v605, %v929
      %v931 = vpop.f32.mrf.mxu0
      %v932 = vpop.f32.mrf.mxu0
      %v933 = vpop.f32.mrf.mxu0
      %934 = vdwg.mxu0
      %935 = vmatprep.subr.bf16.mxu0 0
      %936 = vmatpush1.bf16.msra.mxu0 %v822
      %937 = vmatprep.subr.bf16.mxu0 0
      %938 = vmatpush1.bf16.msra.mxu0 %v821
      %939 = vmatprep.subr.bf16.mxu0 0
      %940 = vmatpush1.bf16.msra.mxu0 %v820
      %941 = vmatprep.subr.bf16.mxu0 0
      %942 = vmatpush1.bf16.msra.mxu0 %v819
      %943 = vmatprep.subr.bf16.mxu0 0
      %944 = vmatpush1.bf16.msra.mxu0 %v818
      %945 = vmatprep.subr.bf16.mxu0 0
      %946 = vmatpush1.bf16.msra.mxu0 %v817
      %947 = vmatprep.subr.bf16.mxu0 0
      %948 = vmatpush1.bf16.msra.mxu0 %v816
      %949 = vmatprep.subr.bf16.mxu0 0
      %950 = vmatpush1.bf16.msra.mxu0 %v815
      %951 = vmatprep.subr.bf16.mxu0 0
      %952 = vmatpush2.bf16.msra.mxu0 %v830
      %953 = vmatprep.subr.bf16.mxu0 0
      %954 = vmatpush2.bf16.msra.mxu0 %v829
      %955 = vmatprep.subr.bf16.mxu0 0
      %956 = vmatpush2.bf16.msra.mxu0 %v828
      %957 = vmatprep.subr.bf16.mxu0 0
      %958 = vmatpush2.bf16.msra.mxu0 %v827
      %959 = vmatprep.subr.bf16.mxu0 0
      %960 = vmatpush2.bf16.msra.mxu0 %v826
      %961 = vmatprep.subr.bf16.mxu0 0
      %962 = vmatpush2.bf16.msra.mxu0 %v825
      %963 = vmatprep.subr.bf16.mxu0 0
      %964 = vmatpush2.bf16.msra.mxu0 %v824
      %965 = vmatprep.subr.bf16.mxu0 0
      %966 = vmatpush2.bf16.msra.mxu0 %v823
      %967 = vmatprep.mubr.bf16.mxu0 %v501
      %968 = vmatmul.mubr.bf16.gmra.mxu0 %v500
      %v969 = vpop.f32.mrf.mxu0
      %v970 = vadd.f32 %v930, %v969
      %v971 = vpop.f32.mrf.mxu0
      %v972 = vpop.f32.mrf.mxu0
      %v973 = vpop.f32.mrf.mxu0
      %974 = vdwg.mxu0
      %975 = vmatprep.subr.bf16.mxu0 0
      %976 = vmatpush1.bf16.msra.mxu0 %v838
      %977 = vmatprep.subr.bf16.mxu0 0
      %978 = vmatpush1.bf16.msra.mxu0 %v837
      %979 = vmatprep.subr.bf16.mxu0 0
      %980 = vmatpush1.bf16.msra.mxu0 %v836
      %981 = vmatprep.subr.bf16.mxu0 0
      %982 = vmatpush1.bf16.msra.mxu0 %v835
      %983 = vmatprep.subr.bf16.mxu0 0
      %984 = vmatpush1.bf16.msra.mxu0 %v834
      %985 = vmatprep.subr.bf16.mxu0 0
      %986 = vmatpush1.bf16.msra.mxu0 %v833
      %987 = vmatprep.subr.bf16.mxu0 0
      %988 = vmatpush1.bf16.msra.mxu0 %v832
      %989 = vmatprep.subr.bf16.mxu0 0
      %990 = vmatpush1.bf16.msra.mxu0 %v831
      %991 = vmatprep.subr.bf16.mxu0 0
      %992 = vmatpush2.bf16.msra.mxu0 %v846
      %993 = vmatprep.subr.bf16.mxu0 0
      %994 = vmatpush2.bf16.msra.mxu0 %v845
      %995 = vmatprep.subr.bf16.mxu0 0
      %996 = vmatpush2.bf16.msra.mxu0 %v844
      %997 = vmatprep.subr.bf16.mxu0 0
      %998 = vmatpush2.bf16.msra.mxu0 %v843
      %999 = vmatprep.subr.bf16.mxu0 0
      %1000 = vmatpush2.bf16.msra.mxu0 %v842
      %1001 = vmatprep.subr.bf16.mxu0 0
      %1002 = vmatpush2.bf16.msra.mxu0 %v841
      %1003 = vmatprep.subr.bf16.mxu0 0
      %1004 = vmatpush2.bf16.msra.mxu0 %v840
      %1005 = vmatprep.subr.bf16.mxu0 0
      %1006 = vmatpush2.bf16.msra.mxu0 %v839
      %1007 = vmatprep.mubr.bf16.mxu0 %v503
      %1008 = vmatmul.mubr.bf16.gmra.mxu0 %v502
      %v1009 = vpop.f32.mrf.mxu0
      %v1010 = vadd.f32 %v970, %v1009
      %v1011 = vpop.f32.mrf.mxu0
      %v1012 = vpop.f32.mrf.mxu0
      %v1013 = vpop.f32.mrf.mxu0
      %1014 = vdwg.mxu0
      %1015 = vmax.xlane.f32.xlu0 %v1010
      %v1016 = vpop.xlane.xlu0 %1015
      %v1017 = vsub.f32 %v1010, %v1016
      %v1018 = vmul.f32 %v1017, 1.442695
      %v1019 = vpow.pop %v1018
      %1020 = vadd.xlane.f32.xlu0 %v1019
      %v1021 = vpop.xlane.xlu0 %1020
      %v1022 = vrcp.pop %v1021
      %v1023 = vmul.f32 %v1019, %v1022
      %1024 = vmax.xlane.f32.xlu0 %v1023
      %v1025 = vpop.xlane.xlu0 %1024
      %v1026 = vlaneseq
      %v1027 = vand.u32 %v1026, 127
      %vm1028 = vcmp.eq.f32.partialorder %v1023, %v1025
      %v1029 = vsel %vm1028, %v1027, 128
      %v1030 = vand.u32 %v1029, 65535
      %v1031 = vshra.s32 %v1029, 16
      %v1032 = vcvt.s32.f32 %v1030
      %v1033 = vcvt.s32.f32 %v1031
      %1034 = vmin.xlane.f32.xlu0 %v1033
      %v1035 = vpop.xlane.xlu0 %1034
      %vm1036 = vcmp.eq.f32.partialorder %v1033, %v1035
      %v1037 = vsel %vm1036, %v1032, inf
      %1038 = vmin.xlane.f32.xlu0 %v1037
      %v1039 = vpop.xlane.xlu0 %1038
      %v1040 = vcvt.f32.s32 %v1039
      %v1041 = vcvt.f32.s32 %v1035
      %v1042 = vshll.u32 %v1041, 16
      %v1043 = vadd.s32 %v1042, %v1040
      %vm1044 = vcmp.eq.s32.totalorder %v1027, %v1043
      %v1045 = vsel %vm1044, 1, 0
      %v1046 = vcvt.s32.f32 %v1045
      %v1053 = vunpack.c.l.b16 %v498
      %v1054 = vunpack.c.l.b16 %v499
      %v1055 = vunpack.c.l.b16 %v500
      %v1056 = vunpack.c.l.b16 %v501
      %v1057 = vunpack.c.l.b16 %v502
      %v1058 = vunpack.c.l.b16 %v503
      %v1059 = vpack.c.b16 %v1054, %v1053
      %v1060 = vpack.c.b16 %v1056, %v1055
      %v1061 = vpack.c.b16 %v1058, %v1057
      %1065 = vst [vmem:[%s352] sm:$0xff] %v1059
      %1066 = vst [vmem:[%s352 + $0x8] sm:$0xff] %v1060
      %1067 = vst [vmem:[%s352 + $0x10] sm:$0xff] %v1061
      %vm1068 = vcmask 7168
      %1069 = vst.msk [vmem:[%s356] sm:$0xff] %vm1068, %v1043
      %v1070 = vmul.f32 %v1025, %v375
      %1071 = vst.msk [vmem:[%s360] sm:$0xff] %vm1068, %v1070
      %v1072 = vmul.f32 %v1046, %v375
      %v1073 = vrot.slane %v1072, 4
      %v1074 = vadd.f32 %v1072, %v1073
      %v1075 = vrot.slane %v1074, 2
      %v1076 = vadd.f32 %v1074, %v1075
      %v1077 = vrot.slane %v1076, 1
      %v1078 = vadd.f32 %v1076, %v1077
      %v1079 = vmul.f32 %v1023, %v375
      %v1080 = vrot.slane %v1079, 4
      %v1081 = vadd.f32 %v1079, %v1080
      %v1082 = vrot.slane %v1081, 2
      %v1083 = vadd.f32 %v1081, %v1082
      %v1084 = vrot.slane %v1083, 1
      %v1085 = vadd.f32 %v1083, %v1084
      %vm1086 = vcmp.eq.s32.totalorder %v368, 0
      %v1087 = vsel %vm1086, %v1078, 0.0
      %vm1088 = vcmp.eq.s32.totalorder %v368, 1
      %v1089 = vsel %vm1088, %v1085, 0.0
      %v1090 = vadd.f32 %v1087, %v1089
      %1091 = vst [vmem:[%s364] sm:$0xff] %v1090
      %p1092 = scmp.lt.s32.totalorder %s22, 1
      %s1093 = scalar_select %p1092, %s22, 1
      %s1094 = smul.addr %s1093, 6
      %s1095 = smul.addr %s1094, 4
      %s1096 = scalar_lea.vmem %s6, %s1095
      %p1097 = scmp.lt.s32.totalorder %s22, 1
      %s1098 = scalar_select %p1097, %s22, 1
      %s1099 = smul.addr %s1098, 8
      %s1100 = scalar_lea.vmem %s7, %s1099
      %p1101 = scmp.lt.s32.totalorder %s22, 1
      %s1102 = scalar_select %p1101, %s22, 1
      %s1103 = smul.addr %s1102, 8
      %s1104 = scalar_lea.vmem %s8, %s1103
      %p1105 = scmp.lt.s32.totalorder %s22, 1
      %s1106 = scalar_select %p1105, %s22, 1
      %s1107 = smul.addr %s1106, 8
      %s1108 = scalar_lea.vmem %s9, %s1107
      // Predicated region
      $region45: #{switch_transformer_forward.7} parent=43 // pred_check
        %p1109 = pneg %p171
      $region46: #{switch_transformer_forward.7} parent=43 // pred_check_branch
        %1111 = sbr.rel (%p1109) target = $region48
      $region47: #{switch_transformer_forward.7} parent=43 // pred_region
        _
      $region48: #{switch_transformer_forward.7} parent=43 // pred_fallthru
        _
      // Predicated region
      $region49: #{switch_transformer_forward.7} parent=43 // pred_check
        %p1112 = pneg %p197
      $region50: #{switch_transformer_forward.7} parent=43 // pred_check_branch
        %1114 = sbr.rel (%p1112) target = $region52
      $region51: #{switch_transformer_forward.7} parent=43 // pred_region
        _
      $region52: #{switch_transformer_forward.7} parent=43 // pred_fallthru
        _
      // Predicated region
      $region53: #{switch_transformer_forward.7} parent=43 // pred_check
        %p1115 = pneg %p223
      $region54: #{switch_transformer_forward.7} parent=43 // pred_check_branch
        %1117 = sbr.rel (%p1115) target = $region56
      $region55: #{switch_transformer_forward.7} parent=43 // pred_region
        _
      $region56: #{switch_transformer_forward.7} parent=43 // pred_fallthru
        _
      // Predicated region
      $region57: #{switch_transformer_forward.7} parent=43 // pred_check
        %p1118 = pneg %p249
      $region58: #{switch_transformer_forward.7} parent=43 // pred_check_branch
        %1120 = sbr.rel (%p1118) target = $region60
      $region59: #{switch_transformer_forward.7} parent=43 // pred_region
        _
      $region60: #{switch_transformer_forward.7} parent=43 // pred_fallthru
        _
    $region44: #{switch_transformer_forward.7} parent=5 // pred_fallthru
      _
    %p1121 = scmp.le.s32.totalorder 2, %s17
    // Predicated region
    $region61: #{switch_transformer_forward.7} parent=5 // pred_check
      %p1122 = pneg %p1121
    $region62: #{switch_transformer_forward.7} parent=5 // pred_check_branch
      %1124 = sbr.rel (%p1122) target = $region64
    $region63: #{switch_transformer_forward.7} parent=5 // pred_region
      %s1125 = ssub.s32 %s17, 2
      // Predicated region
      $region65: #{switch_transformer_forward.7} parent=63 // pred_check
        %p1126 = pneg %p177
      $region66: #{switch_transformer_forward.7} parent=63 // pred_check_branch
        %1128 = sbr.rel (%p1126) target = $region68
      $region67: #{switch_transformer_forward.7} parent=63 // pred_region
        %p1129 = scmp.lt.s32.totalorder %s23, 1
        %s1130 = scalar_select %p1129, %s23, 1
        %s1131 = smul.addr %s1130, 6
        %s1132 = smul.addr %s1131, 4
        %s1133 = scalar_lea.vmem %s6, %s1132
      $region68: #{switch_transformer_forward.7} parent=63 // pred_fallthru
        _
      // Predicated region
      $region69: #{switch_transformer_forward.7} parent=63 // pred_check
        %p1134 = pneg %p203
      $region70: #{switch_transformer_forward.7} parent=63 // pred_check_branch
        %1136 = sbr.rel (%p1134) target = $region72
      $region71: #{switch_transformer_forward.7} parent=63 // pred_region
        %p1137 = scmp.lt.s32.totalorder %s23, 1
        %s1138 = scalar_select %p1137, %s23, 1
        %s1139 = smul.addr %s1138, 8
        %s1140 = scalar_lea.vmem %s7, %s1139
      $region72: #{switch_transformer_forward.7} parent=63 // pred_fallthru
        _
      // Predicated region
      $region73: #{switch_transformer_forward.7} parent=63 // pred_check
        %p1141 = pneg %p229
      $region74: #{switch_transformer_forward.7} parent=63 // pred_check_branch
        %1143 = sbr.rel (%p1141) target = $region76
      $region75: #{switch_transformer_forward.7} parent=63 // pred_region
        %p1144 = scmp.lt.s32.totalorder %s23, 1
        %s1145 = scalar_select %p1144, %s23, 1
        %s1146 = smul.addr %s1145, 8
        %s1147 = scalar_lea.vmem %s8, %s1146
      $region76: #{switch_transformer_forward.7} parent=63 // pred_fallthru
        _
      // Predicated region
      $region77: #{switch_transformer_forward.7} parent=63 // pred_check
        %p1148 = pneg %p255
      $region78: #{switch_transformer_forward.7} parent=63 // pred_check_branch
        %1150 = sbr.rel (%p1148) target = $region80
      $region79: #{switch_transformer_forward.7} parent=63 // pred_region
        %p1151 = scmp.lt.s32.totalorder %s23, 1
        %s1152 = scalar_select %p1151, %s23, 1
        %s1153 = smul.addr %s1152, 8
        %s1154 = scalar_lea.vmem %s9, %s1153
      $region80: #{switch_transformer_forward.7} parent=63 // pred_fallthru
        _
    $region64: #{switch_transformer_forward.7} parent=5 // pred_fallthru
      _
  $region6: #{switch_transformer_forward.7} parent=0 // loop_footer
    %s21 = sadd.s32 1, %s17
  $region7: #{switch_transformer_forward.7} parent=0 // loop_footer_branch
    %16 = sbr.rel target = $region3
  $region8: #{switch_transformer_forward.7} parent=0 // loop_exit
    _

// kernel: switch_transformer_forward.6
$region0: #{switch_transformer_forward.6}
  #allocation0 [shape = 'u32[]', space=smem, size = 0x4, offset = 0x4, fixed_abs, tag = 'smem constant byte address 0x4 - core index']
  #allocation1 [shape = 'u32[144,128]{1,0:T(1,128)}', space=vmem, size = 0x12000, scoped, tag = 'internal scratch']
  #allocation2 [shape = 's32[1]{0}', space=sflag, size = 0x4, scoped, tag = 'scoped memory for switch_transformer_forward.6']
  #allocation3 [shape = 'u8[512]{0}', space=smem, size = 0x200, scoped, tag = 'prefetched SMEM operand 0']
  %s0 = inlined_call_operand.vmem [shape: s32[6], index: 0, kind: input, shape index: {}]
  %s1 = inlined_call_operand.vmem [shape: bf16[48,768], index: 1, kind: input, shape index: {}]
  %s2 = inlined_call_operand.vmem [shape: f32[48,1], index: 2, kind: input, shape index: {}]
  %s3 = inlined_call_operand.hbm [shape: bf16[4,768,512], index: 3, kind: input, shape index: {}]
  %s4 = inlined_call_operand.hbm [shape: f32[4,1,512], index: 4, kind: input, shape index: {}]
  %s5 = inlined_call_operand.hbm [shape: bf16[4,512,768], index: 5, kind: input, shape index: {}]
  %s6 = inlined_call_operand.hbm [shape: f32[4,1,768], index: 6, kind: input, shape index: {}]
  %s7 = inlined_call_operand.vmem [shape: bf16[48,768], index: 7, kind: output, shape index: {}]
  %s8 = sld [smem:[#allocation0]]
  $region73: #{switch_transformer_forward.6} parent=0
    _
  %s10 = ssub.s32 1, %s8
  %s11 = scalar_select 0, %s10, %s8
  %s12 = sshll.u32 %s0, 4
  %s13 = int_to_ptr.vmem [resolvable:$true] %s12
  %15 = dma.vmem_to_smem %s13, 16, [#allocation3], [#allocation2]
  %16 = dma.done [#allocation2], 16
  %17 = sfence
  $region1: #{switch_transformer_forward.6} parent=0
    #allocation4 [shape = 'u8[1572864]{0}', space=vmem, size = 0x180000, scoped, tag = 'input window, operand 3']
    #allocation5 [shape = 's32[2]{0}', space=sflag, size = 0x8, scoped, tag = 'scoped memory for switch_transformer_forward.6']
    #allocation6 [shape = 'u8[4096]{0}', space=vmem, size = 0x1000, scoped, tag = 'input window, operand 4']
    #allocation7 [shape = 's32[2]{0}', space=sflag, size = 0x8, scoped, tag = 'scoped memory for switch_transformer_forward.6']
    #allocation8 [shape = 'u8[1572864]{0}', space=vmem, size = 0x180000, scoped, tag = 'input window, operand 5']
    #allocation9 [shape = 'u8[6144]{0}', space=vmem, size = 0x1800, scoped, tag = 'input window, operand 6']
    #allocation10 [shape = 's32[2]{0}', space=sflag, size = 0x8, scoped, tag = 'scoped memory for switch_transformer_forward.6']
    %18 = vsyncpa [#allocation5], 0
    %s19 = scalar_lea.sflag [#allocation5], 1
    %20 = vsyncpa %s19, 0
    %21 = vsyncpa [#allocation7], 0
    %s22 = scalar_lea.sflag [#allocation7], 1
    %23 = vsyncpa %s22, 0
    %24 = vsyncpa [#allocation10], 0
    %s25 = scalar_lea.sflag [#allocation10], 1
    %26 = vsyncpa %s25, 0
    loop: start=0, step=1, limit=8
    $region2: #{switch_transformer_forward.6} parent=1 // loop_pre_header
      _
    $region3: #{switch_transformer_forward.6} parent=1 // loop_header
      %s28 = sphi 0, %s32
      %p29 = scmp.ge.s32.totalorder %s28, 8
      %s38 = sphi 0, %s40
      %s41 = sphi 0, %s38
      %s42 = sphi 0, %s41
      %s58 = sphi 0, %s42
      %s64 = sphi 0, %s66
      %s67 = sphi 0, %s64
      %s68 = sphi 0, %s67
      %s84 = sphi 0, %s68
      %s92 = sphi 0, %s94
      %s95 = sphi 0, %s92
      %s96 = sphi 0, %s95
      %s112 = sphi 0, %s96
      %s120 = sphi 0, %s122
      %s123 = sphi 0, %s120
      %s124 = sphi 0, %s123
      %s140 = sphi 0, %s124
      %s148 = sphi 0, %s150
      %s151 = sphi 0, %s148
      %s152 = sphi 0, %s151
      %s168 = sphi 0, %s152
      %s176 = sphi 0, %s178
      %s179 = sphi 0, %s176
      %s180 = sphi 0, %s179
      %s196 = sphi 0, %s180
      %s202 = sphi 0, %s204
      %s205 = sphi 0, %s202
      %s206 = sphi 0, %s205
      %s222 = sphi 0, %s206
    $region4: #{switch_transformer_forward.6} parent=1 // loop_header_branch
      %31 = sbr.rel (%p29) target = $region8
    $region5: #{switch_transformer_forward.6} parent=1 // loop_body
      %s33 = ssub.s32 %s28, 1
      %s34 = ssub.s32 %s28, 2
      %s35 = sadd.s32 %s28, 1
      %s36 = ssub.s32 %s28, %s35
      %p37 = scmp.eq.s32.totalorder %s36, 0
      %s39 = sadd.s32 %s38, 1
      %s40 = scalar_select %p37, %s38, %s39
      %p43 = pneg %p37
      %p44 = scmp.eq.s32.totalorder %s28, 5
      %p45 = por %p43, %p44
      %p46 = scmp.ne.s32.totalorder %s38, %s41
      %p47 = scmp.eq.s32.totalorder %s28, 0
      %p48 = por %p46, %p47
      %p49 = scmp.ne.s32.totalorder %s38, %s41
      %p50 = scmp.eq.s32.totalorder %s33, 5
      %p51 = por %p49, %p50
      %p52 = scmp.ne.s32.totalorder %s41, %s42
      %p53 = scmp.eq.s32.totalorder %s33, 0
      %p54 = por %p52, %p53
      %p55 = scmp.ne.s32.totalorder %s41, %s42
      %p56 = scmp.eq.s32.totalorder %s34, 5
      %p57 = por %p55, %p56
      %p59 = scmp.ne.s32.totalorder %s42, %s58
      %p60 = scmp.eq.s32.totalorder %s34, 0
      %p61 = por %p59, %p60
      %s62 = ssub.s32 %s28, %s35
      %p63 = scmp.eq.s32.totalorder %s62, 0
      %s65 = sadd.s32 %s64, 1
      %s66 = scalar_select %p63, %s64, %s65
      %p69 = pneg %p63
      %p70 = scmp.eq.s32.totalorder %s28, 5
      %p71 = por %p69, %p70
      %p72 = scmp.ne.s32.totalorder %s64, %s67
      %p73 = scmp.eq.s32.totalorder %s28, 0
      %p74 = por %p72, %p73
      %p75 = scmp.ne.s32.totalorder %s64, %s67
      %p76 = scmp.eq.s32.totalorder %s33, 5
      %p77 = por %p75, %p76
      %p78 = scmp.ne.s32.totalorder %s67, %s68
      %p79 = scmp.eq.s32.totalorder %s33, 0
      %p80 = por %p78, %p79
      %p81 = scmp.ne.s32.totalorder %s67, %s68
      %p82 = scmp.eq.s32.totalorder %s34, 5
      %p83 = por %p81, %p82
      %p85 = scmp.ne.s32.totalorder %s68, %s84
      %p86 = scmp.eq.s32.totalorder %s34, 0
      %p87 = por %p85, %p86
      %s88 = sld [smem:[#allocation3 + %s28]]
      %s89 = sld [smem:[#allocation3 + %s35]]
      %s90 = ssub.s32 %s88, %s89
      %p91 = scmp.eq.s32.totalorder %s90, 0
      %s93 = sadd.s32 %s92, 1
      %s94 = scalar_select %p91, %s92, %s93
      %p97 = pneg %p91
      %p98 = scmp.eq.s32.totalorder %s28, 5
      %p99 = por %p97, %p98
      %p100 = scmp.ne.s32.totalorder %s92, %s95
      %p101 = scmp.eq.s32.totalorder %s28, 0
      %p102 = por %p100, %p101
      %p103 = scmp.ne.s32.totalorder %s92, %s95
      %p104 = scmp.eq.s32.totalorder %s33, 5
      %p105 = por %p103, %p104
      %p106 = scmp.ne.s32.totalorder %s95, %s96
      %p107 = scmp.eq.s32.totalorder %s33, 0
      %p108 = por %p106, %p107
      %p109 = scmp.ne.s32.totalorder %s95, %s96
      %p110 = scmp.eq.s32.totalorder %s34, 5
      %p111 = por %p109, %p110
      %p113 = scmp.ne.s32.totalorder %s96, %s112
      %p114 = scmp.eq.s32.totalorder %s34, 0
      %p115 = por %p113, %p114
      %s116 = sld [smem:[#allocation3 + %s28]]
      %s117 = sld [smem:[#allocation3 + %s35]]
      %s118 = ssub.s32 %s116, %s117
      %p119 = scmp.eq.s32.totalorder %s118, 0
      %s121 = sadd.s32 %s120, 1
      %s122 = scalar_select %p119, %s120, %s121
      %p125 = pneg %p119
      %p126 = scmp.eq.s32.totalorder %s28, 5
      %p127 = por %p125, %p126
      %p128 = scmp.ne.s32.totalorder %s120, %s123
      %p129 = scmp.eq.s32.totalorder %s28, 0
      %p130 = por %p128, %p129
      %p131 = scmp.ne.s32.totalorder %s120, %s123
      %p132 = scmp.eq.s32.totalorder %s33, 5
      %p133 = por %p131, %p132
      %p134 = scmp.ne.s32.totalorder %s123, %s124
      %p135 = scmp.eq.s32.totalorder %s33, 0
      %p136 = por %p134, %p135
      %p137 = scmp.ne.s32.totalorder %s123, %s124
      %p138 = scmp.eq.s32.totalorder %s34, 5
      %p139 = por %p137, %p138
      %p141 = scmp.ne.s32.totalorder %s124, %s140
      %p142 = scmp.eq.s32.totalorder %s34, 0
      %p143 = por %p141, %p142
      %s144 = sld [smem:[#allocation3 + %s28]]
      %s145 = sld [smem:[#allocation3 + %s35]]
      %s146 = ssub.s32 %s144, %s145
      %p147 = scmp.eq.s32.totalorder %s146, 0
      %s149 = sadd.s32 %s148, 1
      %s150 = scalar_select %p147, %s148, %s149
      %p153 = pneg %p147
      %p154 = scmp.eq.s32.totalorder %s28, 5
      %p155 = por %p153, %p154
      %p156 = scmp.ne.s32.totalorder %s148, %s151
      %p157 = scmp.eq.s32.totalorder %s28, 0
      %p158 = por %p156, %p157
      %p159 = scmp.ne.s32.totalorder %s148, %s151
      %p160 = scmp.eq.s32.totalorder %s33, 5
      %p161 = por %p159, %p160
      %p162 = scmp.ne.s32.totalorder %s151, %s152
      %p163 = scmp.eq.s32.totalorder %s33, 0
      %p164 = por %p162, %p163
      %p165 = scmp.ne.s32.totalorder %s151, %s152
      %p166 = scmp.eq.s32.totalorder %s34, 5
      %p167 = por %p165, %p166
      %p169 = scmp.ne.s32.totalorder %s152, %s168
      %p170 = scmp.eq.s32.totalorder %s34, 0
      %p171 = por %p169, %p170
      %s172 = sld [smem:[#allocation3 + %s28]]
      %s173 = sld [smem:[#allocation3 + %s35]]
      %s174 = ssub.s32 %s172, %s173
      %p175 = scmp.eq.s32.totalorder %s174, 0
      %s177 = sadd.s32 %s176, 1
      %s178 = scalar_select %p175, %s176, %s177
      %p181 = pneg %p175
      %p182 = scmp.eq.s32.totalorder %s28, 5
      %p183 = por %p181, %p182
      %p184 = scmp.ne.s32.totalorder %s176, %s179
      %p185 = scmp.eq.s32.totalorder %s28, 0
      %p186 = por %p184, %p185
      %p187 = scmp.ne.s32.totalorder %s176, %s179
      %p188 = scmp.eq.s32.totalorder %s33, 5
      %p189 = por %p187, %p188
      %p190 = scmp.ne.s32.totalorder %s179, %s180
      %p191 = scmp.eq.s32.totalorder %s33, 0
      %p192 = por %p190, %p191
      %p193 = scmp.ne.s32.totalorder %s179, %s180
      %p194 = scmp.eq.s32.totalorder %s34, 5
      %p195 = por %p193, %p194
      %p197 = scmp.ne.s32.totalorder %s180, %s196
      %p198 = scmp.eq.s32.totalorder %s34, 0
      %p199 = por %p197, %p198
      %s200 = ssub.s32 %s28, %s35
      %p201 = scmp.eq.s32.totalorder %s200, 0
      %s203 = sadd.s32 %s202, 1
      %s204 = scalar_select %p201, %s202, %s203
      %p207 = pneg %p201
      %p208 = scmp.eq.s32.totalorder %s28, 5
      %p209 = por %p207, %p208
      %p210 = scmp.ne.s32.totalorder %s202, %s205
      %p211 = scmp.eq.s32.totalorder %s28, 0
      %p212 = por %p210, %p211
      %p213 = scmp.ne.s32.totalorder %s202, %s205
      %p214 = scmp.eq.s32.totalorder %s33, 5
      %p215 = por %p213, %p214
      %p216 = scmp.ne.s32.totalorder %s205, %s206
      %p217 = scmp.eq.s32.totalorder %s33, 0
      %p218 = por %p216, %p217
      %p219 = scmp.ne.s32.totalorder %s205, %s206
      %p220 = scmp.eq.s32.totalorder %s34, 5
      %p221 = por %p219, %p220
      %p223 = scmp.ne.s32.totalorder %s206, %s222
      %p224 = scmp.eq.s32.totalorder %s34, 0
      %p225 = por %p223, %p224
      %p226 = scmp.le.s32.totalorder 1, %s28
      %p227 = scmp.lt.s32.totalorder %s28, 7
      %p228 = pnand %p226, %p227
      %p229 = pneg %p228
      // Predicated region
      $region9: #{switch_transformer_forward.6} parent=5 // pred_check
        _
      $region10: #{switch_transformer_forward.6} parent=5 // pred_check_branch
        %231 = sbr.rel (%p228) target = $region12
      $region11: #{switch_transformer_forward.6} parent=5 // pred_region
        %s232 = ssub.s32 %s28, 1
      $region12: #{switch_transformer_forward.6} parent=5 // pred_fallthru
        _
      %p233 = scmp.lt.s32.totalorder %s28, 6
      // Predicated region
      $region13: #{switch_transformer_forward.6} parent=5 // pred_check
        %p234 = pneg %p233
      $region14: #{switch_transformer_forward.6} parent=5 // pred_check_branch
        %236 = sbr.rel (%p234) target = $region16
      $region15: #{switch_transformer_forward.6} parent=5 // pred_region
        // Predicated region
        $region17: #{switch_transformer_forward.6} parent=15 // pred_check
          %p237 = pneg %p48
        $region18: #{switch_transformer_forward.6} parent=15 // pred_check_branch
          %239 = sbr.rel (%p237) target = $region20
        $region19: #{switch_transformer_forward.6} parent=15 // pred_region
          %p240 = scmp.lt.s32.totalorder %s28, 5
          %s241 = scalar_select %p240, %s28, 5
          %s242 = smul.addr %s241, 6
          %s243 = smul.addr %s242, 4
          %s244 = scalar_lea.vmem %s1, %s243
        $region20: #{switch_transformer_forward.6} parent=15 // pred_fallthru
          _
        // Predicated region
        $region21: #{switch_transformer_forward.6} parent=15 // pred_check
          %p245 = pneg %p74
        $region22: #{switch_transformer_forward.6} parent=15 // pred_check_branch
          %247 = sbr.rel (%p245) target = $region24
        $region23: #{switch_transformer_forward.6} parent=15 // pred_region
          %p248 = scmp.lt.s32.totalorder %s28, 5
          %s249 = scalar_select %p248, %s28, 5
          %s250 = smul.addr %s249, 8
          %s251 = scalar_lea.vmem %s2, %s250
        $region24: #{switch_transformer_forward.6} parent=15 // pred_fallthru
          _
        // Predicated region
        $region25: #{switch_transformer_forward.6} parent=15 // pred_check
          %p252 = pneg %p102
        $region26: #{switch_transformer_forward.6} parent=15 // pred_check_branch
          %254 = sbr.rel (%p252) target = $region28
        $region27: #{switch_transformer_forward.6} parent=15 // pred_region
          %s255 = sand.u32 %s92, 1
          %s256 = scalar_lea.sflag [#allocation5], %s255
          %s257 = sand.u32 %s92, 1
          %s258 = smul.addr %s257, 1536
          %s259 = scalar_lea.vmem [#allocation4], %s258
          %s260 = sld [smem:[#allocation3 + %s28]]
          %s262 = ssub.s32 24576, 24576
          %263 = vsyncadd %s256, %s262
          %s264 = smul.addr %s260, 384
          %s265 = smul.addr %s264, 64
          %s266 = scalar_lea.hbm %s3, %s265
          %s267 = sshll.u32 %s259, 4
          %s268 = int_to_ptr.vmem [resolvable:$true] %s267
          %273 = dma.hbm_to_vmem [thread:$0]  %s266, 24576, %s268, %s256, 256, 256, 16
        $region28: #{switch_transformer_forward.6} parent=15 // pred_fallthru
          _
        // Predicated region
        $region29: #{switch_transformer_forward.6} parent=15 // pred_check
          %p274 = pneg %p130
        $region30: #{switch_transformer_forward.6} parent=15 // pred_check_branch
          %276 = sbr.rel (%p274) target = $region32
        $region31: #{switch_transformer_forward.6} parent=15 // pred_region
          %s277 = sand.u32 %s28, 1
          %s278 = scalar_lea.sflag [#allocation7], %s277
          %s279 = sand.u32 %s120, 1
          %s280 = smul.addr %s279, 4
          %s281 = scalar_lea.vmem [#allocation6], %s280
          %s282 = sld [smem:[#allocation3 + %s28]]
          %s284 = ssub.s32 64, 64
          %285 = vsyncadd %s278, %s284
          %s286 = smul.addr %s282, 4
          %s287 = smul.addr %s286, 16
          %s288 = scalar_lea.hbm %s4, %s287
          %s290 = sshll.u32 %s281, 4
          %s291 = int_to_ptr.vmem [resolvable:$true] %s290
          %293 = dma.hbm_to_vmem [thread:$0]  %s288, 64, %s291, %s278
        $region32: #{switch_transformer_forward.6} parent=15 // pred_fallthru
          _
        // Predicated region
        $region33: #{switch_transformer_forward.6} parent=15 // pred_check
          %p294 = pneg %p158
        $region34: #{switch_transformer_forward.6} parent=15 // pred_check_branch
          %296 = sbr.rel (%p294) target = $region36
        $region35: #{switch_transformer_forward.6} parent=15 // pred_region
          %s297 = sand.u32 %s28, 1
          %s298 = scalar_lea.sflag [#allocation7], %s297
          %s299 = sand.u32 %s148, 1
          %s300 = smul.addr %s299, 1536
          %s301 = scalar_lea.vmem [#allocation8], %s300
          %s302 = sld [smem:[#allocation3 + %s28]]
          %s304 = ssub.s32 24576, 24576
          %305 = vsyncadd %s298, %s304
          %s306 = smul.addr %s302, 384
          %s307 = smul.addr %s306, 64
          %s308 = scalar_lea.hbm %s5, %s307
          %s309 = sshll.u32 %s301, 4
          %s310 = int_to_ptr.vmem [resolvable:$true] %s309
          %315 = dma.hbm_to_vmem [thread:$0]  %s308, 24576, %s310, %s298, 384, 384, 24
        $region36: #{switch_transformer_forward.6} parent=15 // pred_fallthru
          _
        // Predicated region
        $region37: #{switch_transformer_forward.6} parent=15 // pred_check
          %p316 = pneg %p186
        $region38: #{switch_transformer_forward.6} parent=15 // pred_check_branch
          %318 = sbr.rel (%p316) target = $region40
        $region39: #{switch_transformer_forward.6} parent=15 // pred_region
          %s319 = sand.u32 %s176, 1
          %s320 = scalar_lea.sflag [#allocation10], %s319
          %s321 = sand.u32 %s176, 1
          %s322 = smul.addr %s321, 6
          %s323 = scalar_lea.vmem [#allocation9], %s322
          %s324 = sld [smem:[#allocation3 + %s28]]
          %s326 = ssub.s32 96, 96
          %327 = vsyncadd %s320, %s326
          %s328 = smul.addr %s324, 6
          %s329 = smul.addr %s328, 16
          %s330 = scalar_lea.hbm %s6, %s329
          %s332 = sshll.u32 %s323, 4
          %s333 = int_to_ptr.vmem [resolvable:$true] %s332
          %335 = dma.hbm_to_vmem [thread:$0]  %s330, 96, %s333, %s320
        $region40: #{switch_transformer_forward.6} parent=15 // pred_fallthru
          _
      $region16: #{switch_transformer_forward.6} parent=5 // pred_fallthru
        _
      %p336 = scmp.le.s32.totalorder 1, %s28
      %p337 = scmp.lt.s32.totalorder %s28, 7
      %p338 = pnand %p336, %p337
      %p339 = pneg %p338
      // Predicated region
      $region41: #{switch_transformer_forward.6} parent=5 // pred_check
        _
      $region42: #{switch_transformer_forward.6} parent=5 // pred_check_branch
        %341 = sbr.rel (%p338) target = $region44
      $region43: #{switch_transformer_forward.6} parent=5 // pred_region
        %s342 = ssub.s32 %s28, 1
        %s343 = sand.u32 %s95, 1
        %s344 = scalar_lea.sflag [#allocation5], %s343
        %s345 = sand.u32 %s95, 1
        %s346 = smul.addr %s345, 1536
        %s347 = scalar_lea.vmem [#allocation4], %s346
        // Predicated region
        $region45: #{switch_transformer_forward.6} parent=43 // pred_check
          %p348 = pneg %p108
        $region46: #{switch_transformer_forward.6} parent=43 // pred_check_branch
          %350 = sbr.rel (%p348) target = $region48
        $region47: #{switch_transformer_forward.6} parent=43 // pred_region
          %351 = dma.done %s344, 24576
        $region48: #{switch_transformer_forward.6} parent=43 // pred_fallthru
          _
        %s352 = sand.u32 %s33, 1
        %s353 = scalar_lea.sflag [#allocation7], %s352
        %s354 = sand.u32 %s123, 1
        %s355 = smul.addr %s354, 4
        %s356 = scalar_lea.vmem [#allocation6], %s355
        // Predicated region
        $region49: #{switch_transformer_forward.6} parent=43 // pred_check
          %p357 = pneg %p136
        $region50: #{switch_transformer_forward.6} parent=43 // pred_check_branch
          %359 = sbr.rel (%p357) target = $region52
        $region51: #{switch_transformer_forward.6} parent=43 // pred_region
          %360 = dma.done %s353, 64
        $region52: #{switch_transformer_forward.6} parent=43 // pred_fallthru
          _
        %s361 = sand.u32 %s33, 1
        %s362 = scalar_lea.sflag [#allocation7], %s361
        %s363 = sand.u32 %s151, 1
        %s364 = smul.addr %s363, 1536
        %s365 = scalar_lea.vmem [#allocation8], %s364
        // Predicated region
        $region53: #{switch_transformer_forward.6} parent=43 // pred_check
          %p366 = pneg %p164
        $region54: #{switch_transformer_forward.6} parent=43 // pred_check_branch
          %368 = sbr.rel (%p366) target = $region56
        $region55: #{switch_transformer_forward.6} parent=43 // pred_region
          %369 = dma.done %s362, 24576
        $region56: #{switch_transformer_forward.6} parent=43 // pred_fallthru
          _
        %s370 = sand.u32 %s179, 1
        %s371 = scalar_lea.sflag [#allocation10], %s370
        %s372 = sand.u32 %s179, 1
        %s373 = smul.addr %s372, 6
        %s374 = scalar_lea.vmem [#allocation9], %s373
        // Predicated region
        $region57: #{switch_transformer_forward.6} parent=43 // pred_check
          %p375 = pneg %p192
        $region58: #{switch_transformer_forward.6} parent=43 // pred_check_branch
          %377 = sbr.rel (%p375) target = $region60
        $region59: #{switch_transformer_forward.6} parent=43 // pred_region
          %378 = dma.done %s371, 96
        $region60: #{switch_transformer_forward.6} parent=43 // pred_fallthru
          _
        %p379 = scmp.lt.s32.totalorder %s33, 5
        %s380 = scalar_select %p379, %s33, 5
        %s381 = smul.addr %s380, 6
        %s382 = smul.addr %s381, 4
        %s383 = scalar_lea.vmem %s1, %s382
        %p384 = pneg %p54
        %p385 = pneg %p51
        %p386 = scmp.lt.s32.totalorder %s33, 5
        %s387 = scalar_select %p386, %s33, 5
        %s388 = smul.addr %s387, 8
        %s389 = scalar_lea.vmem %s2, %s388
        %p390 = pneg %p80
        %p391 = pneg %p77
        %s392 = sand.u32 %s95, 1
        %s393 = scalar_lea.sflag [#allocation5], %s392
        %s394 = sand.u32 %s95, 1
        %s395 = smul.addr %s394, 1536
        %s396 = scalar_lea.vmem [#allocation4], %s395
        %p397 = pneg %p108
        %p398 = pneg %p105
        %s399 = sand.u32 %s33, 1
        %s400 = scalar_lea.sflag [#allocation7], %s399
        %s401 = sand.u32 %s123, 1
        %s402 = smul.addr %s401, 4
        %s403 = scalar_lea.vmem [#allocation6], %s402
        %p404 = pneg %p136
        %p405 = pneg %p133
        %s406 = sand.u32 %s33, 1
        %s407 = scalar_lea.sflag [#allocation7], %s406
        %s408 = sand.u32 %s151, 1
        %s409 = smul.addr %s408, 1536
        %s410 = scalar_lea.vmem [#allocation8], %s409
        %p411 = pneg %p164
        %p412 = pneg %p161
        %s413 = sand.u32 %s179, 1
        %s414 = scalar_lea.sflag [#allocation10], %s413
        %s415 = sand.u32 %s179, 1
        %s416 = smul.addr %s415, 6
        %s417 = scalar_lea.vmem [#allocation9], %s416
        %p418 = pneg %p192
        %p419 = pneg %p189
        %p420 = pneg %p218
        %p421 = pneg %p215
        %p422 = scmp.lt.s32.totalorder %s33, 5
        %s423 = scalar_select %p422, %s33, 5
        %s424 = smul.addr %s423, 6
        %s425 = smul.addr %s424, 4
        %s426 = scalar_lea.vmem %s7, %s425
        %p427 = scmp.lt.s32.totalorder %s33, 5
        %s428 = scalar_select %p427, %s33, 5
        %s429 = smul.addr %s428, 6
        %s430 = smul.addr %s429, 4
        %s431 = scalar_lea.vmem %s1, %s430
        %p432 = scmp.lt.s32.totalorder %s33, 5
        %s433 = scalar_select %p432, %s33, 5
        %s434 = smul.addr %s433, 8
        %s435 = scalar_lea.vmem %s2, %s434
        %s436 = sld [smem:[#allocation3 + %s33]]
        %s437 = sld [smem:[#allocation3 + %s33]]
        %s438 = sld [smem:[#allocation3 + %s33]]
        %s439 = sld [smem:[#allocation3 + %s33]]
        %p440 = scmp.lt.s32.totalorder %s33, 5
        %s441 = scalar_select %p440, %s33, 5
        %s442 = smul.addr %s441, 6
        %s443 = smul.addr %s442, 4
        %s444 = scalar_lea.vmem %s7, %s443
        %v445 = vld [vmem:[%s431] sm:$0xff]
        %v446 = vld [vmem:[%s431 + $0x8] sm:$0xff]
        %v447 = vld [vmem:[%s431 + $0x10] sm:$0xff]
        %v448 = vld [vmem:[%s347] sm:$0xff]
        %v449 = vld [vmem:[%s347 + $0x8] sm:$0xff]
        %v450 = vld [vmem:[%s347 + $0x10] sm:$0xff]
        %v451 = vld [vmem:[%s347 + $0x18] sm:$0xff]
        %v452 = vld [vmem:[%s347 + $0x20] sm:$0xff]
        %v453 = vld [vmem:[%s347 + $0x28] sm:$0xff]
        %v454 = vld [vmem:[%s347 + $0x30] sm:$0xff]
        %v455 = vld [vmem:[%s347 + $0x38] sm:$0xff]
        %v456 = vld [vmem:[%s347 + $0x40] sm:$0xff]
        %v457 = vld [vmem:[%s347 + $0x48] sm:$0xff]
        %v458 = vld [vmem:[%s347 + $0x50] sm:$0xff]
        %v459 = vld [vmem:[%s347 + $0x58] sm:$0xff]
        %v460 = vld [vmem:[%s347 + $0x60] sm:$0xff]
        %v461 = vld [vmem:[%s347 + $0x68] sm:$0xff]
        %v462 = vld [vmem:[%s347 + $0x70] sm:$0xff]
        %v463 = vld [vmem:[%s347 + $0x78] sm:$0xff]
        %v464 = vld [vmem:[%s347 + $0x80] sm:$0xff]
        %v465 = vld [vmem:[%s347 + $0x88] sm:$0xff]
        %v466 = vld [vmem:[%s347 + $0x90] sm:$0xff]
        %v467 = vld [vmem:[%s347 + $0x98] sm:$0xff]
        %v468 = vld [vmem:[%s347 + $0xa0] sm:$0xff]
        %v469 = vld [vmem:[%s347 + $0xa8] sm:$0xff]
        %v470 = vld [vmem:[%s347 + $0xb0] sm:$0xff]
        %v471 = vld [vmem:[%s347 + $0xb8] sm:$0xff]
        %v472 = vld [vmem:[%s347 + $0xc0] sm:$0xff]
        %v473 = vld [vmem:[%s347 + $0xc8] sm:$0xff]
        %v474 = vld [vmem:[%s347 + $0xd0] sm:$0xff]
        %v475 = vld [vmem:[%s347 + $0xd8] sm:$0xff]
        %v476 = vld [vmem:[%s347 + $0xe0] sm:$0xff]
        %v477 = vld [vmem:[%s347 + $0xe8] sm:$0xff]
        %v478 = vld [vmem:[%s347 + $0xf0] sm:$0xff]
        %v479 = vld [vmem:[%s347 + $0xf8] sm:$0xff]
        %v480 = vld [vmem:[%s347 + $0x100] sm:$0xff]
        %v481 = vld [vmem:[%s347 + $0x108] sm:$0xff]
        %v482 = vld [vmem:[%s347 + $0x110] sm:$0xff]
        %v483 = vld [vmem:[%s347 + $0x118] sm:$0xff]
        %v484 = vld [vmem:[%s347 + $0x120] sm:$0xff]
        %v485 = vld [vmem:[%s347 + $0x128] sm:$0xff]
        %v486 = vld [vmem:[%s347 + $0x130] sm:$0xff]
        %v487 = vld [vmem:[%s347 + $0x138] sm:$0xff]
        %v488 = vld [vmem:[%s347 + $0x140] sm:$0xff]
        %v489 = vld [vmem:[%s347 + $0x148] sm:$0xff]
        %v490 = vld [vmem:[%s347 + $0x150] sm:$0xff]
        %v491 = vld [vmem:[%s347 + $0x158] sm:$0xff]
        %v492 = vld [vmem:[%s347 + $0x160] sm:$0xff]
        %v493 = vld [vmem:[%s347 + $0x168] sm:$0xff]
        %v494 = vld [vmem:[%s347 + $0x170] sm:$0xff]
        %v495 = vld [vmem:[%s347 + $0x178] sm:$0xff]
        %v496 = vld [vmem:[%s347 + $0x180] sm:$0xff]
        %v497 = vld [vmem:[%s347 + $0x188] sm:$0xff]
        %v498 = vld [vmem:[%s347 + $0x190] sm:$0xff]
        %v499 = vld [vmem:[%s347 + $0x198] sm:$0xff]
        %v500 = vld [vmem:[%s347 + $0x1a0] sm:$0xff]
        %v501 = vld [vmem:[%s347 + $0x1a8] sm:$0xff]
        %v502 = vld [vmem:[%s347 + $0x1b0] sm:$0xff]
        %v503 = vld [vmem:[%s347 + $0x1b8] sm:$0xff]
        %v504 = vld [vmem:[%s347 + $0x1c0] sm:$0xff]
        %v505 = vld [vmem:[%s347 + $0x1c8] sm:$0xff]
        %v506 = vld [vmem:[%s347 + $0x1d0] sm:$0xff]
        %v507 = vld [vmem:[%s347 + $0x1d8] sm:$0xff]
        %v508 = vld [vmem:[%s347 + $0x1e0] sm:$0xff]
        %v509 = vld [vmem:[%s347 + $0x1e8] sm:$0xff]
        %v510 = vld [vmem:[%s347 + $0x1f0] sm:$0xff]
        %v511 = vld [vmem:[%s347 + $0x1f8] sm:$0xff]
        %v512 = vld [vmem:[%s347 + $0x200] sm:$0xff]
        %v513 = vld [vmem:[%s347 + $0x208] sm:$0xff]
        %v514 = vld [vmem:[%s347 + $0x210] sm:$0xff]
        %v515 = vld [vmem:[%s347 + $0x218] sm:$0xff]
        %v516 = vld [vmem:[%s347 + $0x220] sm:$0xff]
        %v517 = vld [vmem:[%s347 + $0x228] sm:$0xff]
        %v518 = vld [vmem:[%s347 + $0x230] sm:$0xff]
        %v519 = vld [vmem:[%s347 + $0x238] sm:$0xff]
        %v520 = vld [vmem:[%s347 + $0x240] sm:$0xff]
        %v521 = vld [vmem:[%s347 + $0x248] sm:$0xff]
        %v522 = vld [vmem:[%s347 + $0x250] sm:$0xff]
        %v523 = vld [vmem:[%s347 + $0x258] sm:$0xff]
        %v524 = vld [vmem:[%s347 + $0x260] sm:$0xff]
        %v525 = vld [vmem:[%s347 + $0x268] sm:$0xff]
        %v526 = vld [vmem:[%s347 + $0x270] sm:$0xff]
        %v527 = vld [vmem:[%s347 + $0x278] sm:$0xff]
        %v528 = vld [vmem:[%s347 + $0x280] sm:$0xff]
        %v529 = vld [vmem:[%s347 + $0x288] sm:$0xff]
        %v530 = vld [vmem:[%s347 + $0x290] sm:$0xff]
        %v531 = vld [vmem:[%s347 + $0x298] sm:$0xff]
        %v532 = vld [vmem:[%s347 + $0x2a0] sm:$0xff]
        %v533 = vld [vmem:[%s347 + $0x2a8] sm:$0xff]
        %v534 = vld [vmem:[%s347 + $0x2b0] sm:$0xff]
        %v535 = vld [vmem:[%s347 + $0x2b8] sm:$0xff]
        %v536 = vld [vmem:[%s347 + $0x2c0] sm:$0xff]
        %v537 = vld [vmem:[%s347 + $0x2c8] sm:$0xff]
        %v538 = vld [vmem:[%s347 + $0x2d0] sm:$0xff]
        %v539 = vld [vmem:[%s347 + $0x2d8] sm:$0xff]
        %v540 = vld [vmem:[%s347 + $0x2e0] sm:$0xff]
        %v541 = vld [vmem:[%s347 + $0x2e8] sm:$0xff]
        %v542 = vld [vmem:[%s347 + $0x2f0] sm:$0xff]
        %v543 = vld [vmem:[%s347 + $0x2f8] sm:$0xff]
        %v544 = vld [vmem:[%s347 + $0x300] sm:$0xff]
        %v545 = vld [vmem:[%s347 + $0x308] sm:$0xff]
        %v546 = vld [vmem:[%s347 + $0x310] sm:$0xff]
        %v547 = vld [vmem:[%s347 + $0x318] sm:$0xff]
        %v548 = vld [vmem:[%s347 + $0x320] sm:$0xff]
        %v549 = vld [vmem:[%s347 + $0x328] sm:$0xff]
        %v550 = vld [vmem:[%s347 + $0x330] sm:$0xff]
        %v551 = vld [vmem:[%s347 + $0x338] sm:$0xff]
        %v552 = vld [vmem:[%s347 + $0x340] sm:$0xff]
        %v553 = vld [vmem:[%s347 + $0x348] sm:$0xff]
        %v554 = vld [vmem:[%s347 + $0x350] sm:$0xff]
        %v555 = vld [vmem:[%s347 + $0x358] sm:$0xff]
        %v556 = vld [vmem:[%s347 + $0x360] sm:$0xff]
        %v557 = vld [vmem:[%s347 + $0x368] sm:$0xff]
        %v558 = vld [vmem:[%s347 + $0x370] sm:$0xff]
        %v559 = vld [vmem:[%s347 + $0x378] sm:$0xff]
        %v560 = vld [vmem:[%s347 + $0x380] sm:$0xff]
        %v561 = vld [vmem:[%s347 + $0x388] sm:$0xff]
        %v562 = vld [vmem:[%s347 + $0x390] sm:$0xff]
        %v563 = vld [vmem:[%s347 + $0x398] sm:$0xff]
        %v564 = vld [vmem:[%s347 + $0x3a0] sm:$0xff]
        %v565 = vld [vmem:[%s347 + $0x3a8] sm:$0xff]
        %v566 = vld [vmem:[%s347 + $0x3b0] sm:$0xff]
        %v567 = vld [vmem:[%s347 + $0x3b8] sm:$0xff]
        %v568 = vld [vmem:[%s347 + $0x3c0] sm:$0xff]
        %v569 = vld [vmem:[%s347 + $0x3c8] sm:$0xff]
        %v570 = vld [vmem:[%s347 + $0x3d0] sm:$0xff]
        %v571 = vld [vmem:[%s347 + $0x3d8] sm:$0xff]
        %v572 = vld [vmem:[%s347 + $0x3e0] sm:$0xff]
        %v573 = vld [vmem:[%s347 + $0x3e8] sm:$0xff]
        %v574 = vld [vmem:[%s347 + $0x3f0] sm:$0xff]
        %v575 = vld [vmem:[%s347 + $0x3f8] sm:$0xff]
        %v576 = vld [vmem:[%s347 + $0x400] sm:$0xff]
        %v577 = vld [vmem:[%s347 + $0x408] sm:$0xff]
        %v578 = vld [vmem:[%s347 + $0x410] sm:$0xff]
        %v579 = vld [vmem:[%s347 + $0x418] sm:$0xff]
        %v580 = vld [vmem:[%s347 + $0x420] sm:$0xff]
        %v581 = vld [vmem:[%s347 + $0x428] sm:$0xff]
        %v582 = vld [vmem:[%s347 + $0x430] sm:$0xff]
        %v583 = vld [vmem:[%s347 + $0x438] sm:$0xff]
        %v584 = vld [vmem:[%s347 + $0x440] sm:$0xff]
        %v585 = vld [vmem:[%s347 + $0x448] sm:$0xff]
        %v586 = vld [vmem:[%s347 + $0x450] sm:$0xff]
        %v587 = vld [vmem:[%s347 + $0x458] sm:$0xff]
        %v588 = vld [vmem:[%s347 + $0x460] sm:$0xff]
        %v589 = vld [vmem:[%s347 + $0x468] sm:$0xff]
        %v590 = vld [vmem:[%s347 + $0x470] sm:$0xff]
        %v591 = vld [vmem:[%s347 + $0x478] sm:$0xff]
        %v592 = vld [vmem:[%s347 + $0x480] sm:$0xff]
        %v593 = vld [vmem:[%s347 + $0x488] sm:$0xff]
        %v594 = vld [vmem:[%s347 + $0x490] sm:$0xff]
        %v595 = vld [vmem:[%s347 + $0x498] sm:$0xff]
        %v596 = vld [vmem:[%s347 + $0x4a0] sm:$0xff]
        %v597 = vld [vmem:[%s347 + $0x4a8] sm:$0xff]
        %v598 = vld [vmem:[%s347 + $0x4b0] sm:$0xff]
        %v599 = vld [vmem:[%s347 + $0x4b8] sm:$0xff]
        %v600 = vld [vmem:[%s347 + $0x4c0] sm:$0xff]
        %v601 = vld [vmem:[%s347 + $0x4c8] sm:$0xff]
        %v602 = vld [vmem:[%s347 + $0x4d0] sm:$0xff]
        %v603 = vld [vmem:[%s347 + $0x4d8] sm:$0xff]
        %v604 = vld [vmem:[%s347 + $0x4e0] sm:$0xff]
        %v605 = vld [vmem:[%s347 + $0x4e8] sm:$0xff]
        %v606 = vld [vmem:[%s347 + $0x4f0] sm:$0xff]
        %v607 = vld [vmem:[%s347 + $0x4f8] sm:$0xff]
        %v608 = vld [vmem:[%s347 + $0x500] sm:$0xff]
        %v609 = vld [vmem:[%s347 + $0x508] sm:$0xff]
        %v610 = vld [vmem:[%s347 + $0x510] sm:$0xff]
        %v611 = vld [vmem:[%s347 + $0x518] sm:$0xff]
        %v612 = vld [vmem:[%s347 + $0x520] sm:$0xff]
        %v613 = vld [vmem:[%s347 + $0x528] sm:$0xff]
        %v614 = vld [vmem:[%s347 + $0x530] sm:$0xff]
        %v615 = vld [vmem:[%s347 + $0x538] sm:$0xff]
        %v616 = vld [vmem:[%s347 + $0x540] sm:$0xff]
        %v617 = vld [vmem:[%s347 + $0x548] sm:$0xff]
        %v618 = vld [vmem:[%s347 + $0x550] sm:$0xff]
        %v619 = vld [vmem:[%s347 + $0x558] sm:$0xff]
        %v620 = vld [vmem:[%s347 + $0x560] sm:$0xff]
        %v621 = vld [vmem:[%s347 + $0x568] sm:$0xff]
        %v622 = vld [vmem:[%s347 + $0x570] sm:$0xff]
        %v623 = vld [vmem:[%s347 + $0x578] sm:$0xff]
        %v624 = vld [vmem:[%s347 + $0x580] sm:$0xff]
        %v625 = vld [vmem:[%s347 + $0x588] sm:$0xff]
        %v626 = vld [vmem:[%s347 + $0x590] sm:$0xff]
        %v627 = vld [vmem:[%s347 + $0x598] sm:$0xff]
        %v628 = vld [vmem:[%s347 + $0x5a0] sm:$0xff]
        %v629 = vld [vmem:[%s347 + $0x5a8] sm:$0xff]
        %v630 = vld [vmem:[%s347 + $0x5b0] sm:$0xff]
        %v631 = vld [vmem:[%s347 + $0x5b8] sm:$0xff]
        %v632 = vld [vmem:[%s347 + $0x5c0] sm:$0xff]
        %v633 = vld [vmem:[%s347 + $0x5c8] sm:$0xff]
        %v634 = vld [vmem:[%s347 + $0x5d0] sm:$0xff]
        %v635 = vld [vmem:[%s347 + $0x5d8] sm:$0xff]
        %v636 = vld [vmem:[%s347 + $0x5e0] sm:$0xff]
        %v637 = vld [vmem:[%s347 + $0x5e8] sm:$0xff]
        %v638 = vld [vmem:[%s347 + $0x5f0] sm:$0xff]
        %v639 = vld [vmem:[%s347 + $0x5f8] sm:$0xff]
        %v640 = vld [vmem:[%s356] sm:$0xf]
        %v642 = vlaneseq
        %v643 = vshrl.u32 %v642, 7
        %v644 = vsub.s32 0, %v643
        %v645 = vrot.slane %v640, %v644
        %v646 = vlaneseq
        %v647 = vshrl.u32 %v646, 7
        %v648 = vsub.s32 1, %v647
        %v649 = vrot.slane %v640, %v648
        %v650 = vlaneseq
        %v651 = vshrl.u32 %v650, 7
        %v652 = vsub.s32 2, %v651
        %v653 = vrot.slane %v640, %v652
        %v654 = vlaneseq
        %v655 = vshrl.u32 %v654, 7
        %v656 = vsub.s32 3, %v655
        %v657 = vrot.slane %v640, %v656
        %v665 = vunpack.c.l.b16 %v445
        %v666 = vunpack.c.h.b16 %v445
        %v667 = vunpack.c.l.b16 %v446
        %v668 = vunpack.c.h.b16 %v446
        %v669 = vunpack.c.l.b16 %v447
        %v670 = vunpack.c.h.b16 %v447
        %v671 = vpack.c.b16 %v665, %v665
        %v672 = vpack.c.b16 %v666, %v666
        %v673 = vpack.c.b16 %v667, %v667
        %v674 = vpack.c.b16 %v668, %v668
        %v675 = vpack.c.b16 %v669, %v669
        %v676 = vpack.c.b16 %v670, %v670
        %v875 = vunpack.c.l.b16 %v448
        %v876 = vunpack.c.h.b16 %v448
        %v877 = vunpack.c.l.b16 %v449
        %v878 = vunpack.c.h.b16 %v449
        %v879 = vunpack.c.l.b16 %v450
        %v880 = vunpack.c.h.b16 %v450
        %v881 = vunpack.c.l.b16 %v451
        %v882 = vunpack.c.h.b16 %v451
        %v883 = vunpack.c.l.b16 %v452
        %v884 = vunpack.c.h.b16 %v452
        %v885 = vunpack.c.l.b16 %v453
        %v886 = vunpack.c.h.b16 %v453
        %v887 = vunpack.c.l.b16 %v454
        %v888 = vunpack.c.h.b16 %v454
        %v889 = vunpack.c.l.b16 %v455
        %v890 = vunpack.c.h.b16 %v455
        %v891 = vunpack.c.l.b16 %v456
        %v892 = vunpack.c.h.b16 %v456
        %v893 = vunpack.c.l.b16 %v457
        %v894 = vunpack.c.h.b16 %v457
        %v895 = vunpack.c.l.b16 %v458
        %v896 = vunpack.c.h.b16 %v458
        %v897 = vunpack.c.l.b16 %v459
        %v898 = vunpack.c.h.b16 %v459
        %v899 = vunpack.c.l.b16 %v460
        %v900 = vunpack.c.h.b16 %v460
        %v901 = vunpack.c.l.b16 %v461
        %v902 = vunpack.c.h.b16 %v461
        %v903 = vunpack.c.l.b16 %v462
        %v904 = vunpack.c.h.b16 %v462
        %v905 = vunpack.c.l.b16 %v463
        %v906 = vunpack.c.h.b16 %v463
        %v907 = vunpack.c.l.b16 %v464
        %v908 = vunpack.c.h.b16 %v464
        %v909 = vunpack.c.l.b16 %v465
        %v910 = vunpack.c.h.b16 %v465
        %v911 = vunpack.c.l.b16 %v466
        %v912 = vunpack.c.h.b16 %v466
        %v913 = vunpack.c.l.b16 %v467
        %v914 = vunpack.c.h.b16 %v467
        %v915 = vunpack.c.l.b16 %v468
        %v916 = vunpack.c.h.b16 %v468
        %v917 = vunpack.c.l.b16 %v469
        %v918 = vunpack.c.h.b16 %v469
        %v919 = vunpack.c.l.b16 %v470
        %v920 = vunpack.c.h.b16 %v470
        %v921 = vunpack.c.l.b16 %v471
        %v922 = vunpack.c.h.b16 %v471
        %v923 = vunpack.c.l.b16 %v472
        %v924 = vunpack.c.h.b16 %v472
        %v925 = vunpack.c.l.b16 %v473
        %v926 = vunpack.c.h.b16 %v473
        %v927 = vunpack.c.l.b16 %v474
        %v928 = vunpack.c.h.b16 %v474
        %v929 = vunpack.c.l.b16 %v475
        %v930 = vunpack.c.h.b16 %v475
        %v931 = vunpack.c.l.b16 %v476
        %v932 = vunpack.c.h.b16 %v476
        %v933 = vunpack.c.l.b16 %v477
        %v934 = vunpack.c.h.b16 %v477
        %v935 = vunpack.c.l.b16 %v478
        %v936 = vunpack.c.h.b16 %v478
        %v937 = vunpack.c.l.b16 %v479
        %v938 = vunpack.c.h.b16 %v479
        %v939 = vunpack.c.l.b16 %v480
        %v940 = vunpack.c.h.b16 %v480
        %v941 = vunpack.c.l.b16 %v481
        %v942 = vunpack.c.h.b16 %v481
        %v943 = vunpack.c.l.b16 %v482
        %v944 = vunpack.c.h.b16 %v482
        %v945 = vunpack.c.l.b16 %v483
        %v946 = vunpack.c.h.b16 %v483
        %v947 = vunpack.c.l.b16 %v484
        %v948 = vunpack.c.h.b16 %v484
        %v949 = vunpack.c.l.b16 %v485
        %v950 = vunpack.c.h.b16 %v485
        %v951 = vunpack.c.l.b16 %v486
        %v952 = vunpack.c.h.b16 %v486
        %v953 = vunpack.c.l.b16 %v487
        %v954 = vunpack.c.h.b16 %v487
        %v955 = vunpack.c.l.b16 %v488
        %v956 = vunpack.c.h.b16 %v488
        %v957 = vunpack.c.l.b16 %v489
        %v958 = vunpack.c.h.b16 %v489
        %v959 = vunpack.c.l.b16 %v490
        %v960 = vunpack.c.h.b16 %v490
        %v961 = vunpack.c.l.b16 %v491
        %v962 = vunpack.c.h.b16 %v491
        %v963 = vunpack.c.l.b16 %v492
        %v964 = vunpack.c.h.b16 %v492
        %v965 = vunpack.c.l.b16 %v493
        %v966 = vunpack.c.h.b16 %v493
        %v967 = vunpack.c.l.b16 %v494
        %v968 = vunpack.c.h.b16 %v494
        %v969 = vunpack.c.l.b16 %v495
        %v970 = vunpack.c.h.b16 %v495
        %v971 = vunpack.c.l.b16 %v496
        %v972 = vunpack.c.h.b16 %v496
        %v973 = vunpack.c.l.b16 %v497
        %v974 = vunpack.c.h.b16 %v497
        %v975 = vunpack.c.l.b16 %v498
        %v976 = vunpack.c.h.b16 %v498
        %v977 = vunpack.c.l.b16 %v499
        %v978 = vunpack.c.h.b16 %v499
        %v979 = vunpack.c.l.b16 %v500
        %v980 = vunpack.c.h.b16 %v500
        %v981 = vunpack.c.l.b16 %v501
        %v982 = vunpack.c.h.b16 %v501
        %v983 = vunpack.c.l.b16 %v502
        %v984 = vunpack.c.h.b16 %v502
        %v985 = vunpack.c.l.b16 %v503
        %v986 = vunpack.c.h.b16 %v503
        %v987 = vunpack.c.l.b16 %v504
        %v988 = vunpack.c.h.b16 %v504
        %v989 = vunpack.c.l.b16 %v505
        %v990 = vunpack.c.h.b16 %v505
        %v991 = vunpack.c.l.b16 %v506
        %v992 = vunpack.c.h.b16 %v506
        %v993 = vunpack.c.l.b16 %v507
        %v994 = vunpack.c.h.b16 %v507
        %v995 = vunpack.c.l.b16 %v508
        %v996 = vunpack.c.h.b16 %v508
        %v997 = vunpack.c.l.b16 %v509
        %v998 = vunpack.c.h.b16 %v509
        %v999 = vunpack.c.l.b16 %v510
        %v1000 = vunpack.c.h.b16 %v510
        %v1001 = vunpack.c.l.b16 %v511
        %v1002 = vunpack.c.h.b16 %v511
        %v1003 = vunpack.c.l.b16 %v512
        %v1004 = vunpack.c.h.b16 %v512
        %v1005 = vunpack.c.l.b16 %v513
        %v1006 = vunpack.c.h.b16 %v513
        %v1007 = vunpack.c.l.b16 %v514
        %v1008 = vunpack.c.h.b16 %v514
        %v1009 = vunpack.c.l.b16 %v515
        %v1010 = vunpack.c.h.b16 %v515
        %v1011 = vunpack.c.l.b16 %v516
        %v1012 = vunpack.c.h.b16 %v516
        %v1013 = vunpack.c.l.b16 %v517
        %v1014 = vunpack.c.h.b16 %v517
        %v1015 = vunpack.c.l.b16 %v518
        %v1016 = vunpack.c.h.b16 %v518
        %v1017 = vunpack.c.l.b16 %v519
        %v1018 = vunpack.c.h.b16 %v519
        %v1019 = vunpack.c.l.b16 %v520
        %v1020 = vunpack.c.h.b16 %v520
        %v1021 = vunpack.c.l.b16 %v521
        %v1022 = vunpack.c.h.b16 %v521
        %v1023 = vunpack.c.l.b16 %v522
        %v1024 = vunpack.c.h.b16 %v522
        %v1025 = vunpack.c.l.b16 %v523
        %v1026 = vunpack.c.h.b16 %v523
        %v1027 = vunpack.c.l.b16 %v524
        %v1028 = vunpack.c.h.b16 %v524
        %v1029 = vunpack.c.l.b16 %v525
        %v1030 = vunpack.c.h.b16 %v525
        %v1031 = vunpack.c.l.b16 %v526
        %v1032 = vunpack.c.h.b16 %v526
        %v1033 = vunpack.c.l.b16 %v527
        %v1034 = vunpack.c.h.b16 %v527
        %v1035 = vunpack.c.l.b16 %v528
        %v1036 = vunpack.c.h.b16 %v528
        %v1037 = vunpack.c.l.b16 %v529
        %v1038 = vunpack.c.h.b16 %v529
        %v1039 = vunpack.c.l.b16 %v530
        %v1040 = vunpack.c.h.b16 %v530
        %v1041 = vunpack.c.l.b16 %v531
        %v1042 = vunpack.c.h.b16 %v531
        %v1043 = vunpack.c.l.b16 %v532
        %v1044 = vunpack.c.h.b16 %v532
        %v1045 = vunpack.c.l.b16 %v533
        %v1046 = vunpack.c.h.b16 %v533
        %v1047 = vunpack.c.l.b16 %v534
        %v1048 = vunpack.c.h.b16 %v534
        %v1049 = vunpack.c.l.b16 %v535
        %v1050 = vunpack.c.h.b16 %v535
        %v1051 = vunpack.c.l.b16 %v536
        %v1052 = vunpack.c.h.b16 %v536
        %v1053 = vunpack.c.l.b16 %v537
        %v1054 = vunpack.c.h.b16 %v537
        %v1055 = vunpack.c.l.b16 %v538
        %v1056 = vunpack.c.h.b16 %v538
        %v1057 = vunpack.c.l.b16 %v539
        %v1058 = vunpack.c.h.b16 %v539
        %v1059 = vunpack.c.l.b16 %v540
        %v1060 = vunpack.c.h.b16 %v540
        %v1061 = vunpack.c.l.b16 %v541
        %v1062 = vunpack.c.h.b16 %v541
        %v1063 = vunpack.c.l.b16 %v542
        %v1064 = vunpack.c.h.b16 %v542
        %v1065 = vunpack.c.l.b16 %v543
        %v1066 = vunpack.c.h.b16 %v543
        %v1067 = vunpack.c.l.b16 %v544
        %v1068 = vunpack.c.h.b16 %v544
        %v1069 = vunpack.c.l.b16 %v545
        %v1070 = vunpack.c.h.b16 %v545
        %v1071 = vunpack.c.l.b16 %v546
        %v1072 = vunpack.c.h.b16 %v546
        %v1073 = vunpack.c.l.b16 %v547
        %v1074 = vunpack.c.h.b16 %v547
        %v1075 = vunpack.c.l.b16 %v548
        %v1076 = vunpack.c.h.b16 %v548
        %v1077 = vunpack.c.l.b16 %v549
        %v1078 = vunpack.c.h.b16 %v549
        %v1079 = vunpack.c.l.b16 %v550
        %v1080 = vunpack.c.h.b16 %v550
        %v1081 = vunpack.c.l.b16 %v551
        %v1082 = vunpack.c.h.b16 %v551
        %v1083 = vunpack.c.l.b16 %v552
        %v1084 = vunpack.c.h.b16 %v552
        %v1085 = vunpack.c.l.b16 %v553
        %v1086 = vunpack.c.h.b16 %v553
        %v1087 = vunpack.c.l.b16 %v554
        %v1088 = vunpack.c.h.b16 %v554
        %v1089 = vunpack.c.l.b16 %v555
        %v1090 = vunpack.c.h.b16 %v555
        %v1091 = vunpack.c.l.b16 %v556
        %v1092 = vunpack.c.h.b16 %v556
        %v1093 = vunpack.c.l.b16 %v557
        %v1094 = vunpack.c.h.b16 %v557
        %v1095 = vunpack.c.l.b16 %v558
        %v1096 = vunpack.c.h.b16 %v558
        %v1097 = vunpack.c.l.b16 %v559
        %v1098 = vunpack.c.h.b16 %v559
        %v1099 = vunpack.c.l.b16 %v560
        %v1100 = vunpack.c.h.b16 %v560
        %v1101 = vunpack.c.l.b16 %v561
        %v1102 = vunpack.c.h.b16 %v561
        %v1103 = vunpack.c.l.b16 %v562
        %v1104 = vunpack.c.h.b16 %v562
        %v1105 = vunpack.c.l.b16 %v563
        %v1106 = vunpack.c.h.b16 %v563
        %v1107 = vunpack.c.l.b16 %v564
        %v1108 = vunpack.c.h.b16 %v564
        %v1109 = vunpack.c.l.b16 %v565
        %v1110 = vunpack.c.h.b16 %v565
        %v1111 = vunpack.c.l.b16 %v566
        %v1112 = vunpack.c.h.b16 %v566
        %v1113 = vunpack.c.l.b16 %v567
        %v1114 = vunpack.c.h.b16 %v567
        %v1115 = vunpack.c.l.b16 %v568
        %v1116 = vunpack.c.h.b16 %v568
        %v1117 = vunpack.c.l.b16 %v569
        %v1118 = vunpack.c.h.b16 %v569
        %v1119 = vunpack.c.l.b16 %v570
        %v1120 = vunpack.c.h.b16 %v570
        %v1121 = vunpack.c.l.b16 %v571
        %v1122 = vunpack.c.h.b16 %v571
        %v1123 = vunpack.c.l.b16 %v572
        %v1124 = vunpack.c.h.b16 %v572
        %v1125 = vunpack.c.l.b16 %v573
        %v1126 = vunpack.c.h.b16 %v573
        %v1127 = vunpack.c.l.b16 %v574
        %v1128 = vunpack.c.h.b16 %v574
        %v1129 = vunpack.c.l.b16 %v575
        %v1130 = vunpack.c.h.b16 %v575
        %v1131 = vunpack.c.l.b16 %v576
        %v1132 = vunpack.c.h.b16 %v576
        %v1133 = vunpack.c.l.b16 %v577
        %v1134 = vunpack.c.h.b16 %v577
        %v1135 = vunpack.c.l.b16 %v578
        %v1136 = vunpack.c.h.b16 %v578
        %v1137 = vunpack.c.l.b16 %v579
        %v1138 = vunpack.c.h.b16 %v579
        %v1139 = vunpack.c.l.b16 %v580
        %v1140 = vunpack.c.h.b16 %v580
        %v1141 = vunpack.c.l.b16 %v581
        %v1142 = vunpack.c.h.b16 %v581
        %v1143 = vunpack.c.l.b16 %v582
        %v1144 = vunpack.c.h.b16 %v582
        %v1145 = vunpack.c.l.b16 %v583
        %v1146 = vunpack.c.h.b16 %v583
        %v1147 = vunpack.c.l.b16 %v584
        %v1148 = vunpack.c.h.b16 %v584
        %v1149 = vunpack.c.l.b16 %v585
        %v1150 = vunpack.c.h.b16 %v585
        %v1151 = vunpack.c.l.b16 %v586
        %v1152 = vunpack.c.h.b16 %v586
        %v1153 = vunpack.c.l.b16 %v587
        %v1154 = vunpack.c.h.b16 %v587
        %v1155 = vunpack.c.l.b16 %v588
        %v1156 = vunpack.c.h.b16 %v588
        %v1157 = vunpack.c.l.b16 %v589
        %v1158 = vunpack.c.h.b16 %v589
        %v1159 = vunpack.c.l.b16 %v590
        %v1160 = vunpack.c.h.b16 %v590
        %v1161 = vunpack.c.l.b16 %v591
        %v1162 = vunpack.c.h.b16 %v591
        %v1163 = vunpack.c.l.b16 %v592
        %v1164 = vunpack.c.h.b16 %v592
        %v1165 = vunpack.c.l.b16 %v593
        %v1166 = vunpack.c.h.b16 %v593
        %v1167 = vunpack.c.l.b16 %v594
        %v1168 = vunpack.c.h.b16 %v594
        %v1169 = vunpack.c.l.b16 %v595
        %v1170 = vunpack.c.h.b16 %v595
        %v1171 = vunpack.c.l.b16 %v596
        %v1172 = vunpack.c.h.b16 %v596
        %v1173 = vunpack.c.l.b16 %v597
        %v1174 = vunpack.c.h.b16 %v597
        %v1175 = vunpack.c.l.b16 %v598
        %v1176 = vunpack.c.h.b16 %v598
        %v1177 = vunpack.c.l.b16 %v599
        %v1178 = vunpack.c.h.b16 %v599
        %v1179 = vunpack.c.l.b16 %v600
        %v1180 = vunpack.c.h.b16 %v600
        %v1181 = vunpack.c.l.b16 %v601
        %v1182 = vunpack.c.h.b16 %v601
        %v1183 = vunpack.c.l.b16 %v602
        %v1184 = vunpack.c.h.b16 %v602
        %v1185 = vunpack.c.l.b16 %v603
        %v1186 = vunpack.c.h.b16 %v603
        %v1187 = vunpack.c.l.b16 %v604
        %v1188 = vunpack.c.h.b16 %v604
        %v1189 = vunpack.c.l.b16 %v605
        %v1190 = vunpack.c.h.b16 %v605
        %v1191 = vunpack.c.l.b16 %v606
        %v1192 = vunpack.c.h.b16 %v606
        %v1193 = vunpack.c.l.b16 %v607
        %v1194 = vunpack.c.h.b16 %v607
        %v1195 = vunpack.c.l.b16 %v608
        %v1196 = vunpack.c.h.b16 %v608
        %v1197 = vunpack.c.l.b16 %v609
        %v1198 = vunpack.c.h.b16 %v609
        %v1199 = vunpack.c.l.b16 %v610
        %v1200 = vunpack.c.h.b16 %v610
        %v1201 = vunpack.c.l.b16 %v611
        %v1202 = vunpack.c.h.b16 %v611
        %v1203 = vunpack.c.l.b16 %v612
        %v1204 = vunpack.c.h.b16 %v612
        %v1205 = vunpack.c.l.b16 %v613
        %v1206 = vunpack.c.h.b16 %v613
        %v1207 = vunpack.c.l.b16 %v614
        %v1208 = vunpack.c.h.b16 %v614
        %v1209 = vunpack.c.l.b16 %v615
        %v1210 = vunpack.c.h.b16 %v615
        %v1211 = vunpack.c.l.b16 %v616
        %v1212 = vunpack.c.h.b16 %v616
        %v1213 = vunpack.c.l.b16 %v617
        %v1214 = vunpack.c.h.b16 %v617
        %v1215 = vunpack.c.l.b16 %v618
        %v1216 = vunpack.c.h.b16 %v618
        %v1217 = vunpack.c.l.b16 %v619
        %v1218 = vunpack.c.h.b16 %v619
        %v1219 = vunpack.c.l.b16 %v620
        %v1220 = vunpack.c.h.b16 %v620
        %v1221 = vunpack.c.l.b16 %v621
        %v1222 = vunpack.c.h.b16 %v621
        %v1223 = vunpack.c.l.b16 %v622
        %v1224 = vunpack.c.h.b16 %v622
        %v1225 = vunpack.c.l.b16 %v623
        %v1226 = vunpack.c.h.b16 %v623
        %v1227 = vunpack.c.l.b16 %v624
        %v1228 = vunpack.c.h.b16 %v624
        %v1229 = vunpack.c.l.b16 %v625
        %v1230 = vunpack.c.h.b16 %v625
        %v1231 = vunpack.c.l.b16 %v626
        %v1232 = vunpack.c.h.b16 %v626
        %v1233 = vunpack.c.l.b16 %v627
        %v1234 = vunpack.c.h.b16 %v627
        %v1235 = vunpack.c.l.b16 %v628
        %v1236 = vunpack.c.h.b16 %v628
        %v1237 = vunpack.c.l.b16 %v629
        %v1238 = vunpack.c.h.b16 %v629
        %v1239 = vunpack.c.l.b16 %v630
        %v1240 = vunpack.c.h.b16 %v630
        %v1241 = vunpack.c.l.b16 %v631
        %v1242 = vunpack.c.h.b16 %v631
        %v1243 = vunpack.c.l.b16 %v632
        %v1244 = vunpack.c.h.b16 %v632
        %v1245 = vunpack.c.l.b16 %v633
        %v1246 = vunpack.c.h.b16 %v633
        %v1247 = vunpack.c.l.b16 %v634
        %v1248 = vunpack.c.h.b16 %v634
        %v1249 = vunpack.c.l.b16 %v635
        %v1250 = vunpack.c.h.b16 %v635
        %v1251 = vunpack.c.l.b16 %v636
        %v1252 = vunpack.c.h.b16 %v636
        %v1253 = vunpack.c.l.b16 %v637
        %v1254 = vunpack.c.h.b16 %v637
        %v1255 = vunpack.c.l.b16 %v638
        %v1256 = vunpack.c.h.b16 %v638
        %v1257 = vunpack.c.l.b16 %v639
        %v1258 = vunpack.c.h.b16 %v639
        %v1259 = vpack.c.b16 %v879, %v875
        %v1260 = vpack.c.b16 %v880, %v876
        %v1261 = vpack.c.b16 %v881, %v877
        %v1262 = vpack.c.b16 %v882, %v878
        %v1263 = vpack.c.b16 %v887, %v883
        %v1264 = vpack.c.b16 %v888, %v884
        %v1265 = vpack.c.b16 %v889, %v885
        %v1266 = vpack.c.b16 %v890, %v886
        %v1267 = vpack.c.b16 %v895, %v891
        %v1268 = vpack.c.b16 %v896, %v892
        %v1269 = vpack.c.b16 %v897, %v893
        %v1270 = vpack.c.b16 %v898, %v894
        %v1271 = vpack.c.b16 %v903, %v899
        %v1272 = vpack.c.b16 %v904, %v900
        %v1273 = vpack.c.b16 %v905, %v901
        %v1274 = vpack.c.b16 %v906, %v902
        %v1275 = vpack.c.b16 %v911, %v907
        %v1276 = vpack.c.b16 %v912, %v908
        %v1277 = vpack.c.b16 %v913, %v909
        %v1278 = vpack.c.b16 %v914, %v910
        %v1279 = vpack.c.b16 %v919, %v915
        %v1280 = vpack.c.b16 %v920, %v916
        %v1281 = vpack.c.b16 %v921, %v917
        %v1282 = vpack.c.b16 %v922, %v918
        %v1283 = vpack.c.b16 %v927, %v923
        %v1284 = vpack.c.b16 %v928, %v924
        %v1285 = vpack.c.b16 %v929, %v925
        %v1286 = vpack.c.b16 %v930, %v926
        %v1287 = vpack.c.b16 %v935, %v931
        %v1288 = vpack.c.b16 %v936, %v932
        %v1289 = vpack.c.b16 %v937, %v933
        %v1290 = vpack.c.b16 %v938, %v934
        %v1291 = vpack.c.b16 %v943, %v939
        %v1292 = vpack.c.b16 %v944, %v940
        %v1293 = vpack.c.b16 %v945, %v941
        %v1294 = vpack.c.b16 %v946, %v942
        %v1295 = vpack.c.b16 %v951, %v947
        %v1296 = vpack.c.b16 %v952, %v948
        %v1297 = vpack.c.b16 %v953, %v949
        %v1298 = vpack.c.b16 %v954, %v950
        %v1299 = vpack.c.b16 %v959, %v955
        %v1300 = vpack.c.b16 %v960, %v956
        %v1301 = vpack.c.b16 %v961, %v957
        %v1302 = vpack.c.b16 %v962, %v958
        %v1303 = vpack.c.b16 %v967, %v963
        %v1304 = vpack.c.b16 %v968, %v964
        %v1305 = vpack.c.b16 %v969, %v965
        %v1306 = vpack.c.b16 %v970, %v966
        %v1307 = vpack.c.b16 %v975, %v971
        %v1308 = vpack.c.b16 %v976, %v972
        %v1309 = vpack.c.b16 %v977, %v973
        %v1310 = vpack.c.b16 %v978, %v974
        %v1311 = vpack.c.b16 %v983, %v979
        %v1312 = vpack.c.b16 %v984, %v980
        %v1313 = vpack.c.b16 %v985, %v981
        %v1314 = vpack.c.b16 %v986, %v982
        %v1315 = vpack.c.b16 %v991, %v987
        %v1316 = vpack.c.b16 %v992, %v988
        %v1317 = vpack.c.b16 %v993, %v989
        %v1318 = vpack.c.b16 %v994, %v990
        %v1319 = vpack.c.b16 %v999, %v995
        %v1320 = vpack.c.b16 %v1000, %v996
        %v1321 = vpack.c.b16 %v1001, %v997
        %v1322 = vpack.c.b16 %v1002, %v998
        %v1323 = vpack.c.b16 %v1007, %v1003
        %v1324 = vpack.c.b16 %v1008, %v1004
        %v1325 = vpack.c.b16 %v1009, %v1005
        %v1326 = vpack.c.b16 %v1010, %v1006
        %v1327 = vpack.c.b16 %v1015, %v1011
        %v1328 = vpack.c.b16 %v1016, %v1012
        %v1329 = vpack.c.b16 %v1017, %v1013
        %v1330 = vpack.c.b16 %v1018, %v1014
        %v1331 = vpack.c.b16 %v1023, %v1019
        %v1332 = vpack.c.b16 %v1024, %v1020
        %v1333 = vpack.c.b16 %v1025, %v1021
        %v1334 = vpack.c.b16 %v1026, %v1022
        %v1335 = vpack.c.b16 %v1031, %v1027
        %v1336 = vpack.c.b16 %v1032, %v1028
        %v1337 = vpack.c.b16 %v1033, %v1029
        %v1338 = vpack.c.b16 %v1034, %v1030
        %v1339 = vpack.c.b16 %v1039, %v1035
        %v1340 = vpack.c.b16 %v1040, %v1036
        %v1341 = vpack.c.b16 %v1041, %v1037
        %v1342 = vpack.c.b16 %v1042, %v1038
        %v1343 = vpack.c.b16 %v1047, %v1043
        %v1344 = vpack.c.b16 %v1048, %v1044
        %v1345 = vpack.c.b16 %v1049, %v1045
        %v1346 = vpack.c.b16 %v1050, %v1046
        %v1347 = vpack.c.b16 %v1055, %v1051
        %v1348 = vpack.c.b16 %v1056, %v1052
        %v1349 = vpack.c.b16 %v1057, %v1053
        %v1350 = vpack.c.b16 %v1058, %v1054
        %v1351 = vpack.c.b16 %v1063, %v1059
        %v1352 = vpack.c.b16 %v1064, %v1060
        %v1353 = vpack.c.b16 %v1065, %v1061
        %v1354 = vpack.c.b16 %v1066, %v1062
        %v1355 = vpack.c.b16 %v1071, %v1067
        %v1356 = vpack.c.b16 %v1072, %v1068
        %v1357 = vpack.c.b16 %v1073, %v1069
        %v1358 = vpack.c.b16 %v1074, %v1070
        %v1359 = vpack.c.b16 %v1079, %v1075
        %v1360 = vpack.c.b16 %v1080, %v1076
        %v1361 = vpack.c.b16 %v1081, %v1077
        %v1362 = vpack.c.b16 %v1082, %v1078
        %v1363 = vpack.c.b16 %v1087, %v1083
        %v1364 = vpack.c.b16 %v1088, %v1084
        %v1365 = vpack.c.b16 %v1089, %v1085
        %v1366 = vpack.c.b16 %v1090, %v1086
        %v1367 = vpack.c.b16 %v1095, %v1091
        %v1368 = vpack.c.b16 %v1096, %v1092
        %v1369 = vpack.c.b16 %v1097, %v1093
        %v1370 = vpack.c.b16 %v1098, %v1094
        %v1371 = vpack.c.b16 %v1103, %v1099
        %v1372 = vpack.c.b16 %v1104, %v1100
        %v1373 = vpack.c.b16 %v1105, %v1101
        %v1374 = vpack.c.b16 %v1106, %v1102
        %v1375 = vpack.c.b16 %v1111, %v1107
        %v1376 = vpack.c.b16 %v1112, %v1108
        %v1377 = vpack.c.b16 %v1113, %v1109
        %v1378 = vpack.c.b16 %v1114, %v1110
        %v1379 = vpack.c.b16 %v1119, %v1115
        %v1380 = vpack.c.b16 %v1120, %v1116
        %v1381 = vpack.c.b16 %v1121, %v1117
        %v1382 = vpack.c.b16 %v1122, %v1118
        %v1383 = vpack.c.b16 %v1127, %v1123
        %v1384 = vpack.c.b16 %v1128, %v1124
        %v1385 = vpack.c.b16 %v1129, %v1125
        %v1386 = vpack.c.b16 %v1130, %v1126
        %v1387 = vpack.c.b16 %v1135, %v1131
        %v1388 = vpack.c.b16 %v1136, %v1132
        %v1389 = vpack.c.b16 %v1137, %v1133
        %v1390 = vpack.c.b16 %v1138, %v1134
        %v1391 = vpack.c.b16 %v1143, %v1139
        %v1392 = vpack.c.b16 %v1144, %v1140
        %v1393 = vpack.c.b16 %v1145, %v1141
        %v1394 = vpack.c.b16 %v1146, %v1142
        %v1395 = vpack.c.b16 %v1151, %v1147
        %v1396 = vpack.c.b16 %v1152, %v1148
        %v1397 = vpack.c.b16 %v1153, %v1149
        %v1398 = vpack.c.b16 %v1154, %v1150
        %v1399 = vpack.c.b16 %v1159, %v1155
        %v1400 = vpack.c.b16 %v1160, %v1156
        %v1401 = vpack.c.b16 %v1161, %v1157
        %v1402 = vpack.c.b16 %v1162, %v1158
        %v1403 = vpack.c.b16 %v1167, %v1163
        %v1404 = vpack.c.b16 %v1168, %v1164
        %v1405 = vpack.c.b16 %v1169, %v1165
        %v1406 = vpack.c.b16 %v1170, %v1166
        %v1407 = vpack.c.b16 %v1175, %v1171
        %v1408 = vpack.c.b16 %v1176, %v1172
        %v1409 = vpack.c.b16 %v1177, %v1173
        %v1410 = vpack.c.b16 %v1178, %v1174
        %v1411 = vpack.c.b16 %v1183, %v1179
        %v1412 = vpack.c.b16 %v1184, %v1180
        %v1413 = vpack.c.b16 %v1185, %v1181
        %v1414 = vpack.c.b16 %v1186, %v1182
        %v1415 = vpack.c.b16 %v1191, %v1187
        %v1416 = vpack.c.b16 %v1192, %v1188
        %v1417 = vpack.c.b16 %v1193, %v1189
        %v1418 = vpack.c.b16 %v1194, %v1190
        %v1419 = vpack.c.b16 %v1199, %v1195
        %v1420 = vpack.c.b16 %v1200, %v1196
        %v1421 = vpack.c.b16 %v1201, %v1197
        %v1422 = vpack.c.b16 %v1202, %v1198
        %v1423 = vpack.c.b16 %v1207, %v1203
        %v1424 = vpack.c.b16 %v1208, %v1204
        %v1425 = vpack.c.b16 %v1209, %v1205
        %v1426 = vpack.c.b16 %v1210, %v1206
        %v1427 = vpack.c.b16 %v1215, %v1211
        %v1428 = vpack.c.b16 %v1216, %v1212
        %v1429 = vpack.c.b16 %v1217, %v1213
        %v1430 = vpack.c.b16 %v1218, %v1214
        %v1431 = vpack.c.b16 %v1223, %v1219
        %v1432 = vpack.c.b16 %v1224, %v1220
        %v1433 = vpack.c.b16 %v1225, %v1221
        %v1434 = vpack.c.b16 %v1226, %v1222
        %v1435 = vpack.c.b16 %v1231, %v1227
        %v1436 = vpack.c.b16 %v1232, %v1228
        %v1437 = vpack.c.b16 %v1233, %v1229
        %v1438 = vpack.c.b16 %v1234, %v1230
        %v1439 = vpack.c.b16 %v1239, %v1235
        %v1440 = vpack.c.b16 %v1240, %v1236
        %v1441 = vpack.c.b16 %v1241, %v1237
        %v1442 = vpack.c.b16 %v1242, %v1238
        %v1443 = vpack.c.b16 %v1247, %v1243
        %v1444 = vpack.c.b16 %v1248, %v1244
        %v1445 = vpack.c.b16 %v1249, %v1245
        %v1446 = vpack.c.b16 %v1250, %v1246
        %v1447 = vpack.c.b16 %v1255, %v1251
        %v1448 = vpack.c.b16 %v1256, %v1252
        %v1449 = vpack.c.b16 %v1257, %v1253
        %v1450 = vpack.c.b16 %v1258, %v1254
        %1643 = vmatprep.subr.bf16.mxu0 %v1288
        %1644 = vmatpush1.bf16.msra.mxu0 %v1287
        %1645 = vmatprep.subr.bf16.mxu0 %v1284
        %1646 = vmatpush1.bf16.msra.mxu0 %v1283
        %1647 = vmatprep.subr.bf16.mxu0 %v1280
        %1648 = vmatpush1.bf16.msra.mxu0 %v1279
        %1649 = vmatprep.subr.bf16.mxu0 %v1276
        %1650 = vmatpush1.bf16.msra.mxu0 %v1275
        %1651 = vmatprep.subr.bf16.mxu0 %v1272
        %1652 = vmatpush1.bf16.msra.mxu0 %v1271
        %1653 = vmatprep.subr.bf16.mxu0 %v1268
        %1654 = vmatpush1.bf16.msra.mxu0 %v1267
        %1655 = vmatprep.subr.bf16.mxu0 %v1264
        %1656 = vmatpush1.bf16.msra.mxu0 %v1263
        %1657 = vmatprep.subr.bf16.mxu0 %v1260
        %1658 = vmatpush1.bf16.msra.mxu0 %v1259
        %1659 = vmatprep.subr.bf16.mxu0 %v1320
        %1660 = vmatpush2.bf16.msra.mxu0 %v1319
        %1661 = vmatprep.subr.bf16.mxu0 %v1316
        %1662 = vmatpush2.bf16.msra.mxu0 %v1315
        %1663 = vmatprep.subr.bf16.mxu0 %v1312
        %1664 = vmatpush2.bf16.msra.mxu0 %v1311
        %1665 = vmatprep.subr.bf16.mxu0 %v1308
        %1666 = vmatpush2.bf16.msra.mxu0 %v1307
        %1667 = vmatprep.subr.bf16.mxu0 %v1304
        %1668 = vmatpush2.bf16.msra.mxu0 %v1303
        %1669 = vmatprep.subr.bf16.mxu0 %v1300
        %1670 = vmatpush2.bf16.msra.mxu0 %v1299
        %1671 = vmatprep.subr.bf16.mxu0 %v1296
        %1672 = vmatpush2.bf16.msra.mxu0 %v1295
        %1673 = vmatprep.subr.bf16.mxu0 %v1292
        %1674 = vmatpush2.bf16.msra.mxu0 %v1291
        %1675 = vmatprep.mubr.bf16.mxu0 %v672
        %1676 = vmatmul.mubr.bf16.gmra.mxu0 %v671
        %v1677 = vpop.f32.mrf.mxu0
        %v1678 = vadd.f32 %v645, %v1677
        %v1679 = vpop.f32.mrf.mxu0
        %v1680 = vadd.f32 %v649, %v1679
        %v1681 = vpop.f32.mrf.mxu0
        %v1682 = vpop.f32.mrf.mxu0
        %1683 = vdwg.mxu0
        %1684 = vmatprep.subr.bf16.mxu0 %v1352
        %1685 = vmatpush1.bf16.msra.mxu0 %v1351
        %1686 = vmatprep.subr.bf16.mxu0 %v1348
        %1687 = vmatpush1.bf16.msra.mxu0 %v1347
        %1688 = vmatprep.subr.bf16.mxu0 %v1344
        %1689 = vmatpush1.bf16.msra.mxu0 %v1343
        %1690 = vmatprep.subr.bf16.mxu0 %v1340
        %1691 = vmatpush1.bf16.msra.mxu0 %v1339
        %1692 = vmatprep.subr.bf16.mxu0 %v1336
        %1693 = vmatpush1.bf16.msra.mxu0 %v1335
        %1694 = vmatprep.subr.bf16.mxu0 %v1332
        %1695 = vmatpush1.bf16.msra.mxu0 %v1331
        %1696 = vmatprep.subr.bf16.mxu0 %v1328
        %1697 = vmatpush1.bf16.msra.mxu0 %v1327
        %1698 = vmatprep.subr.bf16.mxu0 %v1324
        %1699 = vmatpush1.bf16.msra.mxu0 %v1323
        %1700 = vmatprep.subr.bf16.mxu0 %v1384
        %1701 = vmatpush2.bf16.msra.mxu0 %v1383
        %1702 = vmatprep.subr.bf16.mxu0 %v1380
        %1703 = vmatpush2.bf16.msra.mxu0 %v1379
        %1704 = vmatprep.subr.bf16.mxu0 %v1376
        %1705 = vmatpush2.bf16.msra.mxu0 %v1375
        %1706 = vmatprep.subr.bf16.mxu0 %v1372
        %1707 = vmatpush2.bf16.msra.mxu0 %v1371
        %1708 = vmatprep.subr.bf16.mxu0 %v1368
        %1709 = vmatpush2.bf16.msra.mxu0 %v1367
        %1710 = vmatprep.subr.bf16.mxu0 %v1364
        %1711 = vmatpush2.bf16.msra.mxu0 %v1363
        %1712 = vmatprep.subr.bf16.mxu0 %v1360
        %1713 = vmatpush2.bf16.msra.mxu0 %v1359
        %1714 = vmatprep.subr.bf16.mxu0 %v1356
        %1715 = vmatpush2.bf16.msra.mxu0 %v1355
        %1716 = vmatprep.mubr.bf16.mxu0 %v674
        %1717 = vmatmul.mubr.bf16.gmra.mxu0 %v673
        %v1718 = vpop.f32.mrf.mxu0
        %v1719 = vadd.f32 %v1678, %v1718
        %v1720 = vpop.f32.mrf.mxu0
        %v1721 = vadd.f32 %v1680, %v1720
        %v1722 = vpop.f32.mrf.mxu0
        %v1723 = vpop.f32.mrf.mxu0
        %1724 = vdwg.mxu0
        %1725 = vmatprep.subr.bf16.mxu0 %v1416
        %1726 = vmatpush1.bf16.msra.mxu0 %v1415
        %1727 = vmatprep.subr.bf16.mxu0 %v1412
        %1728 = vmatpush1.bf16.msra.mxu0 %v1411
        %1729 = vmatprep.subr.bf16.mxu0 %v1408
        %1730 = vmatpush1.bf16.msra.mxu0 %v1407
        %1731 = vmatprep.subr.bf16.mxu0 %v1404
        %1732 = vmatpush1.bf16.msra.mxu0 %v1403
        %1733 = vmatprep.subr.bf16.mxu0 %v1400
        %1734 = vmatpush1.bf16.msra.mxu0 %v1399
        %1735 = vmatprep.subr.bf16.mxu0 %v1396
        %1736 = vmatpush1.bf16.msra.mxu0 %v1395
        %1737 = vmatprep.subr.bf16.mxu0 %v1392
        %1738 = vmatpush1.bf16.msra.mxu0 %v1391
        %1739 = vmatprep.subr.bf16.mxu0 %v1388
        %1740 = vmatpush1.bf16.msra.mxu0 %v1387
        %1741 = vmatprep.subr.bf16.mxu0 %v1448
        %1742 = vmatpush2.bf16.msra.mxu0 %v1447
        %1743 = vmatprep.subr.bf16.mxu0 %v1444
        %1744 = vmatpush2.bf16.msra.mxu0 %v1443
        %1745 = vmatprep.subr.bf16.mxu0 %v1440
        %1746 = vmatpush2.bf16.msra.mxu0 %v1439
        %1747 = vmatprep.subr.bf16.mxu0 %v1436
        %1748 = vmatpush2.bf16.msra.mxu0 %v1435
        %1749 = vmatprep.subr.bf16.mxu0 %v1432
        %1750 = vmatpush2.bf16.msra.mxu0 %v1431
        %1751 = vmatprep.subr.bf16.mxu0 %v1428
        %1752 = vmatpush2.bf16.msra.mxu0 %v1427
        %1753 = vmatprep.subr.bf16.mxu0 %v1424
        %1754 = vmatpush2.bf16.msra.mxu0 %v1423
        %1755 = vmatprep.subr.bf16.mxu0 %v1420
        %1756 = vmatpush2.bf16.msra.mxu0 %v1419
        %1757 = vmatprep.mubr.bf16.mxu0 %v676
        %1758 = vmatmul.mubr.bf16.gmra.mxu0 %v675
        %v1759 = vpop.f32.mrf.mxu0
        %v1760 = vadd.f32 %v1719, %v1759
        %v1761 = vpop.f32.mrf.mxu0
        %v1762 = vadd.f32 %v1721, %v1761
        %v1763 = vpop.f32.mrf.mxu0
        %v1764 = vpop.f32.mrf.mxu0
        %1765 = vdwg.mxu0
        %1766 = vmatprep.subr.bf16.mxu0 %v1290
        %1767 = vmatpush1.bf16.msra.mxu0 %v1289
        %1768 = vmatprep.subr.bf16.mxu0 %v1286
        %1769 = vmatpush1.bf16.msra.mxu0 %v1285
        %1770 = vmatprep.subr.bf16.mxu0 %v1282
        %1771 = vmatpush1.bf16.msra.mxu0 %v1281
        %1772 = vmatprep.subr.bf16.mxu0 %v1278
        %1773 = vmatpush1.bf16.msra.mxu0 %v1277
        %1774 = vmatprep.subr.bf16.mxu0 %v1274
        %1775 = vmatpush1.bf16.msra.mxu0 %v1273
        %1776 = vmatprep.subr.bf16.mxu0 %v1270
        %1777 = vmatpush1.bf16.msra.mxu0 %v1269
        %1778 = vmatprep.subr.bf16.mxu0 %v1266
        %1779 = vmatpush1.bf16.msra.mxu0 %v1265
        %1780 = vmatprep.subr.bf16.mxu0 %v1262
        %1781 = vmatpush1.bf16.msra.mxu0 %v1261
        %1782 = vmatprep.subr.bf16.mxu0 %v1322
        %1783 = vmatpush2.bf16.msra.mxu0 %v1321
        %1784 = vmatprep.subr.bf16.mxu0 %v1318
        %1785 = vmatpush2.bf16.msra.mxu0 %v1317
        %1786 = vmatprep.subr.bf16.mxu0 %v1314
        %1787 = vmatpush2.bf16.msra.mxu0 %v1313
        %1788 = vmatprep.subr.bf16.mxu0 %v1310
        %1789 = vmatpush2.bf16.msra.mxu0 %v1309
        %1790 = vmatprep.subr.bf16.mxu0 %v1306
        %1791 = vmatpush2.bf16.msra.mxu0 %v1305
        %1792 = vmatprep.subr.bf16.mxu0 %v1302
        %1793 = vmatpush2.bf16.msra.mxu0 %v1301
        %1794 = vmatprep.subr.bf16.mxu0 %v1298
        %1795 = vmatpush2.bf16.msra.mxu0 %v1297
        %1796 = vmatprep.subr.bf16.mxu0 %v1294
        %1797 = vmatpush2.bf16.msra.mxu0 %v1293
        %1798 = vmatprep.mubr.bf16.mxu0 %v672
        %1799 = vmatmul.mubr.bf16.gmra.mxu0 %v671
        %v1800 = vpop.f32.mrf.mxu0
        %v1801 = vadd.f32 %v653, %v1800
        %v1802 = vpop.f32.mrf.mxu0
        %v1803 = vadd.f32 %v657, %v1802
        %v1804 = vpop.f32.mrf.mxu0
        %v1805 = vpop.f32.mrf.mxu0
        %1806 = vdwg.mxu0
        %1807 = vmatprep.subr.bf16.mxu0 %v1354
        %1808 = vmatpush1.bf16.msra.mxu0 %v1353
        %1809 = vmatprep.subr.bf16.mxu0 %v1350
        %1810 = vmatpush1.bf16.msra.mxu0 %v1349
        %1811 = vmatprep.subr.bf16.mxu0 %v1346
        %1812 = vmatpush1.bf16.msra.mxu0 %v1345
        %1813 = vmatprep.subr.bf16.mxu0 %v1342
        %1814 = vmatpush1.bf16.msra.mxu0 %v1341
        %1815 = vmatprep.subr.bf16.mxu0 %v1338
        %1816 = vmatpush1.bf16.msra.mxu0 %v1337
        %1817 = vmatprep.subr.bf16.mxu0 %v1334
        %1818 = vmatpush1.bf16.msra.mxu0 %v1333
        %1819 = vmatprep.subr.bf16.mxu0 %v1330
        %1820 = vmatpush1.bf16.msra.mxu0 %v1329
        %1821 = vmatprep.subr.bf16.mxu0 %v1326
        %1822 = vmatpush1.bf16.msra.mxu0 %v1325
        %1823 = vmatprep.subr.bf16.mxu0 %v1386
        %1824 = vmatpush2.bf16.msra.mxu0 %v1385
        %1825 = vmatprep.subr.bf16.mxu0 %v1382
        %1826 = vmatpush2.bf16.msra.mxu0 %v1381
        %1827 = vmatprep.subr.bf16.mxu0 %v1378
        %1828 = vmatpush2.bf16.msra.mxu0 %v1377
        %1829 = vmatprep.subr.bf16.mxu0 %v1374
        %1830 = vmatpush2.bf16.msra.mxu0 %v1373
        %1831 = vmatprep.subr.bf16.mxu0 %v1370
        %1832 = vmatpush2.bf16.msra.mxu0 %v1369
        %1833 = vmatprep.subr.bf16.mxu0 %v1366
        %1834 = vmatpush2.bf16.msra.mxu0 %v1365
        %1835 = vmatprep.subr.bf16.mxu0 %v1362
        %1836 = vmatpush2.bf16.msra.mxu0 %v1361
        %1837 = vmatprep.subr.bf16.mxu0 %v1358
        %1838 = vmatpush2.bf16.msra.mxu0 %v1357
        %1839 = vmatprep.mubr.bf16.mxu0 %v674
        %1840 = vmatmul.mubr.bf16.gmra.mxu0 %v673
        %v1841 = vpop.f32.mrf.mxu0
        %v1842 = vadd.f32 %v1801, %v1841
        %v1843 = vpop.f32.mrf.mxu0
        %v1844 = vadd.f32 %v1803, %v1843
        %v1845 = vpop.f32.mrf.mxu0
        %v1846 = vpop.f32.mrf.mxu0
        %1847 = vdwg.mxu0
        %1848 = vmatprep.subr.bf16.mxu0 %v1418
        %1849 = vmatpush1.bf16.msra.mxu0 %v1417
        %1850 = vmatprep.subr.bf16.mxu0 %v1414
        %1851 = vmatpush1.bf16.msra.mxu0 %v1413
        %1852 = vmatprep.subr.bf16.mxu0 %v1410
        %1853 = vmatpush1.bf16.msra.mxu0 %v1409
        %1854 = vmatprep.subr.bf16.mxu0 %v1406
        %1855 = vmatpush1.bf16.msra.mxu0 %v1405
        %1856 = vmatprep.subr.bf16.mxu0 %v1402
        %1857 = vmatpush1.bf16.msra.mxu0 %v1401
        %1858 = vmatprep.subr.bf16.mxu0 %v1398
        %1859 = vmatpush1.bf16.msra.mxu0 %v1397
        %1860 = vmatprep.subr.bf16.mxu0 %v1394
        %1861 = vmatpush1.bf16.msra.mxu0 %v1393
        %1862 = vmatprep.subr.bf16.mxu0 %v1390
        %1863 = vmatpush1.bf16.msra.mxu0 %v1389
        %1864 = vmatprep.subr.bf16.mxu0 %v1450
        %1865 = vmatpush2.bf16.msra.mxu0 %v1449
        %1866 = vmatprep.subr.bf16.mxu0 %v1446
        %1867 = vmatpush2.bf16.msra.mxu0 %v1445
        %1868 = vmatprep.subr.bf16.mxu0 %v1442
        %1869 = vmatpush2.bf16.msra.mxu0 %v1441
        %1870 = vmatprep.subr.bf16.mxu0 %v1438
        %1871 = vmatpush2.bf16.msra.mxu0 %v1437
        %1872 = vmatprep.subr.bf16.mxu0 %v1434
        %1873 = vmatpush2.bf16.msra.mxu0 %v1433
        %1874 = vmatprep.subr.bf16.mxu0 %v1430
        %1875 = vmatpush2.bf16.msra.mxu0 %v1429
        %1876 = vmatprep.subr.bf16.mxu0 %v1426
        %1877 = vmatpush2.bf16.msra.mxu0 %v1425
        %1878 = vmatprep.subr.bf16.mxu0 %v1422
        %1879 = vmatpush2.bf16.msra.mxu0 %v1421
        %1880 = vmatprep.mubr.bf16.mxu0 %v676
        %1881 = vmatmul.mubr.bf16.gmra.mxu0 %v675
        %v1882 = vpop.f32.mrf.mxu0
        %v1883 = vadd.f32 %v1842, %v1882
        %v1884 = vpop.f32.mrf.mxu0
        %v1885 = vadd.f32 %v1844, %v1884
        %v1886 = vpop.f32.mrf.mxu0
        %v1887 = vpop.f32.mrf.mxu0
        %1888 = vdwg.mxu0
        %v1889 = vmax.f32 %v1760, 0.0
        %v1890 = vmax.f32 %v1762, 0.0
        %v1891 = vmax.f32 %v1883, 0.0
        %v1892 = vmax.f32 %v1885, 0.0
        %v1893 = vpack.c.bf16 %v1889, %v1889
        %v1894 = vpack.c.bf16 %v1890, %v1890
        %v1895 = vpack.c.bf16 %v1891, %v1891
        %v1896 = vpack.c.bf16 %v1892, %v1892
        %v1897 = vld [vmem:[%s365] sm:$0xff]
        %v1898 = vld [vmem:[%s365 + $0x8] sm:$0xff]
        %v1899 = vld [vmem:[%s365 + $0x10] sm:$0xff]
        %v1900 = vld [vmem:[%s365 + $0x18] sm:$0xff]
        %v1901 = vld [vmem:[%s365 + $0x20] sm:$0xff]
        %v1902 = vld [vmem:[%s365 + $0x28] sm:$0xff]
        %v1903 = vld [vmem:[%s365 + $0x30] sm:$0xff]
        %v1904 = vld [vmem:[%s365 + $0x38] sm:$0xff]
        %v1905 = vld [vmem:[%s365 + $0x40] sm:$0xff]
        %v1906 = vld [vmem:[%s365 + $0x48] sm:$0xff]
        %v1907 = vld [vmem:[%s365 + $0x50] sm:$0xff]
        %v1908 = vld [vmem:[%s365 + $0x58] sm:$0xff]
        %v1909 = vld [vmem:[%s365 + $0x60] sm:$0xff]
        %v1910 = vld [vmem:[%s365 + $0x68] sm:$0xff]
        %v1911 = vld [vmem:[%s365 + $0x70] sm:$0xff]
        %v1912 = vld [vmem:[%s365 + $0x78] sm:$0xff]
        %v1913 = vld [vmem:[%s365 + $0x80] sm:$0xff]
        %v1914 = vld [vmem:[%s365 + $0x88] sm:$0xff]
        %v1915 = vld [vmem:[%s365 + $0x90] sm:$0xff]
        %v1916 = vld [vmem:[%s365 + $0x98] sm:$0xff]
        %v1917 = vld [vmem:[%s365 + $0xa0] sm:$0xff]
        %v1918 = vld [vmem:[%s365 + $0xa8] sm:$0xff]
        %v1919 = vld [vmem:[%s365 + $0xb0] sm:$0xff]
        %v1920 = vld [vmem:[%s365 + $0xb8] sm:$0xff]
        %v1921 = vld [vmem:[%s365 + $0xc0] sm:$0xff]
        %v1922 = vld [vmem:[%s365 + $0xc8] sm:$0xff]
        %v1923 = vld [vmem:[%s365 + $0xd0] sm:$0xff]
        %v1924 = vld [vmem:[%s365 + $0xd8] sm:$0xff]
        %v1925 = vld [vmem:[%s365 + $0xe0] sm:$0xff]
        %v1926 = vld [vmem:[%s365 + $0xe8] sm:$0xff]
        %v1927 = vld [vmem:[%s365 + $0xf0] sm:$0xff]
        %v1928 = vld [vmem:[%s365 + $0xf8] sm:$0xff]
        %v1929 = vld [vmem:[%s365 + $0x100] sm:$0xff]
        %v1930 = vld [vmem:[%s365 + $0x108] sm:$0xff]
        %v1931 = vld [vmem:[%s365 + $0x110] sm:$0xff]
        %v1932 = vld [vmem:[%s365 + $0x118] sm:$0xff]
        %v1933 = vld [vmem:[%s365 + $0x120] sm:$0xff]
        %v1934 = vld [vmem:[%s365 + $0x128] sm:$0xff]
        %v1935 = vld [vmem:[%s365 + $0x130] sm:$0xff]
        %v1936 = vld [vmem:[%s365 + $0x138] sm:$0xff]
        %v1937 = vld [vmem:[%s365 + $0x140] sm:$0xff]
        %v1938 = vld [vmem:[%s365 + $0x148] sm:$0xff]
        %v1939 = vld [vmem:[%s365 + $0x150] sm:$0xff]
        %v1940 = vld [vmem:[%s365 + $0x158] sm:$0xff]
        %v1941 = vld [vmem:[%s365 + $0x160] sm:$0xff]
        %v1942 = vld [vmem:[%s365 + $0x168] sm:$0xff]
        %v1943 = vld [vmem:[%s365 + $0x170] sm:$0xff]
        %v1944 = vld [vmem:[%s365 + $0x178] sm:$0xff]
        %v1945 = vld [vmem:[%s365 + $0x180] sm:$0xff]
        %v1946 = vld [vmem:[%s365 + $0x188] sm:$0xff]
        %v1947 = vld [vmem:[%s365 + $0x190] sm:$0xff]
        %v1948 = vld [vmem:[%s365 + $0x198] sm:$0xff]
        %v1949 = vld [vmem:[%s365 + $0x1a0] sm:$0xff]
        %v1950 = vld [vmem:[%s365 + $0x1a8] sm:$0xff]
        %v1951 = vld [vmem:[%s365 + $0x1b0] sm:$0xff]
        %v1952 = vld [vmem:[%s365 + $0x1b8] sm:$0xff]
        %v1953 = vld [vmem:[%s365 + $0x1c0] sm:$0xff]
        %v1954 = vld [vmem:[%s365 + $0x1c8] sm:$0xff]
        %v1955 = vld [vmem:[%s365 + $0x1d0] sm:$0xff]
        %v1956 = vld [vmem:[%s365 + $0x1d8] sm:$0xff]
        %v1957 = vld [vmem:[%s365 + $0x1e0] sm:$0xff]
        %v1958 = vld [vmem:[%s365 + $0x1e8] sm:$0xff]
        %v1959 = vld [vmem:[%s365 + $0x1f0] sm:$0xff]
        %v1960 = vld [vmem:[%s365 + $0x1f8] sm:$0xff]
        %v1961 = vld [vmem:[%s365 + $0x200] sm:$0xff]
        %v1962 = vld [vmem:[%s365 + $0x208] sm:$0xff]
        %v1963 = vld [vmem:[%s365 + $0x210] sm:$0xff]
        %v1964 = vld [vmem:[%s365 + $0x218] sm:$0xff]
        %v1965 = vld [vmem:[%s365 + $0x220] sm:$0xff]
        %v1966 = vld [vmem:[%s365 + $0x228] sm:$0xff]
        %v1967 = vld [vmem:[%s365 + $0x230] sm:$0xff]
        %v1968 = vld [vmem:[%s365 + $0x238] sm:$0xff]
        %v1969 = vld [vmem:[%s365 + $0x240] sm:$0xff]
        %v1970 = vld [vmem:[%s365 + $0x248] sm:$0xff]
        %v1971 = vld [vmem:[%s365 + $0x250] sm:$0xff]
        %v1972 = vld [vmem:[%s365 + $0x258] sm:$0xff]
        %v1973 = vld [vmem:[%s365 + $0x260] sm:$0xff]
        %v1974 = vld [vmem:[%s365 + $0x268] sm:$0xff]
        %v1975 = vld [vmem:[%s365 + $0x270] sm:$0xff]
        %v1976 = vld [vmem:[%s365 + $0x278] sm:$0xff]
        %v1977 = vld [vmem:[%s365 + $0x280] sm:$0xff]
        %v1978 = vld [vmem:[%s365 + $0x288] sm:$0xff]
        %v1979 = vld [vmem:[%s365 + $0x290] sm:$0xff]
        %v1980 = vld [vmem:[%s365 + $0x298] sm:$0xff]
        %v1981 = vld [vmem:[%s365 + $0x2a0] sm:$0xff]
        %v1982 = vld [vmem:[%s365 + $0x2a8] sm:$0xff]
        %v1983 = vld [vmem:[%s365 + $0x2b0] sm:$0xff]
        %v1984 = vld [vmem:[%s365 + $0x2b8] sm:$0xff]
        %v1985 = vld [vmem:[%s365 + $0x2c0] sm:$0xff]
        %v1986 = vld [vmem:[%s365 + $0x2c8] sm:$0xff]
        %v1987 = vld [vmem:[%s365 + $0x2d0] sm:$0xff]
        %v1988 = vld [vmem:[%s365 + $0x2d8] sm:$0xff]
        %v1989 = vld [vmem:[%s365 + $0x2e0] sm:$0xff]
        %v1990 = vld [vmem:[%s365 + $0x2e8] sm:$0xff]
        %v1991 = vld [vmem:[%s365 + $0x2f0] sm:$0xff]
        %v1992 = vld [vmem:[%s365 + $0x2f8] sm:$0xff]
        %v1993 = vld [vmem:[%s365 + $0x300] sm:$0xff]
        %v1994 = vld [vmem:[%s365 + $0x308] sm:$0xff]
        %v1995 = vld [vmem:[%s365 + $0x310] sm:$0xff]
        %v1996 = vld [vmem:[%s365 + $0x318] sm:$0xff]
        %v1997 = vld [vmem:[%s365 + $0x320] sm:$0xff]
        %v1998 = vld [vmem:[%s365 + $0x328] sm:$0xff]
        %v1999 = vld [vmem:[%s365 + $0x330] sm:$0xff]
        %v2000 = vld [vmem:[%s365 + $0x338] sm:$0xff]
        %v2001 = vld [vmem:[%s365 + $0x340] sm:$0xff]
        %v2002 = vld [vmem:[%s365 + $0x348] sm:$0xff]
        %v2003 = vld [vmem:[%s365 + $0x350] sm:$0xff]
        %v2004 = vld [vmem:[%s365 + $0x358] sm:$0xff]
        %v2005 = vld [vmem:[%s365 + $0x360] sm:$0xff]
        %v2006 = vld [vmem:[%s365 + $0x368] sm:$0xff]
        %v2007 = vld [vmem:[%s365 + $0x370] sm:$0xff]
        %v2008 = vld [vmem:[%s365 + $0x378] sm:$0xff]
        %v2009 = vld [vmem:[%s365 + $0x380] sm:$0xff]
        %v2010 = vld [vmem:[%s365 + $0x388] sm:$0xff]
        %v2011 = vld [vmem:[%s365 + $0x390] sm:$0xff]
        %v2012 = vld [vmem:[%s365 + $0x398] sm:$0xff]
        %v2013 = vld [vmem:[%s365 + $0x3a0] sm:$0xff]
        %v2014 = vld [vmem:[%s365 + $0x3a8] sm:$0xff]
        %v2015 = vld [vmem:[%s365 + $0x3b0] sm:$0xff]
        %v2016 = vld [vmem:[%s365 + $0x3b8] sm:$0xff]
        %v2017 = vld [vmem:[%s365 + $0x3c0] sm:$0xff]
        %v2018 = vld [vmem:[%s365 + $0x3c8] sm:$0xff]
        %v2019 = vld [vmem:[%s365 + $0x3d0] sm:$0xff]
        %v2020 = vld [vmem:[%s365 + $0x3d8] sm:$0xff]
        %v2021 = vld [vmem:[%s365 + $0x3e0] sm:$0xff]
        %v2022 = vld [vmem:[%s365 + $0x3e8] sm:$0xff]
        %v2023 = vld [vmem:[%s365 + $0x3f0] sm:$0xff]
        %v2024 = vld [vmem:[%s365 + $0x3f8] sm:$0xff]
        %v2025 = vld [vmem:[%s365 + $0x400] sm:$0xff]
        %v2026 = vld [vmem:[%s365 + $0x408] sm:$0xff]
        %v2027 = vld [vmem:[%s365 + $0x410] sm:$0xff]
        %v2028 = vld [vmem:[%s365 + $0x418] sm:$0xff]
        %v2029 = vld [vmem:[%s365 + $0x420] sm:$0xff]
        %v2030 = vld [vmem:[%s365 + $0x428] sm:$0xff]
        %v2031 = vld [vmem:[%s365 + $0x430] sm:$0xff]
        %v2032 = vld [vmem:[%s365 + $0x438] sm:$0xff]
        %v2033 = vld [vmem:[%s365 + $0x440] sm:$0xff]
        %v2034 = vld [vmem:[%s365 + $0x448] sm:$0xff]
        %v2035 = vld [vmem:[%s365 + $0x450] sm:$0xff]
        %v2036 = vld [vmem:[%s365 + $0x458] sm:$0xff]
        %v2037 = vld [vmem:[%s365 + $0x460] sm:$0xff]
        %v2038 = vld [vmem:[%s365 + $0x468] sm:$0xff]
        %v2039 = vld [vmem:[%s365 + $0x470] sm:$0xff]
        %v2040 = vld [vmem:[%s365 + $0x478] sm:$0xff]
        %v2041 = vld [vmem:[%s365 + $0x480] sm:$0xff]
        %v2042 = vld [vmem:[%s365 + $0x488] sm:$0xff]
        %v2043 = vld [vmem:[%s365 + $0x490] sm:$0xff]
        %v2044 = vld [vmem:[%s365 + $0x498] sm:$0xff]
        %v2045 = vld [vmem:[%s365 + $0x4a0] sm:$0xff]
        %v2046 = vld [vmem:[%s365 + $0x4a8] sm:$0xff]
        %v2047 = vld [vmem:[%s365 + $0x4b0] sm:$0xff]
        %v2048 = vld [vmem:[%s365 + $0x4b8] sm:$0xff]
        %v2049 = vld [vmem:[%s365 + $0x4c0] sm:$0xff]
        %v2050 = vld [vmem:[%s365 + $0x4c8] sm:$0xff]
        %v2051 = vld [vmem:[%s365 + $0x4d0] sm:$0xff]
        %v2052 = vld [vmem:[%s365 + $0x4d8] sm:$0xff]
        %v2053 = vld [vmem:[%s365 + $0x4e0] sm:$0xff]
        %v2054 = vld [vmem:[%s365 + $0x4e8] sm:$0xff]
        %v2055 = vld [vmem:[%s365 + $0x4f0] sm:$0xff]
        %v2056 = vld [vmem:[%s365 + $0x4f8] sm:$0xff]
        %v2057 = vld [vmem:[%s365 + $0x500] sm:$0xff]
        %v2058 = vld [vmem:[%s365 + $0x508] sm:$0xff]
        %v2059 = vld [vmem:[%s365 + $0x510] sm:$0xff]
        %v2060 = vld [vmem:[%s365 + $0x518] sm:$0xff]
        %v2061 = vld [vmem:[%s365 + $0x520] sm:$0xff]
        %v2062 = vld [vmem:[%s365 + $0x528] sm:$0xff]
        %v2063 = vld [vmem:[%s365 + $0x530] sm:$0xff]
        %v2064 = vld [vmem:[%s365 + $0x538] sm:$0xff]
        %v2065 = vld [vmem:[%s365 + $0x540] sm:$0xff]
        %v2066 = vld [vmem:[%s365 + $0x548] sm:$0xff]
        %v2067 = vld [vmem:[%s365 + $0x550] sm:$0xff]
        %v2068 = vld [vmem:[%s365 + $0x558] sm:$0xff]
        %v2069 = vld [vmem:[%s365 + $0x560] sm:$0xff]
        %v2070 = vld [vmem:[%s365 + $0x568] sm:$0xff]
        %v2071 = vld [vmem:[%s365 + $0x570] sm:$0xff]
        %v2072 = vld [vmem:[%s365 + $0x578] sm:$0xff]
        %v2073 = vld [vmem:[%s365 + $0x580] sm:$0xff]
        %v2074 = vld [vmem:[%s365 + $0x588] sm:$0xff]
        %v2075 = vld [vmem:[%s365 + $0x590] sm:$0xff]
        %v2076 = vld [vmem:[%s365 + $0x598] sm:$0xff]
        %v2077 = vld [vmem:[%s365 + $0x5a0] sm:$0xff]
        %v2078 = vld [vmem:[%s365 + $0x5a8] sm:$0xff]
        %v2079 = vld [vmem:[%s365 + $0x5b0] sm:$0xff]
        %v2080 = vld [vmem:[%s365 + $0x5b8] sm:$0xff]
        %v2081 = vld [vmem:[%s365 + $0x5c0] sm:$0xff]
        %v2082 = vld [vmem:[%s365 + $0x5c8] sm:$0xff]
        %v2083 = vld [vmem:[%s365 + $0x5d0] sm:$0xff]
        %v2084 = vld [vmem:[%s365 + $0x5d8] sm:$0xff]
        %v2085 = vld [vmem:[%s365 + $0x5e0] sm:$0xff]
        %v2086 = vld [vmem:[%s365 + $0x5e8] sm:$0xff]
        %v2087 = vld [vmem:[%s365 + $0x5f0] sm:$0xff]
        %v2088 = vld [vmem:[%s365 + $0x5f8] sm:$0xff]
        %v2089 = vld [vmem:[%s374] sm:$0x3f]
        %v2091 = vlaneseq
        %v2092 = vshrl.u32 %v2091, 7
        %v2093 = vsub.s32 0, %v2092
        %v2094 = vrot.slane %v2089, %v2093
        %v2095 = vlaneseq
        %v2096 = vshrl.u32 %v2095, 7
        %v2097 = vsub.s32 1, %v2096
        %v2098 = vrot.slane %v2089, %v2097
        %v2099 = vlaneseq
        %v2100 = vshrl.u32 %v2099, 7
        %v2101 = vsub.s32 2, %v2100
        %v2102 = vrot.slane %v2089, %v2101
        %v2103 = vlaneseq
        %v2104 = vshrl.u32 %v2103, 7
        %v2105 = vsub.s32 3, %v2104
        %v2106 = vrot.slane %v2089, %v2105
        %v2107 = vlaneseq
        %v2108 = vshrl.u32 %v2107, 7
        %v2109 = vsub.s32 4, %v2108
        %v2110 = vrot.slane %v2089, %v2109
        %v2111 = vlaneseq
        %v2112 = vshrl.u32 %v2111, 7
        %v2113 = vsub.s32 5, %v2112
        %v2114 = vrot.slane %v2089, %v2113
        %v2313 = vunpack.c.l.b16 %v1897
        %v2314 = vunpack.c.h.b16 %v1897
        %v2315 = vunpack.c.l.b16 %v1898
        %v2316 = vunpack.c.h.b16 %v1898
        %v2317 = vunpack.c.l.b16 %v1899
        %v2318 = vunpack.c.h.b16 %v1899
        %v2319 = vunpack.c.l.b16 %v1900
        %v2320 = vunpack.c.h.b16 %v1900
        %v2321 = vunpack.c.l.b16 %v1901
        %v2322 = vunpack.c.h.b16 %v1901
        %v2323 = vunpack.c.l.b16 %v1902
        %v2324 = vunpack.c.h.b16 %v1902
        %v2325 = vunpack.c.l.b16 %v1903
        %v2326 = vunpack.c.h.b16 %v1903
        %v2327 = vunpack.c.l.b16 %v1904
        %v2328 = vunpack.c.h.b16 %v1904
        %v2329 = vunpack.c.l.b16 %v1905
        %v2330 = vunpack.c.h.b16 %v1905
        %v2331 = vunpack.c.l.b16 %v1906
        %v2332 = vunpack.c.h.b16 %v1906
        %v2333 = vunpack.c.l.b16 %v1907
        %v2334 = vunpack.c.h.b16 %v1907
        %v2335 = vunpack.c.l.b16 %v1908
        %v2336 = vunpack.c.h.b16 %v1908
        %v2337 = vunpack.c.l.b16 %v1909
        %v2338 = vunpack.c.h.b16 %v1909
        %v2339 = vunpack.c.l.b16 %v1910
        %v2340 = vunpack.c.h.b16 %v1910
        %v2341 = vunpack.c.l.b16 %v1911
        %v2342 = vunpack.c.h.b16 %v1911
        %v2343 = vunpack.c.l.b16 %v1912
        %v2344 = vunpack.c.h.b16 %v1912
        %v2345 = vunpack.c.l.b16 %v1913
        %v2346 = vunpack.c.h.b16 %v1913
        %v2347 = vunpack.c.l.b16 %v1914
        %v2348 = vunpack.c.h.b16 %v1914
        %v2349 = vunpack.c.l.b16 %v1915
        %v2350 = vunpack.c.h.b16 %v1915
        %v2351 = vunpack.c.l.b16 %v1916
        %v2352 = vunpack.c.h.b16 %v1916
        %v2353 = vunpack.c.l.b16 %v1917
        %v2354 = vunpack.c.h.b16 %v1917
        %v2355 = vunpack.c.l.b16 %v1918
        %v2356 = vunpack.c.h.b16 %v1918
        %v2357 = vunpack.c.l.b16 %v1919
        %v2358 = vunpack.c.h.b16 %v1919
        %v2359 = vunpack.c.l.b16 %v1920
        %v2360 = vunpack.c.h.b16 %v1920
        %v2361 = vunpack.c.l.b16 %v1921
        %v2362 = vunpack.c.h.b16 %v1921
        %v2363 = vunpack.c.l.b16 %v1922
        %v2364 = vunpack.c.h.b16 %v1922
        %v2365 = vunpack.c.l.b16 %v1923
        %v2366 = vunpack.c.h.b16 %v1923
        %v2367 = vunpack.c.l.b16 %v1924
        %v2368 = vunpack.c.h.b16 %v1924
        %v2369 = vunpack.c.l.b16 %v1925
        %v2370 = vunpack.c.h.b16 %v1925
        %v2371 = vunpack.c.l.b16 %v1926
        %v2372 = vunpack.c.h.b16 %v1926
        %v2373 = vunpack.c.l.b16 %v1927
        %v2374 = vunpack.c.h.b16 %v1927
        %v2375 = vunpack.c.l.b16 %v1928
        %v2376 = vunpack.c.h.b16 %v1928
        %v2377 = vunpack.c.l.b16 %v1929
        %v2378 = vunpack.c.h.b16 %v1929
        %v2379 = vunpack.c.l.b16 %v1930
        %v2380 = vunpack.c.h.b16 %v1930
        %v2381 = vunpack.c.l.b16 %v1931
        %v2382 = vunpack.c.h.b16 %v1931
        %v2383 = vunpack.c.l.b16 %v1932
        %v2384 = vunpack.c.h.b16 %v1932
        %v2385 = vunpack.c.l.b16 %v1933
        %v2386 = vunpack.c.h.b16 %v1933
        %v2387 = vunpack.c.l.b16 %v1934
        %v2388 = vunpack.c.h.b16 %v1934
        %v2389 = vunpack.c.l.b16 %v1935
        %v2390 = vunpack.c.h.b16 %v1935
        %v2391 = vunpack.c.l.b16 %v1936
        %v2392 = vunpack.c.h.b16 %v1936
        %v2393 = vunpack.c.l.b16 %v1937
        %v2394 = vunpack.c.h.b16 %v1937
        %v2395 = vunpack.c.l.b16 %v1938
        %v2396 = vunpack.c.h.b16 %v1938
        %v2397 = vunpack.c.l.b16 %v1939
        %v2398 = vunpack.c.h.b16 %v1939
        %v2399 = vunpack.c.l.b16 %v1940
        %v2400 = vunpack.c.h.b16 %v1940
        %v2401 = vunpack.c.l.b16 %v1941
        %v2402 = vunpack.c.h.b16 %v1941
        %v2403 = vunpack.c.l.b16 %v1942
        %v2404 = vunpack.c.h.b16 %v1942
        %v2405 = vunpack.c.l.b16 %v1943
        %v2406 = vunpack.c.h.b16 %v1943
        %v2407 = vunpack.c.l.b16 %v1944
        %v2408 = vunpack.c.h.b16 %v1944
        %v2409 = vunpack.c.l.b16 %v1945
        %v2410 = vunpack.c.h.b16 %v1945
        %v2411 = vunpack.c.l.b16 %v1946
        %v2412 = vunpack.c.h.b16 %v1946
        %v2413 = vunpack.c.l.b16 %v1947
        %v2414 = vunpack.c.h.b16 %v1947
        %v2415 = vunpack.c.l.b16 %v1948
        %v2416 = vunpack.c.h.b16 %v1948
        %v2417 = vunpack.c.l.b16 %v1949
        %v2418 = vunpack.c.h.b16 %v1949
        %v2419 = vunpack.c.l.b16 %v1950
        %v2420 = vunpack.c.h.b16 %v1950
        %v2421 = vunpack.c.l.b16 %v1951
        %v2422 = vunpack.c.h.b16 %v1951
        %v2423 = vunpack.c.l.b16 %v1952
        %v2424 = vunpack.c.h.b16 %v1952
        %v2425 = vunpack.c.l.b16 %v1953
        %v2426 = vunpack.c.h.b16 %v1953
        %v2427 = vunpack.c.l.b16 %v1954
        %v2428 = vunpack.c.h.b16 %v1954
        %v2429 = vunpack.c.l.b16 %v1955
        %v2430 = vunpack.c.h.b16 %v1955
        %v2431 = vunpack.c.l.b16 %v1956
        %v2432 = vunpack.c.h.b16 %v1956
        %v2433 = vunpack.c.l.b16 %v1957
        %v2434 = vunpack.c.h.b16 %v1957
        %v2435 = vunpack.c.l.b16 %v1958
        %v2436 = vunpack.c.h.b16 %v1958
        %v2437 = vunpack.c.l.b16 %v1959
        %v2438 = vunpack.c.h.b16 %v1959
        %v2439 = vunpack.c.l.b16 %v1960
        %v2440 = vunpack.c.h.b16 %v1960
        %v2441 = vunpack.c.l.b16 %v1961
        %v2442 = vunpack.c.h.b16 %v1961
        %v2443 = vunpack.c.l.b16 %v1962
        %v2444 = vunpack.c.h.b16 %v1962
        %v2445 = vunpack.c.l.b16 %v1963
        %v2446 = vunpack.c.h.b16 %v1963
        %v2447 = vunpack.c.l.b16 %v1964
        %v2448 = vunpack.c.h.b16 %v1964
        %v2449 = vunpack.c.l.b16 %v1965
        %v2450 = vunpack.c.h.b16 %v1965
        %v2451 = vunpack.c.l.b16 %v1966
        %v2452 = vunpack.c.h.b16 %v1966
        %v2453 = vunpack.c.l.b16 %v1967
        %v2454 = vunpack.c.h.b16 %v1967
        %v2455 = vunpack.c.l.b16 %v1968
        %v2456 = vunpack.c.h.b16 %v1968
        %v2457 = vunpack.c.l.b16 %v1969
        %v2458 = vunpack.c.h.b16 %v1969
        %v2459 = vunpack.c.l.b16 %v1970
        %v2460 = vunpack.c.h.b16 %v1970
        %v2461 = vunpack.c.l.b16 %v1971
        %v2462 = vunpack.c.h.b16 %v1971
        %v2463 = vunpack.c.l.b16 %v1972
        %v2464 = vunpack.c.h.b16 %v1972
        %v2465 = vunpack.c.l.b16 %v1973
        %v2466 = vunpack.c.h.b16 %v1973
        %v2467 = vunpack.c.l.b16 %v1974
        %v2468 = vunpack.c.h.b16 %v1974
        %v2469 = vunpack.c.l.b16 %v1975
        %v2470 = vunpack.c.h.b16 %v1975
        %v2471 = vunpack.c.l.b16 %v1976
        %v2472 = vunpack.c.h.b16 %v1976
        %v2473 = vunpack.c.l.b16 %v1977
        %v2474 = vunpack.c.h.b16 %v1977
        %v2475 = vunpack.c.l.b16 %v1978
        %v2476 = vunpack.c.h.b16 %v1978
        %v2477 = vunpack.c.l.b16 %v1979
        %v2478 = vunpack.c.h.b16 %v1979
        %v2479 = vunpack.c.l.b16 %v1980
        %v2480 = vunpack.c.h.b16 %v1980
        %v2481 = vunpack.c.l.b16 %v1981
        %v2482 = vunpack.c.h.b16 %v1981
        %v2483 = vunpack.c.l.b16 %v1982
        %v2484 = vunpack.c.h.b16 %v1982
        %v2485 = vunpack.c.l.b16 %v1983
        %v2486 = vunpack.c.h.b16 %v1983
        %v2487 = vunpack.c.l.b16 %v1984
        %v2488 = vunpack.c.h.b16 %v1984
        %v2489 = vunpack.c.l.b16 %v1985
        %v2490 = vunpack.c.h.b16 %v1985
        %v2491 = vunpack.c.l.b16 %v1986
        %v2492 = vunpack.c.h.b16 %v1986
        %v2493 = vunpack.c.l.b16 %v1987
        %v2494 = vunpack.c.h.b16 %v1987
        %v2495 = vunpack.c.l.b16 %v1988
        %v2496 = vunpack.c.h.b16 %v1988
        %v2497 = vunpack.c.l.b16 %v1989
        %v2498 = vunpack.c.h.b16 %v1989
        %v2499 = vunpack.c.l.b16 %v1990
        %v2500 = vunpack.c.h.b16 %v1990
        %v2501 = vunpack.c.l.b16 %v1991
        %v2502 = vunpack.c.h.b16 %v1991
        %v2503 = vunpack.c.l.b16 %v1992
        %v2504 = vunpack.c.h.b16 %v1992
        %v2505 = vunpack.c.l.b16 %v1993
        %v2506 = vunpack.c.h.b16 %v1993
        %v2507 = vunpack.c.l.b16 %v1994
        %v2508 = vunpack.c.h.b16 %v1994
        %v2509 = vunpack.c.l.b16 %v1995
        %v2510 = vunpack.c.h.b16 %v1995
        %v2511 = vunpack.c.l.b16 %v1996
        %v2512 = vunpack.c.h.b16 %v1996
        %v2513 = vunpack.c.l.b16 %v1997
        %v2514 = vunpack.c.h.b16 %v1997
        %v2515 = vunpack.c.l.b16 %v1998
        %v2516 = vunpack.c.h.b16 %v1998
        %v2517 = vunpack.c.l.b16 %v1999
        %v2518 = vunpack.c.h.b16 %v1999
        %v2519 = vunpack.c.l.b16 %v2000
        %v2520 = vunpack.c.h.b16 %v2000
        %v2521 = vunpack.c.l.b16 %v2001
        %v2522 = vunpack.c.h.b16 %v2001
        %v2523 = vunpack.c.l.b16 %v2002
        %v2524 = vunpack.c.h.b16 %v2002
        %v2525 = vunpack.c.l.b16 %v2003
        %v2526 = vunpack.c.h.b16 %v2003
        %v2527 = vunpack.c.l.b16 %v2004
        %v2528 = vunpack.c.h.b16 %v2004
        %v2529 = vunpack.c.l.b16 %v2005
        %v2530 = vunpack.c.h.b16 %v2005
        %v2531 = vunpack.c.l.b16 %v2006
        %v2532 = vunpack.c.h.b16 %v2006
        %v2533 = vunpack.c.l.b16 %v2007
        %v2534 = vunpack.c.h.b16 %v2007
        %v2535 = vunpack.c.l.b16 %v2008
        %v2536 = vunpack.c.h.b16 %v2008
        %v2537 = vunpack.c.l.b16 %v2009
        %v2538 = vunpack.c.h.b16 %v2009
        %v2539 = vunpack.c.l.b16 %v2010
        %v2540 = vunpack.c.h.b16 %v2010
        %v2541 = vunpack.c.l.b16 %v2011
        %v2542 = vunpack.c.h.b16 %v2011
        %v2543 = vunpack.c.l.b16 %v2012
        %v2544 = vunpack.c.h.b16 %v2012
        %v2545 = vunpack.c.l.b16 %v2013
        %v2546 = vunpack.c.h.b16 %v2013
        %v2547 = vunpack.c.l.b16 %v2014
        %v2548 = vunpack.c.h.b16 %v2014
        %v2549 = vunpack.c.l.b16 %v2015
        %v2550 = vunpack.c.h.b16 %v2015
        %v2551 = vunpack.c.l.b16 %v2016
        %v2552 = vunpack.c.h.b16 %v2016
        %v2553 = vunpack.c.l.b16 %v2017
        %v2554 = vunpack.c.h.b16 %v2017
        %v2555 = vunpack.c.l.b16 %v2018
        %v2556 = vunpack.c.h.b16 %v2018
        %v2557 = vunpack.c.l.b16 %v2019
        %v2558 = vunpack.c.h.b16 %v2019
        %v2559 = vunpack.c.l.b16 %v2020
        %v2560 = vunpack.c.h.b16 %v2020
        %v2561 = vunpack.c.l.b16 %v2021
        %v2562 = vunpack.c.h.b16 %v2021
        %v2563 = vunpack.c.l.b16 %v2022
        %v2564 = vunpack.c.h.b16 %v2022
        %v2565 = vunpack.c.l.b16 %v2023
        %v2566 = vunpack.c.h.b16 %v2023
        %v2567 = vunpack.c.l.b16 %v2024
        %v2568 = vunpack.c.h.b16 %v2024
        %v2569 = vunpack.c.l.b16 %v2025
        %v2570 = vunpack.c.h.b16 %v2025
        %v2571 = vunpack.c.l.b16 %v2026
        %v2572 = vunpack.c.h.b16 %v2026
        %v2573 = vunpack.c.l.b16 %v2027
        %v2574 = vunpack.c.h.b16 %v2027
        %v2575 = vunpack.c.l.b16 %v2028
        %v2576 = vunpack.c.h.b16 %v2028
        %v2577 = vunpack.c.l.b16 %v2029
        %v2578 = vunpack.c.h.b16 %v2029
        %v2579 = vunpack.c.l.b16 %v2030
        %v2580 = vunpack.c.h.b16 %v2030
        %v2581 = vunpack.c.l.b16 %v2031
        %v2582 = vunpack.c.h.b16 %v2031
        %v2583 = vunpack.c.l.b16 %v2032
        %v2584 = vunpack.c.h.b16 %v2032
        %v2585 = vunpack.c.l.b16 %v2033
        %v2586 = vunpack.c.h.b16 %v2033
        %v2587 = vunpack.c.l.b16 %v2034
        %v2588 = vunpack.c.h.b16 %v2034
        %v2589 = vunpack.c.l.b16 %v2035
        %v2590 = vunpack.c.h.b16 %v2035
        %v2591 = vunpack.c.l.b16 %v2036
        %v2592 = vunpack.c.h.b16 %v2036
        %v2593 = vunpack.c.l.b16 %v2037
        %v2594 = vunpack.c.h.b16 %v2037
        %v2595 = vunpack.c.l.b16 %v2038
        %v2596 = vunpack.c.h.b16 %v2038
        %v2597 = vunpack.c.l.b16 %v2039
        %v2598 = vunpack.c.h.b16 %v2039
        %v2599 = vunpack.c.l.b16 %v2040
        %v2600 = vunpack.c.h.b16 %v2040
        %v2601 = vunpack.c.l.b16 %v2041
        %v2602 = vunpack.c.h.b16 %v2041
        %v2603 = vunpack.c.l.b16 %v2042
        %v2604 = vunpack.c.h.b16 %v2042
        %v2605 = vunpack.c.l.b16 %v2043
        %v2606 = vunpack.c.h.b16 %v2043
        %v2607 = vunpack.c.l.b16 %v2044
        %v2608 = vunpack.c.h.b16 %v2044
        %v2609 = vunpack.c.l.b16 %v2045
        %v2610 = vunpack.c.h.b16 %v2045
        %v2611 = vunpack.c.l.b16 %v2046
        %v2612 = vunpack.c.h.b16 %v2046
        %v2613 = vunpack.c.l.b16 %v2047
        %v2614 = vunpack.c.h.b16 %v2047
        %v2615 = vunpack.c.l.b16 %v2048
        %v2616 = vunpack.c.h.b16 %v2048
        %v2617 = vunpack.c.l.b16 %v2049
        %v2618 = vunpack.c.h.b16 %v2049
        %v2619 = vunpack.c.l.b16 %v2050
        %v2620 = vunpack.c.h.b16 %v2050
        %v2621 = vunpack.c.l.b16 %v2051
        %v2622 = vunpack.c.h.b16 %v2051
        %v2623 = vunpack.c.l.b16 %v2052
        %v2624 = vunpack.c.h.b16 %v2052
        %v2625 = vunpack.c.l.b16 %v2053
        %v2626 = vunpack.c.h.b16 %v2053
        %v2627 = vunpack.c.l.b16 %v2054
        %v2628 = vunpack.c.h.b16 %v2054
        %v2629 = vunpack.c.l.b16 %v2055
        %v2630 = vunpack.c.h.b16 %v2055
        %v2631 = vunpack.c.l.b16 %v2056
        %v2632 = vunpack.c.h.b16 %v2056
        %v2633 = vunpack.c.l.b16 %v2057
        %v2634 = vunpack.c.h.b16 %v2057
        %v2635 = vunpack.c.l.b16 %v2058
        %v2636 = vunpack.c.h.b16 %v2058
        %v2637 = vunpack.c.l.b16 %v2059
        %v2638 = vunpack.c.h.b16 %v2059
        %v2639 = vunpack.c.l.b16 %v2060
        %v2640 = vunpack.c.h.b16 %v2060
        %v2641 = vunpack.c.l.b16 %v2061
        %v2642 = vunpack.c.h.b16 %v2061
        %v2643 = vunpack.c.l.b16 %v2062
        %v2644 = vunpack.c.h.b16 %v2062
        %v2645 = vunpack.c.l.b16 %v2063
        %v2646 = vunpack.c.h.b16 %v2063
        %v2647 = vunpack.c.l.b16 %v2064
        %v2648 = vunpack.c.h.b16 %v2064
        %v2649 = vunpack.c.l.b16 %v2065
        %v2650 = vunpack.c.h.b16 %v2065
        %v2651 = vunpack.c.l.b16 %v2066
        %v2652 = vunpack.c.h.b16 %v2066
        %v2653 = vunpack.c.l.b16 %v2067
        %v2654 = vunpack.c.h.b16 %v2067
        %v2655 = vunpack.c.l.b16 %v2068
        %v2656 = vunpack.c.h.b16 %v2068
        %v2657 = vunpack.c.l.b16 %v2069
        %v2658 = vunpack.c.h.b16 %v2069
        %v2659 = vunpack.c.l.b16 %v2070
        %v2660 = vunpack.c.h.b16 %v2070
        %v2661 = vunpack.c.l.b16 %v2071
        %v2662 = vunpack.c.h.b16 %v2071
        %v2663 = vunpack.c.l.b16 %v2072
        %v2664 = vunpack.c.h.b16 %v2072
        %v2665 = vunpack.c.l.b16 %v2073
        %v2666 = vunpack.c.h.b16 %v2073
        %v2667 = vunpack.c.l.b16 %v2074
        %v2668 = vunpack.c.h.b16 %v2074
        %v2669 = vunpack.c.l.b16 %v2075
        %v2670 = vunpack.c.h.b16 %v2075
        %v2671 = vunpack.c.l.b16 %v2076
        %v2672 = vunpack.c.h.b16 %v2076
        %v2673 = vunpack.c.l.b16 %v2077
        %v2674 = vunpack.c.h.b16 %v2077
        %v2675 = vunpack.c.l.b16 %v2078
        %v2676 = vunpack.c.h.b16 %v2078
        %v2677 = vunpack.c.l.b16 %v2079
        %v2678 = vunpack.c.h.b16 %v2079
        %v2679 = vunpack.c.l.b16 %v2080
        %v2680 = vunpack.c.h.b16 %v2080
        %v2681 = vunpack.c.l.b16 %v2081
        %v2682 = vunpack.c.h.b16 %v2081
        %v2683 = vunpack.c.l.b16 %v2082
        %v2684 = vunpack.c.h.b16 %v2082
        %v2685 = vunpack.c.l.b16 %v2083
        %v2686 = vunpack.c.h.b16 %v2083
        %v2687 = vunpack.c.l.b16 %v2084
        %v2688 = vunpack.c.h.b16 %v2084
        %v2689 = vunpack.c.l.b16 %v2085
        %v2690 = vunpack.c.h.b16 %v2085
        %v2691 = vunpack.c.l.b16 %v2086
        %v2692 = vunpack.c.h.b16 %v2086
        %v2693 = vunpack.c.l.b16 %v2087
        %v2694 = vunpack.c.h.b16 %v2087
        %v2695 = vunpack.c.l.b16 %v2088
        %v2696 = vunpack.c.h.b16 %v2088
        %v2697 = vpack.c.b16 %v2319, %v2313
        %v2698 = vpack.c.b16 %v2320, %v2314
        %v2699 = vpack.c.b16 %v2321, %v2315
        %v2700 = vpack.c.b16 %v2322, %v2316
        %v2701 = vpack.c.b16 %v2323, %v2317
        %v2702 = vpack.c.b16 %v2324, %v2318
        %v2703 = vpack.c.b16 %v2331, %v2325
        %v2704 = vpack.c.b16 %v2332, %v2326
        %v2705 = vpack.c.b16 %v2333, %v2327
        %v2706 = vpack.c.b16 %v2334, %v2328
        %v2707 = vpack.c.b16 %v2335, %v2329
        %v2708 = vpack.c.b16 %v2336, %v2330
        %v2709 = vpack.c.b16 %v2343, %v2337
        %v2710 = vpack.c.b16 %v2344, %v2338
        %v2711 = vpack.c.b16 %v2345, %v2339
        %v2712 = vpack.c.b16 %v2346, %v2340
        %v2713 = vpack.c.b16 %v2347, %v2341
        %v2714 = vpack.c.b16 %v2348, %v2342
        %v2715 = vpack.c.b16 %v2355, %v2349
        %v2716 = vpack.c.b16 %v2356, %v2350
        %v2717 = vpack.c.b16 %v2357, %v2351
        %v2718 = vpack.c.b16 %v2358, %v2352
        %v2719 = vpack.c.b16 %v2359, %v2353
        %v2720 = vpack.c.b16 %v2360, %v2354
        %v2721 = vpack.c.b16 %v2367, %v2361
        %v2722 = vpack.c.b16 %v2368, %v2362
        %v2723 = vpack.c.b16 %v2369, %v2363
        %v2724 = vpack.c.b16 %v2370, %v2364
        %v2725 = vpack.c.b16 %v2371, %v2365
        %v2726 = vpack.c.b16 %v2372, %v2366
        %v2727 = vpack.c.b16 %v2379, %v2373
        %v2728 = vpack.c.b16 %v2380, %v2374
        %v2729 = vpack.c.b16 %v2381, %v2375
        %v2730 = vpack.c.b16 %v2382, %v2376
        %v2731 = vpack.c.b16 %v2383, %v2377
        %v2732 = vpack.c.b16 %v2384, %v2378
        %v2733 = vpack.c.b16 %v2391, %v2385
        %v2734 = vpack.c.b16 %v2392, %v2386
        %v2735 = vpack.c.b16 %v2393, %v2387
        %v2736 = vpack.c.b16 %v2394, %v2388
        %v2737 = vpack.c.b16 %v2395, %v2389
        %v2738 = vpack.c.b16 %v2396, %v2390
        %v2739 = vpack.c.b16 %v2403, %v2397
        %v2740 = vpack.c.b16 %v2404, %v2398
        %v2741 = vpack.c.b16 %v2405, %v2399
        %v2742 = vpack.c.b16 %v2406, %v2400
        %v2743 = vpack.c.b16 %v2407, %v2401
        %v2744 = vpack.c.b16 %v2408, %v2402
        %v2745 = vpack.c.b16 %v2415, %v2409
        %v2746 = vpack.c.b16 %v2416, %v2410
        %v2747 = vpack.c.b16 %v2417, %v2411
        %v2748 = vpack.c.b16 %v2418, %v2412
        %v2749 = vpack.c.b16 %v2419, %v2413
        %v2750 = vpack.c.b16 %v2420, %v2414
        %v2751 = vpack.c.b16 %v2427, %v2421
        %v2752 = vpack.c.b16 %v2428, %v2422
        %v2753 = vpack.c.b16 %v2429, %v2423
        %v2754 = vpack.c.b16 %v2430, %v2424
        %v2755 = vpack.c.b16 %v2431, %v2425
        %v2756 = vpack.c.b16 %v2432, %v2426
        %v2757 = vpack.c.b16 %v2439, %v2433
        %v2758 = vpack.c.b16 %v2440, %v2434
        %v2759 = vpack.c.b16 %v2441, %v2435
        %v2760 = vpack.c.b16 %v2442, %v2436
        %v2761 = vpack.c.b16 %v2443, %v2437
        %v2762 = vpack.c.b16 %v2444, %v2438
        %v2763 = vpack.c.b16 %v2451, %v2445
        %v2764 = vpack.c.b16 %v2452, %v2446
        %v2765 = vpack.c.b16 %v2453, %v2447
        %v2766 = vpack.c.b16 %v2454, %v2448
        %v2767 = vpack.c.b16 %v2455, %v2449
        %v2768 = vpack.c.b16 %v2456, %v2450
        %v2769 = vpack.c.b16 %v2463, %v2457
        %v2770 = vpack.c.b16 %v2464, %v2458
        %v2771 = vpack.c.b16 %v2465, %v2459
        %v2772 = vpack.c.b16 %v2466, %v2460
        %v2773 = vpack.c.b16 %v2467, %v2461
        %v2774 = vpack.c.b16 %v2468, %v2462
        %v2775 = vpack.c.b16 %v2475, %v2469
        %v2776 = vpack.c.b16 %v2476, %v2470
        %v2777 = vpack.c.b16 %v2477, %v2471
        %v2778 = vpack.c.b16 %v2478, %v2472
        %v2779 = vpack.c.b16 %v2479, %v2473
        %v2780 = vpack.c.b16 %v2480, %v2474
        %v2781 = vpack.c.b16 %v2487, %v2481
        %v2782 = vpack.c.b16 %v2488, %v2482
        %v2783 = vpack.c.b16 %v2489, %v2483
        %v2784 = vpack.c.b16 %v2490, %v2484
        %v2785 = vpack.c.b16 %v2491, %v2485
        %v2786 = vpack.c.b16 %v2492, %v2486
        %v2787 = vpack.c.b16 %v2499, %v2493
        %v2788 = vpack.c.b16 %v2500, %v2494
        %v2789 = vpack.c.b16 %v2501, %v2495
        %v2790 = vpack.c.b16 %v2502, %v2496
        %v2791 = vpack.c.b16 %v2503, %v2497
        %v2792 = vpack.c.b16 %v2504, %v2498
        %v2793 = vpack.c.b16 %v2511, %v2505
        %v2794 = vpack.c.b16 %v2512, %v2506
        %v2795 = vpack.c.b16 %v2513, %v2507
        %v2796 = vpack.c.b16 %v2514, %v2508
        %v2797 = vpack.c.b16 %v2515, %v2509
        %v2798 = vpack.c.b16 %v2516, %v2510
        %v2799 = vpack.c.b16 %v2523, %v2517
        %v2800 = vpack.c.b16 %v2524, %v2518
        %v2801 = vpack.c.b16 %v2525, %v2519
        %v2802 = vpack.c.b16 %v2526, %v2520
        %v2803 = vpack.c.b16 %v2527, %v2521
        %v2804 = vpack.c.b16 %v2528, %v2522
        %v2805 = vpack.c.b16 %v2535, %v2529
        %v2806 = vpack.c.b16 %v2536, %v2530
        %v2807 = vpack.c.b16 %v2537, %v2531
        %v2808 = vpack.c.b16 %v2538, %v2532
        %v2809 = vpack.c.b16 %v2539, %v2533
        %v2810 = vpack.c.b16 %v2540, %v2534
        %v2811 = vpack.c.b16 %v2547, %v2541
        %v2812 = vpack.c.b16 %v2548, %v2542
        %v2813 = vpack.c.b16 %v2549, %v2543
        %v2814 = vpack.c.b16 %v2550, %v2544
        %v2815 = vpack.c.b16 %v2551, %v2545
        %v2816 = vpack.c.b16 %v2552, %v2546
        %v2817 = vpack.c.b16 %v2559, %v2553
        %v2818 = vpack.c.b16 %v2560, %v2554
        %v2819 = vpack.c.b16 %v2561, %v2555
        %v2820 = vpack.c.b16 %v2562, %v2556
        %v2821 = vpack.c.b16 %v2563, %v2557
        %v2822 = vpack.c.b16 %v2564, %v2558
        %v2823 = vpack.c.b16 %v2571, %v2565
        %v2824 = vpack.c.b16 %v2572, %v2566
        %v2825 = vpack.c.b16 %v2573, %v2567
        %v2826 = vpack.c.b16 %v2574, %v2568
        %v2827 = vpack.c.b16 %v2575, %v2569
        %v2828 = vpack.c.b16 %v2576, %v2570
        %v2829 = vpack.c.b16 %v2583, %v2577
        %v2830 = vpack.c.b16 %v2584, %v2578
        %v2831 = vpack.c.b16 %v2585, %v2579
        %v2832 = vpack.c.b16 %v2586, %v2580
        %v2833 = vpack.c.b16 %v2587, %v2581
        %v2834 = vpack.c.b16 %v2588, %v2582
        %v2835 = vpack.c.b16 %v2595, %v2589
        %v2836 = vpack.c.b16 %v2596, %v2590
        %v2837 = vpack.c.b16 %v2597, %v2591
        %v2838 = vpack.c.b16 %v2598, %v2592
        %v2839 = vpack.c.b16 %v2599, %v2593
        %v2840 = vpack.c.b16 %v2600, %v2594
        %v2841 = vpack.c.b16 %v2607, %v2601
        %v2842 = vpack.c.b16 %v2608, %v2602
        %v2843 = vpack.c.b16 %v2609, %v2603
        %v2844 = vpack.c.b16 %v2610, %v2604
        %v2845 = vpack.c.b16 %v2611, %v2605
        %v2846 = vpack.c.b16 %v2612, %v2606
        %v2847 = vpack.c.b16 %v2619, %v2613
        %v2848 = vpack.c.b16 %v2620, %v2614
        %v2849 = vpack.c.b16 %v2621, %v2615
        %v2850 = vpack.c.b16 %v2622, %v2616
        %v2851 = vpack.c.b16 %v2623, %v2617
        %v2852 = vpack.c.b16 %v2624, %v2618
        %v2853 = vpack.c.b16 %v2631, %v2625
        %v2854 = vpack.c.b16 %v2632, %v2626
        %v2855 = vpack.c.b16 %v2633, %v2627
        %v2856 = vpack.c.b16 %v2634, %v2628
        %v2857 = vpack.c.b16 %v2635, %v2629
        %v2858 = vpack.c.b16 %v2636, %v2630
        %v2859 = vpack.c.b16 %v2643, %v2637
        %v2860 = vpack.c.b16 %v2644, %v2638
        %v2861 = vpack.c.b16 %v2645, %v2639
        %v2862 = vpack.c.b16 %v2646, %v2640
        %v2863 = vpack.c.b16 %v2647, %v2641
        %v2864 = vpack.c.b16 %v2648, %v2642
        %v2865 = vpack.c.b16 %v2655, %v2649
        %v2866 = vpack.c.b16 %v2656, %v2650
        %v2867 = vpack.c.b16 %v2657, %v2651
        %v2868 = vpack.c.b16 %v2658, %v2652
        %v2869 = vpack.c.b16 %v2659, %v2653
        %v2870 = vpack.c.b16 %v2660, %v2654
        %v2871 = vpack.c.b16 %v2667, %v2661
        %v2872 = vpack.c.b16 %v2668, %v2662
        %v2873 = vpack.c.b16 %v2669, %v2663
        %v2874 = vpack.c.b16 %v2670, %v2664
        %v2875 = vpack.c.b16 %v2671, %v2665
        %v2876 = vpack.c.b16 %v2672, %v2666
        %v2877 = vpack.c.b16 %v2679, %v2673
        %v2878 = vpack.c.b16 %v2680, %v2674
        %v2879 = vpack.c.b16 %v2681, %v2675
        %v2880 = vpack.c.b16 %v2682, %v2676
        %v2881 = vpack.c.b16 %v2683, %v2677
        %v2882 = vpack.c.b16 %v2684, %v2678
        %v2883 = vpack.c.b16 %v2691, %v2685
        %v2884 = vpack.c.b16 %v2692, %v2686
        %v2885 = vpack.c.b16 %v2693, %v2687
        %v2886 = vpack.c.b16 %v2694, %v2688
        %v2887 = vpack.c.b16 %v2695, %v2689
        %v2888 = vpack.c.b16 %v2696, %v2690
        %3081 = vmatprep.subr.bf16.mxu0 %v2740
        %3082 = vmatpush1.bf16.msra.mxu0 %v2739
        %3083 = vmatprep.subr.bf16.mxu0 %v2734
        %3084 = vmatpush1.bf16.msra.mxu0 %v2733
        %3085 = vmatprep.subr.bf16.mxu0 %v2728
        %3086 = vmatpush1.bf16.msra.mxu0 %v2727
        %3087 = vmatprep.subr.bf16.mxu0 %v2722
        %3088 = vmatpush1.bf16.msra.mxu0 %v2721
        %3089 = vmatprep.subr.bf16.mxu0 %v2716
        %3090 = vmatpush1.bf16.msra.mxu0 %v2715
        %3091 = vmatprep.subr.bf16.mxu0 %v2710
        %3092 = vmatpush1.bf16.msra.mxu0 %v2709
        %3093 = vmatprep.subr.bf16.mxu0 %v2704
        %3094 = vmatpush1.bf16.msra.mxu0 %v2703
        %3095 = vmatprep.subr.bf16.mxu0 %v2698
        %3096 = vmatpush1.bf16.msra.mxu0 %v2697
        %3097 = vmatprep.subr.bf16.mxu0 %v2788
        %3098 = vmatpush2.bf16.msra.mxu0 %v2787
        %3099 = vmatprep.subr.bf16.mxu0 %v2782
        %3100 = vmatpush2.bf16.msra.mxu0 %v2781
        %3101 = vmatprep.subr.bf16.mxu0 %v2776
        %3102 = vmatpush2.bf16.msra.mxu0 %v2775
        %3103 = vmatprep.subr.bf16.mxu0 %v2770
        %3104 = vmatpush2.bf16.msra.mxu0 %v2769
        %3105 = vmatprep.subr.bf16.mxu0 %v2764
        %3106 = vmatpush2.bf16.msra.mxu0 %v2763
        %3107 = vmatprep.subr.bf16.mxu0 %v2758
        %3108 = vmatpush2.bf16.msra.mxu0 %v2757
        %3109 = vmatprep.subr.bf16.mxu0 %v2752
        %3110 = vmatpush2.bf16.msra.mxu0 %v2751
        %3111 = vmatprep.subr.bf16.mxu0 %v2746
        %3112 = vmatpush2.bf16.msra.mxu0 %v2745
        %3113 = vmatprep.mubr.bf16.mxu0 %v1894
        %3114 = vmatmul.mubr.bf16.gmra.mxu0 %v1893
        %v3115 = vpop.f32.mrf.mxu0
        %v3116 = vadd.f32 %v2094, %v3115
        %v3117 = vpop.f32.mrf.mxu0
        %v3118 = vadd.f32 %v2098, %v3117
        %v3119 = vpop.f32.mrf.mxu0
        %v3120 = vpop.f32.mrf.mxu0
        %3121 = vdwg.mxu0
        %3122 = vmatprep.subr.bf16.mxu0 %v2836
        %3123 = vmatpush1.bf16.msra.mxu0 %v2835
        %3124 = vmatprep.subr.bf16.mxu0 %v2830
        %3125 = vmatpush1.bf16.msra.mxu0 %v2829
        %3126 = vmatprep.subr.bf16.mxu0 %v2824
        %3127 = vmatpush1.bf16.msra.mxu0 %v2823
        %3128 = vmatprep.subr.bf16.mxu0 %v2818
        %3129 = vmatpush1.bf16.msra.mxu0 %v2817
        %3130 = vmatprep.subr.bf16.mxu0 %v2812
        %3131 = vmatpush1.bf16.msra.mxu0 %v2811
        %3132 = vmatprep.subr.bf16.mxu0 %v2806
        %3133 = vmatpush1.bf16.msra.mxu0 %v2805
        %3134 = vmatprep.subr.bf16.mxu0 %v2800
        %3135 = vmatpush1.bf16.msra.mxu0 %v2799
        %3136 = vmatprep.subr.bf16.mxu0 %v2794
        %3137 = vmatpush1.bf16.msra.mxu0 %v2793
        %3138 = vmatprep.subr.bf16.mxu0 %v2884
        %3139 = vmatpush2.bf16.msra.mxu0 %v2883
        %3140 = vmatprep.subr.bf16.mxu0 %v2878
        %3141 = vmatpush2.bf16.msra.mxu0 %v2877
        %3142 = vmatprep.subr.bf16.mxu0 %v2872
        %3143 = vmatpush2.bf16.msra.mxu0 %v2871
        %3144 = vmatprep.subr.bf16.mxu0 %v2866
        %3145 = vmatpush2.bf16.msra.mxu0 %v2865
        %3146 = vmatprep.subr.bf16.mxu0 %v2860
        %3147 = vmatpush2.bf16.msra.mxu0 %v2859
        %3148 = vmatprep.subr.bf16.mxu0 %v2854
        %3149 = vmatpush2.bf16.msra.mxu0 %v2853
        %3150 = vmatprep.subr.bf16.mxu0 %v2848
        %3151 = vmatpush2.bf16.msra.mxu0 %v2847
        %3152 = vmatprep.subr.bf16.mxu0 %v2842
        %3153 = vmatpush2.bf16.msra.mxu0 %v2841
        %3154 = vmatprep.mubr.bf16.mxu0 %v1896
        %3155 = vmatmul.mubr.bf16.gmra.mxu0 %v1895
        %v3156 = vpop.f32.mrf.mxu0
        %v3157 = vadd.f32 %v3116, %v3156
        %v3158 = vpop.f32.mrf.mxu0
        %v3159 = vadd.f32 %v3118, %v3158
        %v3160 = vpop.f32.mrf.mxu0
        %v3161 = vpop.f32.mrf.mxu0
        %3162 = vdwg.mxu0
        %3163 = vmatprep.subr.bf16.mxu0 %v2742
        %3164 = vmatpush1.bf16.msra.mxu0 %v2741
        %3165 = vmatprep.subr.bf16.mxu0 %v2736
        %3166 = vmatpush1.bf16.msra.mxu0 %v2735
        %3167 = vmatprep.subr.bf16.mxu0 %v2730
        %3168 = vmatpush1.bf16.msra.mxu0 %v2729
        %3169 = vmatprep.subr.bf16.mxu0 %v2724
        %3170 = vmatpush1.bf16.msra.mxu0 %v2723
        %3171 = vmatprep.subr.bf16.mxu0 %v2718
        %3172 = vmatpush1.bf16.msra.mxu0 %v2717
        %3173 = vmatprep.subr.bf16.mxu0 %v2712
        %3174 = vmatpush1.bf16.msra.mxu0 %v2711
        %3175 = vmatprep.subr.bf16.mxu0 %v2706
        %3176 = vmatpush1.bf16.msra.mxu0 %v2705
        %3177 = vmatprep.subr.bf16.mxu0 %v2700
        %3178 = vmatpush1.bf16.msra.mxu0 %v2699
        %3179 = vmatprep.subr.bf16.mxu0 %v2790
        %3180 = vmatpush2.bf16.msra.mxu0 %v2789
        %3181 = vmatprep.subr.bf16.mxu0 %v2784
        %3182 = vmatpush2.bf16.msra.mxu0 %v2783
        %3183 = vmatprep.subr.bf16.mxu0 %v2778
        %3184 = vmatpush2.bf16.msra.mxu0 %v2777
        %3185 = vmatprep.subr.bf16.mxu0 %v2772
        %3186 = vmatpush2.bf16.msra.mxu0 %v2771
        %3187 = vmatprep.subr.bf16.mxu0 %v2766
        %3188 = vmatpush2.bf16.msra.mxu0 %v2765
        %3189 = vmatprep.subr.bf16.mxu0 %v2760
        %3190 = vmatpush2.bf16.msra.mxu0 %v2759
        %3191 = vmatprep.subr.bf16.mxu0 %v2754
        %3192 = vmatpush2.bf16.msra.mxu0 %v2753
        %3193 = vmatprep.subr.bf16.mxu0 %v2748
        %3194 = vmatpush2.bf16.msra.mxu0 %v2747
        %3195 = vmatprep.mubr.bf16.mxu0 %v1894
        %3196 = vmatmul.mubr.bf16.gmra.mxu0 %v1893
        %v3197 = vpop.f32.mrf.mxu0
        %v3198 = vadd.f32 %v2102, %v3197
        %v3199 = vpop.f32.mrf.mxu0
        %v3200 = vadd.f32 %v2106, %v3199
        %v3201 = vpop.f32.mrf.mxu0
        %v3202 = vpop.f32.mrf.mxu0
        %3203 = vdwg.mxu0
        %3204 = vmatprep.subr.bf16.mxu0 %v2838
        %3205 = vmatpush1.bf16.msra.mxu0 %v2837
        %3206 = vmatprep.subr.bf16.mxu0 %v2832
        %3207 = vmatpush1.bf16.msra.mxu0 %v2831
        %3208 = vmatprep.subr.bf16.mxu0 %v2826
        %3209 = vmatpush1.bf16.msra.mxu0 %v2825
        %3210 = vmatprep.subr.bf16.mxu0 %v2820
        %3211 = vmatpush1.bf16.msra.mxu0 %v2819
        %3212 = vmatprep.subr.bf16.mxu0 %v2814
        %3213 = vmatpush1.bf16.msra.mxu0 %v2813
        %3214 = vmatprep.subr.bf16.mxu0 %v2808
        %3215 = vmatpush1.bf16.msra.mxu0 %v2807
        %3216 = vmatprep.subr.bf16.mxu0 %v2802
        %3217 = vmatpush1.bf16.msra.mxu0 %v2801
        %3218 = vmatprep.subr.bf16.mxu0 %v2796
        %3219 = vmatpush1.bf16.msra.mxu0 %v2795
        %3220 = vmatprep.subr.bf16.mxu0 %v2886
        %3221 = vmatpush2.bf16.msra.mxu0 %v2885
        %3222 = vmatprep.subr.bf16.mxu0 %v2880
        %3223 = vmatpush2.bf16.msra.mxu0 %v2879
        %3224 = vmatprep.subr.bf16.mxu0 %v2874
        %3225 = vmatpush2.bf16.msra.mxu0 %v2873
        %3226 = vmatprep.subr.bf16.mxu0 %v2868
        %3227 = vmatpush2.bf16.msra.mxu0 %v2867
        %3228 = vmatprep.subr.bf16.mxu0 %v2862
        %3229 = vmatpush2.bf16.msra.mxu0 %v2861
        %3230 = vmatprep.subr.bf16.mxu0 %v2856
        %3231 = vmatpush2.bf16.msra.mxu0 %v2855
        %3232 = vmatprep.subr.bf16.mxu0 %v2850
        %3233 = vmatpush2.bf16.msra.mxu0 %v2849
        %3234 = vmatprep.subr.bf16.mxu0 %v2844
        %3235 = vmatpush2.bf16.msra.mxu0 %v2843
        %3236 = vmatprep.mubr.bf16.mxu0 %v1896
        %3237 = vmatmul.mubr.bf16.gmra.mxu0 %v1895
        %v3238 = vpop.f32.mrf.mxu0
        %v3239 = vadd.f32 %v3198, %v3238
        %v3240 = vpop.f32.mrf.mxu0
        %v3241 = vadd.f32 %v3200, %v3240
        %v3242 = vpop.f32.mrf.mxu0
        %v3243 = vpop.f32.mrf.mxu0
        %3244 = vdwg.mxu0
        %3245 = vmatprep.subr.bf16.mxu0 %v2744
        %3246 = vmatpush1.bf16.msra.mxu0 %v2743
        %3247 = vmatprep.subr.bf16.mxu0 %v2738
        %3248 = vmatpush1.bf16.msra.mxu0 %v2737
        %3249 = vmatprep.subr.bf16.mxu0 %v2732
        %3250 = vmatpush1.bf16.msra.mxu0 %v2731
        %3251 = vmatprep.subr.bf16.mxu0 %v2726
        %3252 = vmatpush1.bf16.msra.mxu0 %v2725
        %3253 = vmatprep.subr.bf16.mxu0 %v2720
        %3254 = vmatpush1.bf16.msra.mxu0 %v2719
        %3255 = vmatprep.subr.bf16.mxu0 %v2714
        %3256 = vmatpush1.bf16.msra.mxu0 %v2713
        %3257 = vmatprep.subr.bf16.mxu0 %v2708
        %3258 = vmatpush1.bf16.msra.mxu0 %v2707
        %3259 = vmatprep.subr.bf16.mxu0 %v2702
        %3260 = vmatpush1.bf16.msra.mxu0 %v2701
        %3261 = vmatprep.subr.bf16.mxu0 %v2792
        %3262 = vmatpush2.bf16.msra.mxu0 %v2791
        %3263 = vmatprep.subr.bf16.mxu0 %v2786
        %3264 = vmatpush2.bf16.msra.mxu0 %v2785
        %3265 = vmatprep.subr.bf16.mxu0 %v2780
        %3266 = vmatpush2.bf16.msra.mxu0 %v2779
        %3267 = vmatprep.subr.bf16.mxu0 %v2774
        %3268 = vmatpush2.bf16.msra.mxu0 %v2773
        %3269 = vmatprep.subr.bf16.mxu0 %v2768
        %3270 = vmatpush2.bf16.msra.mxu0 %v2767
        %3271 = vmatprep.subr.bf16.mxu0 %v2762
        %3272 = vmatpush2.bf16.msra.mxu0 %v2761
        %3273 = vmatprep.subr.bf16.mxu0 %v2756
        %3274 = vmatpush2.bf16.msra.mxu0 %v2755
        %3275 = vmatprep.subr.bf16.mxu0 %v2750
        %3276 = vmatpush2.bf16.msra.mxu0 %v2749
        %3277 = vmatprep.mubr.bf16.mxu0 %v1894
        %3278 = vmatmul.mubr.bf16.gmra.mxu0 %v1893
        %v3279 = vpop.f32.mrf.mxu0
        %v3280 = vadd.f32 %v2110, %v3279
        %v3281 = vpop.f32.mrf.mxu0
        %v3282 = vadd.f32 %v2114, %v3281
        %v3283 = vpop.f32.mrf.mxu0
        %v3284 = vpop.f32.mrf.mxu0
        %3285 = vdwg.mxu0
        %3286 = vmatprep.subr.bf16.mxu0 %v2840
        %3287 = vmatpush1.bf16.msra.mxu0 %v2839
        %3288 = vmatprep.subr.bf16.mxu0 %v2834
        %3289 = vmatpush1.bf16.msra.mxu0 %v2833
        %3290 = vmatprep.subr.bf16.mxu0 %v2828
        %3291 = vmatpush1.bf16.msra.mxu0 %v2827
        %3292 = vmatprep.subr.bf16.mxu0 %v2822
        %3293 = vmatpush1.bf16.msra.mxu0 %v2821
        %3294 = vmatprep.subr.bf16.mxu0 %v2816
        %3295 = vmatpush1.bf16.msra.mxu0 %v2815
        %3296 = vmatprep.subr.bf16.mxu0 %v2810
        %3297 = vmatpush1.bf16.msra.mxu0 %v2809
        %3298 = vmatprep.subr.bf16.mxu0 %v2804
        %3299 = vmatpush1.bf16.msra.mxu0 %v2803
        %3300 = vmatprep.subr.bf16.mxu0 %v2798
        %3301 = vmatpush1.bf16.msra.mxu0 %v2797
        %3302 = vmatprep.subr.bf16.mxu0 %v2888
        %3303 = vmatpush2.bf16.msra.mxu0 %v2887
        %3304 = vmatprep.subr.bf16.mxu0 %v2882
        %3305 = vmatpush2.bf16.msra.mxu0 %v2881
        %3306 = vmatprep.subr.bf16.mxu0 %v2876
        %3307 = vmatpush2.bf16.msra.mxu0 %v2875
        %3308 = vmatprep.subr.bf16.mxu0 %v2870
        %3309 = vmatpush2.bf16.msra.mxu0 %v2869
        %3310 = vmatprep.subr.bf16.mxu0 %v2864
        %3311 = vmatpush2.bf16.msra.mxu0 %v2863
        %3312 = vmatprep.subr.bf16.mxu0 %v2858
        %3313 = vmatpush2.bf16.msra.mxu0 %v2857
        %3314 = vmatprep.subr.bf16.mxu0 %v2852
        %3315 = vmatpush2.bf16.msra.mxu0 %v2851
        %3316 = vmatprep.subr.bf16.mxu0 %v2846
        %3317 = vmatpush2.bf16.msra.mxu0 %v2845
        %3318 = vmatprep.mubr.bf16.mxu0 %v1896
        %3319 = vmatmul.mubr.bf16.gmra.mxu0 %v1895
        %v3320 = vpop.f32.mrf.mxu0
        %v3321 = vadd.f32 %v3280, %v3320
        %v3322 = vpop.f32.mrf.mxu0
        %v3323 = vadd.f32 %v3282, %v3322
        %v3324 = vpop.f32.mrf.mxu0
        %v3325 = vpop.f32.mrf.mxu0
        %3326 = vdwg.mxu0
        %v3327 = vld [vmem:[%s435] sm:$0xff]
        %3329 = vset.pattern.permute.xlu0 0
        %3330 = vperm.xlu0 %3329, %v3327
        %v3331 = vpop.permute.xlu0 %3330
        %v3333 = vmul.f32 %v3331, %v3157
        %v3334 = vmul.f32 %v3331, %v3159
        %v3335 = vmul.f32 %v3331, %v3239
        %v3336 = vmul.f32 %v3331, %v3241
        %v3337 = vmul.f32 %v3331, %v3321
        %v3338 = vmul.f32 %v3331, %v3323
        %v3339 = vpack.c.bf16 %v3333, %v3333
        %v3340 = vpack.c.bf16 %v3334, %v3334
        %v3341 = vpack.c.bf16 %v3335, %v3335
        %v3342 = vpack.c.bf16 %v3336, %v3336
        %v3343 = vpack.c.bf16 %v3337, %v3337
        %v3344 = vpack.c.bf16 %v3338, %v3338
        %v3351 = vunpack.c.l.b16 %v3339
        %v3352 = vunpack.c.l.b16 %v3340
        %v3353 = vunpack.c.l.b16 %v3341
        %v3354 = vunpack.c.l.b16 %v3342
        %v3355 = vunpack.c.l.b16 %v3343
        %v3356 = vunpack.c.l.b16 %v3344
        %v3357 = vpack.c.b16 %v3352, %v3351
        %v3358 = vpack.c.b16 %v3354, %v3353
        %v3359 = vpack.c.b16 %v3356, %v3355
        %3363 = vst [vmem:[%s444] sm:$0xff] %v3357
        %3364 = vst [vmem:[%s444 + $0x8] sm:$0xff] %v3358
        %3365 = vst [vmem:[%s444 + $0x10] sm:$0xff] %v3359
        %p3366 = scmp.lt.s32.totalorder %s33, 5
        %s3367 = scalar_select %p3366, %s33, 5
        %s3368 = smul.addr %s3367, 6
        %s3369 = smul.addr %s3368, 4
        %s3370 = scalar_lea.vmem %s7, %s3369
        // Predicated region
        $region61: #{switch_transformer_forward.6} parent=43 // pred_check
          %p3371 = pneg %p215
        $region62: #{switch_transformer_forward.6} parent=43 // pred_check_branch
          %3373 = sbr.rel (%p3371) target = $region64
        $region63: #{switch_transformer_forward.6} parent=43 // pred_region
          _
        $region64: #{switch_transformer_forward.6} parent=43 // pred_fallthru
          _
      $region44: #{switch_transformer_forward.6} parent=5 // pred_fallthru
        _
      %p3374 = scmp.le.s32.totalorder 2, %s28
      // Predicated region
      $region65: #{switch_transformer_forward.6} parent=5 // pred_check
        %p3375 = pneg %p3374
      $region66: #{switch_transformer_forward.6} parent=5 // pred_check_branch
        %3377 = sbr.rel (%p3375) target = $region68
      $region67: #{switch_transformer_forward.6} parent=5 // pred_region
        %s3378 = ssub.s32 %s28, 2
        // Predicated region
        $region69: #{switch_transformer_forward.6} parent=67 // pred_check
          %p3379 = pneg %p221
        $region70: #{switch_transformer_forward.6} parent=67 // pred_check_branch
          %3381 = sbr.rel (%p3379) target = $region72
        $region71: #{switch_transformer_forward.6} parent=67 // pred_region
          %p3382 = scmp.lt.s32.totalorder %s34, 5
          %s3383 = scalar_select %p3382, %s34, 5
          %s3384 = smul.addr %s3383, 6
          %s3385 = smul.addr %s3384, 4
          %s3386 = scalar_lea.vmem %s7, %s3385
        $region72: #{switch_transformer_forward.6} parent=67 // pred_fallthru
          _
      $region68: #{switch_transformer_forward.6} parent=5 // pred_fallthru
        _
    $region6: #{switch_transformer_forward.6} parent=1 // loop_footer
      %s32 = sadd.s32 1, %s28
    $region7: #{switch_transformer_forward.6} parent=1 // loop_footer_branch
      %27 = sbr.rel target = $region3
    $region8: #{switch_transformer_forward.6} parent=1 // loop_exit
      _
    %3387 = vsyncpa [#allocation5], 1
    %s3388 = scalar_lea.sflag [#allocation5], 1
    %3389 = vsyncpa %s3388, 1
    %3390 = vsyncpa [#allocation7], 1
    %s3391 = scalar_lea.sflag [#allocation7], 1
    %3392 = vsyncpa %s3391, 1
    %3393 = vsyncpa [#allocation10], 1
    %s3394 = scalar_lea.sflag [#allocation10], 1
    %3395 = vsyncpa %s3394, 1

// kernel: switch_transformer_forward.8
$region0: #{switch_transformer_forward.8}
  #allocation0 [shape = 'u32[]', space=smem, size = 0x4, offset = 0x4, fixed_abs, tag = 'smem constant byte address 0x4 - core index']
  #allocation1 [shape = 'u32[144,128]{1,0:T(1,128)}', space=vmem, size = 0x12000, scoped, tag = 'internal scratch']
  #allocation2 [shape = 's32[1]{0}', space=sflag, size = 0x4, scoped, tag = 'scoped memory for switch_transformer_forward.8']
  #allocation3 [shape = 'u8[512]{0}', space=smem, size = 0x200, scoped, tag = 'prefetched SMEM operand 0']
  %s0 = inlined_call_operand.vmem [shape: s32[6], index: 0, kind: input, shape index: {}]
  %s1 = inlined_call_operand.vmem [shape: bf16[48,768], index: 1, kind: input, shape index: {}]
  %s2 = inlined_call_operand.vmem [shape: f32[48,1], index: 2, kind: input, shape index: {}]
  %s3 = inlined_call_operand.vmem [shape: bf16[4,768,512], index: 3, kind: input, shape index: {}]
  %s4 = inlined_call_operand.vmem [shape: f32[4,1,512], index: 4, kind: input, shape index: {}]
  %s5 = inlined_call_operand.vmem [shape: bf16[4,512,768], index: 5, kind: input, shape index: {}]
  %s6 = inlined_call_operand.vmem [shape: f32[4,1,768], index: 6, kind: input, shape index: {}]
  %s7 = inlined_call_operand.vmem [shape: bf16[48,768], index: 7, kind: output, shape index: {}]
  %s8 = sld [smem:[#allocation0]]
  $region57: #{switch_transformer_forward.8} parent=0
    _
  %s10 = ssub.s32 1, %s8
  %s11 = scalar_select 0, %s10, %s8
  %s12 = sshll.u32 %s0, 4
  %s13 = int_to_ptr.vmem [resolvable:$true] %s12
  %15 = dma.vmem_to_smem %s13, 16, [#allocation3], [#allocation2]
  %16 = dma.done [#allocation2], 16
  %17 = sfence
  loop: start=0, step=1, limit=8
  $region2: #{switch_transformer_forward.8} parent=0 // loop_pre_header
    _
  $region3: #{switch_transformer_forward.8} parent=0 // loop_header
    %s19 = sphi 0, %s23
    %p20 = scmp.ge.s32.totalorder %s19, 8
    %s29 = sphi 0, %s31
    %s32 = sphi 0, %s29
    %s33 = sphi 0, %s32
    %s49 = sphi 0, %s33
    %s55 = sphi 0, %s57
    %s58 = sphi 0, %s55
    %s59 = sphi 0, %s58
    %s75 = sphi 0, %s59
    %s83 = sphi 0, %s85
    %s86 = sphi 0, %s83
    %s87 = sphi 0, %s86
    %s103 = sphi 0, %s87
    %s111 = sphi 0, %s113
    %s114 = sphi 0, %s111
    %s115 = sphi 0, %s114
    %s131 = sphi 0, %s115
    %s139 = sphi 0, %s141
    %s142 = sphi 0, %s139
    %s143 = sphi 0, %s142
    %s159 = sphi 0, %s143
    %s167 = sphi 0, %s169
    %s170 = sphi 0, %s167
    %s171 = sphi 0, %s170
    %s187 = sphi 0, %s171
    %s193 = sphi 0, %s195
    %s196 = sphi 0, %s193
    %s197 = sphi 0, %s196
    %s213 = sphi 0, %s197
  $region4: #{switch_transformer_forward.8} parent=0 // loop_header_branch
    %22 = sbr.rel (%p20) target = $region8
  $region5: #{switch_transformer_forward.8} parent=0 // loop_body
    %s24 = ssub.s32 %s19, 1
    %s25 = ssub.s32 %s19, 2
    %s26 = sadd.s32 %s19, 1
    %s27 = ssub.s32 %s19, %s26
    %p28 = scmp.eq.s32.totalorder %s27, 0
    %s30 = sadd.s32 %s29, 1
    %s31 = scalar_select %p28, %s29, %s30
    %p34 = pneg %p28
    %p35 = scmp.eq.s32.totalorder %s19, 5
    %p36 = por %p34, %p35
    %p37 = scmp.ne.s32.totalorder %s29, %s32
    %p38 = scmp.eq.s32.totalorder %s19, 0
    %p39 = por %p37, %p38
    %p40 = scmp.ne.s32.totalorder %s29, %s32
    %p41 = scmp.eq.s32.totalorder %s24, 5
    %p42 = por %p40, %p41
    %p43 = scmp.ne.s32.totalorder %s32, %s33
    %p44 = scmp.eq.s32.totalorder %s24, 0
    %p45 = por %p43, %p44
    %p46 = scmp.ne.s32.totalorder %s32, %s33
    %p47 = scmp.eq.s32.totalorder %s25, 5
    %p48 = por %p46, %p47
    %p50 = scmp.ne.s32.totalorder %s33, %s49
    %p51 = scmp.eq.s32.totalorder %s25, 0
    %p52 = por %p50, %p51
    %s53 = ssub.s32 %s19, %s26
    %p54 = scmp.eq.s32.totalorder %s53, 0
    %s56 = sadd.s32 %s55, 1
    %s57 = scalar_select %p54, %s55, %s56
    %p60 = pneg %p54
    %p61 = scmp.eq.s32.totalorder %s19, 5
    %p62 = por %p60, %p61
    %p63 = scmp.ne.s32.totalorder %s55, %s58
    %p64 = scmp.eq.s32.totalorder %s19, 0
    %p65 = por %p63, %p64
    %p66 = scmp.ne.s32.totalorder %s55, %s58
    %p67 = scmp.eq.s32.totalorder %s24, 5
    %p68 = por %p66, %p67
    %p69 = scmp.ne.s32.totalorder %s58, %s59
    %p70 = scmp.eq.s32.totalorder %s24, 0
    %p71 = por %p69, %p70
    %p72 = scmp.ne.s32.totalorder %s58, %s59
    %p73 = scmp.eq.s32.totalorder %s25, 5
    %p74 = por %p72, %p73
    %p76 = scmp.ne.s32.totalorder %s59, %s75
    %p77 = scmp.eq.s32.totalorder %s25, 0
    %p78 = por %p76, %p77
    %s79 = sld [smem:[#allocation3 + %s19]]
    %s80 = sld [smem:[#allocation3 + %s26]]
    %s81 = ssub.s32 %s79, %s80
    %p82 = scmp.eq.s32.totalorder %s81, 0
    %s84 = sadd.s32 %s83, 1
    %s85 = scalar_select %p82, %s83, %s84
    %p88 = pneg %p82
    %p89 = scmp.eq.s32.totalorder %s19, 5
    %p90 = por %p88, %p89
    %p91 = scmp.ne.s32.totalorder %s83, %s86
    %p92 = scmp.eq.s32.totalorder %s19, 0
    %p93 = por %p91, %p92
    %p94 = scmp.ne.s32.totalorder %s83, %s86
    %p95 = scmp.eq.s32.totalorder %s24, 5
    %p96 = por %p94, %p95
    %p97 = scmp.ne.s32.totalorder %s86, %s87
    %p98 = scmp.eq.s32.totalorder %s24, 0
    %p99 = por %p97, %p98
    %p100 = scmp.ne.s32.totalorder %s86, %s87
    %p101 = scmp.eq.s32.totalorder %s25, 5
    %p102 = por %p100, %p101
    %p104 = scmp.ne.s32.totalorder %s87, %s103
    %p105 = scmp.eq.s32.totalorder %s25, 0
    %p106 = por %p104, %p105
    %s107 = sld [smem:[#allocation3 + %s19]]
    %s108 = sld [smem:[#allocation3 + %s26]]
    %s109 = ssub.s32 %s107, %s108
    %p110 = scmp.eq.s32.totalorder %s109, 0
    %s112 = sadd.s32 %s111, 1
    %s113 = scalar_select %p110, %s111, %s112
    %p116 = pneg %p110
    %p117 = scmp.eq.s32.totalorder %s19, 5
    %p118 = por %p116, %p117
    %p119 = scmp.ne.s32.totalorder %s111, %s114
    %p120 = scmp.eq.s32.totalorder %s19, 0
    %p121 = por %p119, %p120
    %p122 = scmp.ne.s32.totalorder %s111, %s114
    %p123 = scmp.eq.s32.totalorder %s24, 5
    %p124 = por %p122, %p123
    %p125 = scmp.ne.s32.totalorder %s114, %s115
    %p126 = scmp.eq.s32.totalorder %s24, 0
    %p127 = por %p125, %p126
    %p128 = scmp.ne.s32.totalorder %s114, %s115
    %p129 = scmp.eq.s32.totalorder %s25, 5
    %p130 = por %p128, %p129
    %p132 = scmp.ne.s32.totalorder %s115, %s131
    %p133 = scmp.eq.s32.totalorder %s25, 0
    %p134 = por %p132, %p133
    %s135 = sld [smem:[#allocation3 + %s19]]
    %s136 = sld [smem:[#allocation3 + %s26]]
    %s137 = ssub.s32 %s135, %s136
    %p138 = scmp.eq.s32.totalorder %s137, 0
    %s140 = sadd.s32 %s139, 1
    %s141 = scalar_select %p138, %s139, %s140
    %p144 = pneg %p138
    %p145 = scmp.eq.s32.totalorder %s19, 5
    %p146 = por %p144, %p145
    %p147 = scmp.ne.s32.totalorder %s139, %s142
    %p148 = scmp.eq.s32.totalorder %s19, 0
    %p149 = por %p147, %p148
    %p150 = scmp.ne.s32.totalorder %s139, %s142
    %p151 = scmp.eq.s32.totalorder %s24, 5
    %p152 = por %p150, %p151
    %p153 = scmp.ne.s32.totalorder %s142, %s143
    %p154 = scmp.eq.s32.totalorder %s24, 0
    %p155 = por %p153, %p154
    %p156 = scmp.ne.s32.totalorder %s142, %s143
    %p157 = scmp.eq.s32.totalorder %s25, 5
    %p158 = por %p156, %p157
    %p160 = scmp.ne.s32.totalorder %s143, %s159
    %p161 = scmp.eq.s32.totalorder %s25, 0
    %p162 = por %p160, %p161
    %s163 = sld [smem:[#allocation3 + %s19]]
    %s164 = sld [smem:[#allocation3 + %s26]]
    %s165 = ssub.s32 %s163, %s164
    %p166 = scmp.eq.s32.totalorder %s165, 0
    %s168 = sadd.s32 %s167, 1
    %s169 = scalar_select %p166, %s167, %s168
    %p172 = pneg %p166
    %p173 = scmp.eq.s32.totalorder %s19, 5
    %p174 = por %p172, %p173
    %p175 = scmp.ne.s32.totalorder %s167, %s170
    %p176 = scmp.eq.s32.totalorder %s19, 0
    %p177 = por %p175, %p176
    %p178 = scmp.ne.s32.totalorder %s167, %s170
    %p179 = scmp.eq.s32.totalorder %s24, 5
    %p180 = por %p178, %p179
    %p181 = scmp.ne.s32.totalorder %s170, %s171
    %p182 = scmp.eq.s32.totalorder %s24, 0
    %p183 = por %p181, %p182
    %p184 = scmp.ne.s32.totalorder %s170, %s171
    %p185 = scmp.eq.s32.totalorder %s25, 5
    %p186 = por %p184, %p185
    %p188 = scmp.ne.s32.totalorder %s171, %s187
    %p189 = scmp.eq.s32.totalorder %s25, 0
    %p190 = por %p188, %p189
    %s191 = ssub.s32 %s19, %s26
    %p192 = scmp.eq.s32.totalorder %s191, 0
    %s194 = sadd.s32 %s193, 1
    %s195 = scalar_select %p192, %s193, %s194
    %p198 = pneg %p192
    %p199 = scmp.eq.s32.totalorder %s19, 5
    %p200 = por %p198, %p199
    %p201 = scmp.ne.s32.totalorder %s193, %s196
    %p202 = scmp.eq.s32.totalorder %s19, 0
    %p203 = por %p201, %p202
    %p204 = scmp.ne.s32.totalorder %s193, %s196
    %p205 = scmp.eq.s32.totalorder %s24, 5
    %p206 = por %p204, %p205
    %p207 = scmp.ne.s32.totalorder %s196, %s197
    %p208 = scmp.eq.s32.totalorder %s24, 0
    %p209 = por %p207, %p208
    %p210 = scmp.ne.s32.totalorder %s196, %s197
    %p211 = scmp.eq.s32.totalorder %s25, 5
    %p212 = por %p210, %p211
    %p214 = scmp.ne.s32.totalorder %s197, %s213
    %p215 = scmp.eq.s32.totalorder %s25, 0
    %p216 = por %p214, %p215
    %p217 = scmp.le.s32.totalorder 1, %s19
    %p218 = scmp.lt.s32.totalorder %s19, 7
    %p219 = pnand %p217, %p218
    %p220 = pneg %p219
    // Predicated region
    $region9: #{switch_transformer_forward.8} parent=5 // pred_check
      _
    $region10: #{switch_transformer_forward.8} parent=5 // pred_check_branch
      %222 = sbr.rel (%p219) target = $region12
    $region11: #{switch_transformer_forward.8} parent=5 // pred_region
      %s223 = ssub.s32 %s19, 1
    $region12: #{switch_transformer_forward.8} parent=5 // pred_fallthru
      _
    %p224 = scmp.lt.s32.totalorder %s19, 6
    // Predicated region
    $region13: #{switch_transformer_forward.8} parent=5 // pred_check
      %p225 = pneg %p224
    $region14: #{switch_transformer_forward.8} parent=5 // pred_check_branch
      %227 = sbr.rel (%p225) target = $region16
    $region15: #{switch_transformer_forward.8} parent=5 // pred_region
      // Predicated region
      $region17: #{switch_transformer_forward.8} parent=15 // pred_check
        %p228 = pneg %p39
      $region18: #{switch_transformer_forward.8} parent=15 // pred_check_branch
        %230 = sbr.rel (%p228) target = $region20
      $region19: #{switch_transformer_forward.8} parent=15 // pred_region
        %p231 = scmp.lt.s32.totalorder %s19, 5
        %s232 = scalar_select %p231, %s19, 5
        %s233 = smul.addr %s232, 6
        %s234 = smul.addr %s233, 4
        %s235 = scalar_lea.vmem %s1, %s234
      $region20: #{switch_transformer_forward.8} parent=15 // pred_fallthru
        _
      // Predicated region
      $region21: #{switch_transformer_forward.8} parent=15 // pred_check
        %p236 = pneg %p65
      $region22: #{switch_transformer_forward.8} parent=15 // pred_check_branch
        %238 = sbr.rel (%p236) target = $region24
      $region23: #{switch_transformer_forward.8} parent=15 // pred_region
        %p239 = scmp.lt.s32.totalorder %s19, 5
        %s240 = scalar_select %p239, %s19, 5
        %s241 = smul.addr %s240, 8
        %s242 = scalar_lea.vmem %s2, %s241
      $region24: #{switch_transformer_forward.8} parent=15 // pred_fallthru
        _
      // Predicated region
      $region25: #{switch_transformer_forward.8} parent=15 // pred_check
        %p243 = pneg %p93
      $region26: #{switch_transformer_forward.8} parent=15 // pred_check_branch
        %245 = sbr.rel (%p243) target = $region28
      $region27: #{switch_transformer_forward.8} parent=15 // pred_region
        %s246 = sld [smem:[#allocation3 + %s19]]
        %p247 = scmp.lt.s32.totalorder %s246, 3
        %s248 = scalar_select %p247, %s246, 3
        %s249 = smul.addr %s248, 384
        %s250 = smul.addr %s249, 4
        %s251 = scalar_lea.vmem %s3, %s250
        %s252 = sld [smem:[#allocation3 + %s19]]
      $region28: #{switch_transformer_forward.8} parent=15 // pred_fallthru
        _
      // Predicated region
      $region29: #{switch_transformer_forward.8} parent=15 // pred_check
        %p253 = pneg %p121
      $region30: #{switch_transformer_forward.8} parent=15 // pred_check_branch
        %255 = sbr.rel (%p253) target = $region32
      $region31: #{switch_transformer_forward.8} parent=15 // pred_region
        %s256 = sld [smem:[#allocation3 + %s19]]
        %p257 = scmp.lt.s32.totalorder %s256, 3
        %s258 = scalar_select %p257, %s256, 3
        %s259 = smul.addr %s258, 4
        %s260 = scalar_lea.vmem %s4, %s259
        %s261 = sld [smem:[#allocation3 + %s19]]
      $region32: #{switch_transformer_forward.8} parent=15 // pred_fallthru
        _
      // Predicated region
      $region33: #{switch_transformer_forward.8} parent=15 // pred_check
        %p262 = pneg %p149
      $region34: #{switch_transformer_forward.8} parent=15 // pred_check_branch
        %264 = sbr.rel (%p262) target = $region36
      $region35: #{switch_transformer_forward.8} parent=15 // pred_region
        %s265 = sld [smem:[#allocation3 + %s19]]
        %p266 = scmp.lt.s32.totalorder %s265, 3
        %s267 = scalar_select %p266, %s265, 3
        %s268 = smul.addr %s267, 384
        %s269 = smul.addr %s268, 4
        %s270 = scalar_lea.vmem %s5, %s269
        %s271 = sld [smem:[#allocation3 + %s19]]
      $region36: #{switch_transformer_forward.8} parent=15 // pred_fallthru
        _
      // Predicated region
      $region37: #{switch_transformer_forward.8} parent=15 // pred_check
        %p272 = pneg %p177
      $region38: #{switch_transformer_forward.8} parent=15 // pred_check_branch
        %274 = sbr.rel (%p272) target = $region40
      $region39: #{switch_transformer_forward.8} parent=15 // pred_region
        %s275 = sld [smem:[#allocation3 + %s19]]
        %p276 = scmp.lt.s32.totalorder %s275, 3
        %s277 = scalar_select %p276, %s275, 3
        %s278 = smul.addr %s277, 6
        %s279 = scalar_lea.vmem %s6, %s278
        %s280 = sld [smem:[#allocation3 + %s19]]
      $region40: #{switch_transformer_forward.8} parent=15 // pred_fallthru
        _
    $region16: #{switch_transformer_forward.8} parent=5 // pred_fallthru
      _
    %p281 = scmp.le.s32.totalorder 1, %s19
    %p282 = scmp.lt.s32.totalorder %s19, 7
    %p283 = pnand %p281, %p282
    %p284 = pneg %p283
    // Predicated region
    $region41: #{switch_transformer_forward.8} parent=5 // pred_check
      _
    $region42: #{switch_transformer_forward.8} parent=5 // pred_check_branch
      %286 = sbr.rel (%p283) target = $region44
    $region43: #{switch_transformer_forward.8} parent=5 // pred_region
      %s287 = ssub.s32 %s19, 1
      %p288 = scmp.lt.s32.totalorder %s24, 5
      %s289 = scalar_select %p288, %s24, 5
      %s290 = smul.addr %s289, 6
      %s291 = smul.addr %s290, 4
      %s292 = scalar_lea.vmem %s1, %s291
      %p293 = pneg %p45
      %p294 = pneg %p42
      %p295 = scmp.lt.s32.totalorder %s24, 5
      %s296 = scalar_select %p295, %s24, 5
      %s297 = smul.addr %s296, 8
      %s298 = scalar_lea.vmem %s2, %s297
      %p299 = pneg %p71
      %p300 = pneg %p68
      %s301 = sld [smem:[#allocation3 + %s24]]
      %p302 = scmp.lt.s32.totalorder %s301, 3
      %s303 = scalar_select %p302, %s301, 3
      %s304 = smul.addr %s303, 384
      %s305 = smul.addr %s304, 4
      %s306 = scalar_lea.vmem %s3, %s305
      %p307 = pneg %p99
      %p308 = pneg %p96
      %s309 = sld [smem:[#allocation3 + %s24]]
      %p310 = scmp.lt.s32.totalorder %s309, 3
      %s311 = scalar_select %p310, %s309, 3
      %s312 = smul.addr %s311, 4
      %s313 = scalar_lea.vmem %s4, %s312
      %p314 = pneg %p127
      %p315 = pneg %p124
      %s316 = sld [smem:[#allocation3 + %s24]]
      %p317 = scmp.lt.s32.totalorder %s316, 3
      %s318 = scalar_select %p317, %s316, 3
      %s319 = smul.addr %s318, 384
      %s320 = smul.addr %s319, 4
      %s321 = scalar_lea.vmem %s5, %s320
      %p322 = pneg %p155
      %p323 = pneg %p152
      %s324 = sld [smem:[#allocation3 + %s24]]
      %p325 = scmp.lt.s32.totalorder %s324, 3
      %s326 = scalar_select %p325, %s324, 3
      %s327 = smul.addr %s326, 6
      %s328 = scalar_lea.vmem %s6, %s327
      %p329 = pneg %p183
      %p330 = pneg %p180
      %p331 = pneg %p209
      %p332 = pneg %p206
      %p333 = scmp.lt.s32.totalorder %s24, 5
      %s334 = scalar_select %p333, %s24, 5
      %s335 = smul.addr %s334, 6
      %s336 = smul.addr %s335, 4
      %s337 = scalar_lea.vmem %s7, %s336
      %p338 = scmp.lt.s32.totalorder %s24, 5
      %s339 = scalar_select %p338, %s24, 5
      %s340 = smul.addr %s339, 6
      %s341 = smul.addr %s340, 4
      %s342 = scalar_lea.vmem %s1, %s341
      %p343 = scmp.lt.s32.totalorder %s24, 5
      %s344 = scalar_select %p343, %s24, 5
      %s345 = smul.addr %s344, 8
      %s346 = scalar_lea.vmem %s2, %s345
      %s347 = sld [smem:[#allocation3 + %s24]]
      %p348 = scmp.lt.s32.totalorder %s347, 3
      %s349 = scalar_select %p348, %s347, 3
      %s350 = smul.addr %s349, 384
      %s351 = smul.addr %s350, 4
      %s352 = scalar_lea.vmem %s3, %s351
      %s353 = sld [smem:[#allocation3 + %s24]]
      %s354 = sld [smem:[#allocation3 + %s24]]
      %p355 = scmp.lt.s32.totalorder %s354, 3
      %s356 = scalar_select %p355, %s354, 3
      %s357 = smul.addr %s356, 4
      %s358 = scalar_lea.vmem %s4, %s357
      %s359 = sld [smem:[#allocation3 + %s24]]
      %s360 = sld [smem:[#allocation3 + %s24]]
      %p361 = scmp.lt.s32.totalorder %s360, 3
      %s362 = scalar_select %p361, %s360, 3
      %s363 = smul.addr %s362, 384
      %s364 = smul.addr %s363, 4
      %s365 = scalar_lea.vmem %s5, %s364
      %s366 = sld [smem:[#allocation3 + %s24]]
      %s367 = sld [smem:[#allocation3 + %s24]]
      %p368 = scmp.lt.s32.totalorder %s367, 3
      %s369 = scalar_select %p368, %s367, 3
      %s370 = smul.addr %s369, 6
      %s371 = scalar_lea.vmem %s6, %s370
      %s372 = sld [smem:[#allocation3 + %s24]]
      %p373 = scmp.lt.s32.totalorder %s24, 5
      %s374 = scalar_select %p373, %s24, 5
      %s375 = smul.addr %s374, 6
      %s376 = smul.addr %s375, 4
      %s377 = scalar_lea.vmem %s7, %s376
      %v378 = vld [vmem:[%s342] sm:$0xff]
      %v379 = vld [vmem:[%s342 + $0x8] sm:$0xff]
      %v380 = vld [vmem:[%s342 + $0x10] sm:$0xff]
      %v381 = vld [vmem:[%s352] sm:$0xff]
      %v382 = vld [vmem:[%s352 + $0x8] sm:$0xff]
      %v383 = vld [vmem:[%s352 + $0x10] sm:$0xff]
      %v384 = vld [vmem:[%s352 + $0x18] sm:$0xff]
      %v385 = vld [vmem:[%s352 + $0x20] sm:$0xff]
      %v386 = vld [vmem:[%s352 + $0x28] sm:$0xff]
      %v387 = vld [vmem:[%s352 + $0x30] sm:$0xff]
      %v388 = vld [vmem:[%s352 + $0x38] sm:$0xff]
      %v389 = vld [vmem:[%s352 + $0x40] sm:$0xff]
      %v390 = vld [vmem:[%s352 + $0x48] sm:$0xff]
      %v391 = vld [vmem:[%s352 + $0x50] sm:$0xff]
      %v392 = vld [vmem:[%s352 + $0x58] sm:$0xff]
      %v393 = vld [vmem:[%s352 + $0x60] sm:$0xff]
      %v394 = vld [vmem:[%s352 + $0x68] sm:$0xff]
      %v395 = vld [vmem:[%s352 + $0x70] sm:$0xff]
      %v396 = vld [vmem:[%s352 + $0x78] sm:$0xff]
      %v397 = vld [vmem:[%s352 + $0x80] sm:$0xff]
      %v398 = vld [vmem:[%s352 + $0x88] sm:$0xff]
      %v399 = vld [vmem:[%s352 + $0x90] sm:$0xff]
      %v400 = vld [vmem:[%s352 + $0x98] sm:$0xff]
      %v401 = vld [vmem:[%s352 + $0xa0] sm:$0xff]
      %v402 = vld [vmem:[%s352 + $0xa8] sm:$0xff]
      %v403 = vld [vmem:[%s352 + $0xb0] sm:$0xff]
      %v404 = vld [vmem:[%s352 + $0xb8] sm:$0xff]
      %v405 = vld [vmem:[%s352 + $0xc0] sm:$0xff]
      %v406 = vld [vmem:[%s352 + $0xc8] sm:$0xff]
      %v407 = vld [vmem:[%s352 + $0xd0] sm:$0xff]
      %v408 = vld [vmem:[%s352 + $0xd8] sm:$0xff]
      %v409 = vld [vmem:[%s352 + $0xe0] sm:$0xff]
      %v410 = vld [vmem:[%s352 + $0xe8] sm:$0xff]
      %v411 = vld [vmem:[%s352 + $0xf0] sm:$0xff]
      %v412 = vld [vmem:[%s352 + $0xf8] sm:$0xff]
      %v413 = vld [vmem:[%s352 + $0x100] sm:$0xff]
      %v414 = vld [vmem:[%s352 + $0x108] sm:$0xff]
      %v415 = vld [vmem:[%s352 + $0x110] sm:$0xff]
      %v416 = vld [vmem:[%s352 + $0x118] sm:$0xff]
      %v417 = vld [vmem:[%s352 + $0x120] sm:$0xff]
      %v418 = vld [vmem:[%s352 + $0x128] sm:$0xff]
      %v419 = vld [vmem:[%s352 + $0x130] sm:$0xff]
      %v420 = vld [vmem:[%s352 + $0x138] sm:$0xff]
      %v421 = vld [vmem:[%s352 + $0x140] sm:$0xff]
      %v422 = vld [vmem:[%s352 + $0x148] sm:$0xff]
      %v423 = vld [vmem:[%s352 + $0x150] sm:$0xff]
      %v424 = vld [vmem:[%s352 + $0x158] sm:$0xff]
      %v425 = vld [vmem:[%s352 + $0x160] sm:$0xff]
      %v426 = vld [vmem:[%s352 + $0x168] sm:$0xff]
      %v427 = vld [vmem:[%s352 + $0x170] sm:$0xff]
      %v428 = vld [vmem:[%s352 + $0x178] sm:$0xff]
      %v429 = vld [vmem:[%s352 + $0x180] sm:$0xff]
      %v430 = vld [vmem:[%s352 + $0x188] sm:$0xff]
      %v431 = vld [vmem:[%s352 + $0x190] sm:$0xff]
      %v432 = vld [vmem:[%s352 + $0x198] sm:$0xff]
      %v433 = vld [vmem:[%s352 + $0x1a0] sm:$0xff]
      %v434 = vld [vmem:[%s352 + $0x1a8] sm:$0xff]
      %v435 = vld [vmem:[%s352 + $0x1b0] sm:$0xff]
      %v436 = vld [vmem:[%s352 + $0x1b8] sm:$0xff]
      %v437 = vld [vmem:[%s352 + $0x1c0] sm:$0xff]
      %v438 = vld [vmem:[%s352 + $0x1c8] sm:$0xff]
      %v439 = vld [vmem:[%s352 + $0x1d0] sm:$0xff]
      %v440 = vld [vmem:[%s352 + $0x1d8] sm:$0xff]
      %v441 = vld [vmem:[%s352 + $0x1e0] sm:$0xff]
      %v442 = vld [vmem:[%s352 + $0x1e8] sm:$0xff]
      %v443 = vld [vmem:[%s352 + $0x1f0] sm:$0xff]
      %v444 = vld [vmem:[%s352 + $0x1f8] sm:$0xff]
      %v445 = vld [vmem:[%s352 + $0x200] sm:$0xff]
      %v446 = vld [vmem:[%s352 + $0x208] sm:$0xff]
      %v447 = vld [vmem:[%s352 + $0x210] sm:$0xff]
      %v448 = vld [vmem:[%s352 + $0x218] sm:$0xff]
      %v449 = vld [vmem:[%s352 + $0x220] sm:$0xff]
      %v450 = vld [vmem:[%s352 + $0x228] sm:$0xff]
      %v451 = vld [vmem:[%s352 + $0x230] sm:$0xff]
      %v452 = vld [vmem:[%s352 + $0x238] sm:$0xff]
      %v453 = vld [vmem:[%s352 + $0x240] sm:$0xff]
      %v454 = vld [vmem:[%s352 + $0x248] sm:$0xff]
      %v455 = vld [vmem:[%s352 + $0x250] sm:$0xff]
      %v456 = vld [vmem:[%s352 + $0x258] sm:$0xff]
      %v457 = vld [vmem:[%s352 + $0x260] sm:$0xff]
      %v458 = vld [vmem:[%s352 + $0x268] sm:$0xff]
      %v459 = vld [vmem:[%s352 + $0x270] sm:$0xff]
      %v460 = vld [vmem:[%s352 + $0x278] sm:$0xff]
      %v461 = vld [vmem:[%s352 + $0x280] sm:$0xff]
      %v462 = vld [vmem:[%s352 + $0x288] sm:$0xff]
      %v463 = vld [vmem:[%s352 + $0x290] sm:$0xff]
      %v464 = vld [vmem:[%s352 + $0x298] sm:$0xff]
      %v465 = vld [vmem:[%s352 + $0x2a0] sm:$0xff]
      %v466 = vld [vmem:[%s352 + $0x2a8] sm:$0xff]
      %v467 = vld [vmem:[%s352 + $0x2b0] sm:$0xff]
      %v468 = vld [vmem:[%s352 + $0x2b8] sm:$0xff]
      %v469 = vld [vmem:[%s352 + $0x2c0] sm:$0xff]
      %v470 = vld [vmem:[%s352 + $0x2c8] sm:$0xff]
      %v471 = vld [vmem:[%s352 + $0x2d0] sm:$0xff]
      %v472 = vld [vmem:[%s352 + $0x2d8] sm:$0xff]
      %v473 = vld [vmem:[%s352 + $0x2e0] sm:$0xff]
      %v474 = vld [vmem:[%s352 + $0x2e8] sm:$0xff]
      %v475 = vld [vmem:[%s352 + $0x2f0] sm:$0xff]
      %v476 = vld [vmem:[%s352 + $0x2f8] sm:$0xff]
      %v477 = vld [vmem:[%s352 + $0x300] sm:$0xff]
      %v478 = vld [vmem:[%s352 + $0x308] sm:$0xff]
      %v479 = vld [vmem:[%s352 + $0x310] sm:$0xff]
      %v480 = vld [vmem:[%s352 + $0x318] sm:$0xff]
      %v481 = vld [vmem:[%s352 + $0x320] sm:$0xff]
      %v482 = vld [vmem:[%s352 + $0x328] sm:$0xff]
      %v483 = vld [vmem:[%s352 + $0x330] sm:$0xff]
      %v484 = vld [vmem:[%s352 + $0x338] sm:$0xff]
      %v485 = vld [vmem:[%s352 + $0x340] sm:$0xff]
      %v486 = vld [vmem:[%s352 + $0x348] sm:$0xff]
      %v487 = vld [vmem:[%s352 + $0x350] sm:$0xff]
      %v488 = vld [vmem:[%s352 + $0x358] sm:$0xff]
      %v489 = vld [vmem:[%s352 + $0x360] sm:$0xff]
      %v490 = vld [vmem:[%s352 + $0x368] sm:$0xff]
      %v491 = vld [vmem:[%s352 + $0x370] sm:$0xff]
      %v492 = vld [vmem:[%s352 + $0x378] sm:$0xff]
      %v493 = vld [vmem:[%s352 + $0x380] sm:$0xff]
      %v494 = vld [vmem:[%s352 + $0x388] sm:$0xff]
      %v495 = vld [vmem:[%s352 + $0x390] sm:$0xff]
      %v496 = vld [vmem:[%s352 + $0x398] sm:$0xff]
      %v497 = vld [vmem:[%s352 + $0x3a0] sm:$0xff]
      %v498 = vld [vmem:[%s352 + $0x3a8] sm:$0xff]
      %v499 = vld [vmem:[%s352 + $0x3b0] sm:$0xff]
      %v500 = vld [vmem:[%s352 + $0x3b8] sm:$0xff]
      %v501 = vld [vmem:[%s352 + $0x3c0] sm:$0xff]
      %v502 = vld [vmem:[%s352 + $0x3c8] sm:$0xff]
      %v503 = vld [vmem:[%s352 + $0x3d0] sm:$0xff]
      %v504 = vld [vmem:[%s352 + $0x3d8] sm:$0xff]
      %v505 = vld [vmem:[%s352 + $0x3e0] sm:$0xff]
      %v506 = vld [vmem:[%s352 + $0x3e8] sm:$0xff]
      %v507 = vld [vmem:[%s352 + $0x3f0] sm:$0xff]
      %v508 = vld [vmem:[%s352 + $0x3f8] sm:$0xff]
      %v509 = vld [vmem:[%s352 + $0x400] sm:$0xff]
      %v510 = vld [vmem:[%s352 + $0x408] sm:$0xff]
      %v511 = vld [vmem:[%s352 + $0x410] sm:$0xff]
      %v512 = vld [vmem:[%s352 + $0x418] sm:$0xff]
      %v513 = vld [vmem:[%s352 + $0x420] sm:$0xff]
      %v514 = vld [vmem:[%s352 + $0x428] sm:$0xff]
      %v515 = vld [vmem:[%s352 + $0x430] sm:$0xff]
      %v516 = vld [vmem:[%s352 + $0x438] sm:$0xff]
      %v517 = vld [vmem:[%s352 + $0x440] sm:$0xff]
      %v518 = vld [vmem:[%s352 + $0x448] sm:$0xff]
      %v519 = vld [vmem:[%s352 + $0x450] sm:$0xff]
      %v520 = vld [vmem:[%s352 + $0x458] sm:$0xff]
      %v521 = vld [vmem:[%s352 + $0x460] sm:$0xff]
      %v522 = vld [vmem:[%s352 + $0x468] sm:$0xff]
      %v523 = vld [vmem:[%s352 + $0x470] sm:$0xff]
      %v524 = vld [vmem:[%s352 + $0x478] sm:$0xff]
      %v525 = vld [vmem:[%s352 + $0x480] sm:$0xff]
      %v526 = vld [vmem:[%s352 + $0x488] sm:$0xff]
      %v527 = vld [vmem:[%s352 + $0x490] sm:$0xff]
      %v528 = vld [vmem:[%s352 + $0x498] sm:$0xff]
      %v529 = vld [vmem:[%s352 + $0x4a0] sm:$0xff]
      %v530 = vld [vmem:[%s352 + $0x4a8] sm:$0xff]
      %v531 = vld [vmem:[%s352 + $0x4b0] sm:$0xff]
      %v532 = vld [vmem:[%s352 + $0x4b8] sm:$0xff]
      %v533 = vld [vmem:[%s352 + $0x4c0] sm:$0xff]
      %v534 = vld [vmem:[%s352 + $0x4c8] sm:$0xff]
      %v535 = vld [vmem:[%s352 + $0x4d0] sm:$0xff]
      %v536 = vld [vmem:[%s352 + $0x4d8] sm:$0xff]
      %v537 = vld [vmem:[%s352 + $0x4e0] sm:$0xff]
      %v538 = vld [vmem:[%s352 + $0x4e8] sm:$0xff]
      %v539 = vld [vmem:[%s352 + $0x4f0] sm:$0xff]
      %v540 = vld [vmem:[%s352 + $0x4f8] sm:$0xff]
      %v541 = vld [vmem:[%s352 + $0x500] sm:$0xff]
      %v542 = vld [vmem:[%s352 + $0x508] sm:$0xff]
      %v543 = vld [vmem:[%s352 + $0x510] sm:$0xff]
      %v544 = vld [vmem:[%s352 + $0x518] sm:$0xff]
      %v545 = vld [vmem:[%s352 + $0x520] sm:$0xff]
      %v546 = vld [vmem:[%s352 + $0x528] sm:$0xff]
      %v547 = vld [vmem:[%s352 + $0x530] sm:$0xff]
      %v548 = vld [vmem:[%s352 + $0x538] sm:$0xff]
      %v549 = vld [vmem:[%s352 + $0x540] sm:$0xff]
      %v550 = vld [vmem:[%s352 + $0x548] sm:$0xff]
      %v551 = vld [vmem:[%s352 + $0x550] sm:$0xff]
      %v552 = vld [vmem:[%s352 + $0x558] sm:$0xff]
      %v553 = vld [vmem:[%s352 + $0x560] sm:$0xff]
      %v554 = vld [vmem:[%s352 + $0x568] sm:$0xff]
      %v555 = vld [vmem:[%s352 + $0x570] sm:$0xff]
      %v556 = vld [vmem:[%s352 + $0x578] sm:$0xff]
      %v557 = vld [vmem:[%s352 + $0x580] sm:$0xff]
      %v558 = vld [vmem:[%s352 + $0x588] sm:$0xff]
      %v559 = vld [vmem:[%s352 + $0x590] sm:$0xff]
      %v560 = vld [vmem:[%s352 + $0x598] sm:$0xff]
      %v561 = vld [vmem:[%s352 + $0x5a0] sm:$0xff]
      %v562 = vld [vmem:[%s352 + $0x5a8] sm:$0xff]
      %v563 = vld [vmem:[%s352 + $0x5b0] sm:$0xff]
      %v564 = vld [vmem:[%s352 + $0x5b8] sm:$0xff]
      %v565 = vld [vmem:[%s352 + $0x5c0] sm:$0xff]
      %v566 = vld [vmem:[%s352 + $0x5c8] sm:$0xff]
      %v567 = vld [vmem:[%s352 + $0x5d0] sm:$0xff]
      %v568 = vld [vmem:[%s352 + $0x5d8] sm:$0xff]
      %v569 = vld [vmem:[%s352 + $0x5e0] sm:$0xff]
      %v570 = vld [vmem:[%s352 + $0x5e8] sm:$0xff]
      %v571 = vld [vmem:[%s352 + $0x5f0] sm:$0xff]
      %v572 = vld [vmem:[%s352 + $0x5f8] sm:$0xff]
      %v573 = vld [vmem:[%s358] sm:$0xf]
      %v575 = vlaneseq
      %v576 = vshrl.u32 %v575, 7
      %v577 = vsub.s32 0, %v576
      %v578 = vrot.slane %v573, %v577
      %v579 = vlaneseq
      %v580 = vshrl.u32 %v579, 7
      %v581 = vsub.s32 1, %v580
      %v582 = vrot.slane %v573, %v581
      %v583 = vlaneseq
      %v584 = vshrl.u32 %v583, 7
      %v585 = vsub.s32 2, %v584
      %v586 = vrot.slane %v573, %v585
      %v587 = vlaneseq
      %v588 = vshrl.u32 %v587, 7
      %v589 = vsub.s32 3, %v588
      %v590 = vrot.slane %v573, %v589
      %v598 = vunpack.c.l.b16 %v378
      %v599 = vunpack.c.h.b16 %v378
      %v600 = vunpack.c.l.b16 %v379
      %v601 = vunpack.c.h.b16 %v379
      %v602 = vunpack.c.l.b16 %v380
      %v603 = vunpack.c.h.b16 %v380
      %v604 = vpack.c.b16 %v598, %v598
      %v605 = vpack.c.b16 %v599, %v599
      %v606 = vpack.c.b16 %v600, %v600
      %v607 = vpack.c.b16 %v601, %v601
      %v608 = vpack.c.b16 %v602, %v602
      %v609 = vpack.c.b16 %v603, %v603
      %v808 = vunpack.c.l.b16 %v381
      %v809 = vunpack.c.h.b16 %v381
      %v810 = vunpack.c.l.b16 %v382
      %v811 = vunpack.c.h.b16 %v382
      %v812 = vunpack.c.l.b16 %v383
      %v813 = vunpack.c.h.b16 %v383
      %v814 = vunpack.c.l.b16 %v384
      %v815 = vunpack.c.h.b16 %v384
      %v816 = vunpack.c.l.b16 %v385
      %v817 = vunpack.c.h.b16 %v385
      %v818 = vunpack.c.l.b16 %v386
      %v819 = vunpack.c.h.b16 %v386
      %v820 = vunpack.c.l.b16 %v387
      %v821 = vunpack.c.h.b16 %v387
      %v822 = vunpack.c.l.b16 %v388
      %v823 = vunpack.c.h.b16 %v388
      %v824 = vunpack.c.l.b16 %v389
      %v825 = vunpack.c.h.b16 %v389
      %v826 = vunpack.c.l.b16 %v390
      %v827 = vunpack.c.h.b16 %v390
      %v828 = vunpack.c.l.b16 %v391
      %v829 = vunpack.c.h.b16 %v391
      %v830 = vunpack.c.l.b16 %v392
      %v831 = vunpack.c.h.b16 %v392
      %v832 = vunpack.c.l.b16 %v393
      %v833 = vunpack.c.h.b16 %v393
      %v834 = vunpack.c.l.b16 %v394
      %v835 = vunpack.c.h.b16 %v394
      %v836 = vunpack.c.l.b16 %v395
      %v837 = vunpack.c.h.b16 %v395
      %v838 = vunpack.c.l.b16 %v396
      %v839 = vunpack.c.h.b16 %v396
      %v840 = vunpack.c.l.b16 %v397
      %v841 = vunpack.c.h.b16 %v397
      %v842 = vunpack.c.l.b16 %v398
      %v843 = vunpack.c.h.b16 %v398
      %v844 = vunpack.c.l.b16 %v399
      %v845 = vunpack.c.h.b16 %v399
      %v846 = vunpack.c.l.b16 %v400
      %v847 = vunpack.c.h.b16 %v400
      %v848 = vunpack.c.l.b16 %v401
      %v849 = vunpack.c.h.b16 %v401
      %v850 = vunpack.c.l.b16 %v402
      %v851 = vunpack.c.h.b16 %v402
      %v852 = vunpack.c.l.b16 %v403
      %v853 = vunpack.c.h.b16 %v403
      %v854 = vunpack.c.l.b16 %v404
      %v855 = vunpack.c.h.b16 %v404
      %v856 = vunpack.c.l.b16 %v405
      %v857 = vunpack.c.h.b16 %v405
      %v858 = vunpack.c.l.b16 %v406
      %v859 = vunpack.c.h.b16 %v406
      %v860 = vunpack.c.l.b16 %v407
      %v861 = vunpack.c.h.b16 %v407
      %v862 = vunpack.c.l.b16 %v408
      %v863 = vunpack.c.h.b16 %v408
      %v864 = vunpack.c.l.b16 %v409
      %v865 = vunpack.c.h.b16 %v409
      %v866 = vunpack.c.l.b16 %v410
      %v867 = vunpack.c.h.b16 %v410
      %v868 = vunpack.c.l.b16 %v411
      %v869 = vunpack.c.h.b16 %v411
      %v870 = vunpack.c.l.b16 %v412
      %v871 = vunpack.c.h.b16 %v412
      %v872 = vunpack.c.l.b16 %v413
      %v873 = vunpack.c.h.b16 %v413
      %v874 = vunpack.c.l.b16 %v414
      %v875 = vunpack.c.h.b16 %v414
      %v876 = vunpack.c.l.b16 %v415
      %v877 = vunpack.c.h.b16 %v415
      %v878 = vunpack.c.l.b16 %v416
      %v879 = vunpack.c.h.b16 %v416
      %v880 = vunpack.c.l.b16 %v417
      %v881 = vunpack.c.h.b16 %v417
      %v882 = vunpack.c.l.b16 %v418
      %v883 = vunpack.c.h.b16 %v418
      %v884 = vunpack.c.l.b16 %v419
      %v885 = vunpack.c.h.b16 %v419
      %v886 = vunpack.c.l.b16 %v420
      %v887 = vunpack.c.h.b16 %v420
      %v888 = vunpack.c.l.b16 %v421
      %v889 = vunpack.c.h.b16 %v421
      %v890 = vunpack.c.l.b16 %v422
      %v891 = vunpack.c.h.b16 %v422
      %v892 = vunpack.c.l.b16 %v423
      %v893 = vunpack.c.h.b16 %v423
      %v894 = vunpack.c.l.b16 %v424
      %v895 = vunpack.c.h.b16 %v424
      %v896 = vunpack.c.l.b16 %v425
      %v897 = vunpack.c.h.b16 %v425
      %v898 = vunpack.c.l.b16 %v426
      %v899 = vunpack.c.h.b16 %v426
      %v900 = vunpack.c.l.b16 %v427
      %v901 = vunpack.c.h.b16 %v427
      %v902 = vunpack.c.l.b16 %v428
      %v903 = vunpack.c.h.b16 %v428
      %v904 = vunpack.c.l.b16 %v429
      %v905 = vunpack.c.h.b16 %v429
      %v906 = vunpack.c.l.b16 %v430
      %v907 = vunpack.c.h.b16 %v430
      %v908 = vunpack.c.l.b16 %v431
      %v909 = vunpack.c.h.b16 %v431
      %v910 = vunpack.c.l.b16 %v432
      %v911 = vunpack.c.h.b16 %v432
      %v912 = vunpack.c.l.b16 %v433
      %v913 = vunpack.c.h.b16 %v433
      %v914 = vunpack.c.l.b16 %v434
      %v915 = vunpack.c.h.b16 %v434
      %v916 = vunpack.c.l.b16 %v435
      %v917 = vunpack.c.h.b16 %v435
      %v918 = vunpack.c.l.b16 %v436
      %v919 = vunpack.c.h.b16 %v436
      %v920 = vunpack.c.l.b16 %v437
      %v921 = vunpack.c.h.b16 %v437
      %v922 = vunpack.c.l.b16 %v438
      %v923 = vunpack.c.h.b16 %v438
      %v924 = vunpack.c.l.b16 %v439
      %v925 = vunpack.c.h.b16 %v439
      %v926 = vunpack.c.l.b16 %v440
      %v927 = vunpack.c.h.b16 %v440
      %v928 = vunpack.c.l.b16 %v441
      %v929 = vunpack.c.h.b16 %v441
      %v930 = vunpack.c.l.b16 %v442
      %v931 = vunpack.c.h.b16 %v442
      %v932 = vunpack.c.l.b16 %v443
      %v933 = vunpack.c.h.b16 %v443
      %v934 = vunpack.c.l.b16 %v444
      %v935 = vunpack.c.h.b16 %v444
      %v936 = vunpack.c.l.b16 %v445
      %v937 = vunpack.c.h.b16 %v445
      %v938 = vunpack.c.l.b16 %v446
      %v939 = vunpack.c.h.b16 %v446
      %v940 = vunpack.c.l.b16 %v447
      %v941 = vunpack.c.h.b16 %v447
      %v942 = vunpack.c.l.b16 %v448
      %v943 = vunpack.c.h.b16 %v448
      %v944 = vunpack.c.l.b16 %v449
      %v945 = vunpack.c.h.b16 %v449
      %v946 = vunpack.c.l.b16 %v450
      %v947 = vunpack.c.h.b16 %v450
      %v948 = vunpack.c.l.b16 %v451
      %v949 = vunpack.c.h.b16 %v451
      %v950 = vunpack.c.l.b16 %v452
      %v951 = vunpack.c.h.b16 %v452
      %v952 = vunpack.c.l.b16 %v453
      %v953 = vunpack.c.h.b16 %v453
      %v954 = vunpack.c.l.b16 %v454
      %v955 = vunpack.c.h.b16 %v454
      %v956 = vunpack.c.l.b16 %v455
      %v957 = vunpack.c.h.b16 %v455
      %v958 = vunpack.c.l.b16 %v456
      %v959 = vunpack.c.h.b16 %v456
      %v960 = vunpack.c.l.b16 %v457
      %v961 = vunpack.c.h.b16 %v457
      %v962 = vunpack.c.l.b16 %v458
      %v963 = vunpack.c.h.b16 %v458
      %v964 = vunpack.c.l.b16 %v459
      %v965 = vunpack.c.h.b16 %v459
      %v966 = vunpack.c.l.b16 %v460
      %v967 = vunpack.c.h.b16 %v460
      %v968 = vunpack.c.l.b16 %v461
      %v969 = vunpack.c.h.b16 %v461
      %v970 = vunpack.c.l.b16 %v462
      %v971 = vunpack.c.h.b16 %v462
      %v972 = vunpack.c.l.b16 %v463
      %v973 = vunpack.c.h.b16 %v463
      %v974 = vunpack.c.l.b16 %v464
      %v975 = vunpack.c.h.b16 %v464
      %v976 = vunpack.c.l.b16 %v465
      %v977 = vunpack.c.h.b16 %v465
      %v978 = vunpack.c.l.b16 %v466
      %v979 = vunpack.c.h.b16 %v466
      %v980 = vunpack.c.l.b16 %v467
      %v981 = vunpack.c.h.b16 %v467
      %v982 = vunpack.c.l.b16 %v468
      %v983 = vunpack.c.h.b16 %v468
      %v984 = vunpack.c.l.b16 %v469
      %v985 = vunpack.c.h.b16 %v469
      %v986 = vunpack.c.l.b16 %v470
      %v987 = vunpack.c.h.b16 %v470
      %v988 = vunpack.c.l.b16 %v471
      %v989 = vunpack.c.h.b16 %v471
      %v990 = vunpack.c.l.b16 %v472
      %v991 = vunpack.c.h.b16 %v472
      %v992 = vunpack.c.l.b16 %v473
      %v993 = vunpack.c.h.b16 %v473
      %v994 = vunpack.c.l.b16 %v474
      %v995 = vunpack.c.h.b16 %v474
      %v996 = vunpack.c.l.b16 %v475
      %v997 = vunpack.c.h.b16 %v475
      %v998 = vunpack.c.l.b16 %v476
      %v999 = vunpack.c.h.b16 %v476
      %v1000 = vunpack.c.l.b16 %v477
      %v1001 = vunpack.c.h.b16 %v477
      %v1002 = vunpack.c.l.b16 %v478
      %v1003 = vunpack.c.h.b16 %v478
      %v1004 = vunpack.c.l.b16 %v479
      %v1005 = vunpack.c.h.b16 %v479
      %v1006 = vunpack.c.l.b16 %v480
      %v1007 = vunpack.c.h.b16 %v480
      %v1008 = vunpack.c.l.b16 %v481
      %v1009 = vunpack.c.h.b16 %v481
      %v1010 = vunpack.c.l.b16 %v482
      %v1011 = vunpack.c.h.b16 %v482
      %v1012 = vunpack.c.l.b16 %v483
      %v1013 = vunpack.c.h.b16 %v483
      %v1014 = vunpack.c.l.b16 %v484
      %v1015 = vunpack.c.h.b16 %v484
      %v1016 = vunpack.c.l.b16 %v485
      %v1017 = vunpack.c.h.b16 %v485
      %v1018 = vunpack.c.l.b16 %v486
      %v1019 = vunpack.c.h.b16 %v486
      %v1020 = vunpack.c.l.b16 %v487
      %v1021 = vunpack.c.h.b16 %v487
      %v1022 = vunpack.c.l.b16 %v488
      %v1023 = vunpack.c.h.b16 %v488
      %v1024 = vunpack.c.l.b16 %v489
      %v1025 = vunpack.c.h.b16 %v489
      %v1026 = vunpack.c.l.b16 %v490
      %v1027 = vunpack.c.h.b16 %v490
      %v1028 = vunpack.c.l.b16 %v491
      %v1029 = vunpack.c.h.b16 %v491
      %v1030 = vunpack.c.l.b16 %v492
      %v1031 = vunpack.c.h.b16 %v492
      %v1032 = vunpack.c.l.b16 %v493
      %v1033 = vunpack.c.h.b16 %v493
      %v1034 = vunpack.c.l.b16 %v494
      %v1035 = vunpack.c.h.b16 %v494
      %v1036 = vunpack.c.l.b16 %v495
      %v1037 = vunpack.c.h.b16 %v495
      %v1038 = vunpack.c.l.b16 %v496
      %v1039 = vunpack.c.h.b16 %v496
      %v1040 = vunpack.c.l.b16 %v497
      %v1041 = vunpack.c.h.b16 %v497
      %v1042 = vunpack.c.l.b16 %v498
      %v1043 = vunpack.c.h.b16 %v498
      %v1044 = vunpack.c.l.b16 %v499
      %v1045 = vunpack.c.h.b16 %v499
      %v1046 = vunpack.c.l.b16 %v500
      %v1047 = vunpack.c.h.b16 %v500
      %v1048 = vunpack.c.l.b16 %v501
      %v1049 = vunpack.c.h.b16 %v501
      %v1050 = vunpack.c.l.b16 %v502
      %v1051 = vunpack.c.h.b16 %v502
      %v1052 = vunpack.c.l.b16 %v503
      %v1053 = vunpack.c.h.b16 %v503
      %v1054 = vunpack.c.l.b16 %v504
      %v1055 = vunpack.c.h.b16 %v504
      %v1056 = vunpack.c.l.b16 %v505
      %v1057 = vunpack.c.h.b16 %v505
      %v1058 = vunpack.c.l.b16 %v506
      %v1059 = vunpack.c.h.b16 %v506
      %v1060 = vunpack.c.l.b16 %v507
      %v1061 = vunpack.c.h.b16 %v507
      %v1062 = vunpack.c.l.b16 %v508
      %v1063 = vunpack.c.h.b16 %v508
      %v1064 = vunpack.c.l.b16 %v509
      %v1065 = vunpack.c.h.b16 %v509
      %v1066 = vunpack.c.l.b16 %v510
      %v1067 = vunpack.c.h.b16 %v510
      %v1068 = vunpack.c.l.b16 %v511
      %v1069 = vunpack.c.h.b16 %v511
      %v1070 = vunpack.c.l.b16 %v512
      %v1071 = vunpack.c.h.b16 %v512
      %v1072 = vunpack.c.l.b16 %v513
      %v1073 = vunpack.c.h.b16 %v513
      %v1074 = vunpack.c.l.b16 %v514
      %v1075 = vunpack.c.h.b16 %v514
      %v1076 = vunpack.c.l.b16 %v515
      %v1077 = vunpack.c.h.b16 %v515
      %v1078 = vunpack.c.l.b16 %v516
      %v1079 = vunpack.c.h.b16 %v516
      %v1080 = vunpack.c.l.b16 %v517
      %v1081 = vunpack.c.h.b16 %v517
      %v1082 = vunpack.c.l.b16 %v518
      %v1083 = vunpack.c.h.b16 %v518
      %v1084 = vunpack.c.l.b16 %v519
      %v1085 = vunpack.c.h.b16 %v519
      %v1086 = vunpack.c.l.b16 %v520
      %v1087 = vunpack.c.h.b16 %v520
      %v1088 = vunpack.c.l.b16 %v521
      %v1089 = vunpack.c.h.b16 %v521
      %v1090 = vunpack.c.l.b16 %v522
      %v1091 = vunpack.c.h.b16 %v522
      %v1092 = vunpack.c.l.b16 %v523
      %v1093 = vunpack.c.h.b16 %v523
      %v1094 = vunpack.c.l.b16 %v524
      %v1095 = vunpack.c.h.b16 %v524
      %v1096 = vunpack.c.l.b16 %v525
      %v1097 = vunpack.c.h.b16 %v525
      %v1098 = vunpack.c.l.b16 %v526
      %v1099 = vunpack.c.h.b16 %v526
      %v1100 = vunpack.c.l.b16 %v527
      %v1101 = vunpack.c.h.b16 %v527
      %v1102 = vunpack.c.l.b16 %v528
      %v1103 = vunpack.c.h.b16 %v528
      %v1104 = vunpack.c.l.b16 %v529
      %v1105 = vunpack.c.h.b16 %v529
      %v1106 = vunpack.c.l.b16 %v530
      %v1107 = vunpack.c.h.b16 %v530
      %v1108 = vunpack.c.l.b16 %v531
      %v1109 = vunpack.c.h.b16 %v531
      %v1110 = vunpack.c.l.b16 %v532
      %v1111 = vunpack.c.h.b16 %v532
      %v1112 = vunpack.c.l.b16 %v533
      %v1113 = vunpack.c.h.b16 %v533
      %v1114 = vunpack.c.l.b16 %v534
      %v1115 = vunpack.c.h.b16 %v534
      %v1116 = vunpack.c.l.b16 %v535
      %v1117 = vunpack.c.h.b16 %v535
      %v1118 = vunpack.c.l.b16 %v536
      %v1119 = vunpack.c.h.b16 %v536
      %v1120 = vunpack.c.l.b16 %v537
      %v1121 = vunpack.c.h.b16 %v537
      %v1122 = vunpack.c.l.b16 %v538
      %v1123 = vunpack.c.h.b16 %v538
      %v1124 = vunpack.c.l.b16 %v539
      %v1125 = vunpack.c.h.b16 %v539
      %v1126 = vunpack.c.l.b16 %v540
      %v1127 = vunpack.c.h.b16 %v540
      %v1128 = vunpack.c.l.b16 %v541
      %v1129 = vunpack.c.h.b16 %v541
      %v1130 = vunpack.c.l.b16 %v542
      %v1131 = vunpack.c.h.b16 %v542
      %v1132 = vunpack.c.l.b16 %v543
      %v1133 = vunpack.c.h.b16 %v543
      %v1134 = vunpack.c.l.b16 %v544
      %v1135 = vunpack.c.h.b16 %v544
      %v1136 = vunpack.c.l.b16 %v545
      %v1137 = vunpack.c.h.b16 %v545
      %v1138 = vunpack.c.l.b16 %v546
      %v1139 = vunpack.c.h.b16 %v546
      %v1140 = vunpack.c.l.b16 %v547
      %v1141 = vunpack.c.h.b16 %v547
      %v1142 = vunpack.c.l.b16 %v548
      %v1143 = vunpack.c.h.b16 %v548
      %v1144 = vunpack.c.l.b16 %v549
      %v1145 = vunpack.c.h.b16 %v549
      %v1146 = vunpack.c.l.b16 %v550
      %v1147 = vunpack.c.h.b16 %v550
      %v1148 = vunpack.c.l.b16 %v551
      %v1149 = vunpack.c.h.b16 %v551
      %v1150 = vunpack.c.l.b16 %v552
      %v1151 = vunpack.c.h.b16 %v552
      %v1152 = vunpack.c.l.b16 %v553
      %v1153 = vunpack.c.h.b16 %v553
      %v1154 = vunpack.c.l.b16 %v554
      %v1155 = vunpack.c.h.b16 %v554
      %v1156 = vunpack.c.l.b16 %v555
      %v1157 = vunpack.c.h.b16 %v555
      %v1158 = vunpack.c.l.b16 %v556
      %v1159 = vunpack.c.h.b16 %v556
      %v1160 = vunpack.c.l.b16 %v557
      %v1161 = vunpack.c.h.b16 %v557
      %v1162 = vunpack.c.l.b16 %v558
      %v1163 = vunpack.c.h.b16 %v558
      %v1164 = vunpack.c.l.b16 %v559
      %v1165 = vunpack.c.h.b16 %v559
      %v1166 = vunpack.c.l.b16 %v560
      %v1167 = vunpack.c.h.b16 %v560
      %v1168 = vunpack.c.l.b16 %v561
      %v1169 = vunpack.c.h.b16 %v561
      %v1170 = vunpack.c.l.b16 %v562
      %v1171 = vunpack.c.h.b16 %v562
      %v1172 = vunpack.c.l.b16 %v563
      %v1173 = vunpack.c.h.b16 %v563
      %v1174 = vunpack.c.l.b16 %v564
      %v1175 = vunpack.c.h.b16 %v564
      %v1176 = vunpack.c.l.b16 %v565
      %v1177 = vunpack.c.h.b16 %v565
      %v1178 = vunpack.c.l.b16 %v566
      %v1179 = vunpack.c.h.b16 %v566
      %v1180 = vunpack.c.l.b16 %v567
      %v1181 = vunpack.c.h.b16 %v567
      %v1182 = vunpack.c.l.b16 %v568
      %v1183 = vunpack.c.h.b16 %v568
      %v1184 = vunpack.c.l.b16 %v569
      %v1185 = vunpack.c.h.b16 %v569
      %v1186 = vunpack.c.l.b16 %v570
      %v1187 = vunpack.c.h.b16 %v570
      %v1188 = vunpack.c.l.b16 %v571
      %v1189 = vunpack.c.h.b16 %v571
      %v1190 = vunpack.c.l.b16 %v572
      %v1191 = vunpack.c.h.b16 %v572
      %v1192 = vpack.c.b16 %v812, %v808
      %v1193 = vpack.c.b16 %v813, %v809
      %v1194 = vpack.c.b16 %v814, %v810
      %v1195 = vpack.c.b16 %v815, %v811
      %v1196 = vpack.c.b16 %v820, %v816
      %v1197 = vpack.c.b16 %v821, %v817
      %v1198 = vpack.c.b16 %v822, %v818
      %v1199 = vpack.c.b16 %v823, %v819
      %v1200 = vpack.c.b16 %v828, %v824
      %v1201 = vpack.c.b16 %v829, %v825
      %v1202 = vpack.c.b16 %v830, %v826
      %v1203 = vpack.c.b16 %v831, %v827
      %v1204 = vpack.c.b16 %v836, %v832
      %v1205 = vpack.c.b16 %v837, %v833
      %v1206 = vpack.c.b16 %v838, %v834
      %v1207 = vpack.c.b16 %v839, %v835
      %v1208 = vpack.c.b16 %v844, %v840
      %v1209 = vpack.c.b16 %v845, %v841
      %v1210 = vpack.c.b16 %v846, %v842
      %v1211 = vpack.c.b16 %v847, %v843
      %v1212 = vpack.c.b16 %v852, %v848
      %v1213 = vpack.c.b16 %v853, %v849
      %v1214 = vpack.c.b16 %v854, %v850
      %v1215 = vpack.c.b16 %v855, %v851
      %v1216 = vpack.c.b16 %v860, %v856
      %v1217 = vpack.c.b16 %v861, %v857
      %v1218 = vpack.c.b16 %v862, %v858
      %v1219 = vpack.c.b16 %v863, %v859
      %v1220 = vpack.c.b16 %v868, %v864
      %v1221 = vpack.c.b16 %v869, %v865
      %v1222 = vpack.c.b16 %v870, %v866
      %v1223 = vpack.c.b16 %v871, %v867
      %v1224 = vpack.c.b16 %v876, %v872
      %v1225 = vpack.c.b16 %v877, %v873
      %v1226 = vpack.c.b16 %v878, %v874
      %v1227 = vpack.c.b16 %v879, %v875
      %v1228 = vpack.c.b16 %v884, %v880
      %v1229 = vpack.c.b16 %v885, %v881
      %v1230 = vpack.c.b16 %v886, %v882
      %v1231 = vpack.c.b16 %v887, %v883
      %v1232 = vpack.c.b16 %v892, %v888
      %v1233 = vpack.c.b16 %v893, %v889
      %v1234 = vpack.c.b16 %v894, %v890
      %v1235 = vpack.c.b16 %v895, %v891
      %v1236 = vpack.c.b16 %v900, %v896
      %v1237 = vpack.c.b16 %v901, %v897
      %v1238 = vpack.c.b16 %v902, %v898
      %v1239 = vpack.c.b16 %v903, %v899
      %v1240 = vpack.c.b16 %v908, %v904
      %v1241 = vpack.c.b16 %v909, %v905
      %v1242 = vpack.c.b16 %v910, %v906
      %v1243 = vpack.c.b16 %v911, %v907
      %v1244 = vpack.c.b16 %v916, %v912
      %v1245 = vpack.c.b16 %v917, %v913
      %v1246 = vpack.c.b16 %v918, %v914
      %v1247 = vpack.c.b16 %v919, %v915
      %v1248 = vpack.c.b16 %v924, %v920
      %v1249 = vpack.c.b16 %v925, %v921
      %v1250 = vpack.c.b16 %v926, %v922
      %v1251 = vpack.c.b16 %v927, %v923
      %v1252 = vpack.c.b16 %v932, %v928
      %v1253 = vpack.c.b16 %v933, %v929
      %v1254 = vpack.c.b16 %v934, %v930
      %v1255 = vpack.c.b16 %v935, %v931
      %v1256 = vpack.c.b16 %v940, %v936
      %v1257 = vpack.c.b16 %v941, %v937
      %v1258 = vpack.c.b16 %v942, %v938
      %v1259 = vpack.c.b16 %v943, %v939
      %v1260 = vpack.c.b16 %v948, %v944
      %v1261 = vpack.c.b16 %v949, %v945
      %v1262 = vpack.c.b16 %v950, %v946
      %v1263 = vpack.c.b16 %v951, %v947
      %v1264 = vpack.c.b16 %v956, %v952
      %v1265 = vpack.c.b16 %v957, %v953
      %v1266 = vpack.c.b16 %v958, %v954
      %v1267 = vpack.c.b16 %v959, %v955
      %v1268 = vpack.c.b16 %v964, %v960
      %v1269 = vpack.c.b16 %v965, %v961
      %v1270 = vpack.c.b16 %v966, %v962
      %v1271 = vpack.c.b16 %v967, %v963
      %v1272 = vpack.c.b16 %v972, %v968
      %v1273 = vpack.c.b16 %v973, %v969
      %v1274 = vpack.c.b16 %v974, %v970
      %v1275 = vpack.c.b16 %v975, %v971
      %v1276 = vpack.c.b16 %v980, %v976
      %v1277 = vpack.c.b16 %v981, %v977
      %v1278 = vpack.c.b16 %v982, %v978
      %v1279 = vpack.c.b16 %v983, %v979
      %v1280 = vpack.c.b16 %v988, %v984
      %v1281 = vpack.c.b16 %v989, %v985
      %v1282 = vpack.c.b16 %v990, %v986
      %v1283 = vpack.c.b16 %v991, %v987
      %v1284 = vpack.c.b16 %v996, %v992
      %v1285 = vpack.c.b16 %v997, %v993
      %v1286 = vpack.c.b16 %v998, %v994
      %v1287 = vpack.c.b16 %v999, %v995
      %v1288 = vpack.c.b16 %v1004, %v1000
      %v1289 = vpack.c.b16 %v1005, %v1001
      %v1290 = vpack.c.b16 %v1006, %v1002
      %v1291 = vpack.c.b16 %v1007, %v1003
      %v1292 = vpack.c.b16 %v1012, %v1008
      %v1293 = vpack.c.b16 %v1013, %v1009
      %v1294 = vpack.c.b16 %v1014, %v1010
      %v1295 = vpack.c.b16 %v1015, %v1011
      %v1296 = vpack.c.b16 %v1020, %v1016
      %v1297 = vpack.c.b16 %v1021, %v1017
      %v1298 = vpack.c.b16 %v1022, %v1018
      %v1299 = vpack.c.b16 %v1023, %v1019
      %v1300 = vpack.c.b16 %v1028, %v1024
      %v1301 = vpack.c.b16 %v1029, %v1025
      %v1302 = vpack.c.b16 %v1030, %v1026
      %v1303 = vpack.c.b16 %v1031, %v1027
      %v1304 = vpack.c.b16 %v1036, %v1032
      %v1305 = vpack.c.b16 %v1037, %v1033
      %v1306 = vpack.c.b16 %v1038, %v1034
      %v1307 = vpack.c.b16 %v1039, %v1035
      %v1308 = vpack.c.b16 %v1044, %v1040
      %v1309 = vpack.c.b16 %v1045, %v1041
      %v1310 = vpack.c.b16 %v1046, %v1042
      %v1311 = vpack.c.b16 %v1047, %v1043
      %v1312 = vpack.c.b16 %v1052, %v1048
      %v1313 = vpack.c.b16 %v1053, %v1049
      %v1314 = vpack.c.b16 %v1054, %v1050
      %v1315 = vpack.c.b16 %v1055, %v1051
      %v1316 = vpack.c.b16 %v1060, %v1056
      %v1317 = vpack.c.b16 %v1061, %v1057
      %v1318 = vpack.c.b16 %v1062, %v1058
      %v1319 = vpack.c.b16 %v1063, %v1059
      %v1320 = vpack.c.b16 %v1068, %v1064
      %v1321 = vpack.c.b16 %v1069, %v1065
      %v1322 = vpack.c.b16 %v1070, %v1066
      %v1323 = vpack.c.b16 %v1071, %v1067
      %v1324 = vpack.c.b16 %v1076, %v1072
      %v1325 = vpack.c.b16 %v1077, %v1073
      %v1326 = vpack.c.b16 %v1078, %v1074
      %v1327 = vpack.c.b16 %v1079, %v1075
      %v1328 = vpack.c.b16 %v1084, %v1080
      %v1329 = vpack.c.b16 %v1085, %v1081
      %v1330 = vpack.c.b16 %v1086, %v1082
      %v1331 = vpack.c.b16 %v1087, %v1083
      %v1332 = vpack.c.b16 %v1092, %v1088
      %v1333 = vpack.c.b16 %v1093, %v1089
      %v1334 = vpack.c.b16 %v1094, %v1090
      %v1335 = vpack.c.b16 %v1095, %v1091
      %v1336 = vpack.c.b16 %v1100, %v1096
      %v1337 = vpack.c.b16 %v1101, %v1097
      %v1338 = vpack.c.b16 %v1102, %v1098
      %v1339 = vpack.c.b16 %v1103, %v1099
      %v1340 = vpack.c.b16 %v1108, %v1104
      %v1341 = vpack.c.b16 %v1109, %v1105
      %v1342 = vpack.c.b16 %v1110, %v1106
      %v1343 = vpack.c.b16 %v1111, %v1107
      %v1344 = vpack.c.b16 %v1116, %v1112
      %v1345 = vpack.c.b16 %v1117, %v1113
      %v1346 = vpack.c.b16 %v1118, %v1114
      %v1347 = vpack.c.b16 %v1119, %v1115
      %v1348 = vpack.c.b16 %v1124, %v1120
      %v1349 = vpack.c.b16 %v1125, %v1121
      %v1350 = vpack.c.b16 %v1126, %v1122
      %v1351 = vpack.c.b16 %v1127, %v1123
      %v1352 = vpack.c.b16 %v1132, %v1128
      %v1353 = vpack.c.b16 %v1133, %v1129
      %v1354 = vpack.c.b16 %v1134, %v1130
      %v1355 = vpack.c.b16 %v1135, %v1131
      %v1356 = vpack.c.b16 %v1140, %v1136
      %v1357 = vpack.c.b16 %v1141, %v1137
      %v1358 = vpack.c.b16 %v1142, %v1138
      %v1359 = vpack.c.b16 %v1143, %v1139
      %v1360 = vpack.c.b16 %v1148, %v1144
      %v1361 = vpack.c.b16 %v1149, %v1145
      %v1362 = vpack.c.b16 %v1150, %v1146
      %v1363 = vpack.c.b16 %v1151, %v1147
      %v1364 = vpack.c.b16 %v1156, %v1152
      %v1365 = vpack.c.b16 %v1157, %v1153
      %v1366 = vpack.c.b16 %v1158, %v1154
      %v1367 = vpack.c.b16 %v1159, %v1155
      %v1368 = vpack.c.b16 %v1164, %v1160
      %v1369 = vpack.c.b16 %v1165, %v1161
      %v1370 = vpack.c.b16 %v1166, %v1162
      %v1371 = vpack.c.b16 %v1167, %v1163
      %v1372 = vpack.c.b16 %v1172, %v1168
      %v1373 = vpack.c.b16 %v1173, %v1169
      %v1374 = vpack.c.b16 %v1174, %v1170
      %v1375 = vpack.c.b16 %v1175, %v1171
      %v1376 = vpack.c.b16 %v1180, %v1176
      %v1377 = vpack.c.b16 %v1181, %v1177
      %v1378 = vpack.c.b16 %v1182, %v1178
      %v1379 = vpack.c.b16 %v1183, %v1179
      %v1380 = vpack.c.b16 %v1188, %v1184
      %v1381 = vpack.c.b16 %v1189, %v1185
      %v1382 = vpack.c.b16 %v1190, %v1186
      %v1383 = vpack.c.b16 %v1191, %v1187
      %1576 = vmatprep.subr.bf16.mxu0 %v1221
      %1577 = vmatpush1.bf16.msra.mxu0 %v1220
      %1578 = vmatprep.subr.bf16.mxu0 %v1217
      %1579 = vmatpush1.bf16.msra.mxu0 %v1216
      %1580 = vmatprep.subr.bf16.mxu0 %v1213
      %1581 = vmatpush1.bf16.msra.mxu0 %v1212
      %1582 = vmatprep.subr.bf16.mxu0 %v1209
      %1583 = vmatpush1.bf16.msra.mxu0 %v1208
      %1584 = vmatprep.subr.bf16.mxu0 %v1205
      %1585 = vmatpush1.bf16.msra.mxu0 %v1204
      %1586 = vmatprep.subr.bf16.mxu0 %v1201
      %1587 = vmatpush1.bf16.msra.mxu0 %v1200
      %1588 = vmatprep.subr.bf16.mxu0 %v1197
      %1589 = vmatpush1.bf16.msra.mxu0 %v1196
      %1590 = vmatprep.subr.bf16.mxu0 %v1193
      %1591 = vmatpush1.bf16.msra.mxu0 %v1192
      %1592 = vmatprep.subr.bf16.mxu0 %v1253
      %1593 = vmatpush2.bf16.msra.mxu0 %v1252
      %1594 = vmatprep.subr.bf16.mxu0 %v1249
      %1595 = vmatpush2.bf16.msra.mxu0 %v1248
      %1596 = vmatprep.subr.bf16.mxu0 %v1245
      %1597 = vmatpush2.bf16.msra.mxu0 %v1244
      %1598 = vmatprep.subr.bf16.mxu0 %v1241
      %1599 = vmatpush2.bf16.msra.mxu0 %v1240
      %1600 = vmatprep.subr.bf16.mxu0 %v1237
      %1601 = vmatpush2.bf16.msra.mxu0 %v1236
      %1602 = vmatprep.subr.bf16.mxu0 %v1233
      %1603 = vmatpush2.bf16.msra.mxu0 %v1232
      %1604 = vmatprep.subr.bf16.mxu0 %v1229
      %1605 = vmatpush2.bf16.msra.mxu0 %v1228
      %1606 = vmatprep.subr.bf16.mxu0 %v1225
      %1607 = vmatpush2.bf16.msra.mxu0 %v1224
      %1608 = vmatprep.mubr.bf16.mxu0 %v605
      %1609 = vmatmul.mubr.bf16.gmra.mxu0 %v604
      %v1610 = vpop.f32.mrf.mxu0
      %v1611 = vadd.f32 %v578, %v1610
      %v1612 = vpop.f32.mrf.mxu0
      %v1613 = vadd.f32 %v582, %v1612
      %v1614 = vpop.f32.mrf.mxu0
      %v1615 = vpop.f32.mrf.mxu0
      %1616 = vdwg.mxu0
      %1617 = vmatprep.subr.bf16.mxu0 %v1285
      %1618 = vmatpush1.bf16.msra.mxu0 %v1284
      %1619 = vmatprep.subr.bf16.mxu0 %v1281
      %1620 = vmatpush1.bf16.msra.mxu0 %v1280
      %1621 = vmatprep.subr.bf16.mxu0 %v1277
      %1622 = vmatpush1.bf16.msra.mxu0 %v1276
      %1623 = vmatprep.subr.bf16.mxu0 %v1273
      %1624 = vmatpush1.bf16.msra.mxu0 %v1272
      %1625 = vmatprep.subr.bf16.mxu0 %v1269
      %1626 = vmatpush1.bf16.msra.mxu0 %v1268
      %1627 = vmatprep.subr.bf16.mxu0 %v1265
      %1628 = vmatpush1.bf16.msra.mxu0 %v1264
      %1629 = vmatprep.subr.bf16.mxu0 %v1261
      %1630 = vmatpush1.bf16.msra.mxu0 %v1260
      %1631 = vmatprep.subr.bf16.mxu0 %v1257
      %1632 = vmatpush1.bf16.msra.mxu0 %v1256
      %1633 = vmatprep.subr.bf16.mxu0 %v1317
      %1634 = vmatpush2.bf16.msra.mxu0 %v1316
      %1635 = vmatprep.subr.bf16.mxu0 %v1313
      %1636 = vmatpush2.bf16.msra.mxu0 %v1312
      %1637 = vmatprep.subr.bf16.mxu0 %v1309
      %1638 = vmatpush2.bf16.msra.mxu0 %v1308
      %1639 = vmatprep.subr.bf16.mxu0 %v1305
      %1640 = vmatpush2.bf16.msra.mxu0 %v1304
      %1641 = vmatprep.subr.bf16.mxu0 %v1301
      %1642 = vmatpush2.bf16.msra.mxu0 %v1300
      %1643 = vmatprep.subr.bf16.mxu0 %v1297
      %1644 = vmatpush2.bf16.msra.mxu0 %v1296
      %1645 = vmatprep.subr.bf16.mxu0 %v1293
      %1646 = vmatpush2.bf16.msra.mxu0 %v1292
      %1647 = vmatprep.subr.bf16.mxu0 %v1289
      %1648 = vmatpush2.bf16.msra.mxu0 %v1288
      %1649 = vmatprep.mubr.bf16.mxu0 %v607
      %1650 = vmatmul.mubr.bf16.gmra.mxu0 %v606
      %v1651 = vpop.f32.mrf.mxu0
      %v1652 = vadd.f32 %v1611, %v1651
      %v1653 = vpop.f32.mrf.mxu0
      %v1654 = vadd.f32 %v1613, %v1653
      %v1655 = vpop.f32.mrf.mxu0
      %v1656 = vpop.f32.mrf.mxu0
      %1657 = vdwg.mxu0
      %1658 = vmatprep.subr.bf16.mxu0 %v1349
      %1659 = vmatpush1.bf16.msra.mxu0 %v1348
      %1660 = vmatprep.subr.bf16.mxu0 %v1345
      %1661 = vmatpush1.bf16.msra.mxu0 %v1344
      %1662 = vmatprep.subr.bf16.mxu0 %v1341
      %1663 = vmatpush1.bf16.msra.mxu0 %v1340
      %1664 = vmatprep.subr.bf16.mxu0 %v1337
      %1665 = vmatpush1.bf16.msra.mxu0 %v1336
      %1666 = vmatprep.subr.bf16.mxu0 %v1333
      %1667 = vmatpush1.bf16.msra.mxu0 %v1332
      %1668 = vmatprep.subr.bf16.mxu0 %v1329
      %1669 = vmatpush1.bf16.msra.mxu0 %v1328
      %1670 = vmatprep.subr.bf16.mxu0 %v1325
      %1671 = vmatpush1.bf16.msra.mxu0 %v1324
      %1672 = vmatprep.subr.bf16.mxu0 %v1321
      %1673 = vmatpush1.bf16.msra.mxu0 %v1320
      %1674 = vmatprep.subr.bf16.mxu0 %v1381
      %1675 = vmatpush2.bf16.msra.mxu0 %v1380
      %1676 = vmatprep.subr.bf16.mxu0 %v1377
      %1677 = vmatpush2.bf16.msra.mxu0 %v1376
      %1678 = vmatprep.subr.bf16.mxu0 %v1373
      %1679 = vmatpush2.bf16.msra.mxu0 %v1372
      %1680 = vmatprep.subr.bf16.mxu0 %v1369
      %1681 = vmatpush2.bf16.msra.mxu0 %v1368
      %1682 = vmatprep.subr.bf16.mxu0 %v1365
      %1683 = vmatpush2.bf16.msra.mxu0 %v1364
      %1684 = vmatprep.subr.bf16.mxu0 %v1361
      %1685 = vmatpush2.bf16.msra.mxu0 %v1360
      %1686 = vmatprep.subr.bf16.mxu0 %v1357
      %1687 = vmatpush2.bf16.msra.mxu0 %v1356
      %1688 = vmatprep.subr.bf16.mxu0 %v1353
      %1689 = vmatpush2.bf16.msra.mxu0 %v1352
      %1690 = vmatprep.mubr.bf16.mxu0 %v609
      %1691 = vmatmul.mubr.bf16.gmra.mxu0 %v608
      %v1692 = vpop.f32.mrf.mxu0
      %v1693 = vadd.f32 %v1652, %v1692
      %v1694 = vpop.f32.mrf.mxu0
      %v1695 = vadd.f32 %v1654, %v1694
      %v1696 = vpop.f32.mrf.mxu0
      %v1697 = vpop.f32.mrf.mxu0
      %1698 = vdwg.mxu0
      %1699 = vmatprep.subr.bf16.mxu0 %v1223
      %1700 = vmatpush1.bf16.msra.mxu0 %v1222
      %1701 = vmatprep.subr.bf16.mxu0 %v1219
      %1702 = vmatpush1.bf16.msra.mxu0 %v1218
      %1703 = vmatprep.subr.bf16.mxu0 %v1215
      %1704 = vmatpush1.bf16.msra.mxu0 %v1214
      %1705 = vmatprep.subr.bf16.mxu0 %v1211
      %1706 = vmatpush1.bf16.msra.mxu0 %v1210
      %1707 = vmatprep.subr.bf16.mxu0 %v1207
      %1708 = vmatpush1.bf16.msra.mxu0 %v1206
      %1709 = vmatprep.subr.bf16.mxu0 %v1203
      %1710 = vmatpush1.bf16.msra.mxu0 %v1202
      %1711 = vmatprep.subr.bf16.mxu0 %v1199
      %1712 = vmatpush1.bf16.msra.mxu0 %v1198
      %1713 = vmatprep.subr.bf16.mxu0 %v1195
      %1714 = vmatpush1.bf16.msra.mxu0 %v1194
      %1715 = vmatprep.subr.bf16.mxu0 %v1255
      %1716 = vmatpush2.bf16.msra.mxu0 %v1254
      %1717 = vmatprep.subr.bf16.mxu0 %v1251
      %1718 = vmatpush2.bf16.msra.mxu0 %v1250
      %1719 = vmatprep.subr.bf16.mxu0 %v1247
      %1720 = vmatpush2.bf16.msra.mxu0 %v1246
      %1721 = vmatprep.subr.bf16.mxu0 %v1243
      %1722 = vmatpush2.bf16.msra.mxu0 %v1242
      %1723 = vmatprep.subr.bf16.mxu0 %v1239
      %1724 = vmatpush2.bf16.msra.mxu0 %v1238
      %1725 = vmatprep.subr.bf16.mxu0 %v1235
      %1726 = vmatpush2.bf16.msra.mxu0 %v1234
      %1727 = vmatprep.subr.bf16.mxu0 %v1231
      %1728 = vmatpush2.bf16.msra.mxu0 %v1230
      %1729 = vmatprep.subr.bf16.mxu0 %v1227
      %1730 = vmatpush2.bf16.msra.mxu0 %v1226
      %1731 = vmatprep.mubr.bf16.mxu0 %v605
      %1732 = vmatmul.mubr.bf16.gmra.mxu0 %v604
      %v1733 = vpop.f32.mrf.mxu0
      %v1734 = vadd.f32 %v586, %v1733
      %v1735 = vpop.f32.mrf.mxu0
      %v1736 = vadd.f32 %v590, %v1735
      %v1737 = vpop.f32.mrf.mxu0
      %v1738 = vpop.f32.mrf.mxu0
      %1739 = vdwg.mxu0
      %1740 = vmatprep.subr.bf16.mxu0 %v1287
      %1741 = vmatpush1.bf16.msra.mxu0 %v1286
      %1742 = vmatprep.subr.bf16.mxu0 %v1283
      %1743 = vmatpush1.bf16.msra.mxu0 %v1282
      %1744 = vmatprep.subr.bf16.mxu0 %v1279
      %1745 = vmatpush1.bf16.msra.mxu0 %v1278
      %1746 = vmatprep.subr.bf16.mxu0 %v1275
      %1747 = vmatpush1.bf16.msra.mxu0 %v1274
      %1748 = vmatprep.subr.bf16.mxu0 %v1271
      %1749 = vmatpush1.bf16.msra.mxu0 %v1270
      %1750 = vmatprep.subr.bf16.mxu0 %v1267
      %1751 = vmatpush1.bf16.msra.mxu0 %v1266
      %1752 = vmatprep.subr.bf16.mxu0 %v1263
      %1753 = vmatpush1.bf16.msra.mxu0 %v1262
      %1754 = vmatprep.subr.bf16.mxu0 %v1259
      %1755 = vmatpush1.bf16.msra.mxu0 %v1258
      %1756 = vmatprep.subr.bf16.mxu0 %v1319
      %1757 = vmatpush2.bf16.msra.mxu0 %v1318
      %1758 = vmatprep.subr.bf16.mxu0 %v1315
      %1759 = vmatpush2.bf16.msra.mxu0 %v1314
      %1760 = vmatprep.subr.bf16.mxu0 %v1311
      %1761 = vmatpush2.bf16.msra.mxu0 %v1310
      %1762 = vmatprep.subr.bf16.mxu0 %v1307
      %1763 = vmatpush2.bf16.msra.mxu0 %v1306
      %1764 = vmatprep.subr.bf16.mxu0 %v1303
      %1765 = vmatpush2.bf16.msra.mxu0 %v1302
      %1766 = vmatprep.subr.bf16.mxu0 %v1299
      %1767 = vmatpush2.bf16.msra.mxu0 %v1298
      %1768 = vmatprep.subr.bf16.mxu0 %v1295
      %1769 = vmatpush2.bf16.msra.mxu0 %v1294
      %1770 = vmatprep.subr.bf16.mxu0 %v1291
      %1771 = vmatpush2.bf16.msra.mxu0 %v1290
      %1772 = vmatprep.mubr.bf16.mxu0 %v607
      %1773 = vmatmul.mubr.bf16.gmra.mxu0 %v606
      %v1774 = vpop.f32.mrf.mxu0
      %v1775 = vadd.f32 %v1734, %v1774
      %v1776 = vpop.f32.mrf.mxu0
      %v1777 = vadd.f32 %v1736, %v1776
      %v1778 = vpop.f32.mrf.mxu0
      %v1779 = vpop.f32.mrf.mxu0
      %1780 = vdwg.mxu0
      %1781 = vmatprep.subr.bf16.mxu0 %v1351
      %1782 = vmatpush1.bf16.msra.mxu0 %v1350
      %1783 = vmatprep.subr.bf16.mxu0 %v1347
      %1784 = vmatpush1.bf16.msra.mxu0 %v1346
      %1785 = vmatprep.subr.bf16.mxu0 %v1343
      %1786 = vmatpush1.bf16.msra.mxu0 %v1342
      %1787 = vmatprep.subr.bf16.mxu0 %v1339
      %1788 = vmatpush1.bf16.msra.mxu0 %v1338
      %1789 = vmatprep.subr.bf16.mxu0 %v1335
      %1790 = vmatpush1.bf16.msra.mxu0 %v1334
      %1791 = vmatprep.subr.bf16.mxu0 %v1331
      %1792 = vmatpush1.bf16.msra.mxu0 %v1330
      %1793 = vmatprep.subr.bf16.mxu0 %v1327
      %1794 = vmatpush1.bf16.msra.mxu0 %v1326
      %1795 = vmatprep.subr.bf16.mxu0 %v1323
      %1796 = vmatpush1.bf16.msra.mxu0 %v1322
      %1797 = vmatprep.subr.bf16.mxu0 %v1383
      %1798 = vmatpush2.bf16.msra.mxu0 %v1382
      %1799 = vmatprep.subr.bf16.mxu0 %v1379
      %1800 = vmatpush2.bf16.msra.mxu0 %v1378
      %1801 = vmatprep.subr.bf16.mxu0 %v1375
      %1802 = vmatpush2.bf16.msra.mxu0 %v1374
      %1803 = vmatprep.subr.bf16.mxu0 %v1371
      %1804 = vmatpush2.bf16.msra.mxu0 %v1370
      %1805 = vmatprep.subr.bf16.mxu0 %v1367
      %1806 = vmatpush2.bf16.msra.mxu0 %v1366
      %1807 = vmatprep.subr.bf16.mxu0 %v1363
      %1808 = vmatpush2.bf16.msra.mxu0 %v1362
      %1809 = vmatprep.subr.bf16.mxu0 %v1359
      %1810 = vmatpush2.bf16.msra.mxu0 %v1358
      %1811 = vmatprep.subr.bf16.mxu0 %v1355
      %1812 = vmatpush2.bf16.msra.mxu0 %v1354
      %1813 = vmatprep.mubr.bf16.mxu0 %v609
      %1814 = vmatmul.mubr.bf16.gmra.mxu0 %v608
      %v1815 = vpop.f32.mrf.mxu0
      %v1816 = vadd.f32 %v1775, %v1815
      %v1817 = vpop.f32.mrf.mxu0
      %v1818 = vadd.f32 %v1777, %v1817
      %v1819 = vpop.f32.mrf.mxu0
      %v1820 = vpop.f32.mrf.mxu0
      %1821 = vdwg.mxu0
      %v1822 = vmax.f32 %v1693, 0.0
      %v1823 = vmax.f32 %v1695, 0.0
      %v1824 = vmax.f32 %v1816, 0.0
      %v1825 = vmax.f32 %v1818, 0.0
      %v1826 = vpack.c.bf16 %v1822, %v1822
      %v1827 = vpack.c.bf16 %v1823, %v1823
      %v1828 = vpack.c.bf16 %v1824, %v1824
      %v1829 = vpack.c.bf16 %v1825, %v1825
      %v1830 = vld [vmem:[%s365] sm:$0xff]
      %v1831 = vld [vmem:[%s365 + $0x8] sm:$0xff]
      %v1832 = vld [vmem:[%s365 + $0x10] sm:$0xff]
      %v1833 = vld [vmem:[%s365 + $0x18] sm:$0xff]
      %v1834 = vld [vmem:[%s365 + $0x20] sm:$0xff]
      %v1835 = vld [vmem:[%s365 + $0x28] sm:$0xff]
      %v1836 = vld [vmem:[%s365 + $0x30] sm:$0xff]
      %v1837 = vld [vmem:[%s365 + $0x38] sm:$0xff]
      %v1838 = vld [vmem:[%s365 + $0x40] sm:$0xff]
      %v1839 = vld [vmem:[%s365 + $0x48] sm:$0xff]
      %v1840 = vld [vmem:[%s365 + $0x50] sm:$0xff]
      %v1841 = vld [vmem:[%s365 + $0x58] sm:$0xff]
      %v1842 = vld [vmem:[%s365 + $0x60] sm:$0xff]
      %v1843 = vld [vmem:[%s365 + $0x68] sm:$0xff]
      %v1844 = vld [vmem:[%s365 + $0x70] sm:$0xff]
      %v1845 = vld [vmem:[%s365 + $0x78] sm:$0xff]
      %v1846 = vld [vmem:[%s365 + $0x80] sm:$0xff]
      %v1847 = vld [vmem:[%s365 + $0x88] sm:$0xff]
      %v1848 = vld [vmem:[%s365 + $0x90] sm:$0xff]
      %v1849 = vld [vmem:[%s365 + $0x98] sm:$0xff]
      %v1850 = vld [vmem:[%s365 + $0xa0] sm:$0xff]
      %v1851 = vld [vmem:[%s365 + $0xa8] sm:$0xff]
      %v1852 = vld [vmem:[%s365 + $0xb0] sm:$0xff]
      %v1853 = vld [vmem:[%s365 + $0xb8] sm:$0xff]
      %v1854 = vld [vmem:[%s365 + $0xc0] sm:$0xff]
      %v1855 = vld [vmem:[%s365 + $0xc8] sm:$0xff]
      %v1856 = vld [vmem:[%s365 + $0xd0] sm:$0xff]
      %v1857 = vld [vmem:[%s365 + $0xd8] sm:$0xff]
      %v1858 = vld [vmem:[%s365 + $0xe0] sm:$0xff]
      %v1859 = vld [vmem:[%s365 + $0xe8] sm:$0xff]
      %v1860 = vld [vmem:[%s365 + $0xf0] sm:$0xff]
      %v1861 = vld [vmem:[%s365 + $0xf8] sm:$0xff]
      %v1862 = vld [vmem:[%s365 + $0x100] sm:$0xff]
      %v1863 = vld [vmem:[%s365 + $0x108] sm:$0xff]
      %v1864 = vld [vmem:[%s365 + $0x110] sm:$0xff]
      %v1865 = vld [vmem:[%s365 + $0x118] sm:$0xff]
      %v1866 = vld [vmem:[%s365 + $0x120] sm:$0xff]
      %v1867 = vld [vmem:[%s365 + $0x128] sm:$0xff]
      %v1868 = vld [vmem:[%s365 + $0x130] sm:$0xff]
      %v1869 = vld [vmem:[%s365 + $0x138] sm:$0xff]
      %v1870 = vld [vmem:[%s365 + $0x140] sm:$0xff]
      %v1871 = vld [vmem:[%s365 + $0x148] sm:$0xff]
      %v1872 = vld [vmem:[%s365 + $0x150] sm:$0xff]
      %v1873 = vld [vmem:[%s365 + $0x158] sm:$0xff]
      %v1874 = vld [vmem:[%s365 + $0x160] sm:$0xff]
      %v1875 = vld [vmem:[%s365 + $0x168] sm:$0xff]
      %v1876 = vld [vmem:[%s365 + $0x170] sm:$0xff]
      %v1877 = vld [vmem:[%s365 + $0x178] sm:$0xff]
      %v1878 = vld [vmem:[%s365 + $0x180] sm:$0xff]
      %v1879 = vld [vmem:[%s365 + $0x188] sm:$0xff]
      %v1880 = vld [vmem:[%s365 + $0x190] sm:$0xff]
      %v1881 = vld [vmem:[%s365 + $0x198] sm:$0xff]
      %v1882 = vld [vmem:[%s365 + $0x1a0] sm:$0xff]
      %v1883 = vld [vmem:[%s365 + $0x1a8] sm:$0xff]
      %v1884 = vld [vmem:[%s365 + $0x1b0] sm:$0xff]
      %v1885 = vld [vmem:[%s365 + $0x1b8] sm:$0xff]
      %v1886 = vld [vmem:[%s365 + $0x1c0] sm:$0xff]
      %v1887 = vld [vmem:[%s365 + $0x1c8] sm:$0xff]
      %v1888 = vld [vmem:[%s365 + $0x1d0] sm:$0xff]
      %v1889 = vld [vmem:[%s365 + $0x1d8] sm:$0xff]
      %v1890 = vld [vmem:[%s365 + $0x1e0] sm:$0xff]
      %v1891 = vld [vmem:[%s365 + $0x1e8] sm:$0xff]
      %v1892 = vld [vmem:[%s365 + $0x1f0] sm:$0xff]
      %v1893 = vld [vmem:[%s365 + $0x1f8] sm:$0xff]
      %v1894 = vld [vmem:[%s365 + $0x200] sm:$0xff]
      %v1895 = vld [vmem:[%s365 + $0x208] sm:$0xff]
      %v1896 = vld [vmem:[%s365 + $0x210] sm:$0xff]
      %v1897 = vld [vmem:[%s365 + $0x218] sm:$0xff]
      %v1898 = vld [vmem:[%s365 + $0x220] sm:$0xff]
      %v1899 = vld [vmem:[%s365 + $0x228] sm:$0xff]
      %v1900 = vld [vmem:[%s365 + $0x230] sm:$0xff]
      %v1901 = vld [vmem:[%s365 + $0x238] sm:$0xff]
      %v1902 = vld [vmem:[%s365 + $0x240] sm:$0xff]
      %v1903 = vld [vmem:[%s365 + $0x248] sm:$0xff]
      %v1904 = vld [vmem:[%s365 + $0x250] sm:$0xff]
      %v1905 = vld [vmem:[%s365 + $0x258] sm:$0xff]
      %v1906 = vld [vmem:[%s365 + $0x260] sm:$0xff]
      %v1907 = vld [vmem:[%s365 + $0x268] sm:$0xff]
      %v1908 = vld [vmem:[%s365 + $0x270] sm:$0xff]
      %v1909 = vld [vmem:[%s365 + $0x278] sm:$0xff]
      %v1910 = vld [vmem:[%s365 + $0x280] sm:$0xff]
      %v1911 = vld [vmem:[%s365 + $0x288] sm:$0xff]
      %v1912 = vld [vmem:[%s365 + $0x290] sm:$0xff]
      %v1913 = vld [vmem:[%s365 + $0x298] sm:$0xff]
      %v1914 = vld [vmem:[%s365 + $0x2a0] sm:$0xff]
      %v1915 = vld [vmem:[%s365 + $0x2a8] sm:$0xff]
      %v1916 = vld [vmem:[%s365 + $0x2b0] sm:$0xff]
      %v1917 = vld [vmem:[%s365 + $0x2b8] sm:$0xff]
      %v1918 = vld [vmem:[%s365 + $0x2c0] sm:$0xff]
      %v1919 = vld [vmem:[%s365 + $0x2c8] sm:$0xff]
      %v1920 = vld [vmem:[%s365 + $0x2d0] sm:$0xff]
      %v1921 = vld [vmem:[%s365 + $0x2d8] sm:$0xff]
      %v1922 = vld [vmem:[%s365 + $0x2e0] sm:$0xff]
      %v1923 = vld [vmem:[%s365 + $0x2e8] sm:$0xff]
      %v1924 = vld [vmem:[%s365 + $0x2f0] sm:$0xff]
      %v1925 = vld [vmem:[%s365 + $0x2f8] sm:$0xff]
      %v1926 = vld [vmem:[%s365 + $0x300] sm:$0xff]
      %v1927 = vld [vmem:[%s365 + $0x308] sm:$0xff]
      %v1928 = vld [vmem:[%s365 + $0x310] sm:$0xff]
      %v1929 = vld [vmem:[%s365 + $0x318] sm:$0xff]
      %v1930 = vld [vmem:[%s365 + $0x320] sm:$0xff]
      %v1931 = vld [vmem:[%s365 + $0x328] sm:$0xff]
      %v1932 = vld [vmem:[%s365 + $0x330] sm:$0xff]
      %v1933 = vld [vmem:[%s365 + $0x338] sm:$0xff]
      %v1934 = vld [vmem:[%s365 + $0x340] sm:$0xff]
      %v1935 = vld [vmem:[%s365 + $0x348] sm:$0xff]
      %v1936 = vld [vmem:[%s365 + $0x350] sm:$0xff]
      %v1937 = vld [vmem:[%s365 + $0x358] sm:$0xff]
      %v1938 = vld [vmem:[%s365 + $0x360] sm:$0xff]
      %v1939 = vld [vmem:[%s365 + $0x368] sm:$0xff]
      %v1940 = vld [vmem:[%s365 + $0x370] sm:$0xff]
      %v1941 = vld [vmem:[%s365 + $0x378] sm:$0xff]
      %v1942 = vld [vmem:[%s365 + $0x380] sm:$0xff]
      %v1943 = vld [vmem:[%s365 + $0x388] sm:$0xff]
      %v1944 = vld [vmem:[%s365 + $0x390] sm:$0xff]
      %v1945 = vld [vmem:[%s365 + $0x398] sm:$0xff]
      %v1946 = vld [vmem:[%s365 + $0x3a0] sm:$0xff]
      %v1947 = vld [vmem:[%s365 + $0x3a8] sm:$0xff]
      %v1948 = vld [vmem:[%s365 + $0x3b0] sm:$0xff]
      %v1949 = vld [vmem:[%s365 + $0x3b8] sm:$0xff]
      %v1950 = vld [vmem:[%s365 + $0x3c0] sm:$0xff]
      %v1951 = vld [vmem:[%s365 + $0x3c8] sm:$0xff]
      %v1952 = vld [vmem:[%s365 + $0x3d0] sm:$0xff]
      %v1953 = vld [vmem:[%s365 + $0x3d8] sm:$0xff]
      %v1954 = vld [vmem:[%s365 + $0x3e0] sm:$0xff]
      %v1955 = vld [vmem:[%s365 + $0x3e8] sm:$0xff]
      %v1956 = vld [vmem:[%s365 + $0x3f0] sm:$0xff]
      %v1957 = vld [vmem:[%s365 + $0x3f8] sm:$0xff]
      %v1958 = vld [vmem:[%s365 + $0x400] sm:$0xff]
      %v1959 = vld [vmem:[%s365 + $0x408] sm:$0xff]
      %v1960 = vld [vmem:[%s365 + $0x410] sm:$0xff]
      %v1961 = vld [vmem:[%s365 + $0x418] sm:$0xff]
      %v1962 = vld [vmem:[%s365 + $0x420] sm:$0xff]
      %v1963 = vld [vmem:[%s365 + $0x428] sm:$0xff]
      %v1964 = vld [vmem:[%s365 + $0x430] sm:$0xff]
      %v1965 = vld [vmem:[%s365 + $0x438] sm:$0xff]
      %v1966 = vld [vmem:[%s365 + $0x440] sm:$0xff]
      %v1967 = vld [vmem:[%s365 + $0x448] sm:$0xff]
      %v1968 = vld [vmem:[%s365 + $0x450] sm:$0xff]
      %v1969 = vld [vmem:[%s365 + $0x458] sm:$0xff]
      %v1970 = vld [vmem:[%s365 + $0x460] sm:$0xff]
      %v1971 = vld [vmem:[%s365 + $0x468] sm:$0xff]
      %v1972 = vld [vmem:[%s365 + $0x470] sm:$0xff]
      %v1973 = vld [vmem:[%s365 + $0x478] sm:$0xff]
      %v1974 = vld [vmem:[%s365 + $0x480] sm:$0xff]
      %v1975 = vld [vmem:[%s365 + $0x488] sm:$0xff]
      %v1976 = vld [vmem:[%s365 + $0x490] sm:$0xff]
      %v1977 = vld [vmem:[%s365 + $0x498] sm:$0xff]
      %v1978 = vld [vmem:[%s365 + $0x4a0] sm:$0xff]
      %v1979 = vld [vmem:[%s365 + $0x4a8] sm:$0xff]
      %v1980 = vld [vmem:[%s365 + $0x4b0] sm:$0xff]
      %v1981 = vld [vmem:[%s365 + $0x4b8] sm:$0xff]
      %v1982 = vld [vmem:[%s365 + $0x4c0] sm:$0xff]
      %v1983 = vld [vmem:[%s365 + $0x4c8] sm:$0xff]
      %v1984 = vld [vmem:[%s365 + $0x4d0] sm:$0xff]
      %v1985 = vld [vmem:[%s365 + $0x4d8] sm:$0xff]
      %v1986 = vld [vmem:[%s365 + $0x4e0] sm:$0xff]
      %v1987 = vld [vmem:[%s365 + $0x4e8] sm:$0xff]
      %v1988 = vld [vmem:[%s365 + $0x4f0] sm:$0xff]
      %v1989 = vld [vmem:[%s365 + $0x4f8] sm:$0xff]
      %v1990 = vld [vmem:[%s365 + $0x500] sm:$0xff]
      %v1991 = vld [vmem:[%s365 + $0x508] sm:$0xff]
      %v1992 = vld [vmem:[%s365 + $0x510] sm:$0xff]
      %v1993 = vld [vmem:[%s365 + $0x518] sm:$0xff]
      %v1994 = vld [vmem:[%s365 + $0x520] sm:$0xff]
      %v1995 = vld [vmem:[%s365 + $0x528] sm:$0xff]
      %v1996 = vld [vmem:[%s365 + $0x530] sm:$0xff]
      %v1997 = vld [vmem:[%s365 + $0x538] sm:$0xff]
      %v1998 = vld [vmem:[%s365 + $0x540] sm:$0xff]
      %v1999 = vld [vmem:[%s365 + $0x548] sm:$0xff]
      %v2000 = vld [vmem:[%s365 + $0x550] sm:$0xff]
      %v2001 = vld [vmem:[%s365 + $0x558] sm:$0xff]
      %v2002 = vld [vmem:[%s365 + $0x560] sm:$0xff]
      %v2003 = vld [vmem:[%s365 + $0x568] sm:$0xff]
      %v2004 = vld [vmem:[%s365 + $0x570] sm:$0xff]
      %v2005 = vld [vmem:[%s365 + $0x578] sm:$0xff]
      %v2006 = vld [vmem:[%s365 + $0x580] sm:$0xff]
      %v2007 = vld [vmem:[%s365 + $0x588] sm:$0xff]
      %v2008 = vld [vmem:[%s365 + $0x590] sm:$0xff]
      %v2009 = vld [vmem:[%s365 + $0x598] sm:$0xff]
      %v2010 = vld [vmem:[%s365 + $0x5a0] sm:$0xff]
      %v2011 = vld [vmem:[%s365 + $0x5a8] sm:$0xff]
      %v2012 = vld [vmem:[%s365 + $0x5b0] sm:$0xff]
      %v2013 = vld [vmem:[%s365 + $0x5b8] sm:$0xff]
      %v2014 = vld [vmem:[%s365 + $0x5c0] sm:$0xff]
      %v2015 = vld [vmem:[%s365 + $0x5c8] sm:$0xff]
      %v2016 = vld [vmem:[%s365 + $0x5d0] sm:$0xff]
      %v2017 = vld [vmem:[%s365 + $0x5d8] sm:$0xff]
      %v2018 = vld [vmem:[%s365 + $0x5e0] sm:$0xff]
      %v2019 = vld [vmem:[%s365 + $0x5e8] sm:$0xff]
      %v2020 = vld [vmem:[%s365 + $0x5f0] sm:$0xff]
      %v2021 = vld [vmem:[%s365 + $0x5f8] sm:$0xff]
      %v2022 = vld [vmem:[%s371] sm:$0x3f]
      %v2024 = vlaneseq
      %v2025 = vshrl.u32 %v2024, 7
      %v2026 = vsub.s32 0, %v2025
      %v2027 = vrot.slane %v2022, %v2026
      %v2028 = vlaneseq
      %v2029 = vshrl.u32 %v2028, 7
      %v2030 = vsub.s32 1, %v2029
      %v2031 = vrot.slane %v2022, %v2030
      %v2032 = vlaneseq
      %v2033 = vshrl.u32 %v2032, 7
      %v2034 = vsub.s32 2, %v2033
      %v2035 = vrot.slane %v2022, %v2034
      %v2036 = vlaneseq
      %v2037 = vshrl.u32 %v2036, 7
      %v2038 = vsub.s32 3, %v2037
      %v2039 = vrot.slane %v2022, %v2038
      %v2040 = vlaneseq
      %v2041 = vshrl.u32 %v2040, 7
      %v2042 = vsub.s32 4, %v2041
      %v2043 = vrot.slane %v2022, %v2042
      %v2044 = vlaneseq
      %v2045 = vshrl.u32 %v2044, 7
      %v2046 = vsub.s32 5, %v2045
      %v2047 = vrot.slane %v2022, %v2046
      %v2246 = vunpack.c.l.b16 %v1830
      %v2247 = vunpack.c.h.b16 %v1830
      %v2248 = vunpack.c.l.b16 %v1831
      %v2249 = vunpack.c.h.b16 %v1831
      %v2250 = vunpack.c.l.b16 %v1832
      %v2251 = vunpack.c.h.b16 %v1832
      %v2252 = vunpack.c.l.b16 %v1833
      %v2253 = vunpack.c.h.b16 %v1833
      %v2254 = vunpack.c.l.b16 %v1834
      %v2255 = vunpack.c.h.b16 %v1834
      %v2256 = vunpack.c.l.b16 %v1835
      %v2257 = vunpack.c.h.b16 %v1835
      %v2258 = vunpack.c.l.b16 %v1836
      %v2259 = vunpack.c.h.b16 %v1836
      %v2260 = vunpack.c.l.b16 %v1837
      %v2261 = vunpack.c.h.b16 %v1837
      %v2262 = vunpack.c.l.b16 %v1838
      %v2263 = vunpack.c.h.b16 %v1838
      %v2264 = vunpack.c.l.b16 %v1839
      %v2265 = vunpack.c.h.b16 %v1839
      %v2266 = vunpack.c.l.b16 %v1840
      %v2267 = vunpack.c.h.b16 %v1840
      %v2268 = vunpack.c.l.b16 %v1841
      %v2269 = vunpack.c.h.b16 %v1841
      %v2270 = vunpack.c.l.b16 %v1842
      %v2271 = vunpack.c.h.b16 %v1842
      %v2272 = vunpack.c.l.b16 %v1843
      %v2273 = vunpack.c.h.b16 %v1843
      %v2274 = vunpack.c.l.b16 %v1844
      %v2275 = vunpack.c.h.b16 %v1844
      %v2276 = vunpack.c.l.b16 %v1845
      %v2277 = vunpack.c.h.b16 %v1845
      %v2278 = vunpack.c.l.b16 %v1846
      %v2279 = vunpack.c.h.b16 %v1846
      %v2280 = vunpack.c.l.b16 %v1847
      %v2281 = vunpack.c.h.b16 %v1847
      %v2282 = vunpack.c.l.b16 %v1848
      %v2283 = vunpack.c.h.b16 %v1848
      %v2284 = vunpack.c.l.b16 %v1849
      %v2285 = vunpack.c.h.b16 %v1849
      %v2286 = vunpack.c.l.b16 %v1850
      %v2287 = vunpack.c.h.b16 %v1850
      %v2288 = vunpack.c.l.b16 %v1851
      %v2289 = vunpack.c.h.b16 %v1851
      %v2290 = vunpack.c.l.b16 %v1852
      %v2291 = vunpack.c.h.b16 %v1852
      %v2292 = vunpack.c.l.b16 %v1853
      %v2293 = vunpack.c.h.b16 %v1853
      %v2294 = vunpack.c.l.b16 %v1854
      %v2295 = vunpack.c.h.b16 %v1854
      %v2296 = vunpack.c.l.b16 %v1855
      %v2297 = vunpack.c.h.b16 %v1855
      %v2298 = vunpack.c.l.b16 %v1856
      %v2299 = vunpack.c.h.b16 %v1856
      %v2300 = vunpack.c.l.b16 %v1857
      %v2301 = vunpack.c.h.b16 %v1857
      %v2302 = vunpack.c.l.b16 %v1858
      %v2303 = vunpack.c.h.b16 %v1858
      %v2304 = vunpack.c.l.b16 %v1859
      %v2305 = vunpack.c.h.b16 %v1859
      %v2306 = vunpack.c.l.b16 %v1860
      %v2307 = vunpack.c.h.b16 %v1860
      %v2308 = vunpack.c.l.b16 %v1861
      %v2309 = vunpack.c.h.b16 %v1861
      %v2310 = vunpack.c.l.b16 %v1862
      %v2311 = vunpack.c.h.b16 %v1862
      %v2312 = vunpack.c.l.b16 %v1863
      %v2313 = vunpack.c.h.b16 %v1863
      %v2314 = vunpack.c.l.b16 %v1864
      %v2315 = vunpack.c.h.b16 %v1864
      %v2316 = vunpack.c.l.b16 %v1865
      %v2317 = vunpack.c.h.b16 %v1865
      %v2318 = vunpack.c.l.b16 %v1866
      %v2319 = vunpack.c.h.b16 %v1866
      %v2320 = vunpack.c.l.b16 %v1867
      %v2321 = vunpack.c.h.b16 %v1867
      %v2322 = vunpack.c.l.b16 %v1868
      %v2323 = vunpack.c.h.b16 %v1868
      %v2324 = vunpack.c.l.b16 %v1869
      %v2325 = vunpack.c.h.b16 %v1869
      %v2326 = vunpack.c.l.b16 %v1870
      %v2327 = vunpack.c.h.b16 %v1870
      %v2328 = vunpack.c.l.b16 %v1871
      %v2329 = vunpack.c.h.b16 %v1871
      %v2330 = vunpack.c.l.b16 %v1872
      %v2331 = vunpack.c.h.b16 %v1872
      %v2332 = vunpack.c.l.b16 %v1873
      %v2333 = vunpack.c.h.b16 %v1873
      %v2334 = vunpack.c.l.b16 %v1874
      %v2335 = vunpack.c.h.b16 %v1874
      %v2336 = vunpack.c.l.b16 %v1875
      %v2337 = vunpack.c.h.b16 %v1875
      %v2338 = vunpack.c.l.b16 %v1876
      %v2339 = vunpack.c.h.b16 %v1876
      %v2340 = vunpack.c.l.b16 %v1877
      %v2341 = vunpack.c.h.b16 %v1877
      %v2342 = vunpack.c.l.b16 %v1878
      %v2343 = vunpack.c.h.b16 %v1878
      %v2344 = vunpack.c.l.b16 %v1879
      %v2345 = vunpack.c.h.b16 %v1879
      %v2346 = vunpack.c.l.b16 %v1880
      %v2347 = vunpack.c.h.b16 %v1880
      %v2348 = vunpack.c.l.b16 %v1881
      %v2349 = vunpack.c.h.b16 %v1881
      %v2350 = vunpack.c.l.b16 %v1882
      %v2351 = vunpack.c.h.b16 %v1882
      %v2352 = vunpack.c.l.b16 %v1883
      %v2353 = vunpack.c.h.b16 %v1883
      %v2354 = vunpack.c.l.b16 %v1884
      %v2355 = vunpack.c.h.b16 %v1884
      %v2356 = vunpack.c.l.b16 %v1885
      %v2357 = vunpack.c.h.b16 %v1885
      %v2358 = vunpack.c.l.b16 %v1886
      %v2359 = vunpack.c.h.b16 %v1886
      %v2360 = vunpack.c.l.b16 %v1887
      %v2361 = vunpack.c.h.b16 %v1887
      %v2362 = vunpack.c.l.b16 %v1888
      %v2363 = vunpack.c.h.b16 %v1888
      %v2364 = vunpack.c.l.b16 %v1889
      %v2365 = vunpack.c.h.b16 %v1889
      %v2366 = vunpack.c.l.b16 %v1890
      %v2367 = vunpack.c.h.b16 %v1890
      %v2368 = vunpack.c.l.b16 %v1891
      %v2369 = vunpack.c.h.b16 %v1891
      %v2370 = vunpack.c.l.b16 %v1892
      %v2371 = vunpack.c.h.b16 %v1892
      %v2372 = vunpack.c.l.b16 %v1893
      %v2373 = vunpack.c.h.b16 %v1893
      %v2374 = vunpack.c.l.b16 %v1894
      %v2375 = vunpack.c.h.b16 %v1894
      %v2376 = vunpack.c.l.b16 %v1895
      %v2377 = vunpack.c.h.b16 %v1895
      %v2378 = vunpack.c.l.b16 %v1896
      %v2379 = vunpack.c.h.b16 %v1896
      %v2380 = vunpack.c.l.b16 %v1897
      %v2381 = vunpack.c.h.b16 %v1897
      %v2382 = vunpack.c.l.b16 %v1898
      %v2383 = vunpack.c.h.b16 %v1898
      %v2384 = vunpack.c.l.b16 %v1899
      %v2385 = vunpack.c.h.b16 %v1899
      %v2386 = vunpack.c.l.b16 %v1900
      %v2387 = vunpack.c.h.b16 %v1900
      %v2388 = vunpack.c.l.b16 %v1901
      %v2389 = vunpack.c.h.b16 %v1901
      %v2390 = vunpack.c.l.b16 %v1902
      %v2391 = vunpack.c.h.b16 %v1902
      %v2392 = vunpack.c.l.b16 %v1903
      %v2393 = vunpack.c.h.b16 %v1903
      %v2394 = vunpack.c.l.b16 %v1904
      %v2395 = vunpack.c.h.b16 %v1904
      %v2396 = vunpack.c.l.b16 %v1905
      %v2397 = vunpack.c.h.b16 %v1905
      %v2398 = vunpack.c.l.b16 %v1906
      %v2399 = vunpack.c.h.b16 %v1906
      %v2400 = vunpack.c.l.b16 %v1907
      %v2401 = vunpack.c.h.b16 %v1907
      %v2402 = vunpack.c.l.b16 %v1908
      %v2403 = vunpack.c.h.b16 %v1908
      %v2404 = vunpack.c.l.b16 %v1909
      %v2405 = vunpack.c.h.b16 %v1909
      %v2406 = vunpack.c.l.b16 %v1910
      %v2407 = vunpack.c.h.b16 %v1910
      %v2408 = vunpack.c.l.b16 %v1911
      %v2409 = vunpack.c.h.b16 %v1911
      %v2410 = vunpack.c.l.b16 %v1912
      %v2411 = vunpack.c.h.b16 %v1912
      %v2412 = vunpack.c.l.b16 %v1913
      %v2413 = vunpack.c.h.b16 %v1913
      %v2414 = vunpack.c.l.b16 %v1914
      %v2415 = vunpack.c.h.b16 %v1914
      %v2416 = vunpack.c.l.b16 %v1915
      %v2417 = vunpack.c.h.b16 %v1915
      %v2418 = vunpack.c.l.b16 %v1916
      %v2419 = vunpack.c.h.b16 %v1916
      %v2420 = vunpack.c.l.b16 %v1917
      %v2421 = vunpack.c.h.b16 %v1917
      %v2422 = vunpack.c.l.b16 %v1918
      %v2423 = vunpack.c.h.b16 %v1918
      %v2424 = vunpack.c.l.b16 %v1919
      %v2425 = vunpack.c.h.b16 %v1919
      %v2426 = vunpack.c.l.b16 %v1920
      %v2427 = vunpack.c.h.b16 %v1920
      %v2428 = vunpack.c.l.b16 %v1921
      %v2429 = vunpack.c.h.b16 %v1921
      %v2430 = vunpack.c.l.b16 %v1922
      %v2431 = vunpack.c.h.b16 %v1922
      %v2432 = vunpack.c.l.b16 %v1923
      %v2433 = vunpack.c.h.b16 %v1923
      %v2434 = vunpack.c.l.b16 %v1924
      %v2435 = vunpack.c.h.b16 %v1924
      %v2436 = vunpack.c.l.b16 %v1925
      %v2437 = vunpack.c.h.b16 %v1925
      %v2438 = vunpack.c.l.b16 %v1926
      %v2439 = vunpack.c.h.b16 %v1926
      %v2440 = vunpack.c.l.b16 %v1927
      %v2441 = vunpack.c.h.b16 %v1927
      %v2442 = vunpack.c.l.b16 %v1928
      %v2443 = vunpack.c.h.b16 %v1928
      %v2444 = vunpack.c.l.b16 %v1929
      %v2445 = vunpack.c.h.b16 %v1929
      %v2446 = vunpack.c.l.b16 %v1930
      %v2447 = vunpack.c.h.b16 %v1930
      %v2448 = vunpack.c.l.b16 %v1931
      %v2449 = vunpack.c.h.b16 %v1931
      %v2450 = vunpack.c.l.b16 %v1932
      %v2451 = vunpack.c.h.b16 %v1932
      %v2452 = vunpack.c.l.b16 %v1933
      %v2453 = vunpack.c.h.b16 %v1933
      %v2454 = vunpack.c.l.b16 %v1934
      %v2455 = vunpack.c.h.b16 %v1934
      %v2456 = vunpack.c.l.b16 %v1935
      %v2457 = vunpack.c.h.b16 %v1935
      %v2458 = vunpack.c.l.b16 %v1936
      %v2459 = vunpack.c.h.b16 %v1936
      %v2460 = vunpack.c.l.b16 %v1937
      %v2461 = vunpack.c.h.b16 %v1937
      %v2462 = vunpack.c.l.b16 %v1938
      %v2463 = vunpack.c.h.b16 %v1938
      %v2464 = vunpack.c.l.b16 %v1939
      %v2465 = vunpack.c.h.b16 %v1939
      %v2466 = vunpack.c.l.b16 %v1940
      %v2467 = vunpack.c.h.b16 %v1940
      %v2468 = vunpack.c.l.b16 %v1941
      %v2469 = vunpack.c.h.b16 %v1941
      %v2470 = vunpack.c.l.b16 %v1942
      %v2471 = vunpack.c.h.b16 %v1942
      %v2472 = vunpack.c.l.b16 %v1943
      %v2473 = vunpack.c.h.b16 %v1943
      %v2474 = vunpack.c.l.b16 %v1944
      %v2475 = vunpack.c.h.b16 %v1944
      %v2476 = vunpack.c.l.b16 %v1945
      %v2477 = vunpack.c.h.b16 %v1945
      %v2478 = vunpack.c.l.b16 %v1946
      %v2479 = vunpack.c.h.b16 %v1946
      %v2480 = vunpack.c.l.b16 %v1947
      %v2481 = vunpack.c.h.b16 %v1947
      %v2482 = vunpack.c.l.b16 %v1948
      %v2483 = vunpack.c.h.b16 %v1948
      %v2484 = vunpack.c.l.b16 %v1949
      %v2485 = vunpack.c.h.b16 %v1949
      %v2486 = vunpack.c.l.b16 %v1950
      %v2487 = vunpack.c.h.b16 %v1950
      %v2488 = vunpack.c.l.b16 %v1951
      %v2489 = vunpack.c.h.b16 %v1951
      %v2490 = vunpack.c.l.b16 %v1952
      %v2491 = vunpack.c.h.b16 %v1952
      %v2492 = vunpack.c.l.b16 %v1953
      %v2493 = vunpack.c.h.b16 %v1953
      %v2494 = vunpack.c.l.b16 %v1954
      %v2495 = vunpack.c.h.b16 %v1954
      %v2496 = vunpack.c.l.b16 %v1955
      %v2497 = vunpack.c.h.b16 %v1955
      %v2498 = vunpack.c.l.b16 %v1956
      %v2499 = vunpack.c.h.b16 %v1956
      %v2500 = vunpack.c.l.b16 %v1957
      %v2501 = vunpack.c.h.b16 %v1957
      %v2502 = vunpack.c.l.b16 %v1958
      %v2503 = vunpack.c.h.b16 %v1958
      %v2504 = vunpack.c.l.b16 %v1959
      %v2505 = vunpack.c.h.b16 %v1959
      %v2506 = vunpack.c.l.b16 %v1960
      %v2507 = vunpack.c.h.b16 %v1960
      %v2508 = vunpack.c.l.b16 %v1961
      %v2509 = vunpack.c.h.b16 %v1961
      %v2510 = vunpack.c.l.b16 %v1962
      %v2511 = vunpack.c.h.b16 %v1962
      %v2512 = vunpack.c.l.b16 %v1963
      %v2513 = vunpack.c.h.b16 %v1963
      %v2514 = vunpack.c.l.b16 %v1964
      %v2515 = vunpack.c.h.b16 %v1964
      %v2516 = vunpack.c.l.b16 %v1965
      %v2517 = vunpack.c.h.b16 %v1965
      %v2518 = vunpack.c.l.b16 %v1966
      %v2519 = vunpack.c.h.b16 %v1966
      %v2520 = vunpack.c.l.b16 %v1967
      %v2521 = vunpack.c.h.b16 %v1967
      %v2522 = vunpack.c.l.b16 %v1968
      %v2523 = vunpack.c.h.b16 %v1968
      %v2524 = vunpack.c.l.b16 %v1969
      %v2525 = vunpack.c.h.b16 %v1969
      %v2526 = vunpack.c.l.b16 %v1970
      %v2527 = vunpack.c.h.b16 %v1970
      %v2528 = vunpack.c.l.b16 %v1971
      %v2529 = vunpack.c.h.b16 %v1971
      %v2530 = vunpack.c.l.b16 %v1972
      %v2531 = vunpack.c.h.b16 %v1972
      %v2532 = vunpack.c.l.b16 %v1973
      %v2533 = vunpack.c.h.b16 %v1973
      %v2534 = vunpack.c.l.b16 %v1974
      %v2535 = vunpack.c.h.b16 %v1974
      %v2536 = vunpack.c.l.b16 %v1975
      %v2537 = vunpack.c.h.b16 %v1975
      %v2538 = vunpack.c.l.b16 %v1976
      %v2539 = vunpack.c.h.b16 %v1976
      %v2540 = vunpack.c.l.b16 %v1977
      %v2541 = vunpack.c.h.b16 %v1977
      %v2542 = vunpack.c.l.b16 %v1978
      %v2543 = vunpack.c.h.b16 %v1978
      %v2544 = vunpack.c.l.b16 %v1979
      %v2545 = vunpack.c.h.b16 %v1979
      %v2546 = vunpack.c.l.b16 %v1980
      %v2547 = vunpack.c.h.b16 %v1980
      %v2548 = vunpack.c.l.b16 %v1981
      %v2549 = vunpack.c.h.b16 %v1981
      %v2550 = vunpack.c.l.b16 %v1982
      %v2551 = vunpack.c.h.b16 %v1982
      %v2552 = vunpack.c.l.b16 %v1983
      %v2553 = vunpack.c.h.b16 %v1983
      %v2554 = vunpack.c.l.b16 %v1984
      %v2555 = vunpack.c.h.b16 %v1984
      %v2556 = vunpack.c.l.b16 %v1985
      %v2557 = vunpack.c.h.b16 %v1985
      %v2558 = vunpack.c.l.b16 %v1986
      %v2559 = vunpack.c.h.b16 %v1986
      %v2560 = vunpack.c.l.b16 %v1987
      %v2561 = vunpack.c.h.b16 %v1987
      %v2562 = vunpack.c.l.b16 %v1988
      %v2563 = vunpack.c.h.b16 %v1988
      %v2564 = vunpack.c.l.b16 %v1989
      %v2565 = vunpack.c.h.b16 %v1989
      %v2566 = vunpack.c.l.b16 %v1990
      %v2567 = vunpack.c.h.b16 %v1990
      %v2568 = vunpack.c.l.b16 %v1991
      %v2569 = vunpack.c.h.b16 %v1991
      %v2570 = vunpack.c.l.b16 %v1992
      %v2571 = vunpack.c.h.b16 %v1992
      %v2572 = vunpack.c.l.b16 %v1993
      %v2573 = vunpack.c.h.b16 %v1993
      %v2574 = vunpack.c.l.b16 %v1994
      %v2575 = vunpack.c.h.b16 %v1994
      %v2576 = vunpack.c.l.b16 %v1995
      %v2577 = vunpack.c.h.b16 %v1995
      %v2578 = vunpack.c.l.b16 %v1996
      %v2579 = vunpack.c.h.b16 %v1996
      %v2580 = vunpack.c.l.b16 %v1997
      %v2581 = vunpack.c.h.b16 %v1997
      %v2582 = vunpack.c.l.b16 %v1998
      %v2583 = vunpack.c.h.b16 %v1998
      %v2584 = vunpack.c.l.b16 %v1999
      %v2585 = vunpack.c.h.b16 %v1999
      %v2586 = vunpack.c.l.b16 %v2000
      %v2587 = vunpack.c.h.b16 %v2000
      %v2588 = vunpack.c.l.b16 %v2001
      %v2589 = vunpack.c.h.b16 %v2001
      %v2590 = vunpack.c.l.b16 %v2002
      %v2591 = vunpack.c.h.b16 %v2002
      %v2592 = vunpack.c.l.b16 %v2003
      %v2593 = vunpack.c.h.b16 %v2003
      %v2594 = vunpack.c.l.b16 %v2004
      %v2595 = vunpack.c.h.b16 %v2004
      %v2596 = vunpack.c.l.b16 %v2005
      %v2597 = vunpack.c.h.b16 %v2005
      %v2598 = vunpack.c.l.b16 %v2006
      %v2599 = vunpack.c.h.b16 %v2006
      %v2600 = vunpack.c.l.b16 %v2007
      %v2601 = vunpack.c.h.b16 %v2007
      %v2602 = vunpack.c.l.b16 %v2008
      %v2603 = vunpack.c.h.b16 %v2008
      %v2604 = vunpack.c.l.b16 %v2009
      %v2605 = vunpack.c.h.b16 %v2009
      %v2606 = vunpack.c.l.b16 %v2010
      %v2607 = vunpack.c.h.b16 %v2010
      %v2608 = vunpack.c.l.b16 %v2011
      %v2609 = vunpack.c.h.b16 %v2011
      %v2610 = vunpack.c.l.b16 %v2012
      %v2611 = vunpack.c.h.b16 %v2012
      %v2612 = vunpack.c.l.b16 %v2013
      %v2613 = vunpack.c.h.b16 %v2013
      %v2614 = vunpack.c.l.b16 %v2014
      %v2615 = vunpack.c.h.b16 %v2014
      %v2616 = vunpack.c.l.b16 %v2015
      %v2617 = vunpack.c.h.b16 %v2015
      %v2618 = vunpack.c.l.b16 %v2016
      %v2619 = vunpack.c.h.b16 %v2016
      %v2620 = vunpack.c.l.b16 %v2017
      %v2621 = vunpack.c.h.b16 %v2017
      %v2622 = vunpack.c.l.b16 %v2018
      %v2623 = vunpack.c.h.b16 %v2018
      %v2624 = vunpack.c.l.b16 %v2019
      %v2625 = vunpack.c.h.b16 %v2019
      %v2626 = vunpack.c.l.b16 %v2020
      %v2627 = vunpack.c.h.b16 %v2020
      %v2628 = vunpack.c.l.b16 %v2021
      %v2629 = vunpack.c.h.b16 %v2021
      %v2630 = vpack.c.b16 %v2252, %v2246
      %v2631 = vpack.c.b16 %v2253, %v2247
      %v2632 = vpack.c.b16 %v2254, %v2248
      %v2633 = vpack.c.b16 %v2255, %v2249
      %v2634 = vpack.c.b16 %v2256, %v2250
      %v2635 = vpack.c.b16 %v2257, %v2251
      %v2636 = vpack.c.b16 %v2264, %v2258
      %v2637 = vpack.c.b16 %v2265, %v2259
      %v2638 = vpack.c.b16 %v2266, %v2260
      %v2639 = vpack.c.b16 %v2267, %v2261
      %v2640 = vpack.c.b16 %v2268, %v2262
      %v2641 = vpack.c.b16 %v2269, %v2263
      %v2642 = vpack.c.b16 %v2276, %v2270
      %v2643 = vpack.c.b16 %v2277, %v2271
      %v2644 = vpack.c.b16 %v2278, %v2272
      %v2645 = vpack.c.b16 %v2279, %v2273
      %v2646 = vpack.c.b16 %v2280, %v2274
      %v2647 = vpack.c.b16 %v2281, %v2275
      %v2648 = vpack.c.b16 %v2288, %v2282
      %v2649 = vpack.c.b16 %v2289, %v2283
      %v2650 = vpack.c.b16 %v2290, %v2284
      %v2651 = vpack.c.b16 %v2291, %v2285
      %v2652 = vpack.c.b16 %v2292, %v2286
      %v2653 = vpack.c.b16 %v2293, %v2287
      %v2654 = vpack.c.b16 %v2300, %v2294
      %v2655 = vpack.c.b16 %v2301, %v2295
      %v2656 = vpack.c.b16 %v2302, %v2296
      %v2657 = vpack.c.b16 %v2303, %v2297
      %v2658 = vpack.c.b16 %v2304, %v2298
      %v2659 = vpack.c.b16 %v2305, %v2299
      %v2660 = vpack.c.b16 %v2312, %v2306
      %v2661 = vpack.c.b16 %v2313, %v2307
      %v2662 = vpack.c.b16 %v2314, %v2308
      %v2663 = vpack.c.b16 %v2315, %v2309
      %v2664 = vpack.c.b16 %v2316, %v2310
      %v2665 = vpack.c.b16 %v2317, %v2311
      %v2666 = vpack.c.b16 %v2324, %v2318
      %v2667 = vpack.c.b16 %v2325, %v2319
      %v2668 = vpack.c.b16 %v2326, %v2320
      %v2669 = vpack.c.b16 %v2327, %v2321
      %v2670 = vpack.c.b16 %v2328, %v2322
      %v2671 = vpack.c.b16 %v2329, %v2323
      %v2672 = vpack.c.b16 %v2336, %v2330
      %v2673 = vpack.c.b16 %v2337, %v2331
      %v2674 = vpack.c.b16 %v2338, %v2332
      %v2675 = vpack.c.b16 %v2339, %v2333
      %v2676 = vpack.c.b16 %v2340, %v2334
      %v2677 = vpack.c.b16 %v2341, %v2335
      %v2678 = vpack.c.b16 %v2348, %v2342
      %v2679 = vpack.c.b16 %v2349, %v2343
      %v2680 = vpack.c.b16 %v2350, %v2344
      %v2681 = vpack.c.b16 %v2351, %v2345
      %v2682 = vpack.c.b16 %v2352, %v2346
      %v2683 = vpack.c.b16 %v2353, %v2347
      %v2684 = vpack.c.b16 %v2360, %v2354
      %v2685 = vpack.c.b16 %v2361, %v2355
      %v2686 = vpack.c.b16 %v2362, %v2356
      %v2687 = vpack.c.b16 %v2363, %v2357
      %v2688 = vpack.c.b16 %v2364, %v2358
      %v2689 = vpack.c.b16 %v2365, %v2359
      %v2690 = vpack.c.b16 %v2372, %v2366
      %v2691 = vpack.c.b16 %v2373, %v2367
      %v2692 = vpack.c.b16 %v2374, %v2368
      %v2693 = vpack.c.b16 %v2375, %v2369
      %v2694 = vpack.c.b16 %v2376, %v2370
      %v2695 = vpack.c.b16 %v2377, %v2371
      %v2696 = vpack.c.b16 %v2384, %v2378
      %v2697 = vpack.c.b16 %v2385, %v2379
      %v2698 = vpack.c.b16 %v2386, %v2380
      %v2699 = vpack.c.b16 %v2387, %v2381
      %v2700 = vpack.c.b16 %v2388, %v2382
      %v2701 = vpack.c.b16 %v2389, %v2383
      %v2702 = vpack.c.b16 %v2396, %v2390
      %v2703 = vpack.c.b16 %v2397, %v2391
      %v2704 = vpack.c.b16 %v2398, %v2392
      %v2705 = vpack.c.b16 %v2399, %v2393
      %v2706 = vpack.c.b16 %v2400, %v2394
      %v2707 = vpack.c.b16 %v2401, %v2395
      %v2708 = vpack.c.b16 %v2408, %v2402
      %v2709 = vpack.c.b16 %v2409, %v2403
      %v2710 = vpack.c.b16 %v2410, %v2404
      %v2711 = vpack.c.b16 %v2411, %v2405
      %v2712 = vpack.c.b16 %v2412, %v2406
      %v2713 = vpack.c.b16 %v2413, %v2407
      %v2714 = vpack.c.b16 %v2420, %v2414
      %v2715 = vpack.c.b16 %v2421, %v2415
      %v2716 = vpack.c.b16 %v2422, %v2416
      %v2717 = vpack.c.b16 %v2423, %v2417
      %v2718 = vpack.c.b16 %v2424, %v2418
      %v2719 = vpack.c.b16 %v2425, %v2419
      %v2720 = vpack.c.b16 %v2432, %v2426
      %v2721 = vpack.c.b16 %v2433, %v2427
      %v2722 = vpack.c.b16 %v2434, %v2428
      %v2723 = vpack.c.b16 %v2435, %v2429
      %v2724 = vpack.c.b16 %v2436, %v2430
      %v2725 = vpack.c.b16 %v2437, %v2431
      %v2726 = vpack.c.b16 %v2444, %v2438
      %v2727 = vpack.c.b16 %v2445, %v2439
      %v2728 = vpack.c.b16 %v2446, %v2440
      %v2729 = vpack.c.b16 %v2447, %v2441
      %v2730 = vpack.c.b16 %v2448, %v2442
      %v2731 = vpack.c.b16 %v2449, %v2443
      %v2732 = vpack.c.b16 %v2456, %v2450
      %v2733 = vpack.c.b16 %v2457, %v2451
      %v2734 = vpack.c.b16 %v2458, %v2452
      %v2735 = vpack.c.b16 %v2459, %v2453
      %v2736 = vpack.c.b16 %v2460, %v2454
      %v2737 = vpack.c.b16 %v2461, %v2455
      %v2738 = vpack.c.b16 %v2468, %v2462
      %v2739 = vpack.c.b16 %v2469, %v2463
      %v2740 = vpack.c.b16 %v2470, %v2464
      %v2741 = vpack.c.b16 %v2471, %v2465
      %v2742 = vpack.c.b16 %v2472, %v2466
      %v2743 = vpack.c.b16 %v2473, %v2467
      %v2744 = vpack.c.b16 %v2480, %v2474
      %v2745 = vpack.c.b16 %v2481, %v2475
      %v2746 = vpack.c.b16 %v2482, %v2476
      %v2747 = vpack.c.b16 %v2483, %v2477
      %v2748 = vpack.c.b16 %v2484, %v2478
      %v2749 = vpack.c.b16 %v2485, %v2479
      %v2750 = vpack.c.b16 %v2492, %v2486
      %v2751 = vpack.c.b16 %v2493, %v2487
      %v2752 = vpack.c.b16 %v2494, %v2488
      %v2753 = vpack.c.b16 %v2495, %v2489
      %v2754 = vpack.c.b16 %v2496, %v2490
      %v2755 = vpack.c.b16 %v2497, %v2491
      %v2756 = vpack.c.b16 %v2504, %v2498
      %v2757 = vpack.c.b16 %v2505, %v2499
      %v2758 = vpack.c.b16 %v2506, %v2500
      %v2759 = vpack.c.b16 %v2507, %v2501
      %v2760 = vpack.c.b16 %v2508, %v2502
      %v2761 = vpack.c.b16 %v2509, %v2503
      %v2762 = vpack.c.b16 %v2516, %v2510
      %v2763 = vpack.c.b16 %v2517, %v2511
      %v2764 = vpack.c.b16 %v2518, %v2512
      %v2765 = vpack.c.b16 %v2519, %v2513
      %v2766 = vpack.c.b16 %v2520, %v2514
      %v2767 = vpack.c.b16 %v2521, %v2515
      %v2768 = vpack.c.b16 %v2528, %v2522
      %v2769 = vpack.c.b16 %v2529, %v2523
      %v2770 = vpack.c.b16 %v2530, %v2524
      %v2771 = vpack.c.b16 %v2531, %v2525
      %v2772 = vpack.c.b16 %v2532, %v2526
      %v2773 = vpack.c.b16 %v2533, %v2527
      %v2774 = vpack.c.b16 %v2540, %v2534
      %v2775 = vpack.c.b16 %v2541, %v2535
      %v2776 = vpack.c.b16 %v2542, %v2536
      %v2777 = vpack.c.b16 %v2543, %v2537
      %v2778 = vpack.c.b16 %v2544, %v2538
      %v2779 = vpack.c.b16 %v2545, %v2539
      %v2780 = vpack.c.b16 %v2552, %v2546
      %v2781 = vpack.c.b16 %v2553, %v2547
      %v2782 = vpack.c.b16 %v2554, %v2548
      %v2783 = vpack.c.b16 %v2555, %v2549
      %v2784 = vpack.c.b16 %v2556, %v2550
      %v2785 = vpack.c.b16 %v2557, %v2551
      %v2786 = vpack.c.b16 %v2564, %v2558
      %v2787 = vpack.c.b16 %v2565, %v2559
      %v2788 = vpack.c.b16 %v2566, %v2560
      %v2789 = vpack.c.b16 %v2567, %v2561
      %v2790 = vpack.c.b16 %v2568, %v2562
      %v2791 = vpack.c.b16 %v2569, %v2563
      %v2792 = vpack.c.b16 %v2576, %v2570
      %v2793 = vpack.c.b16 %v2577, %v2571
      %v2794 = vpack.c.b16 %v2578, %v2572
      %v2795 = vpack.c.b16 %v2579, %v2573
      %v2796 = vpack.c.b16 %v2580, %v2574
      %v2797 = vpack.c.b16 %v2581, %v2575
      %v2798 = vpack.c.b16 %v2588, %v2582
      %v2799 = vpack.c.b16 %v2589, %v2583
      %v2800 = vpack.c.b16 %v2590, %v2584
      %v2801 = vpack.c.b16 %v2591, %v2585
      %v2802 = vpack.c.b16 %v2592, %v2586
      %v2803 = vpack.c.b16 %v2593, %v2587
      %v2804 = vpack.c.b16 %v2600, %v2594
      %v2805 = vpack.c.b16 %v2601, %v2595
      %v2806 = vpack.c.b16 %v2602, %v2596
      %v2807 = vpack.c.b16 %v2603, %v2597
      %v2808 = vpack.c.b16 %v2604, %v2598
      %v2809 = vpack.c.b16 %v2605, %v2599
      %v2810 = vpack.c.b16 %v2612, %v2606
      %v2811 = vpack.c.b16 %v2613, %v2607
      %v2812 = vpack.c.b16 %v2614, %v2608
      %v2813 = vpack.c.b16 %v2615, %v2609
      %v2814 = vpack.c.b16 %v2616, %v2610
      %v2815 = vpack.c.b16 %v2617, %v2611
      %v2816 = vpack.c.b16 %v2624, %v2618
      %v2817 = vpack.c.b16 %v2625, %v2619
      %v2818 = vpack.c.b16 %v2626, %v2620
      %v2819 = vpack.c.b16 %v2627, %v2621
      %v2820 = vpack.c.b16 %v2628, %v2622
      %v2821 = vpack.c.b16 %v2629, %v2623
      %3014 = vmatprep.subr.bf16.mxu0 %v2673
      %3015 = vmatpush1.bf16.msra.mxu0 %v2672
      %3016 = vmatprep.subr.bf16.mxu0 %v2667
      %3017 = vmatpush1.bf16.msra.mxu0 %v2666
      %3018 = vmatprep.subr.bf16.mxu0 %v2661
      %3019 = vmatpush1.bf16.msra.mxu0 %v2660
      %3020 = vmatprep.subr.bf16.mxu0 %v2655
      %3021 = vmatpush1.bf16.msra.mxu0 %v2654
      %3022 = vmatprep.subr.bf16.mxu0 %v2649
      %3023 = vmatpush1.bf16.msra.mxu0 %v2648
      %3024 = vmatprep.subr.bf16.mxu0 %v2643
      %3025 = vmatpush1.bf16.msra.mxu0 %v2642
      %3026 = vmatprep.subr.bf16.mxu0 %v2637
      %3027 = vmatpush1.bf16.msra.mxu0 %v2636
      %3028 = vmatprep.subr.bf16.mxu0 %v2631
      %3029 = vmatpush1.bf16.msra.mxu0 %v2630
      %3030 = vmatprep.subr.bf16.mxu0 %v2721
      %3031 = vmatpush2.bf16.msra.mxu0 %v2720
      %3032 = vmatprep.subr.bf16.mxu0 %v2715
      %3033 = vmatpush2.bf16.msra.mxu0 %v2714
      %3034 = vmatprep.subr.bf16.mxu0 %v2709
      %3035 = vmatpush2.bf16.msra.mxu0 %v2708
      %3036 = vmatprep.subr.bf16.mxu0 %v2703
      %3037 = vmatpush2.bf16.msra.mxu0 %v2702
      %3038 = vmatprep.subr.bf16.mxu0 %v2697
      %3039 = vmatpush2.bf16.msra.mxu0 %v2696
      %3040 = vmatprep.subr.bf16.mxu0 %v2691
      %3041 = vmatpush2.bf16.msra.mxu0 %v2690
      %3042 = vmatprep.subr.bf16.mxu0 %v2685
      %3043 = vmatpush2.bf16.msra.mxu0 %v2684
      %3044 = vmatprep.subr.bf16.mxu0 %v2679
      %3045 = vmatpush2.bf16.msra.mxu0 %v2678
      %3046 = vmatprep.mubr.bf16.mxu0 %v1827
      %3047 = vmatmul.mubr.bf16.gmra.mxu0 %v1826
      %v3048 = vpop.f32.mrf.mxu0
      %v3049 = vadd.f32 %v2027, %v3048
      %v3050 = vpop.f32.mrf.mxu0
      %v3051 = vadd.f32 %v2031, %v3050
      %v3052 = vpop.f32.mrf.mxu0
      %v3053 = vpop.f32.mrf.mxu0
      %3054 = vdwg.mxu0
      %3055 = vmatprep.subr.bf16.mxu0 %v2769
      %3056 = vmatpush1.bf16.msra.mxu0 %v2768
      %3057 = vmatprep.subr.bf16.mxu0 %v2763
      %3058 = vmatpush1.bf16.msra.mxu0 %v2762
      %3059 = vmatprep.subr.bf16.mxu0 %v2757
      %3060 = vmatpush1.bf16.msra.mxu0 %v2756
      %3061 = vmatprep.subr.bf16.mxu0 %v2751
      %3062 = vmatpush1.bf16.msra.mxu0 %v2750
      %3063 = vmatprep.subr.bf16.mxu0 %v2745
      %3064 = vmatpush1.bf16.msra.mxu0 %v2744
      %3065 = vmatprep.subr.bf16.mxu0 %v2739
      %3066 = vmatpush1.bf16.msra.mxu0 %v2738
      %3067 = vmatprep.subr.bf16.mxu0 %v2733
      %3068 = vmatpush1.bf16.msra.mxu0 %v2732
      %3069 = vmatprep.subr.bf16.mxu0 %v2727
      %3070 = vmatpush1.bf16.msra.mxu0 %v2726
      %3071 = vmatprep.subr.bf16.mxu0 %v2817
      %3072 = vmatpush2.bf16.msra.mxu0 %v2816
      %3073 = vmatprep.subr.bf16.mxu0 %v2811
      %3074 = vmatpush2.bf16.msra.mxu0 %v2810
      %3075 = vmatprep.subr.bf16.mxu0 %v2805
      %3076 = vmatpush2.bf16.msra.mxu0 %v2804
      %3077 = vmatprep.subr.bf16.mxu0 %v2799
      %3078 = vmatpush2.bf16.msra.mxu0 %v2798
      %3079 = vmatprep.subr.bf16.mxu0 %v2793
      %3080 = vmatpush2.bf16.msra.mxu0 %v2792
      %3081 = vmatprep.subr.bf16.mxu0 %v2787
      %3082 = vmatpush2.bf16.msra.mxu0 %v2786
      %3083 = vmatprep.subr.bf16.mxu0 %v2781
      %3084 = vmatpush2.bf16.msra.mxu0 %v2780
      %3085 = vmatprep.subr.bf16.mxu0 %v2775
      %3086 = vmatpush2.bf16.msra.mxu0 %v2774
      %3087 = vmatprep.mubr.bf16.mxu0 %v1829
      %3088 = vmatmul.mubr.bf16.gmra.mxu0 %v1828
      %v3089 = vpop.f32.mrf.mxu0
      %v3090 = vadd.f32 %v3049, %v3089
      %v3091 = vpop.f32.mrf.mxu0
      %v3092 = vadd.f32 %v3051, %v3091
      %v3093 = vpop.f32.mrf.mxu0
      %v3094 = vpop.f32.mrf.mxu0
      %3095 = vdwg.mxu0
      %3096 = vmatprep.subr.bf16.mxu0 %v2675
      %3097 = vmatpush1.bf16.msra.mxu0 %v2674
      %3098 = vmatprep.subr.bf16.mxu0 %v2669
      %3099 = vmatpush1.bf16.msra.mxu0 %v2668
      %3100 = vmatprep.subr.bf16.mxu0 %v2663
      %3101 = vmatpush1.bf16.msra.mxu0 %v2662
      %3102 = vmatprep.subr.bf16.mxu0 %v2657
      %3103 = vmatpush1.bf16.msra.mxu0 %v2656
      %3104 = vmatprep.subr.bf16.mxu0 %v2651
      %3105 = vmatpush1.bf16.msra.mxu0 %v2650
      %3106 = vmatprep.subr.bf16.mxu0 %v2645
      %3107 = vmatpush1.bf16.msra.mxu0 %v2644
      %3108 = vmatprep.subr.bf16.mxu0 %v2639
      %3109 = vmatpush1.bf16.msra.mxu0 %v2638
      %3110 = vmatprep.subr.bf16.mxu0 %v2633
      %3111 = vmatpush1.bf16.msra.mxu0 %v2632
      %3112 = vmatprep.subr.bf16.mxu0 %v2723
      %3113 = vmatpush2.bf16.msra.mxu0 %v2722
      %3114 = vmatprep.subr.bf16.mxu0 %v2717
      %3115 = vmatpush2.bf16.msra.mxu0 %v2716
      %3116 = vmatprep.subr.bf16.mxu0 %v2711
      %3117 = vmatpush2.bf16.msra.mxu0 %v2710
      %3118 = vmatprep.subr.bf16.mxu0 %v2705
      %3119 = vmatpush2.bf16.msra.mxu0 %v2704
      %3120 = vmatprep.subr.bf16.mxu0 %v2699
      %3121 = vmatpush2.bf16.msra.mxu0 %v2698
      %3122 = vmatprep.subr.bf16.mxu0 %v2693
      %3123 = vmatpush2.bf16.msra.mxu0 %v2692
      %3124 = vmatprep.subr.bf16.mxu0 %v2687
      %3125 = vmatpush2.bf16.msra.mxu0 %v2686
      %3126 = vmatprep.subr.bf16.mxu0 %v2681
      %3127 = vmatpush2.bf16.msra.mxu0 %v2680
      %3128 = vmatprep.mubr.bf16.mxu0 %v1827
      %3129 = vmatmul.mubr.bf16.gmra.mxu0 %v1826
      %v3130 = vpop.f32.mrf.mxu0
      %v3131 = vadd.f32 %v2035, %v3130
      %v3132 = vpop.f32.mrf.mxu0
      %v3133 = vadd.f32 %v2039, %v3132
      %v3134 = vpop.f32.mrf.mxu0
      %v3135 = vpop.f32.mrf.mxu0
      %3136 = vdwg.mxu0
      %3137 = vmatprep.subr.bf16.mxu0 %v2771
      %3138 = vmatpush1.bf16.msra.mxu0 %v2770
      %3139 = vmatprep.subr.bf16.mxu0 %v2765
      %3140 = vmatpush1.bf16.msra.mxu0 %v2764
      %3141 = vmatprep.subr.bf16.mxu0 %v2759
      %3142 = vmatpush1.bf16.msra.mxu0 %v2758
      %3143 = vmatprep.subr.bf16.mxu0 %v2753
      %3144 = vmatpush1.bf16.msra.mxu0 %v2752
      %3145 = vmatprep.subr.bf16.mxu0 %v2747
      %3146 = vmatpush1.bf16.msra.mxu0 %v2746
      %3147 = vmatprep.subr.bf16.mxu0 %v2741
      %3148 = vmatpush1.bf16.msra.mxu0 %v2740
      %3149 = vmatprep.subr.bf16.mxu0 %v2735
      %3150 = vmatpush1.bf16.msra.mxu0 %v2734
      %3151 = vmatprep.subr.bf16.mxu0 %v2729
      %3152 = vmatpush1.bf16.msra.mxu0 %v2728
      %3153 = vmatprep.subr.bf16.mxu0 %v2819
      %3154 = vmatpush2.bf16.msra.mxu0 %v2818
      %3155 = vmatprep.subr.bf16.mxu0 %v2813
      %3156 = vmatpush2.bf16.msra.mxu0 %v2812
      %3157 = vmatprep.subr.bf16.mxu0 %v2807
      %3158 = vmatpush2.bf16.msra.mxu0 %v2806
      %3159 = vmatprep.subr.bf16.mxu0 %v2801
      %3160 = vmatpush2.bf16.msra.mxu0 %v2800
      %3161 = vmatprep.subr.bf16.mxu0 %v2795
      %3162 = vmatpush2.bf16.msra.mxu0 %v2794
      %3163 = vmatprep.subr.bf16.mxu0 %v2789
      %3164 = vmatpush2.bf16.msra.mxu0 %v2788
      %3165 = vmatprep.subr.bf16.mxu0 %v2783
      %3166 = vmatpush2.bf16.msra.mxu0 %v2782
      %3167 = vmatprep.subr.bf16.mxu0 %v2777
      %3168 = vmatpush2.bf16.msra.mxu0 %v2776
      %3169 = vmatprep.mubr.bf16.mxu0 %v1829
      %3170 = vmatmul.mubr.bf16.gmra.mxu0 %v1828
      %v3171 = vpop.f32.mrf.mxu0
      %v3172 = vadd.f32 %v3131, %v3171
      %v3173 = vpop.f32.mrf.mxu0
      %v3174 = vadd.f32 %v3133, %v3173
      %v3175 = vpop.f32.mrf.mxu0
      %v3176 = vpop.f32.mrf.mxu0
      %3177 = vdwg.mxu0
      %3178 = vmatprep.subr.bf16.mxu0 %v2677
      %3179 = vmatpush1.bf16.msra.mxu0 %v2676
      %3180 = vmatprep.subr.bf16.mxu0 %v2671
      %3181 = vmatpush1.bf16.msra.mxu0 %v2670
      %3182 = vmatprep.subr.bf16.mxu0 %v2665
      %3183 = vmatpush1.bf16.msra.mxu0 %v2664
      %3184 = vmatprep.subr.bf16.mxu0 %v2659
      %3185 = vmatpush1.bf16.msra.mxu0 %v2658
      %3186 = vmatprep.subr.bf16.mxu0 %v2653
      %3187 = vmatpush1.bf16.msra.mxu0 %v2652
      %3188 = vmatprep.subr.bf16.mxu0 %v2647
      %3189 = vmatpush1.bf16.msra.mxu0 %v2646
      %3190 = vmatprep.subr.bf16.mxu0 %v2641
      %3191 = vmatpush1.bf16.msra.mxu0 %v2640
      %3192 = vmatprep.subr.bf16.mxu0 %v2635
      %3193 = vmatpush1.bf16.msra.mxu0 %v2634
      %3194 = vmatprep.subr.bf16.mxu0 %v2725
      %3195 = vmatpush2.bf16.msra.mxu0 %v2724
      %3196 = vmatprep.subr.bf16.mxu0 %v2719
      %3197 = vmatpush2.bf16.msra.mxu0 %v2718
      %3198 = vmatprep.subr.bf16.mxu0 %v2713
      %3199 = vmatpush2.bf16.msra.mxu0 %v2712
      %3200 = vmatprep.subr.bf16.mxu0 %v2707
      %3201 = vmatpush2.bf16.msra.mxu0 %v2706
      %3202 = vmatprep.subr.bf16.mxu0 %v2701
      %3203 = vmatpush2.bf16.msra.mxu0 %v2700
      %3204 = vmatprep.subr.bf16.mxu0 %v2695
      %3205 = vmatpush2.bf16.msra.mxu0 %v2694
      %3206 = vmatprep.subr.bf16.mxu0 %v2689
      %3207 = vmatpush2.bf16.msra.mxu0 %v2688
      %3208 = vmatprep.subr.bf16.mxu0 %v2683
      %3209 = vmatpush2.bf16.msra.mxu0 %v2682
      %3210 = vmatprep.mubr.bf16.mxu0 %v1827
      %3211 = vmatmul.mubr.bf16.gmra.mxu0 %v1826
      %v3212 = vpop.f32.mrf.mxu0
      %v3213 = vadd.f32 %v2043, %v3212
      %v3214 = vpop.f32.mrf.mxu0
      %v3215 = vadd.f32 %v2047, %v3214
      %v3216 = vpop.f32.mrf.mxu0
      %v3217 = vpop.f32.mrf.mxu0
      %3218 = vdwg.mxu0
      %3219 = vmatprep.subr.bf16.mxu0 %v2773
      %3220 = vmatpush1.bf16.msra.mxu0 %v2772
      %3221 = vmatprep.subr.bf16.mxu0 %v2767
      %3222 = vmatpush1.bf16.msra.mxu0 %v2766
      %3223 = vmatprep.subr.bf16.mxu0 %v2761
      %3224 = vmatpush1.bf16.msra.mxu0 %v2760
      %3225 = vmatprep.subr.bf16.mxu0 %v2755
      %3226 = vmatpush1.bf16.msra.mxu0 %v2754
      %3227 = vmatprep.subr.bf16.mxu0 %v2749
      %3228 = vmatpush1.bf16.msra.mxu0 %v2748
      %3229 = vmatprep.subr.bf16.mxu0 %v2743
      %3230 = vmatpush1.bf16.msra.mxu0 %v2742
      %3231 = vmatprep.subr.bf16.mxu0 %v2737
      %3232 = vmatpush1.bf16.msra.mxu0 %v2736
      %3233 = vmatprep.subr.bf16.mxu0 %v2731
      %3234 = vmatpush1.bf16.msra.mxu0 %v2730
      %3235 = vmatprep.subr.bf16.mxu0 %v2821
      %3236 = vmatpush2.bf16.msra.mxu0 %v2820
      %3237 = vmatprep.subr.bf16.mxu0 %v2815
      %3238 = vmatpush2.bf16.msra.mxu0 %v2814
      %3239 = vmatprep.subr.bf16.mxu0 %v2809
      %3240 = vmatpush2.bf16.msra.mxu0 %v2808
      %3241 = vmatprep.subr.bf16.mxu0 %v2803
      %3242 = vmatpush2.bf16.msra.mxu0 %v2802
      %3243 = vmatprep.subr.bf16.mxu0 %v2797
      %3244 = vmatpush2.bf16.msra.mxu0 %v2796
      %3245 = vmatprep.subr.bf16.mxu0 %v2791
      %3246 = vmatpush2.bf16.msra.mxu0 %v2790
      %3247 = vmatprep.subr.bf16.mxu0 %v2785
      %3248 = vmatpush2.bf16.msra.mxu0 %v2784
      %3249 = vmatprep.subr.bf16.mxu0 %v2779
      %3250 = vmatpush2.bf16.msra.mxu0 %v2778
      %3251 = vmatprep.mubr.bf16.mxu0 %v1829
      %3252 = vmatmul.mubr.bf16.gmra.mxu0 %v1828
      %v3253 = vpop.f32.mrf.mxu0
      %v3254 = vadd.f32 %v3213, %v3253
      %v3255 = vpop.f32.mrf.mxu0
      %v3256 = vadd.f32 %v3215, %v3255
      %v3257 = vpop.f32.mrf.mxu0
      %v3258 = vpop.f32.mrf.mxu0
      %3259 = vdwg.mxu0
      %v3260 = vld [vmem:[%s346] sm:$0xff]
      %3262 = vset.pattern.permute.xlu0 0
      %3263 = vperm.xlu0 %3262, %v3260
      %v3264 = vpop.permute.xlu0 %3263
      %v3266 = vmul.f32 %v3264, %v3090
      %v3267 = vmul.f32 %v3264, %v3092
      %v3268 = vmul.f32 %v3264, %v3172
      %v3269 = vmul.f32 %v3264, %v3174
      %v3270 = vmul.f32 %v3264, %v3254
      %v3271 = vmul.f32 %v3264, %v3256
      %v3272 = vpack.c.bf16 %v3266, %v3266
      %v3273 = vpack.c.bf16 %v3267, %v3267
      %v3274 = vpack.c.bf16 %v3268, %v3268
      %v3275 = vpack.c.bf16 %v3269, %v3269
      %v3276 = vpack.c.bf16 %v3270, %v3270
      %v3277 = vpack.c.bf16 %v3271, %v3271
      %v3284 = vunpack.c.l.b16 %v3272
      %v3285 = vunpack.c.l.b16 %v3273
      %v3286 = vunpack.c.l.b16 %v3274
      %v3287 = vunpack.c.l.b16 %v3275
      %v3288 = vunpack.c.l.b16 %v3276
      %v3289 = vunpack.c.l.b16 %v3277
      %v3290 = vpack.c.b16 %v3285, %v3284
      %v3291 = vpack.c.b16 %v3287, %v3286
      %v3292 = vpack.c.b16 %v3289, %v3288
      %3296 = vst [vmem:[%s377] sm:$0xff] %v3290
      %3297 = vst [vmem:[%s377 + $0x8] sm:$0xff] %v3291
      %3298 = vst [vmem:[%s377 + $0x10] sm:$0xff] %v3292
      %p3299 = scmp.lt.s32.totalorder %s24, 5
      %s3300 = scalar_select %p3299, %s24, 5
      %s3301 = smul.addr %s3300, 6
      %s3302 = smul.addr %s3301, 4
      %s3303 = scalar_lea.vmem %s7, %s3302
      // Predicated region
      $region45: #{switch_transformer_forward.8} parent=43 // pred_check
        %p3304 = pneg %p206
      $region46: #{switch_transformer_forward.8} parent=43 // pred_check_branch
        %3306 = sbr.rel (%p3304) target = $region48
      $region47: #{switch_transformer_forward.8} parent=43 // pred_region
        _
      $region48: #{switch_transformer_forward.8} parent=43 // pred_fallthru
        _
    $region44: #{switch_transformer_forward.8} parent=5 // pred_fallthru
      _
    %p3307 = scmp.le.s32.totalorder 2, %s19
    // Predicated region
    $region49: #{switch_transformer_forward.8} parent=5 // pred_check
      %p3308 = pneg %p3307
    $region50: #{switch_transformer_forward.8} parent=5 // pred_check_branch
      %3310 = sbr.rel (%p3308) target = $region52
    $region51: #{switch_transformer_forward.8} parent=5 // pred_region
      %s3311 = ssub.s32 %s19, 2
      // Predicated region
      $region53: #{switch_transformer_forward.8} parent=51 // pred_check
        %p3312 = pneg %p212
      $region54: #{switch_transformer_forward.8} parent=51 // pred_check_branch
        %3314 = sbr.rel (%p3312) target = $region56
      $region55: #{switch_transformer_forward.8} parent=51 // pred_region
        %p3315 = scmp.lt.s32.totalorder %s25, 5
        %s3316 = scalar_select %p3315, %s25, 5
        %s3317 = smul.addr %s3316, 6
        %s3318 = smul.addr %s3317, 4
        %s3319 = scalar_lea.vmem %s7, %s3318
      $region56: #{switch_transformer_forward.8} parent=51 // pred_fallthru
        _
    $region52: #{switch_transformer_forward.8} parent=5 // pred_fallthru
      _
  $region6: #{switch_transformer_forward.8} parent=0 // loop_footer
    %s23 = sadd.s32 1, %s19
  $region7: #{switch_transformer_forward.8} parent=0 // loop_footer_branch
    %18 = sbr.rel target = $region3
  $region8: #{switch_transformer_forward.8} parent=0 // loop_exit
    _

</llo_original>
